<compile_context>
chip_gen: v6e
topology: v6e:2x2x1
jax: 0.10.0
libtpu: 0.0.40
codegen_flags: <defaults>
</compile_context>

<pallas_src>
import functools

import numpy as np
import jax
import jax.numpy as jnp
from jax import lax
from jax.experimental import pallas as pl
from jax.experimental.pallas import tpu as pltpu


# ----------------------------------------------------------------------------
# In-kernel helpers (operate on per-sample VMEM values / refs)
# ----------------------------------------------------------------------------
def _conv3x3_bn_relu(h, pad_ref, w_ref, b_ref):
    """3x3 'same' conv (bias-free) with BN(eval) folded into w/b, then ReLU.

    Implemented as ONE deep-K im2col matmul on the MXU.

    h:       (H, W, Cin)      f32 value
    pad_ref: (H+2, W+2, Cin)  f32 VMEM halo scratch
    w_ref:   (9*Cin, Cout)    bf16; rows ordered (dx, dy, cin) - see build_params
    b_ref:   (1, Cout)        f32 (folded BN shift)
    """
    H, W, Cin = h.shape
    Cout = w_ref.shape[1]

    # Zero ONLY the 1-pixel border slabs; the interior is overwritten next.
    pad_ref[0:1, :, :] = jnp.zeros((1, W + 2, Cin), jnp.float32)
    pad_ref[H + 1:H + 2, :, :] = jnp.zeros((1, W + 2, Cin), jnp.float32)
    pad_ref[:, 0:1, :] = jnp.zeros((H + 2, 1, Cin), jnp.float32)
    pad_ref[:, W + 1:W + 2, :] = jnp.zeros((H + 2, 1, Cin), jnp.float32)
    pad_ref[1:H + 1, 1:W + 1, :] = h

    # im2col: 9 shifted windows concatenated along channels -> one matrix,
    # one bf16 cast, one matmul (K = 9*Cin).
    taps = [pad_ref[dy:dy + H, dx:dx + W, :]
            for dx in range(3) for dy in range(3)]
    im2col = jnp.concatenate(taps, axis=-1).reshape(H * W, 9 * Cin)
    y = jnp.dot(im2col.astype(jnp.bfloat16), w_ref[...],
                preferred_element_type=jnp.float32) + b_ref[...]
    return jnp.maximum(y, 0.0).reshape(H, W, Cout)


def _maxpool2x2(h):
    """2x2 stride-2 max-pool on a (H, W, C) VMEM value."""
    H, W, C = h.shape
    h = h.reshape(H // 2, 2, W, C)               # split H on an outer dim (free)
    h = jnp.maximum(h[:, 0], h[:, 1])            # pool along H
    h = h.reshape(H // 2, W // 2, 2, C)
    return jnp.maximum(h[:, :, 0], h[:, :, 1])   # pool along W


# ----------------------------------------------------------------------------
# The fused SpatialTransformer kernel (one grid step == one batch element)
# ----------------------------------------------------------------------------
def _st_fused_kernel(x_ref, xs_ref,
                     cw0, cb0, cw1, cb1, cw2, cb2, cw3, cb3,
                     fc1w, fc1b, fc2w, fc2b, tps_a,
                     o_ref,
                     pad0, pad1, pad2, pad3,
                     *, nf):
    _, Hin, Win, C = x_ref.shape      # block = (1, Hin, Win, C)
    N = o_ref.shape[2]                # block = (1, C, N), N = Hr*Wr

    x = x_ref[0]                      # (Hin, Win, C) f32

    # ---------------- LocalizationNetwork.features ----------------
    h = _conv3x3_bn_relu(x, pad0, cw0, cb0)
    h = _maxpool2x2(h)
    h = _conv3x3_bn_relu(h, pad1, cw1, cb1)
    h = _maxpool2x2(h)
    h = _conv3x3_bn_relu(h, pad2, cw2, cb2)
    h = _maxpool2x2(h)
    h = _conv3x3_bn_relu(h, pad3, cw3, cb3)           # (Hin/8, Win/8, 512)

    # ---------------- AdaptiveAvgPool2d(1) + fc1(ReLU) + fc2 ----------------
    Hf, Wf, Cf = h.shape
    feat = jnp.mean(h.reshape(Hf * Wf, Cf), axis=0, keepdims=True)   # (1, 512)
    h1 = jnp.dot(feat.astype(jnp.bfloat16), fc1w[...],
                 preferred_element_type=jnp.float32) + fc1b[...]
    h1 = jnp.maximum(h1, 0.0)                                        # (1, 256)
    # fc2 columns are pre-permuted to [all x | all y].
    cp = jnp.dot(h1, fc2w[...], preferred_element_type=jnp.float32) + fc2b[...]

    # ---------------- GridGenerator (constants folded into tps_a) ----------------
    gx = cp[:, :nf]                                                  # (1, nf)
    gy = cp[:, nf:]                                                  # (1, nf)
    px = jnp.dot(gx, tps_a[...], preferred_element_type=jnp.float32)  # (1, N)
    py = jnp.dot(gy, tps_a[...], preferred_element_type=jnp.float32)  # (1, N)

    # ---------------- grid_sample (bilinear, border, align_corners=True) ----------
    ix = jnp.clip((px + 1.0) * 0.5 * (Win - 1), 0.0, float(Win - 1))
    iy = jnp.clip((py + 1.0) * 0.5 * (Hin - 1), 0.0, float(Hin - 1))
    ix0f = jnp.floor(ix)
    iy0f = jnp.floor(iy)
    wx1 = ix - ix0f
    wx0 = 1.0 - wx1
    wy1 = iy - iy0f
    wy0 = 1.0 - wy1
    ix0 = ix0f.astype(jnp.int32)
    iy0 = iy0f.astype(jnp.int32)
    ix1 = jnp.minimum(ix0 + 1, Win - 1)
    iy1 = jnp.minimum(iy0 + 1, Hin - 1)

    # Separable bilinear: row one-hot (Hin, N) and column weights (Win, 1, N),
    # both with the N = Hr*Wr output points in the lane dimension.
    yi = lax.broadcasted_iota(jnp.int32, (Hin, N), 0)
    sy = (jnp.where(yi == iy0, wy0, 0.0) +
          jnp.where(yi == iy1, wy1, 0.0))                            # (Hin, N)
    xi = lax.broadcasted_iota(jnp.int32, (Win, 1, N), 0)
    sx = (jnp.where(xi == ix0[None], wx0[None], 0.0) +
          jnp.where(xi == ix1[None], wx1[None], 0.0))                # (Win, 1, N)

    # xs_ref holds x pre-arranged as (Win*C, Hin) so the H-contraction is one
    # lane-dense MXU matmul with no in-kernel transpose.
    img_t = xs_ref[0]                                                # (Win*C, Hin)
    t = jnp.dot(img_t, sy, preferred_element_type=jnp.float32)       # (Win*C, N)
    t = t.reshape(Win, C, N)
    out = jnp.sum(t * sx, axis=0)                                    # (C, N)
    o_ref[...] = out.reshape(1, C, N)                                # lane-dense store


# ----------------------------------------------------------------------------
# Host-side constant-buffer construction (GridGenerator.__init__, folded)
# ----------------------------------------------------------------------------
def build_grid_generator_tps_a(nf, imrec_size, eps=1e-6):
    """tps_A = ((p_hat @ inv_delta_c)[:, :nf]).T  -> shape (nf, ir_h*ir_w), f32."""
    hnf = nf // 2
    ir_h, ir_w = imrec_size
    cp_x = np.linspace(-1.0, 1.0, hnf)
    c = np.concatenate([np.stack([cp_x, -np.ones(hnf)], axis=1),
                        np.stack([cp_x, np.ones(hnf)], axis=1)], axis=0)      # (nf, 2)
    gxs = (np.arange(-ir_w, ir_w, 2) + 1.0) / ir_w
    gys = (np.arange(-ir_h, ir_h, 2) + 1.0) / ir_h
    # torch.meshgrid's legacy default is 'ij' indexing -> shape (ir_w, ir_h),
    # then .view(-1, 2) gives an x-major flatten.  Reproduced faithfully here.
    px, py = np.meshgrid(gxs, gys, indexing='ij')
    p = np.stack([px, py], axis=2).reshape(-1, 2)                             # (N, 2)

    d = np.linalg.norm(c[:, None, :] - c[None, :, :], axis=2)
    np.fill_diagonal(d, 1.0)
    c_hat = (d ** 2) * np.log(d)
    delta_c = np.concatenate([
        np.concatenate([np.ones((nf, 1)), c, c_hat], axis=1),
        np.concatenate([np.zeros((2, 3)), c.T], axis=1),
        np.concatenate([np.zeros((1, 3)), np.ones((1, nf))], axis=1)], axis=0)
    inv_delta_c = np.linalg.inv(delta_c)            # torch.inverse (host-side)

    diff = p[:, None, :] - c[None, :, :]
    rbf_norm = np.linalg.norm(diff, axis=2)
    rbf = (rbf_norm ** 2) * np.log(rbf_norm + eps)
    p_hat = np.concatenate([np.ones((p.shape[0], 1)), p, rbf], axis=1)        # (N, nf+3)

    # Last 3 rows of [c_prime; 0] are zero, so only the first nf columns matter.
    tps_a = (p_hat @ inv_delta_c)[:, :nf].T         # (nf, N)
    return tps_a.astype(np.float32)


# ----------------------------------------------------------------------------
# Parameter construction (deterministic, matches module __init__ shapes)
# ----------------------------------------------------------------------------
def build_params(nf, img_channel, imrec_size):
    key = jax.random.PRNGKey(0)
    ks = jax.random.split(key, 8)
    chans = [img_channel, 64, 128, 256, 512]
    bn_eps = 1e-5
    params = {}
    for i in range(4):
        cin, cout = chans[i], chans[i + 1]
        w = (jax.random.normal(ks[i], (3, 3, cin, cout), jnp.float32)
             * (1.0 / np.sqrt(9.0 * cin)))                  # HWIO (ky, kx, cin, cout)
        # TODO(synk): BatchNorm2d folded in eval mode (running_mean=0, running_var=1);
        #             PyTorch training-mode batch statistics are not reproduced.
        gamma = jnp.ones((cout,), jnp.float32)
        beta = jnp.zeros((cout,), jnp.float32)
        running_mean = jnp.zeros((cout,), jnp.float32)
        running_var = jnp.ones((cout,), jnp.float32)
        scale = gamma / jnp.sqrt(running_var + bn_eps)
        w_folded = w * scale
        # Reorder to (kx, ky, cin, cout) and flatten to (9*cin, cout) so rows
        # match the kernel's dx-major / dy / cin im2col tap ordering.
        w_im2col = jnp.transpose(w_folded, (1, 0, 2, 3)).reshape(9 * cin, cout)
        params[f'conv{i}_w'] = w_im2col.astype(jnp.bfloat16)
        params[f'conv{i}_b'] = (beta - scale * running_mean).reshape(1, cout)

    params['fc1_w'] = (jax.random.normal(ks[4], (512, 256), jnp.float32)
                       * 0.02).astype(jnp.bfloat16)
    params['fc1_b'] = jnp.zeros((1, 256), jnp.float32)

    # fc2: weight = 0, bias = RARE fiducial init (module layout is interleaved
    # (x_i, y_i)); columns are permuted to [x_0..x_{nf-1}, y_0..y_{nf-1}].
    hnf = nf // 2
    cp_x = np.linspace(-1.0, 1.0, hnf)
    cp_y_top = np.linspace(0.0, -1.0, hnf)
    cp_y_bottom = np.linspace(1.0, 0.0, hnf)
    b2_interleaved = np.concatenate([np.stack([cp_x, cp_y_top], 1),
                                     np.stack([cp_x, cp_y_bottom], 1)], 0).reshape(-1)
    w2_interleaved = np.zeros((256, nf * 2), np.float32)
    perm = np.concatenate([np.arange(0, 2 * nf, 2), np.arange(1, 2 * nf, 2)])
    params['fc2_w'] = jnp.asarray(w2_interleaved[:, perm], jnp.float32)
    params['fc2_b'] = jnp.asarray(b2_interleaved[perm].reshape(1, -1), jnp.float32)

    params['tps_a'] = jnp.asarray(build_grid_generator_tps_a(nf, imrec_size))
    return params


# ----------------------------------------------------------------------------
# Full forward (matches SpatialTransformer.forward); single pallas_call
# ----------------------------------------------------------------------------
def spatial_transformer_forward(x_nchw, params, nf, imrec_size):
    ir_h, ir_w = imrec_size
    N = ir_h * ir_w
    B, C, Hin, Win = x_nchw.shape

    x_nhwc = jnp.transpose(x_nchw, (0, 2, 3, 1)).astype(jnp.float32)  # (B,Hin,Win,C)
    # Sampler view: x^T per sample with (x, c) flattened -> (B, Win*C, Hin);
    # lets the in-kernel grid_sample be one lane-dense matmul with no transpose.
    x_samp = jnp.transpose(x_nhwc.reshape(B, Hin, Win * C), (0, 2, 1))

    weight_keys = ['conv0_w', 'conv0_b', 'conv1_w', 'conv1_b',
                   'conv2_w', 'conv2_b', 'conv3_w', 'conv3_b',
                   'fc1_w', 'fc1_b', 'fc2_w', 'fc2_b', 'tps_a']
    weights = [params[k] for k in weight_keys]

    def resident_spec(arr):                     # full array, same block every step
        return pl.BlockSpec(arr.shape, lambda b: (0, 0))

    in_specs = ([pl.BlockSpec((1, Hin, Win, C), lambda b: (b, 0, 0, 0)),
                 pl.BlockSpec((1, Win * C, Hin), lambda b: (b, 0, 0))]
                + [resident_spec(w) for w in weights])

    out = pl.pallas_call(
        functools.partial(_st_fused_kernel, nf=nf),
        out_shape=jax.ShapeDtypeStruct((B, C, N), jnp.float32),
        grid=(B,),
        in_specs=in_specs,
        out_specs=pl.BlockSpec((1, C, N), lambda b: (b, 0, 0)),
        scratch_shapes=[                                  # per-layer halo buffers
            pltpu.VMEM((Hin + 2, Win + 2, C), jnp.float32),
            pltpu.VMEM((Hin // 2 + 2, Win // 2 + 2, 64), jnp.float32),
            pltpu.VMEM((Hin // 4 + 2, Win // 4 + 2, 128), jnp.float32),
            pltpu.VMEM((Hin // 8 + 2, Win // 8 + 2, 256), jnp.float32),
        ],
        compiler_params=pltpu.CompilerParams(
            dimension_semantics=("parallel",),
            vmem_limit_bytes=32 << 20),
    )(x_nhwc, x_samp, *weights)

    # Output is already NCHW-ordered with the rectified pixels in the lane dim.
    return out.reshape(B, C, ir_h, ir_w)


if __name__ == "__main__":
    nf = 8
    img_channel = 4
    img_size = (16, 16)
    imrec_size = (8, 16)
    batch = 2

    params = build_params(nf, img_channel, imrec_size)
    x = jax.random.normal(jax.random.PRNGKey(0),
                          (batch, img_channel, img_size[0], img_size[1]),
                          jnp.float32)

    fwd = jax.jit(functools.partial(spatial_transformer_forward,
                                    nf=nf, imrec_size=imrec_size))
    out = fwd(x, params)
    jax.block_until_ready(out)
    assert out.shape == (batch, img_channel, imrec_size[0], imrec_size[1])
    assert bool(jnp.all(jnp.isfinite(out)))
    print("KERNEL_OK")
</pallas_src>

<mosaic_0001>
module attributes {stable_mosaic.version = 11 : i64} {
  func.func @_st_fused_kernel(%arg0: i32, %arg1: memref<1x16x16x4xf32, #tpu.memory_space<vmem>>, %arg2: memref<1x64x16xf32, #tpu.memory_space<vmem>>, %arg3: memref<36x64xbf16, #tpu.memory_space<vmem>>, %arg4: memref<1x64xf32, #tpu.memory_space<vmem>>, %arg5: memref<576x128xbf16, #tpu.memory_space<vmem>>, %arg6: memref<1x128xf32, #tpu.memory_space<vmem>>, %arg7: memref<1152x256xbf16, #tpu.memory_space<vmem>>, %arg8: memref<1x256xf32, #tpu.memory_space<vmem>>, %arg9: memref<2304x512xbf16, #tpu.memory_space<vmem>>, %arg10: memref<1x512xf32, #tpu.memory_space<vmem>>, %arg11: memref<512x256xbf16, #tpu.memory_space<vmem>>, %arg12: memref<1x256xf32, #tpu.memory_space<vmem>>, %arg13: memref<256x16xf32, #tpu.memory_space<vmem>>, %arg14: memref<1x16xf32, #tpu.memory_space<vmem>>, %arg15: memref<8x128xf32, #tpu.memory_space<vmem>>, %arg16: memref<1x4x128xf32, #tpu.memory_space<vmem>>, %arg17: memref<18x18x4xf32, #tpu.memory_space<vmem>>, %arg18: memref<10x10x64xf32, #tpu.memory_space<vmem>>, %arg19: memref<6x6x128xf32, #tpu.memory_space<vmem>>, %arg20: memref<4x4x256xf32, #tpu.memory_space<vmem>>) attributes {dimension_semantics = [#tpu.dimension_semantics<parallel>], iteration_bounds = array<i64: 2>, scalar_prefetch = 0 : i64, scratch_operands = 4 : i64, tpu.core_type = #tpu.core_type<tc>, window_params = [{transform_indices = @transform_0, window_bounds = array<i64: 1, 16, 16, 4>}, {transform_indices = @transform_1, window_bounds = array<i64: 1, 64, 16>}, {pipeline_mode = #tpu.pipeline_mode<synchronous>, transform_indices = @transform_2, window_bounds = array<i64: 36, 64>}, {pipeline_mode = #tpu.pipeline_mode<synchronous>, transform_indices = @transform_3, window_bounds = array<i64: 1, 64>}, {pipeline_mode = #tpu.pipeline_mode<synchronous>, transform_indices = @transform_4, window_bounds = array<i64: 576, 128>}, {pipeline_mode = #tpu.pipeline_mode<synchronous>, transform_indices = @transform_5, window_bounds = array<i64: 1, 128>}, {pipeline_mode = #tpu.pipeline_mode<synchronous>, transform_indices = @transform_6, window_bounds = array<i64: 1152, 256>}, {pipeline_mode = #tpu.pipeline_mode<synchronous>, transform_indices = @transform_7, window_bounds = array<i64: 1, 256>}, {pipeline_mode = #tpu.pipeline_mode<synchronous>, transform_indices = @transform_8, window_bounds = array<i64: 2304, 512>}, {pipeline_mode = #tpu.pipeline_mode<synchronous>, transform_indices = @transform_9, window_bounds = array<i64: 1, 512>}, {pipeline_mode = #tpu.pipeline_mode<synchronous>, transform_indices = @transform_10, window_bounds = array<i64: 512, 256>}, {pipeline_mode = #tpu.pipeline_mode<synchronous>, transform_indices = @transform_11, window_bounds = array<i64: 1, 256>}, {pipeline_mode = #tpu.pipeline_mode<synchronous>, transform_indices = @transform_12, window_bounds = array<i64: 256, 16>}, {pipeline_mode = #tpu.pipeline_mode<synchronous>, transform_indices = @transform_13, window_bounds = array<i64: 1, 16>}, {pipeline_mode = #tpu.pipeline_mode<synchronous>, transform_indices = @transform_14, window_bounds = array<i64: 8, 128>}, {transform_indices = @transform_15, window_bounds = array<i64: 1, 4, 128>}]} {
    %c0 = arith.constant 0 : index
    %c0_0 = arith.constant 0 : index
    %c0_1 = arith.constant 0 : index
    %c0_2 = arith.constant 0 : index
    %0 = vector.load %arg1[%c0, %c0_0, %c0_1, %c0_2] : memref<1x16x16x4xf32, #tpu.memory_space<vmem>>, vector<1x16x16x4xf32>
    %1 = vector.shape_cast %0 : vector<1x16x16x4xf32> to vector<16x16x4xf32>
    %cst = arith.constant 0.000000e+00 : f32
    %2 = vector.broadcast %cst : f32 to vector<1x18x4xf32>
    %c0_3 = arith.constant 0 : index
    %c0_4 = arith.constant 0 : index
    %c0_5 = arith.constant 0 : index
    %3 = vector.load %arg17[%c0_3, %c0_4, %c0_5] : memref<18x18x4xf32, #tpu.memory_space<vmem>>, vector<1x18x4xf32>
    tpu.vector_store %arg17[%c0_3, %c0_4, %c0_5], %2 {strides = array<i32>} : memref<18x18x4xf32, #tpu.memory_space<vmem>>, vector<1x18x4xf32>,
    %cst_6 = arith.constant 0.000000e+00 : f32
    %4 = vector.broadcast %cst_6 : f32 to vector<1x18x4xf32>
    %c17 = arith.constant 17 : index
    %c0_7 = arith.constant 0 : index
    %c0_8 = arith.constant 0 : index
    %5 = vector.load %arg17[%c17, %c0_7, %c0_8] : memref<18x18x4xf32, #tpu.memory_space<vmem>>, vector<1x18x4xf32>
    tpu.vector_store %arg17[%c17, %c0_7, %c0_8], %4 {strides = array<i32>} : memref<18x18x4xf32, #tpu.memory_space<vmem>>, vector<1x18x4xf32>,
    %cst_9 = arith.constant 0.000000e+00 : f32
    %6 = vector.broadcast %cst_9 : f32 to vector<18x1x4xf32>
    %c0_10 = arith.constant 0 : index
    %c0_11 = arith.constant 0 : index
    %c0_12 = arith.constant 0 : index
    %7 = vector.load %arg17[%c0_10, %c0_11, %c0_12] : memref<18x18x4xf32, #tpu.memory_space<vmem>>, vector<18x1x4xf32>
    tpu.vector_store %arg17[%c0_10, %c0_11, %c0_12], %6 {strides = array<i32>} : memref<18x18x4xf32, #tpu.memory_space<vmem>>, vector<18x1x4xf32>,
    %cst_13 = arith.constant 0.000000e+00 : f32
    %8 = vector.broadcast %cst_13 : f32 to vector<18x1x4xf32>
    %c0_14 = arith.constant 0 : index
    %c17_15 = arith.constant 17 : index
    %c0_16 = arith.constant 0 : index
    %9 = vector.load %arg17[%c0_14, %c17_15, %c0_16] : memref<18x18x4xf32, #tpu.memory_space<vmem>>, vector<18x1x4xf32>
    tpu.vector_store %arg17[%c0_14, %c17_15, %c0_16], %8 {strides = array<i32>} : memref<18x18x4xf32, #tpu.memory_space<vmem>>, vector<18x1x4xf32>,
    %c1 = arith.constant 1 : index
    %c1_17 = arith.constant 1 : index
    %c0_18 = arith.constant 0 : index
    %10 = vector.load %arg17[%c1, %c1_17, %c0_18] : memref<18x18x4xf32, #tpu.memory_space<vmem>>, vector<16x16x4xf32>
    tpu.vector_store %arg17[%c1, %c1_17, %c0_18], %1 {strides = array<i32>} : memref<18x18x4xf32, #tpu.memory_space<vmem>>, vector<16x16x4xf32>,
    %c0_19 = arith.constant 0 : index
    %c0_20 = arith.constant 0 : index
    %c0_21 = arith.constant 0 : index
    %11 = vector.load %arg17[%c0_19, %c0_20, %c0_21] : memref<18x18x4xf32, #tpu.memory_space<vmem>>, vector<16x16x4xf32>
    %c1_22 = arith.constant 1 : index
    %c0_23 = arith.constant 0 : index
    %c0_24 = arith.constant 0 : index
    %12 = vector.load %arg17[%c1_22, %c0_23, %c0_24] : memref<18x18x4xf32, #tpu.memory_space<vmem>>, vector<16x16x4xf32>
    %c2 = arith.constant 2 : index
    %c0_25 = arith.constant 0 : index
    %c0_26 = arith.constant 0 : index
    %13 = vector.load %arg17[%c2, %c0_25, %c0_26] : memref<18x18x4xf32, #tpu.memory_space<vmem>>, vector<16x16x4xf32>
    %c0_27 = arith.constant 0 : index
    %c1_28 = arith.constant 1 : index
    %c0_29 = arith.constant 0 : index
    %14 = vector.load %arg17[%c0_27, %c1_28, %c0_29] : memref<18x18x4xf32, #tpu.memory_space<vmem>>, vector<16x16x4xf32>
    %c1_30 = arith.constant 1 : index
    %c1_31 = arith.constant 1 : index
    %c0_32 = arith.constant 0 : index
    %15 = vector.load %arg17[%c1_30, %c1_31, %c0_32] : memref<18x18x4xf32, #tpu.memory_space<vmem>>, vector<16x16x4xf32>
    %c2_33 = arith.constant 2 : index
    %c1_34 = arith.constant 1 : index
    %c0_35 = arith.constant 0 : index
    %16 = vector.load %arg17[%c2_33, %c1_34, %c0_35] : memref<18x18x4xf32, #tpu.memory_space<vmem>>, vector<16x16x4xf32>
    %c0_36 = arith.constant 0 : index
    %c2_37 = arith.constant 2 : index
    %c0_38 = arith.constant 0 : index
    %17 = vector.load %arg17[%c0_36, %c2_37, %c0_38] : memref<18x18x4xf32, #tpu.memory_space<vmem>>, vector<16x16x4xf32>
    %c1_39 = arith.constant 1 : index
    %c2_40 = arith.constant 2 : index
    %c0_41 = arith.constant 0 : index
    %18 = vector.load %arg17[%c1_39, %c2_40, %c0_41] : memref<18x18x4xf32, #tpu.memory_space<vmem>>, vector<16x16x4xf32>
    %c2_42 = arith.constant 2 : index
    %c2_43 = arith.constant 2 : index
    %c0_44 = arith.constant 0 : index
    %19 = vector.load %arg17[%c2_42, %c2_43, %c0_44] : memref<18x18x4xf32, #tpu.memory_space<vmem>>, vector<16x16x4xf32>
    %20 = tpu.concatenate %11, %12, %13, %14, %15, %16, %17, %18, %19 in 2 : vector<16x16x4xf32>, vector<16x16x4xf32>, vector<16x16x4xf32>, vector<16x16x4xf32>, vector<16x16x4xf32>, vector<16x16x4xf32>, vector<16x16x4xf32>, vector<16x16x4xf32>, vector<16x16x4xf32> -> vector<16x16x36xf32>
    %21 = vector.shape_cast %20 : vector<16x16x36xf32> to vector<256x36xf32>
    %22 = arith.truncf %21 : vector<256x36xf32> to vector<256x36xbf16>
    %c0_45 = arith.constant 0 : index
    %c0_46 = arith.constant 0 : index
    %23 = vector.load %arg3[%c0_45, %c0_46] : memref<36x64xbf16, #tpu.memory_space<vmem>>, vector<36x64xbf16>
    %cst_47 = arith.constant dense<0.000000e+00> : vector<256x64xf32>
    %24 = tpu.matmul %22, %23, %cst_47 {dimension_numbers = #tpu.dot_dimension_numbers<[1], [0], [0], [1], [0, 0, 1, 1], [], []>} : vector<256x36xbf16>, vector<36x64xbf16>, vector<256x64xf32> -> vector<256x64xf32>
    %c0_48 = arith.constant 0 : index
    %c0_49 = arith.constant 0 : index
    %25 = vector.load %arg4[%c0_48, %c0_49] : memref<1x64xf32, #tpu.memory_space<vmem>>, vector<1x64xf32>
    %26 = vector.broadcast %25 : vector<1x64xf32> to vector<256x64xf32>
    %27 = arith.addf %24, %26 : vector<256x64xf32>
    %cst_50 = arith.constant 0.000000e+00 : f32
    %28 = vector.broadcast %cst_50 : f32 to vector<256x64xf32>
    %29 = arith.maximumf %27, %28 : vector<256x64xf32>
    %30 = vector.shape_cast %29 : vector<256x64xf32> to vector<16x16x64xf32>
    %31 = vector.shape_cast %30 : vector<16x16x64xf32> to vector<8x2x16x64xf32>
    %32 = vector.extract_strided_slice %31 {offsets = [0, 0, 0, 0], sizes = [8, 1, 16, 64], strides = [1, 1, 1, 1]} : vector<8x2x16x64xf32> to vector<8x1x16x64xf32>
    %33 = vector.shape_cast %32 : vector<8x1x16x64xf32> to vector<8x16x64xf32>
    %34 = vector.extract_strided_slice %31 {offsets = [0, 1, 0, 0], sizes = [8, 1, 16, 64], strides = [1, 1, 1, 1]} : vector<8x2x16x64xf32> to vector<8x1x16x64xf32>
    %35 = vector.shape_cast %34 : vector<8x1x16x64xf32> to vector<8x16x64xf32>
    %36 = arith.maximumf %33, %35 : vector<8x16x64xf32>
    %37 = vector.shape_cast %36 : vector<8x16x64xf32> to vector<8x8x2x64xf32>
    %38 = vector.extract_strided_slice %37 {offsets = [0, 0, 0, 0], sizes = [8, 8, 1, 64], strides = [1, 1, 1, 1]} : vector<8x8x2x64xf32> to vector<8x8x1x64xf32>
    %39 = vector.shape_cast %38 : vector<8x8x1x64xf32> to vector<8x8x64xf32>
    %40 = vector.extract_strided_slice %37 {offsets = [0, 0, 1, 0], sizes = [8, 8, 1, 64], strides = [1, 1, 1, 1]} : vector<8x8x2x64xf32> to vector<8x8x1x64xf32>
    %41 = vector.shape_cast %40 : vector<8x8x1x64xf32> to vector<8x8x64xf32>
    %42 = arith.maximumf %39, %41 : vector<8x8x64xf32>
    %cst_51 = arith.constant 0.000000e+00 : f32
    %43 = vector.broadcast %cst_51 : f32 to vector<1x10x64xf32>
    %c0_52 = arith.constant 0 : index
    %c0_53 = arith.constant 0 : index
    %c0_54 = arith.constant 0 : index
    %44 = vector.load %arg18[%c0_52, %c0_53, %c0_54] : memref<10x10x64xf32, #tpu.memory_space<vmem>>, vector<1x10x64xf32>
    tpu.vector_store %arg18[%c0_52, %c0_53, %c0_54], %43 {strides = array<i32>} : memref<10x10x64xf32, #tpu.memory_space<vmem>>, vector<1x10x64xf32>,
    %cst_55 = arith.constant 0.000000e+00 : f32
    %45 = vector.broadcast %cst_55 : f32 to vector<1x10x64xf32>
    %c9 = arith.constant 9 : index
    %c0_56 = arith.constant 0 : index
    %c0_57 = arith.constant 0 : index
    %46 = vector.load %arg18[%c9, %c0_56, %c0_57] : memref<10x10x64xf32, #tpu.memory_space<vmem>>, vector<1x10x64xf32>
    tpu.vector_store %arg18[%c9, %c0_56, %c0_57], %45 {strides = array<i32>} : memref<10x10x64xf32, #tpu.memory_space<vmem>>, vector<1x10x64xf32>,
    %cst_58 = arith.constant 0.000000e+00 : f32
    %47 = vector.broadcast %cst_58 : f32 to vector<10x1x64xf32>
    %c0_59 = arith.constant 0 : index
    %c0_60 = arith.constant 0 : index
    %c0_61 = arith.constant 0 : index
    %48 = vector.load %arg18[%c0_59, %c0_60, %c0_61] : memref<10x10x64xf32, #tpu.memory_space<vmem>>, vector<10x1x64xf32>
    tpu.vector_store %arg18[%c0_59, %c0_60, %c0_61], %47 {strides = array<i32>} : memref<10x10x64xf32, #tpu.memory_space<vmem>>, vector<10x1x64xf32>,
    %cst_62 = arith.constant 0.000000e+00 : f32
    %49 = vector.broadcast %cst_62 : f32 to vector<10x1x64xf32>
    %c0_63 = arith.constant 0 : index
    %c9_64 = arith.constant 9 : index
    %c0_65 = arith.constant 0 : index
    %50 = vector.load %arg18[%c0_63, %c9_64, %c0_65] : memref<10x10x64xf32, #tpu.memory_space<vmem>>, vector<10x1x64xf32>
    tpu.vector_store %arg18[%c0_63, %c9_64, %c0_65], %49 {strides = array<i32>} : memref<10x10x64xf32, #tpu.memory_space<vmem>>, vector<10x1x64xf32>,
    %c1_66 = arith.constant 1 : index
    %c1_67 = arith.constant 1 : index
    %c0_68 = arith.constant 0 : index
    %51 = vector.load %arg18[%c1_66, %c1_67, %c0_68] : memref<10x10x64xf32, #tpu.memory_space<vmem>>, vector<8x8x64xf32>
    tpu.vector_store %arg18[%c1_66, %c1_67, %c0_68], %42 {strides = array<i32>} : memref<10x10x64xf32, #tpu.memory_space<vmem>>, vector<8x8x64xf32>,
    %c0_69 = arith.constant 0 : index
    %c0_70 = arith.constant 0 : index
    %c0_71 = arith.constant 0 : index
    %52 = vector.load %arg18[%c0_69, %c0_70, %c0_71] : memref<10x10x64xf32, #tpu.memory_space<vmem>>, vector<8x8x64xf32>
    %c1_72 = arith.constant 1 : index
    %c0_73 = arith.constant 0 : index
    %c0_74 = arith.constant 0 : index
    %53 = vector.load %arg18[%c1_72, %c0_73, %c0_74] : memref<10x10x64xf32, #tpu.memory_space<vmem>>, vector<8x8x64xf32>
    %c2_75 = arith.constant 2 : index
    %c0_76 = arith.constant 0 : index
    %c0_77 = arith.constant 0 : index
    %54 = vector.load %arg18[%c2_75, %c0_76, %c0_77] : memref<10x10x64xf32, #tpu.memory_space<vmem>>, vector<8x8x64xf32>
    %c0_78 = arith.constant 0 : index
    %c1_79 = arith.constant 1 : index
    %c0_80 = arith.constant 0 : index
    %55 = vector.load %arg18[%c0_78, %c1_79, %c0_80] : memref<10x10x64xf32, #tpu.memory_space<vmem>>, vector<8x8x64xf32>
    %c1_81 = arith.constant 1 : index
    %c1_82 = arith.constant 1 : index
    %c0_83 = arith.constant 0 : index
    %56 = vector.load %arg18[%c1_81, %c1_82, %c0_83] : memref<10x10x64xf32, #tpu.memory_space<vmem>>, vector<8x8x64xf32>
    %c2_84 = arith.constant 2 : index
    %c1_85 = arith.constant 1 : index
    %c0_86 = arith.constant 0 : index
    %57 = vector.load %arg18[%c2_84, %c1_85, %c0_86] : memref<10x10x64xf32, #tpu.memory_space<vmem>>, vector<8x8x64xf32>
    %c0_87 = arith.constant 0 : index
    %c2_88 = arith.constant 2 : index
    %c0_89 = arith.constant 0 : index
    %58 = vector.load %arg18[%c0_87, %c2_88, %c0_89] : memref<10x10x64xf32, #tpu.memory_space<vmem>>, vector<8x8x64xf32>
    %c1_90 = arith.constant 1 : index
    %c2_91 = arith.constant 2 : index
    %c0_92 = arith.constant 0 : index
    %59 = vector.load %arg18[%c1_90, %c2_91, %c0_92] : memref<10x10x64xf32, #tpu.memory_space<vmem>>, vector<8x8x64xf32>
    %c2_93 = arith.constant 2 : index
    %c2_94 = arith.constant 2 : index
    %c0_95 = arith.constant 0 : index
    %60 = vector.load %arg18[%c2_93, %c2_94, %c0_95] : memref<10x10x64xf32, #tpu.memory_space<vmem>>, vector<8x8x64xf32>
    %61 = tpu.concatenate %52, %53, %54, %55, %56, %57, %58, %59, %60 in 2 : vector<8x8x64xf32>, vector<8x8x64xf32>, vector<8x8x64xf32>, vector<8x8x64xf32>, vector<8x8x64xf32>, vector<8x8x64xf32>, vector<8x8x64xf32>, vector<8x8x64xf32>, vector<8x8x64xf32> -> vector<8x8x576xf32>
    %62 = vector.shape_cast %61 : vector<8x8x576xf32> to vector<64x576xf32>
    %63 = arith.truncf %62 : vector<64x576xf32> to vector<64x576xbf16>
    %c0_96 = arith.constant 0 : index
    %c0_97 = arith.constant 0 : index
    %64 = vector.load %arg5[%c0_96, %c0_97] : memref<576x128xbf16, #tpu.memory_space<vmem>>, vector<576x128xbf16>
    %cst_98 = arith.constant dense<0.000000e+00> : vector<64x128xf32>
    %65 = tpu.matmul %63, %64, %cst_98 {dimension_numbers = #tpu.dot_dimension_numbers<[1], [0], [0], [1], [0, 0, 1, 1], [], []>} : vector<64x576xbf16>, vector<576x128xbf16>, vector<64x128xf32> -> vector<64x128xf32>
    %c0_99 = arith.constant 0 : index
    %c0_100 = arith.constant 0 : index
    %66 = vector.load %arg6[%c0_99, %c0_100] : memref<1x128xf32, #tpu.memory_space<vmem>>, vector<1x128xf32>
    %67 = vector.broadcast %66 : vector<1x128xf32> to vector<64x128xf32>
    %68 = arith.addf %65, %67 : vector<64x128xf32>
    %cst_101 = arith.constant 0.000000e+00 : f32
    %69 = vector.broadcast %cst_101 : f32 to vector<64x128xf32>
    %70 = arith.maximumf %68, %69 : vector<64x128xf32>
    %71 = vector.shape_cast %70 : vector<64x128xf32> to vector<8x8x128xf32>
    %72 = vector.shape_cast %71 : vector<8x8x128xf32> to vector<4x2x8x128xf32>
    %73 = vector.extract_strided_slice %72 {offsets = [0, 0, 0, 0], sizes = [4, 1, 8, 128], strides = [1, 1, 1, 1]} : vector<4x2x8x128xf32> to vector<4x1x8x128xf32>
    %74 = vector.shape_cast %73 : vector<4x1x8x128xf32> to vector<4x8x128xf32>
    %75 = vector.extract_strided_slice %72 {offsets = [0, 1, 0, 0], sizes = [4, 1, 8, 128], strides = [1, 1, 1, 1]} : vector<4x2x8x128xf32> to vector<4x1x8x128xf32>
    %76 = vector.shape_cast %75 : vector<4x1x8x128xf32> to vector<4x8x128xf32>
    %77 = arith.maximumf %74, %76 : vector<4x8x128xf32>
    %78 = vector.shape_cast %77 : vector<4x8x128xf32> to vector<4x4x2x128xf32>
    %79 = vector.extract_strided_slice %78 {offsets = [0, 0, 0, 0], sizes = [4, 4, 1, 128], strides = [1, 1, 1, 1]} : vector<4x4x2x128xf32> to vector<4x4x1x128xf32>
    %80 = vector.shape_cast %79 : vector<4x4x1x128xf32> to vector<4x4x128xf32>
    %81 = vector.extract_strided_slice %78 {offsets = [0, 0, 1, 0], sizes = [4, 4, 1, 128], strides = [1, 1, 1, 1]} : vector<4x4x2x128xf32> to vector<4x4x1x128xf32>
    %82 = vector.shape_cast %81 : vector<4x4x1x128xf32> to vector<4x4x128xf32>
    %83 = arith.maximumf %80, %82 : vector<4x4x128xf32>
    %cst_102 = arith.constant 0.000000e+00 : f32
    %84 = vector.broadcast %cst_102 : f32 to vector<1x6x128xf32>
    %c0_103 = arith.constant 0 : index
    %c0_104 = arith.constant 0 : index
    %c0_105 = arith.constant 0 : index
    %85 = vector.load %arg19[%c0_103, %c0_104, %c0_105] : memref<6x6x128xf32, #tpu.memory_space<vmem>>, vector<1x6x128xf32>
    tpu.vector_store %arg19[%c0_103, %c0_104, %c0_105], %84 {strides = array<i32>} : memref<6x6x128xf32, #tpu.memory_space<vmem>>, vector<1x6x128xf32>,
    %cst_106 = arith.constant 0.000000e+00 : f32
    %86 = vector.broadcast %cst_106 : f32 to vector<1x6x128xf32>
    %c5 = arith.constant 5 : index
    %c0_107 = arith.constant 0 : index
    %c0_108 = arith.constant 0 : index
    %87 = vector.load %arg19[%c5, %c0_107, %c0_108] : memref<6x6x128xf32, #tpu.memory_space<vmem>>, vector<1x6x128xf32>
    tpu.vector_store %arg19[%c5, %c0_107, %c0_108], %86 {strides = array<i32>} : memref<6x6x128xf32, #tpu.memory_space<vmem>>, vector<1x6x128xf32>,
    %cst_109 = arith.constant 0.000000e+00 : f32
    %88 = vector.broadcast %cst_109 : f32 to vector<6x1x128xf32>
    %c0_110 = arith.constant 0 : index
    %c0_111 = arith.constant 0 : index
    %c0_112 = arith.constant 0 : index
    %89 = vector.load %arg19[%c0_110, %c0_111, %c0_112] : memref<6x6x128xf32, #tpu.memory_space<vmem>>, vector<6x1x128xf32>
    tpu.vector_store %arg19[%c0_110, %c0_111, %c0_112], %88 {strides = array<i32>} : memref<6x6x128xf32, #tpu.memory_space<vmem>>, vector<6x1x128xf32>,
    %cst_113 = arith.constant 0.000000e+00 : f32
    %90 = vector.broadcast %cst_113 : f32 to vector<6x1x128xf32>
    %c0_114 = arith.constant 0 : index
    %c5_115 = arith.constant 5 : index
    %c0_116 = arith.constant 0 : index
    %91 = vector.load %arg19[%c0_114, %c5_115, %c0_116] : memref<6x6x128xf32, #tpu.memory_space<vmem>>, vector<6x1x128xf32>
    tpu.vector_store %arg19[%c0_114, %c5_115, %c0_116], %90 {strides = array<i32>} : memref<6x6x128xf32, #tpu.memory_space<vmem>>, vector<6x1x128xf32>,
    %c1_117 = arith.constant 1 : index
    %c1_118 = arith.constant 1 : index
    %c0_119 = arith.constant 0 : index
    %92 = vector.load %arg19[%c1_117, %c1_118, %c0_119] : memref<6x6x128xf32, #tpu.memory_space<vmem>>, vector<4x4x128xf32>
    tpu.vector_store %arg19[%c1_117, %c1_118, %c0_119], %83 {strides = array<i32>} : memref<6x6x128xf32, #tpu.memory_space<vmem>>, vector<4x4x128xf32>,
    %c0_120 = arith.constant 0 : index
    %c0_121 = arith.constant 0 : index
    %c0_122 = arith.constant 0 : index
    %93 = vector.load %arg19[%c0_120, %c0_121, %c0_122] : memref<6x6x128xf32, #tpu.memory_space<vmem>>, vector<4x4x128xf32>
    %c1_123 = arith.constant 1 : index
    %c0_124 = arith.constant 0 : index
    %c0_125 = arith.constant 0 : index
    %94 = vector.load %arg19[%c1_123, %c0_124, %c0_125] : memref<6x6x128xf32, #tpu.memory_space<vmem>>, vector<4x4x128xf32>
    %c2_126 = arith.constant 2 : index
    %c0_127 = arith.constant 0 : index
    %c0_128 = arith.constant 0 : index
    %95 = vector.load %arg19[%c2_126, %c0_127, %c0_128] : memref<6x6x128xf32, #tpu.memory_space<vmem>>, vector<4x4x128xf32>
    %c0_129 = arith.constant 0 : index
    %c1_130 = arith.constant 1 : index
    %c0_131 = arith.constant 0 : index
    %96 = vector.load %arg19[%c0_129, %c1_130, %c0_131] : memref<6x6x128xf32, #tpu.memory_space<vmem>>, vector<4x4x128xf32>
    %c1_132 = arith.constant 1 : index
    %c1_133 = arith.constant 1 : index
    %c0_134 = arith.constant 0 : index
    %97 = vector.load %arg19[%c1_132, %c1_133, %c0_134] : memref<6x6x128xf32, #tpu.memory_space<vmem>>, vector<4x4x128xf32>
    %c2_135 = arith.constant 2 : index
    %c1_136 = arith.constant 1 : index
    %c0_137 = arith.constant 0 : index
    %98 = vector.load %arg19[%c2_135, %c1_136, %c0_137] : memref<6x6x128xf32, #tpu.memory_space<vmem>>, vector<4x4x128xf32>
    %c0_138 = arith.constant 0 : index
    %c2_139 = arith.constant 2 : index
    %c0_140 = arith.constant 0 : index
    %99 = vector.load %arg19[%c0_138, %c2_139, %c0_140] : memref<6x6x128xf32, #tpu.memory_space<vmem>>, vector<4x4x128xf32>
    %c1_141 = arith.constant 1 : index
    %c2_142 = arith.constant 2 : index
    %c0_143 = arith.constant 0 : index
    %100 = vector.load %arg19[%c1_141, %c2_142, %c0_143] : memref<6x6x128xf32, #tpu.memory_space<vmem>>, vector<4x4x128xf32>
    %c2_144 = arith.constant 2 : index
    %c2_145 = arith.constant 2 : index
    %c0_146 = arith.constant 0 : index
    %101 = vector.load %arg19[%c2_144, %c2_145, %c0_146] : memref<6x6x128xf32, #tpu.memory_space<vmem>>, vector<4x4x128xf32>
    %102 = tpu.concatenate %93, %94, %95, %96, %97, %98, %99, %100, %101 in 2 : vector<4x4x128xf32>, vector<4x4x128xf32>, vector<4x4x128xf32>, vector<4x4x128xf32>, vector<4x4x128xf32>, vector<4x4x128xf32>, vector<4x4x128xf32>, vector<4x4x128xf32>, vector<4x4x128xf32> -> vector<4x4x1152xf32>
    %103 = vector.shape_cast %102 : vector<4x4x1152xf32> to vector<16x1152xf32>
    %104 = arith.truncf %103 : vector<16x1152xf32> to vector<16x1152xbf16>
    %c0_147 = arith.constant 0 : index
    %c0_148 = arith.constant 0 : index
    %105 = vector.load %arg7[%c0_147, %c0_148] : memref<1152x256xbf16, #tpu.memory_space<vmem>>, vector<1152x256xbf16>
    %cst_149 = arith.constant dense<0.000000e+00> : vector<16x256xf32>
    %106 = tpu.matmul %104, %105, %cst_149 {dimension_numbers = #tpu.dot_dimension_numbers<[1], [0], [0], [1], [0, 0, 1, 1], [], []>} : vector<16x1152xbf16>, vector<1152x256xbf16>, vector<16x256xf32> -> vector<16x256xf32>
    %c0_150 = arith.constant 0 : index
    %c0_151 = arith.constant 0 : index
    %107 = vector.load %arg8[%c0_150, %c0_151] : memref<1x256xf32, #tpu.memory_space<vmem>>, vector<1x256xf32>
    %108 = vector.broadcast %107 : vector<1x256xf32> to vector<16x256xf32>
    %109 = arith.addf %106, %108 : vector<16x256xf32>
    %cst_152 = arith.constant 0.000000e+00 : f32
    %110 = vector.broadcast %cst_152 : f32 to vector<16x256xf32>
    %111 = arith.maximumf %109, %110 : vector<16x256xf32>
    %112 = vector.shape_cast %111 : vector<16x256xf32> to vector<4x4x256xf32>
    %113 = vector.shape_cast %112 : vector<4x4x256xf32> to vector<2x2x4x256xf32>
    %114 = vector.extract_strided_slice %113 {offsets = [0, 0, 0, 0], sizes = [2, 1, 4, 256], strides = [1, 1, 1, 1]} : vector<2x2x4x256xf32> to vector<2x1x4x256xf32>
    %115 = vector.shape_cast %114 : vector<2x1x4x256xf32> to vector<2x4x256xf32>
    %116 = vector.extract_strided_slice %113 {offsets = [0, 1, 0, 0], sizes = [2, 1, 4, 256], strides = [1, 1, 1, 1]} : vector<2x2x4x256xf32> to vector<2x1x4x256xf32>
    %117 = vector.shape_cast %116 : vector<2x1x4x256xf32> to vector<2x4x256xf32>
    %118 = arith.maximumf %115, %117 : vector<2x4x256xf32>
    %119 = vector.shape_cast %118 : vector<2x4x256xf32> to vector<2x2x2x256xf32>
    %120 = vector.extract_strided_slice %119 {offsets = [0, 0, 0, 0], sizes = [2, 2, 1, 256], strides = [1, 1, 1, 1]} : vector<2x2x2x256xf32> to vector<2x2x1x256xf32>
    %121 = vector.shape_cast %120 : vector<2x2x1x256xf32> to vector<2x2x256xf32>
    %122 = vector.extract_strided_slice %119 {offsets = [0, 0, 1, 0], sizes = [2, 2, 1, 256], strides = [1, 1, 1, 1]} : vector<2x2x2x256xf32> to vector<2x2x1x256xf32>
    %123 = vector.shape_cast %122 : vector<2x2x1x256xf32> to vector<2x2x256xf32>
    %124 = arith.maximumf %121, %123 : vector<2x2x256xf32>
    %cst_153 = arith.constant 0.000000e+00 : f32
    %125 = vector.broadcast %cst_153 : f32 to vector<1x4x256xf32>
    %c0_154 = arith.constant 0 : index
    %c0_155 = arith.constant 0 : index
    %c0_156 = arith.constant 0 : index
    %126 = vector.load %arg20[%c0_154, %c0_155, %c0_156] : memref<4x4x256xf32, #tpu.memory_space<vmem>>, vector<1x4x256xf32>
    tpu.vector_store %arg20[%c0_154, %c0_155, %c0_156], %125 {strides = array<i32>} : memref<4x4x256xf32, #tpu.memory_space<vmem>>, vector<1x4x256xf32>,
    %cst_157 = arith.constant 0.000000e+00 : f32
    %127 = vector.broadcast %cst_157 : f32 to vector<1x4x256xf32>
    %c3 = arith.constant 3 : index
    %c0_158 = arith.constant 0 : index
    %c0_159 = arith.constant 0 : index
    %128 = vector.load %arg20[%c3, %c0_158, %c0_159] : memref<4x4x256xf32, #tpu.memory_space<vmem>>, vector<1x4x256xf32>
    tpu.vector_store %arg20[%c3, %c0_158, %c0_159], %127 {strides = array<i32>} : memref<4x4x256xf32, #tpu.memory_space<vmem>>, vector<1x4x256xf32>,
    %cst_160 = arith.constant 0.000000e+00 : f32
    %129 = vector.broadcast %cst_160 : f32 to vector<4x1x256xf32>
    %c0_161 = arith.constant 0 : index
    %c0_162 = arith.constant 0 : index
    %c0_163 = arith.constant 0 : index
    %130 = vector.load %arg20[%c0_161, %c0_162, %c0_163] : memref<4x4x256xf32, #tpu.memory_space<vmem>>, vector<4x1x256xf32>
    tpu.vector_store %arg20[%c0_161, %c0_162, %c0_163], %129 {strides = array<i32>} : memref<4x4x256xf32, #tpu.memory_space<vmem>>, vector<4x1x256xf32>,
    %cst_164 = arith.constant 0.000000e+00 : f32
    %131 = vector.broadcast %cst_164 : f32 to vector<4x1x256xf32>
    %c0_165 = arith.constant 0 : index
    %c3_166 = arith.constant 3 : index
    %c0_167 = arith.constant 0 : index
    %132 = vector.load %arg20[%c0_165, %c3_166, %c0_167] : memref<4x4x256xf32, #tpu.memory_space<vmem>>, vector<4x1x256xf32>
    tpu.vector_store %arg20[%c0_165, %c3_166, %c0_167], %131 {strides = array<i32>} : memref<4x4x256xf32, #tpu.memory_space<vmem>>, vector<4x1x256xf32>,
    %c1_168 = arith.constant 1 : index
    %c1_169 = arith.constant 1 : index
    %c0_170 = arith.constant 0 : index
    %133 = vector.load %arg20[%c1_168, %c1_169, %c0_170] : memref<4x4x256xf32, #tpu.memory_space<vmem>>, vector<2x2x256xf32>
    tpu.vector_store %arg20[%c1_168, %c1_169, %c0_170], %124 {strides = array<i32>} : memref<4x4x256xf32, #tpu.memory_space<vmem>>, vector<2x2x256xf32>,
    %c0_171 = arith.constant 0 : index
    %c0_172 = arith.constant 0 : index
    %c0_173 = arith.constant 0 : index
    %134 = vector.load %arg20[%c0_171, %c0_172, %c0_173] : memref<4x4x256xf32, #tpu.memory_space<vmem>>, vector<2x2x256xf32>
    %c1_174 = arith.constant 1 : index
    %c0_175 = arith.constant 0 : index
    %c0_176 = arith.constant 0 : index
    %135 = vector.load %arg20[%c1_174, %c0_175, %c0_176] : memref<4x4x256xf32, #tpu.memory_space<vmem>>, vector<2x2x256xf32>
    %c2_177 = arith.constant 2 : index
    %c0_178 = arith.constant 0 : index
    %c0_179 = arith.constant 0 : index
    %136 = vector.load %arg20[%c2_177, %c0_178, %c0_179] : memref<4x4x256xf32, #tpu.memory_space<vmem>>, vector<2x2x256xf32>
    %c0_180 = arith.constant 0 : index
    %c1_181 = arith.constant 1 : index
    %c0_182 = arith.constant 0 : index
    %137 = vector.load %arg20[%c0_180, %c1_181, %c0_182] : memref<4x4x256xf32, #tpu.memory_space<vmem>>, vector<2x2x256xf32>
    %c1_183 = arith.constant 1 : index
    %c1_184 = arith.constant 1 : index
    %c0_185 = arith.constant 0 : index
    %138 = vector.load %arg20[%c1_183, %c1_184, %c0_185] : memref<4x4x256xf32, #tpu.memory_space<vmem>>, vector<2x2x256xf32>
    %c2_186 = arith.constant 2 : index
    %c1_187 = arith.constant 1 : index
    %c0_188 = arith.constant 0 : index
    %139 = vector.load %arg20[%c2_186, %c1_187, %c0_188] : memref<4x4x256xf32, #tpu.memory_space<vmem>>, vector<2x2x256xf32>
    %c0_189 = arith.constant 0 : index
    %c2_190 = arith.constant 2 : index
    %c0_191 = arith.constant 0 : index
    %140 = vector.load %arg20[%c0_189, %c2_190, %c0_191] : memref<4x4x256xf32, #tpu.memory_space<vmem>>, vector<2x2x256xf32>
    %c1_192 = arith.constant 1 : index
    %c2_193 = arith.constant 2 : index
    %c0_194 = arith.constant 0 : index
    %141 = vector.load %arg20[%c1_192, %c2_193, %c0_194] : memref<4x4x256xf32, #tpu.memory_space<vmem>>, vector<2x2x256xf32>
    %c2_195 = arith.constant 2 : index
    %c2_196 = arith.constant 2 : index
    %c0_197 = arith.constant 0 : index
    %142 = vector.load %arg20[%c2_195, %c2_196, %c0_197] : memref<4x4x256xf32, #tpu.memory_space<vmem>>, vector<2x2x256xf32>
    %143 = tpu.concatenate %134, %135, %136, %137, %138, %139, %140, %141, %142 in 2 : vector<2x2x256xf32>, vector<2x2x256xf32>, vector<2x2x256xf32>, vector<2x2x256xf32>, vector<2x2x256xf32>, vector<2x2x256xf32>, vector<2x2x256xf32>, vector<2x2x256xf32>, vector<2x2x256xf32> -> vector<2x2x2304xf32>
    %144 = vector.shape_cast %143 : vector<2x2x2304xf32> to vector<4x2304xf32>
    %145 = arith.truncf %144 : vector<4x2304xf32> to vector<4x2304xbf16>
    %c0_198 = arith.constant 0 : index
    %c0_199 = arith.constant 0 : index
    %146 = vector.load %arg9[%c0_198, %c0_199] : memref<2304x512xbf16, #tpu.memory_space<vmem>>, vector<2304x512xbf16>
    %cst_200 = arith.constant dense<0.000000e+00> : vector<4x512xf32>
    %147 = tpu.matmul %145, %146, %cst_200 {dimension_numbers = #tpu.dot_dimension_numbers<[1], [0], [0], [1], [0, 0, 1, 1], [], []>} : vector<4x2304xbf16>, vector<2304x512xbf16>, vector<4x512xf32> -> vector<4x512xf32>
    %c0_201 = arith.constant 0 : index
    %c0_202 = arith.constant 0 : index
    %148 = vector.load %arg10[%c0_201, %c0_202] : memref<1x512xf32, #tpu.memory_space<vmem>>, vector<1x512xf32>
    %149 = vector.broadcast %148 : vector<1x512xf32> to vector<4x512xf32>
    %150 = arith.addf %147, %149 : vector<4x512xf32>
    %cst_203 = arith.constant 0.000000e+00 : f32
    %151 = vector.broadcast %cst_203 : f32 to vector<4x512xf32>
    %152 = arith.maximumf %150, %151 : vector<4x512xf32>
    %153 = vector.shape_cast %152 : vector<4x512xf32> to vector<2x2x512xf32>
    %154 = vector.shape_cast %153 : vector<2x2x512xf32> to vector<4x512xf32>
    %cst_204 = arith.constant dense<0.000000e+00> : vector<512xf32>
    %155 = vector.multi_reduction <add>, %154, %cst_204 [0] : vector<4x512xf32> to vector<512xf32>
    %156 = vector.shape_cast %155 : vector<512xf32> to vector<1x512xf32>
    %cst_205 = arith.constant 4.000000e+00 : f32
    %157 = vector.broadcast %cst_205 : f32 to vector<1x512xf32>
    %158 = arith.divf %156, %157 : vector<1x512xf32>
    %159 = arith.truncf %158 : vector<1x512xf32> to vector<1x512xbf16>
    %c0_206 = arith.constant 0 : index
    %c0_207 = arith.constant 0 : index
    %160 = vector.load %arg11[%c0_206, %c0_207] : memref<512x256xbf16, #tpu.memory_space<vmem>>, vector<512x256xbf16>
    %cst_208 = arith.constant dense<0.000000e+00> : vector<1x256xf32>
    %161 = tpu.matmul %159, %160, %cst_208 {dimension_numbers = #tpu.dot_dimension_numbers<[1], [0], [0], [1], [0, 0, 1, 1], [], []>} : vector<1x512xbf16>, vector<512x256xbf16>, vector<1x256xf32> -> vector<1x256xf32>
    %c0_209 = arith.constant 0 : index
    %c0_210 = arith.constant 0 : index
    %162 = vector.load %arg12[%c0_209, %c0_210] : memref<1x256xf32, #tpu.memory_space<vmem>>, vector<1x256xf32>
    %163 = arith.addf %161, %162 : vector<1x256xf32>
    %cst_211 = arith.constant 0.000000e+00 : f32
    %164 = vector.broadcast %cst_211 : f32 to vector<1x256xf32>
    %165 = arith.maximumf %163, %164 : vector<1x256xf32>
    %c0_212 = arith.constant 0 : index
    %c0_213 = arith.constant 0 : index
    %166 = vector.load %arg13[%c0_212, %c0_213] : memref<256x16xf32, #tpu.memory_space<vmem>>, vector<256x16xf32>
    %cst_214 = arith.constant dense<0.000000e+00> : vector<1x16xf32>
    %167 = tpu.matmul %165, %166, %cst_214 {dimension_numbers = #tpu.dot_dimension_numbers<[1], [0], [0], [1], [0, 0, 1, 1], [], []>} : vector<1x256xf32>, vector<256x16xf32>, vector<1x16xf32> -> vector<1x16xf32>
    %c0_215 = arith.constant 0 : index
    %c0_216 = arith.constant 0 : index
    %168 = vector.load %arg14[%c0_215, %c0_216] : memref<1x16xf32, #tpu.memory_space<vmem>>, vector<1x16xf32>
    %169 = arith.addf %167, %168 : vector<1x16xf32>
    %170 = vector.extract_strided_slice %169 {offsets = [0, 0], sizes = [1, 8], strides = [1, 1]} : vector<1x16xf32> to vector<1x8xf32>
    %171 = vector.extract_strided_slice %169 {offsets = [0, 8], sizes = [1, 8], strides = [1, 1]} : vector<1x16xf32> to vector<1x8xf32>
    %c0_217 = arith.constant 0 : index
    %c0_218 = arith.constant 0 : index
    %172 = vector.load %arg15[%c0_217, %c0_218] : memref<8x128xf32, #tpu.memory_space<vmem>>, vector<8x128xf32>
    %cst_219 = arith.constant dense<0.000000e+00> : vector<1x128xf32>
    %173 = tpu.matmul %170, %172, %cst_219 {dimension_numbers = #tpu.dot_dimension_numbers<[1], [0], [0], [1], [0, 0, 1, 1], [], []>} : vector<1x8xf32>, vector<8x128xf32>, vector<1x128xf32> -> vector<1x128xf32>
    %c0_220 = arith.constant 0 : index
    %c0_221 = arith.constant 0 : index
    %174 = vector.load %arg15[%c0_220, %c0_221] : memref<8x128xf32, #tpu.memory_space<vmem>>, vector<8x128xf32>
    %cst_222 = arith.constant dense<0.000000e+00> : vector<1x128xf32>
    %175 = tpu.matmul %171, %174, %cst_222 {dimension_numbers = #tpu.dot_dimension_numbers<[1], [0], [0], [1], [0, 0, 1, 1], [], []>} : vector<1x8xf32>, vector<8x128xf32>, vector<1x128xf32> -> vector<1x128xf32>
    %cst_223 = arith.constant 1.000000e+00 : f32
    %176 = vector.broadcast %cst_223 : f32 to vector<1x128xf32>
    %177 = arith.addf %173, %176 : vector<1x128xf32>
    %cst_224 = arith.constant 5.000000e-01 : f32
    %178 = vector.broadcast %cst_224 : f32 to vector<1x128xf32>
    %179 = arith.mulf %177, %178 : vector<1x128xf32>
    %cst_225 = arith.constant 1.500000e+01 : f32
    %180 = vector.broadcast %cst_225 : f32 to vector<1x128xf32>
    %181 = arith.mulf %179, %180 : vector<1x128xf32>
    %cst_226 = arith.constant 0.000000e+00 : f32
    %cst_227 = arith.constant 1.500000e+01 : f32
    %182 = vector.broadcast %cst_226 : f32 to vector<1x128xf32>
    %183 = arith.maximumf %182, %181 : vector<1x128xf32>
    %184 = vector.broadcast %cst_227 : f32 to vector<1x128xf32>
    %185 = arith.minimumf %184, %183 : vector<1x128xf32>
    %cst_228 = arith.constant 1.000000e+00 : f32
    %186 = vector.broadcast %cst_228 : f32 to vector<1x128xf32>
    %187 = arith.addf %175, %186 : vector<1x128xf32>
    %cst_229 = arith.constant 5.000000e-01 : f32
    %188 = vector.broadcast %cst_229 : f32 to vector<1x128xf32>
    %189 = arith.mulf %187, %188 : vector<1x128xf32>
    %cst_230 = arith.constant 1.500000e+01 : f32
    %190 = vector.broadcast %cst_230 : f32 to vector<1x128xf32>
    %191 = arith.mulf %189, %190 : vector<1x128xf32>
    %cst_231 = arith.constant 0.000000e+00 : f32
    %cst_232 = arith.constant 1.500000e+01 : f32
    %192 = vector.broadcast %cst_231 : f32 to vector<1x128xf32>
    %193 = arith.maximumf %192, %191 : vector<1x128xf32>
    %194 = vector.broadcast %cst_232 : f32 to vector<1x128xf32>
    %195 = arith.minimumf %194, %193 : vector<1x128xf32>
    %196 = math.floor %185 : vector<1x128xf32>
    %197 = math.floor %195 : vector<1x128xf32>
    %198 = arith.subf %185, %196 : vector<1x128xf32>
    %cst_233 = arith.constant 1.000000e+00 : f32
    %199 = vector.broadcast %cst_233 : f32 to vector<1x128xf32>
    %200 = arith.subf %199, %198 : vector<1x128xf32>
    %201 = arith.subf %195, %197 : vector<1x128xf32>
    %cst_234 = arith.constant 1.000000e+00 : f32
    %202 = vector.broadcast %cst_234 : f32 to vector<1x128xf32>
    %203 = arith.subf %202, %201 : vector<1x128xf32>
    %204 = arith.fptosi %196 : vector<1x128xf32> to vector<1x128xi32>
    %205 = arith.fptosi %197 : vector<1x128xf32> to vector<1x128xi32>
    %c1_i32 = arith.constant 1 : i32
    %206 = vector.broadcast %c1_i32 : i32 to vector<1x128xi32>
    %207 = arith.addi %204, %206 : vector<1x128xi32>
    %c15_i32 = arith.constant 15 : i32
    %208 = vector.broadcast %c15_i32 : i32 to vector<1x128xi32>
    %209 = arith.minsi %207, %208 : vector<1x128xi32>
    %c1_i32_235 = arith.constant 1 : i32
    %210 = vector.broadcast %c1_i32_235 : i32 to vector<1x128xi32>
    %211 = arith.addi %205, %210 : vector<1x128xi32>
    %c15_i32_236 = arith.constant 15 : i32
    %212 = vector.broadcast %c15_i32_236 : i32 to vector<1x128xi32>
    %213 = arith.minsi %211, %212 : vector<1x128xi32>
    %214 = tpu.iota {dimensions = array<i32: 0>} : vector<16x128xi32>
    %215 = vector.broadcast %205 : vector<1x128xi32> to vector<16x128xi32>
    %216 = arith.cmpi eq, %214, %215 : vector<16x128xi32>
    %cst_237 = arith.constant 0.000000e+00 : f32
    %217 = vector.shape_cast %203 : vector<1x128xf32> to vector<1x128xf32>
    %218 = vector.broadcast %217 : vector<1x128xf32> to vector<16x128xf32>
    %219 = vector.broadcast %cst_237 : f32 to vector<16x128xf32>
    %220 = arith.select %216, %218, %219 : vector<16x128xi1>, vector<16x128xf32>
    %221 = vector.broadcast %213 : vector<1x128xi32> to vector<16x128xi32>
    %222 = arith.cmpi eq, %214, %221 : vector<16x128xi32>
    %cst_238 = arith.constant 0.000000e+00 : f32
    %223 = vector.shape_cast %201 : vector<1x128xf32> to vector<1x128xf32>
    %224 = vector.broadcast %223 : vector<1x128xf32> to vector<16x128xf32>
    %225 = vector.broadcast %cst_238 : f32 to vector<16x128xf32>
    %226 = arith.select %222, %224, %225 : vector<16x128xi1>, vector<16x128xf32>
    %227 = arith.addf %220, %226 : vector<16x128xf32>
    %228 = tpu.iota {dimensions = array<i32: 0>} : vector<16x1x128xi32>
    %229 = vector.shape_cast %204 : vector<1x128xi32> to vector<1x1x128xi32>
    %230 = vector.broadcast %229 : vector<1x1x128xi32> to vector<16x1x128xi32>
    %231 = arith.cmpi eq, %228, %230 : vector<16x1x128xi32>
    %232 = vector.shape_cast %200 : vector<1x128xf32> to vector<1x1x128xf32>
    %cst_239 = arith.constant 0.000000e+00 : f32
    %233 = vector.shape_cast %232 : vector<1x1x128xf32> to vector<1x1x128xf32>
    %234 = vector.broadcast %233 : vector<1x1x128xf32> to vector<16x1x128xf32>
    %235 = vector.broadcast %cst_239 : f32 to vector<16x1x128xf32>
    %236 = arith.select %231, %234, %235 : vector<16x1x128xi1>, vector<16x1x128xf32>
    %237 = vector.shape_cast %209 : vector<1x128xi32> to vector<1x1x128xi32>
    %238 = vector.broadcast %237 : vector<1x1x128xi32> to vector<16x1x128xi32>
    %239 = arith.cmpi eq, %228, %238 : vector<16x1x128xi32>
    %240 = vector.shape_cast %198 : vector<1x128xf32> to vector<1x1x128xf32>
    %cst_240 = arith.constant 0.000000e+00 : f32
    %241 = vector.shape_cast %240 : vector<1x1x128xf32> to vector<1x1x128xf32>
    %242 = vector.broadcast %241 : vector<1x1x128xf32> to vector<16x1x128xf32>
    %243 = vector.broadcast %cst_240 : f32 to vector<16x1x128xf32>
    %244 = arith.select %239, %242, %243 : vector<16x1x128xi1>, vector<16x1x128xf32>
    %245 = arith.addf %236, %244 : vector<16x1x128xf32>
    %c0_241 = arith.constant 0 : index
    %c0_242 = arith.constant 0 : index
    %c0_243 = arith.constant 0 : index
    %246 = vector.load %arg2[%c0_241, %c0_242, %c0_243] : memref<1x64x16xf32, #tpu.memory_space<vmem>>, vector<1x64x16xf32>
    %247 = vector.shape_cast %246 : vector<1x64x16xf32> to vector<64x16xf32>
    %cst_244 = arith.constant dense<0.000000e+00> : vector<64x128xf32>
    %248 = tpu.matmul %247, %227, %cst_244 {dimension_numbers = #tpu.dot_dimension_numbers<[1], [0], [0], [1], [0, 0, 1, 1], [], []>} : vector<64x16xf32>, vector<16x128xf32>, vector<64x128xf32> -> vector<64x128xf32>
    %249 = vector.shape_cast %248 : vector<64x128xf32> to vector<16x4x128xf32>
    %250 = vector.broadcast %245 : vector<16x1x128xf32> to vector<16x4x128xf32>
    %251 = arith.mulf %249, %250 : vector<16x4x128xf32>
    %cst_245 = arith.constant dense<0.000000e+00> : vector<4x128xf32>
    %252 = vector.multi_reduction <add>, %251, %cst_245 [0] : vector<16x4x128xf32> to vector<4x128xf32>
    %253 = vector.shape_cast %252 : vector<4x128xf32> to vector<1x4x128xf32>
    %c0_246 = arith.constant 0 : index
    %c0_247 = arith.constant 0 : index
    %c0_248 = arith.constant 0 : index
    %254 = vector.load %arg16[%c0_246, %c0_247, %c0_248] : memref<1x4x128xf32, #tpu.memory_space<vmem>>, vector<1x4x128xf32>
    tpu.vector_store %arg16[%c0_246, %c0_247, %c0_248], %253 {strides = array<i32>} : memref<1x4x128xf32, #tpu.memory_space<vmem>>, vector<1x4x128xf32>,
    return
  }
  func.func @transform_0(%arg0: i32) -> (i32, i32, i32, i32) {
    %c0_i32 = arith.constant 0 : i32
    %c0_i32_0 = arith.constant 0 : i32
    %c0_i32_1 = arith.constant 0 : i32
    %c0_i32_2 = arith.constant 0 : i32
    return %arg0, %c0_i32, %c0_i32_0, %c0_i32_1 : i32, i32, i32, i32
  }
  func.func @transform_1(%arg0: i32) -> (i32, i32, i32) {
    %c0_i32 = arith.constant 0 : i32
    %c0_i32_0 = arith.constant 0 : i32
    %c0_i32_1 = arith.constant 0 : i32
    return %arg0, %c0_i32, %c0_i32_0 : i32, i32, i32
  }
  func.func @transform_2(%arg0: i32) -> (i32, i32) {
    %c0_i32 = arith.constant 0 : i32
    %c0_i32_0 = arith.constant 0 : i32
    %c0_i32_1 = arith.constant 0 : i32
    return %c0_i32, %c0_i32_0 : i32, i32
  }
  func.func @transform_3(%arg0: i32) -> (i32, i32) {
    %c0_i32 = arith.constant 0 : i32
    %c0_i32_0 = arith.constant 0 : i32
    %c0_i32_1 = arith.constant 0 : i32
    return %c0_i32, %c0_i32_0 : i32, i32
  }
  func.func @transform_4(%arg0: i32) -> (i32, i32) {
    %c0_i32 = arith.constant 0 : i32
    %c0_i32_0 = arith.constant 0 : i32
    %c0_i32_1 = arith.constant 0 : i32
    return %c0_i32, %c0_i32_0 : i32, i32
  }
  func.func @transform_5(%arg0: i32) -> (i32, i32) {
    %c0_i32 = arith.constant 0 : i32
    %c0_i32_0 = arith.constant 0 : i32
    %c0_i32_1 = arith.constant 0 : i32
    return %c0_i32, %c0_i32_0 : i32, i32
  }
  func.func @transform_6(%arg0: i32) -> (i32, i32) {
    %c0_i32 = arith.constant 0 : i32
    %c0_i32_0 = arith.constant 0 : i32
    %c0_i32_1 = arith.constant 0 : i32
    return %c0_i32, %c0_i32_0 : i32, i32
  }
  func.func @transform_7(%arg0: i32) -> (i32, i32) {
    %c0_i32 = arith.constant 0 : i32
    %c0_i32_0 = arith.constant 0 : i32
    %c0_i32_1 = arith.constant 0 : i32
    return %c0_i32, %c0_i32_0 : i32, i32
  }
  func.func @transform_8(%arg0: i32) -> (i32, i32) {
    %c0_i32 = arith.constant 0 : i32
    %c0_i32_0 = arith.constant 0 : i32
    %c0_i32_1 = arith.constant 0 : i32
    return %c0_i32, %c0_i32_0 : i32, i32
  }
  func.func @transform_9(%arg0: i32) -> (i32, i32) {
    %c0_i32 = arith.constant 0 : i32
    %c0_i32_0 = arith.constant 0 : i32
    %c0_i32_1 = arith.constant 0 : i32
    return %c0_i32, %c0_i32_0 : i32, i32
  }
  func.func @transform_10(%arg0: i32) -> (i32, i32) {
    %c0_i32 = arith.constant 0 : i32
    %c0_i32_0 = arith.constant 0 : i32
    %c0_i32_1 = arith.constant 0 : i32
    return %c0_i32, %c0_i32_0 : i32, i32
  }
  func.func @transform_11(%arg0: i32) -> (i32, i32) {
    %c0_i32 = arith.constant 0 : i32
    %c0_i32_0 = arith.constant 0 : i32
    %c0_i32_1 = arith.constant 0 : i32
    return %c0_i32, %c0_i32_0 : i32, i32
  }
  func.func @transform_12(%arg0: i32) -> (i32, i32) {
    %c0_i32 = arith.constant 0 : i32
    %c0_i32_0 = arith.constant 0 : i32
    %c0_i32_1 = arith.constant 0 : i32
    return %c0_i32, %c0_i32_0 : i32, i32
  }
  func.func @transform_13(%arg0: i32) -> (i32, i32) {
    %c0_i32 = arith.constant 0 : i32
    %c0_i32_0 = arith.constant 0 : i32
    %c0_i32_1 = arith.constant 0 : i32
    return %c0_i32, %c0_i32_0 : i32, i32
  }
  func.func @transform_14(%arg0: i32) -> (i32, i32) {
    %c0_i32 = arith.constant 0 : i32
    %c0_i32_0 = arith.constant 0 : i32
    %c0_i32_1 = arith.constant 0 : i32
    return %c0_i32, %c0_i32_0 : i32, i32
  }
  func.func @transform_15(%arg0: i32) -> (i32, i32, i32) {
    %c0_i32 = arith.constant 0 : i32
    %c0_i32_0 = arith.constant 0 : i32
    %c0_i32_1 = arith.constant 0 : i32
    return %arg0, %c0_i32, %c0_i32_0 : i32, i32, i32
  }
}

</mosaic_0001>

<llo_original>
// kernel: spatial_transformer_forward.1
$region0: #{spatial_transformer_forward.1}
  #allocation0 [shape = 'u32[]', space=smem, size = 0x4, offset = 0x4, fixed_abs, tag = 'smem constant byte address 0x4 - core index']
  #allocation1 [shape = 'u32[144,128]{1,0:T(1,128)}', space=vmem, size = 0x12000, scoped, tag = 'internal scratch']
  #allocation2 [shape = 'f32[18,18,4]{2,1,0:T(8,128)}', space=vmem, size = 0x36000, scoped, tag = 'scratch operand']
  #allocation3 [shape = 'f32[10,10,64]{2,1,0:T(8,128)}', space=vmem, size = 0x14000, scoped, tag = 'scratch operand']
  #allocation4 [shape = 'f32[6,6,128]{2,1,0:T(8,128)}', space=vmem, size = 0x6000, scoped, tag = 'scratch operand']
  #allocation5 [shape = 'f32[4,4,256]{2,1,0:T(4,128)}', space=vmem, size = 0x4000, scoped, tag = 'scratch operand']
  %s0 = inlined_call_operand.vmem [shape: f32[2,16,16,4], index: 0, kind: input, shape index: {}]
  %s1 = inlined_call_operand.vmem [shape: f32[2,64,16], index: 1, kind: input, shape index: {}]
  %s2 = inlined_call_operand.hbm [shape: bf16[36,64], index: 2, kind: input, shape index: {}]
  %s3 = inlined_call_operand.hbm [shape: f32[1,64], index: 3, kind: input, shape index: {}]
  %s4 = inlined_call_operand.hbm [shape: bf16[576,128], index: 4, kind: input, shape index: {}]
  %s5 = inlined_call_operand.hbm [shape: f32[1,128], index: 5, kind: input, shape index: {}]
  %s6 = inlined_call_operand.hbm [shape: bf16[1152,256], index: 6, kind: input, shape index: {}]
  %s7 = inlined_call_operand.hbm [shape: f32[1,256], index: 7, kind: input, shape index: {}]
  %s8 = inlined_call_operand.hbm [shape: bf16[2304,512], index: 8, kind: input, shape index: {}]
  %s9 = inlined_call_operand.hbm [shape: f32[1,512], index: 9, kind: input, shape index: {}]
  %s10 = inlined_call_operand.hbm [shape: bf16[512,256], index: 10, kind: input, shape index: {}]
  %s11 = inlined_call_operand.hbm [shape: f32[1,256], index: 11, kind: input, shape index: {}]
  %s12 = inlined_call_operand.vmem [shape: f32[256,16], index: 12, kind: input, shape index: {}]
  %s13 = inlined_call_operand.hbm [shape: f32[1,16], index: 13, kind: input, shape index: {}]
  %s14 = inlined_call_operand.hbm [shape: f32[8,128], index: 14, kind: input, shape index: {}]
  %s15 = inlined_call_operand.vmem [shape: f32[2,4,128], index: 15, kind: output, shape index: {}]
  %s16 = sld [smem:[#allocation0]]
  $region141: #{spatial_transformer_forward.1} parent=0
    _
  %s18 = ssub.s32 1, %s16
  %s19 = scalar_select 0, %s18, %s16
  $region1: #{spatial_transformer_forward.1} parent=0
    #allocation6 [shape = 'u8[10240]{0}', space=vmem, size = 0x2800, scoped, tag = 'input window, operand 2, single buffered']
    #allocation7 [shape = 's32[2]{0}', space=sflag, size = 0x8, scoped, tag = 'scoped memory for spatial_transformer_forward.1']
    #allocation8 [shape = 'u8[512]{0}', space=vmem, size = 0x400, scoped, tag = 'input window, operand 3, single buffered']
    #allocation9 [shape = 's32[1]{0}', space=sflag, size = 0x4, scoped, tag = 'scoped memory for spatial_transformer_forward.1']
    #allocation10 [shape = 'u8[147456]{0}', space=vmem, size = 0x24000, scoped, tag = 'input window, operand 4, single buffered']
    #allocation11 [shape = 'u8[512]{0}', space=vmem, size = 0x400, scoped, tag = 'input window, operand 5, single buffered']
    #allocation12 [shape = 's32[1]{0}', space=sflag, size = 0x4, scoped, tag = 'scoped memory for spatial_transformer_forward.1']
    #allocation13 [shape = 'u8[589824]{0}', space=vmem, size = 0x90000, scoped, tag = 'input window, operand 6, single buffered']
    #allocation14 [shape = 'u8[1024]{0}', space=vmem, size = 0x400, scoped, tag = 'input window, operand 7, single buffered']
    #allocation15 [shape = 's32[1]{0}', space=sflag, size = 0x4, scoped, tag = 'scoped memory for spatial_transformer_forward.1']
    #allocation16 [shape = 'u8[2359296]{0}', space=vmem, size = 0x240000, scoped, tag = 'input window, operand 8, single buffered']
    #allocation17 [shape = 'u8[2048]{0}', space=vmem, size = 0x800, scoped, tag = 'input window, operand 9, single buffered']
    #allocation18 [shape = 's32[1]{0}', space=sflag, size = 0x4, scoped, tag = 'scoped memory for spatial_transformer_forward.1']
    #allocation19 [shape = 'u8[262144]{0}', space=vmem, size = 0x40000, scoped, tag = 'input window, operand 10, single buffered']
    #allocation20 [shape = 'u8[1024]{0}', space=vmem, size = 0x400, scoped, tag = 'input window, operand 11, single buffered']
    #allocation21 [shape = 's32[1]{0}', space=sflag, size = 0x4, scoped, tag = 'scoped memory for spatial_transformer_forward.1']
    #allocation22 [shape = 'u8[512]{0}', space=vmem, size = 0x400, scoped, tag = 'input window, operand 13, single buffered']
    #allocation23 [shape = 'u8[4096]{0}', space=vmem, size = 0x1000, scoped, tag = 'input window, operand 14, single buffered']
    #allocation24 [shape = 's32[1]{0}', space=sflag, size = 0x4, scoped, tag = 'scoped memory for spatial_transformer_forward.1']
    %20 = vsyncpa [#allocation7], 0
    %21 = vsyncpa [#allocation9], 0
    %22 = vsyncpa [#allocation12], 0
    %23 = vsyncpa [#allocation15], 0
    %24 = vsyncpa [#allocation18], 0
    %25 = vsyncpa [#allocation21], 0
    %26 = vsyncpa [#allocation24], 0
    loop: start=0, step=1, limit=4
    $region2: #{spatial_transformer_forward.1} parent=1 // loop_pre_header
      _
    $region3: #{spatial_transformer_forward.1} parent=1 // loop_header
      %s28 = sphi 0, %s32
      %p29 = scmp.ge.s32.totalorder %s28, 4
      %s38 = sphi 0, %s40
      %s41 = sphi 0, %s38
      %s42 = sphi 0, %s41
      %s58 = sphi 0, %s42
      %s64 = sphi 0, %s66
      %s67 = sphi 0, %s64
      %s68 = sphi 0, %s67
      %s84 = sphi 0, %s68
      %s88 = sphi 0, %s88
      %s90 = sphi 0, %s88
      %s91 = sphi 0, %s90
      %s105 = sphi 0, %s91
      %s109 = sphi 0, %s109
      %s111 = sphi 0, %s109
      %s112 = sphi 0, %s111
      %s126 = sphi 0, %s112
      %s130 = sphi 0, %s130
      %s132 = sphi 0, %s130
      %s133 = sphi 0, %s132
      %s147 = sphi 0, %s133
      %s151 = sphi 0, %s151
      %s153 = sphi 0, %s151
      %s154 = sphi 0, %s153
      %s168 = sphi 0, %s154
      %s172 = sphi 0, %s172
      %s174 = sphi 0, %s172
      %s175 = sphi 0, %s174
      %s189 = sphi 0, %s175
      %s193 = sphi 0, %s193
      %s195 = sphi 0, %s193
      %s196 = sphi 0, %s195
      %s210 = sphi 0, %s196
      %s214 = sphi 0, %s214
      %s216 = sphi 0, %s214
      %s217 = sphi 0, %s216
      %s231 = sphi 0, %s217
      %s235 = sphi 0, %s235
      %s237 = sphi 0, %s235
      %s238 = sphi 0, %s237
      %s252 = sphi 0, %s238
      %s256 = sphi 0, %s256
      %s258 = sphi 0, %s256
      %s259 = sphi 0, %s258
      %s273 = sphi 0, %s259
      %s277 = sphi 0, %s277
      %s279 = sphi 0, %s277
      %s280 = sphi 0, %s279
      %s294 = sphi 0, %s280
      %s298 = sphi 0, %s298
      %s300 = sphi 0, %s298
      %s301 = sphi 0, %s300
      %s315 = sphi 0, %s301
      %s319 = sphi 0, %s319
      %s321 = sphi 0, %s319
      %s322 = sphi 0, %s321
      %s336 = sphi 0, %s322
      %s340 = sphi 0, %s340
      %s342 = sphi 0, %s340
      %s343 = sphi 0, %s342
      %s357 = sphi 0, %s343
      %s363 = sphi 0, %s365
      %s366 = sphi 0, %s363
      %s367 = sphi 0, %s366
      %s383 = sphi 0, %s367
    $region4: #{spatial_transformer_forward.1} parent=1 // loop_header_branch
      %31 = sbr.rel (%p29) target = $region8
    $region5: #{spatial_transformer_forward.1} parent=1 // loop_body
      %s33 = ssub.s32 %s28, 1
      %s34 = ssub.s32 %s28, 2
      %s35 = sadd.s32 %s28, 1
      %s36 = ssub.s32 %s28, %s35
      %p37 = scmp.eq.s32.totalorder %s36, 0
      %s39 = sadd.s32 %s38, 1
      %s40 = scalar_select %p37, %s38, %s39
      %p43 = pneg %p37
      %p44 = scmp.eq.s32.totalorder %s28, 1
      %p45 = por %p43, %p44
      %p46 = scmp.ne.s32.totalorder %s38, %s41
      %p47 = scmp.eq.s32.totalorder %s28, 0
      %p48 = por %p46, %p47
      %p49 = scmp.ne.s32.totalorder %s38, %s41
      %p50 = scmp.eq.s32.totalorder %s33, 1
      %p51 = por %p49, %p50
      %p52 = scmp.ne.s32.totalorder %s41, %s42
      %p53 = scmp.eq.s32.totalorder %s33, 0
      %p54 = por %p52, %p53
      %p55 = scmp.ne.s32.totalorder %s41, %s42
      %p56 = scmp.eq.s32.totalorder %s34, 1
      %p57 = por %p55, %p56
      %p59 = scmp.ne.s32.totalorder %s42, %s58
      %p60 = scmp.eq.s32.totalorder %s34, 0
      %p61 = por %p59, %p60
      %s62 = ssub.s32 %s28, %s35
      %p63 = scmp.eq.s32.totalorder %s62, 0
      %s65 = sadd.s32 %s64, 1
      %s66 = scalar_select %p63, %s64, %s65
      %p69 = pneg %p63
      %p70 = scmp.eq.s32.totalorder %s28, 1
      %p71 = por %p69, %p70
      %p72 = scmp.ne.s32.totalorder %s64, %s67
      %p73 = scmp.eq.s32.totalorder %s28, 0
      %p74 = por %p72, %p73
      %p75 = scmp.ne.s32.totalorder %s64, %s67
      %p76 = scmp.eq.s32.totalorder %s33, 1
      %p77 = por %p75, %p76
      %p78 = scmp.ne.s32.totalorder %s67, %s68
      %p79 = scmp.eq.s32.totalorder %s33, 0
      %p80 = por %p78, %p79
      %p81 = scmp.ne.s32.totalorder %s67, %s68
      %p82 = scmp.eq.s32.totalorder %s34, 1
      %p83 = por %p81, %p82
      %p85 = scmp.ne.s32.totalorder %s68, %s84
      %p86 = scmp.eq.s32.totalorder %s34, 0
      %p87 = por %p85, %p86
      %s89 = sadd.s32 %s88, 1
      %p92 = scmp.eq.s32.totalorder %s28, 1
      %p93 = scmp.ne.s32.totalorder %s88, %s90
      %p94 = scmp.eq.s32.totalorder %s28, 0
      %p95 = por %p93, %p94
      %p96 = scmp.ne.s32.totalorder %s88, %s90
      %p97 = scmp.eq.s32.totalorder %s33, 1
      %p98 = por %p96, %p97
      %p99 = scmp.ne.s32.totalorder %s90, %s91
      %p100 = scmp.eq.s32.totalorder %s33, 0
      %p101 = por %p99, %p100
      %p102 = scmp.ne.s32.totalorder %s90, %s91
      %p103 = scmp.eq.s32.totalorder %s34, 1
      %p104 = por %p102, %p103
      %p106 = scmp.ne.s32.totalorder %s91, %s105
      %p107 = scmp.eq.s32.totalorder %s34, 0
      %p108 = por %p106, %p107
      %s110 = sadd.s32 %s109, 1
      %p113 = scmp.eq.s32.totalorder %s28, 1
      %p114 = scmp.ne.s32.totalorder %s109, %s111
      %p115 = scmp.eq.s32.totalorder %s28, 0
      %p116 = por %p114, %p115
      %p117 = scmp.ne.s32.totalorder %s109, %s111
      %p118 = scmp.eq.s32.totalorder %s33, 1
      %p119 = por %p117, %p118
      %p120 = scmp.ne.s32.totalorder %s111, %s112
      %p121 = scmp.eq.s32.totalorder %s33, 0
      %p122 = por %p120, %p121
      %p123 = scmp.ne.s32.totalorder %s111, %s112
      %p124 = scmp.eq.s32.totalorder %s34, 1
      %p125 = por %p123, %p124
      %p127 = scmp.ne.s32.totalorder %s112, %s126
      %p128 = scmp.eq.s32.totalorder %s34, 0
      %p129 = por %p127, %p128
      %s131 = sadd.s32 %s130, 1
      %p134 = scmp.eq.s32.totalorder %s28, 1
      %p135 = scmp.ne.s32.totalorder %s130, %s132
      %p136 = scmp.eq.s32.totalorder %s28, 0
      %p137 = por %p135, %p136
      %p138 = scmp.ne.s32.totalorder %s130, %s132
      %p139 = scmp.eq.s32.totalorder %s33, 1
      %p140 = por %p138, %p139
      %p141 = scmp.ne.s32.totalorder %s132, %s133
      %p142 = scmp.eq.s32.totalorder %s33, 0
      %p143 = por %p141, %p142
      %p144 = scmp.ne.s32.totalorder %s132, %s133
      %p145 = scmp.eq.s32.totalorder %s34, 1
      %p146 = por %p144, %p145
      %p148 = scmp.ne.s32.totalorder %s133, %s147
      %p149 = scmp.eq.s32.totalorder %s34, 0
      %p150 = por %p148, %p149
      %s152 = sadd.s32 %s151, 1
      %p155 = scmp.eq.s32.totalorder %s28, 1
      %p156 = scmp.ne.s32.totalorder %s151, %s153
      %p157 = scmp.eq.s32.totalorder %s28, 0
      %p158 = por %p156, %p157
      %p159 = scmp.ne.s32.totalorder %s151, %s153
      %p160 = scmp.eq.s32.totalorder %s33, 1
      %p161 = por %p159, %p160
      %p162 = scmp.ne.s32.totalorder %s153, %s154
      %p163 = scmp.eq.s32.totalorder %s33, 0
      %p164 = por %p162, %p163
      %p165 = scmp.ne.s32.totalorder %s153, %s154
      %p166 = scmp.eq.s32.totalorder %s34, 1
      %p167 = por %p165, %p166
      %p169 = scmp.ne.s32.totalorder %s154, %s168
      %p170 = scmp.eq.s32.totalorder %s34, 0
      %p171 = por %p169, %p170
      %s173 = sadd.s32 %s172, 1
      %p176 = scmp.eq.s32.totalorder %s28, 1
      %p177 = scmp.ne.s32.totalorder %s172, %s174
      %p178 = scmp.eq.s32.totalorder %s28, 0
      %p179 = por %p177, %p178
      %p180 = scmp.ne.s32.totalorder %s172, %s174
      %p181 = scmp.eq.s32.totalorder %s33, 1
      %p182 = por %p180, %p181
      %p183 = scmp.ne.s32.totalorder %s174, %s175
      %p184 = scmp.eq.s32.totalorder %s33, 0
      %p185 = por %p183, %p184
      %p186 = scmp.ne.s32.totalorder %s174, %s175
      %p187 = scmp.eq.s32.totalorder %s34, 1
      %p188 = por %p186, %p187
      %p190 = scmp.ne.s32.totalorder %s175, %s189
      %p191 = scmp.eq.s32.totalorder %s34, 0
      %p192 = por %p190, %p191
      %s194 = sadd.s32 %s193, 1
      %p197 = scmp.eq.s32.totalorder %s28, 1
      %p198 = scmp.ne.s32.totalorder %s193, %s195
      %p199 = scmp.eq.s32.totalorder %s28, 0
      %p200 = por %p198, %p199
      %p201 = scmp.ne.s32.totalorder %s193, %s195
      %p202 = scmp.eq.s32.totalorder %s33, 1
      %p203 = por %p201, %p202
      %p204 = scmp.ne.s32.totalorder %s195, %s196
      %p205 = scmp.eq.s32.totalorder %s33, 0
      %p206 = por %p204, %p205
      %p207 = scmp.ne.s32.totalorder %s195, %s196
      %p208 = scmp.eq.s32.totalorder %s34, 1
      %p209 = por %p207, %p208
      %p211 = scmp.ne.s32.totalorder %s196, %s210
      %p212 = scmp.eq.s32.totalorder %s34, 0
      %p213 = por %p211, %p212
      %s215 = sadd.s32 %s214, 1
      %p218 = scmp.eq.s32.totalorder %s28, 1
      %p219 = scmp.ne.s32.totalorder %s214, %s216
      %p220 = scmp.eq.s32.totalorder %s28, 0
      %p221 = por %p219, %p220
      %p222 = scmp.ne.s32.totalorder %s214, %s216
      %p223 = scmp.eq.s32.totalorder %s33, 1
      %p224 = por %p222, %p223
      %p225 = scmp.ne.s32.totalorder %s216, %s217
      %p226 = scmp.eq.s32.totalorder %s33, 0
      %p227 = por %p225, %p226
      %p228 = scmp.ne.s32.totalorder %s216, %s217
      %p229 = scmp.eq.s32.totalorder %s34, 1
      %p230 = por %p228, %p229
      %p232 = scmp.ne.s32.totalorder %s217, %s231
      %p233 = scmp.eq.s32.totalorder %s34, 0
      %p234 = por %p232, %p233
      %s236 = sadd.s32 %s235, 1
      %p239 = scmp.eq.s32.totalorder %s28, 1
      %p240 = scmp.ne.s32.totalorder %s235, %s237
      %p241 = scmp.eq.s32.totalorder %s28, 0
      %p242 = por %p240, %p241
      %p243 = scmp.ne.s32.totalorder %s235, %s237
      %p244 = scmp.eq.s32.totalorder %s33, 1
      %p245 = por %p243, %p244
      %p246 = scmp.ne.s32.totalorder %s237, %s238
      %p247 = scmp.eq.s32.totalorder %s33, 0
      %p248 = por %p246, %p247
      %p249 = scmp.ne.s32.totalorder %s237, %s238
      %p250 = scmp.eq.s32.totalorder %s34, 1
      %p251 = por %p249, %p250
      %p253 = scmp.ne.s32.totalorder %s238, %s252
      %p254 = scmp.eq.s32.totalorder %s34, 0
      %p255 = por %p253, %p254
      %s257 = sadd.s32 %s256, 1
      %p260 = scmp.eq.s32.totalorder %s28, 1
      %p261 = scmp.ne.s32.totalorder %s256, %s258
      %p262 = scmp.eq.s32.totalorder %s28, 0
      %p263 = por %p261, %p262
      %p264 = scmp.ne.s32.totalorder %s256, %s258
      %p265 = scmp.eq.s32.totalorder %s33, 1
      %p266 = por %p264, %p265
      %p267 = scmp.ne.s32.totalorder %s258, %s259
      %p268 = scmp.eq.s32.totalorder %s33, 0
      %p269 = por %p267, %p268
      %p270 = scmp.ne.s32.totalorder %s258, %s259
      %p271 = scmp.eq.s32.totalorder %s34, 1
      %p272 = por %p270, %p271
      %p274 = scmp.ne.s32.totalorder %s259, %s273
      %p275 = scmp.eq.s32.totalorder %s34, 0
      %p276 = por %p274, %p275
      %s278 = sadd.s32 %s277, 1
      %p281 = scmp.eq.s32.totalorder %s28, 1
      %p282 = scmp.ne.s32.totalorder %s277, %s279
      %p283 = scmp.eq.s32.totalorder %s28, 0
      %p284 = por %p282, %p283
      %p285 = scmp.ne.s32.totalorder %s277, %s279
      %p286 = scmp.eq.s32.totalorder %s33, 1
      %p287 = por %p285, %p286
      %p288 = scmp.ne.s32.totalorder %s279, %s280
      %p289 = scmp.eq.s32.totalorder %s33, 0
      %p290 = por %p288, %p289
      %p291 = scmp.ne.s32.totalorder %s279, %s280
      %p292 = scmp.eq.s32.totalorder %s34, 1
      %p293 = por %p291, %p292
      %p295 = scmp.ne.s32.totalorder %s280, %s294
      %p296 = scmp.eq.s32.totalorder %s34, 0
      %p297 = por %p295, %p296
      %s299 = sadd.s32 %s298, 1
      %p302 = scmp.eq.s32.totalorder %s28, 1
      %p303 = scmp.ne.s32.totalorder %s298, %s300
      %p304 = scmp.eq.s32.totalorder %s28, 0
      %p305 = por %p303, %p304
      %p306 = scmp.ne.s32.totalorder %s298, %s300
      %p307 = scmp.eq.s32.totalorder %s33, 1
      %p308 = por %p306, %p307
      %p309 = scmp.ne.s32.totalorder %s300, %s301
      %p310 = scmp.eq.s32.totalorder %s33, 0
      %p311 = por %p309, %p310
      %p312 = scmp.ne.s32.totalorder %s300, %s301
      %p313 = scmp.eq.s32.totalorder %s34, 1
      %p314 = por %p312, %p313
      %p316 = scmp.ne.s32.totalorder %s301, %s315
      %p317 = scmp.eq.s32.totalorder %s34, 0
      %p318 = por %p316, %p317
      %s320 = sadd.s32 %s319, 1
      %p323 = scmp.eq.s32.totalorder %s28, 1
      %p324 = scmp.ne.s32.totalorder %s319, %s321
      %p325 = scmp.eq.s32.totalorder %s28, 0
      %p326 = por %p324, %p325
      %p327 = scmp.ne.s32.totalorder %s319, %s321
      %p328 = scmp.eq.s32.totalorder %s33, 1
      %p329 = por %p327, %p328
      %p330 = scmp.ne.s32.totalorder %s321, %s322
      %p331 = scmp.eq.s32.totalorder %s33, 0
      %p332 = por %p330, %p331
      %p333 = scmp.ne.s32.totalorder %s321, %s322
      %p334 = scmp.eq.s32.totalorder %s34, 1
      %p335 = por %p333, %p334
      %p337 = scmp.ne.s32.totalorder %s322, %s336
      %p338 = scmp.eq.s32.totalorder %s34, 0
      %p339 = por %p337, %p338
      %s341 = sadd.s32 %s340, 1
      %p344 = scmp.eq.s32.totalorder %s28, 1
      %p345 = scmp.ne.s32.totalorder %s340, %s342
      %p346 = scmp.eq.s32.totalorder %s28, 0
      %p347 = por %p345, %p346
      %p348 = scmp.ne.s32.totalorder %s340, %s342
      %p349 = scmp.eq.s32.totalorder %s33, 1
      %p350 = por %p348, %p349
      %p351 = scmp.ne.s32.totalorder %s342, %s343
      %p352 = scmp.eq.s32.totalorder %s33, 0
      %p353 = por %p351, %p352
      %p354 = scmp.ne.s32.totalorder %s342, %s343
      %p355 = scmp.eq.s32.totalorder %s34, 1
      %p356 = por %p354, %p355
      %p358 = scmp.ne.s32.totalorder %s343, %s357
      %p359 = scmp.eq.s32.totalorder %s34, 0
      %p360 = por %p358, %p359
      %s361 = ssub.s32 %s28, %s35
      %p362 = scmp.eq.s32.totalorder %s361, 0
      %s364 = sadd.s32 %s363, 1
      %s365 = scalar_select %p362, %s363, %s364
      %p368 = pneg %p362
      %p369 = scmp.eq.s32.totalorder %s28, 1
      %p370 = por %p368, %p369
      %p371 = scmp.ne.s32.totalorder %s363, %s366
      %p372 = scmp.eq.s32.totalorder %s28, 0
      %p373 = por %p371, %p372
      %p374 = scmp.ne.s32.totalorder %s363, %s366
      %p375 = scmp.eq.s32.totalorder %s33, 1
      %p376 = por %p374, %p375
      %p377 = scmp.ne.s32.totalorder %s366, %s367
      %p378 = scmp.eq.s32.totalorder %s33, 0
      %p379 = por %p377, %p378
      %p380 = scmp.ne.s32.totalorder %s366, %s367
      %p381 = scmp.eq.s32.totalorder %s34, 1
      %p382 = por %p380, %p381
      %p384 = scmp.ne.s32.totalorder %s367, %s383
      %p385 = scmp.eq.s32.totalorder %s34, 0
      %p386 = por %p384, %p385
      %p387 = scmp.le.s32.totalorder 1, %s28
      %p388 = scmp.lt.s32.totalorder %s28, 3
      %p389 = pnand %p387, %p388
      %p390 = pneg %p389
      // Predicated region
      $region9: #{spatial_transformer_forward.1} parent=5 // pred_check
        _
      $region10: #{spatial_transformer_forward.1} parent=5 // pred_check_branch
        %392 = sbr.rel (%p389) target = $region12
      $region11: #{spatial_transformer_forward.1} parent=5 // pred_region
        %s393 = ssub.s32 %s28, 1
        // Predicated region
        $region13: #{spatial_transformer_forward.1} parent=11 // pred_check
          %p394 = pneg %p101
        $region14: #{spatial_transformer_forward.1} parent=11 // pred_check_branch
          %396 = sbr.rel (%p394) target = $region16
        $region15: #{spatial_transformer_forward.1} parent=11 // pred_region
          %s398 = ssub.s32 320, 320
          %399 = vsyncadd [#allocation7], %s398
          %s400 = sshll.u32 [#allocation6], 4
          %s401 = int_to_ptr.vmem [resolvable:$true] %s400
          %406 = dma.hbm_to_vmem [thread:$0]  %s2, 320, %s401, [#allocation7], 64, 64, 4
        $region16: #{spatial_transformer_forward.1} parent=11 // pred_fallthru
          _
        // Predicated region
        $region17: #{spatial_transformer_forward.1} parent=11 // pred_check
          %p407 = pneg %p122
        $region18: #{spatial_transformer_forward.1} parent=11 // pred_check_branch
          %409 = sbr.rel (%p407) target = $region20
        $region19: #{spatial_transformer_forward.1} parent=11 // pred_region
          %s411 = ssub.s32 16, 16
          %412 = vsyncadd [#allocation9], %s411
          %s414 = sshll.u32 [#allocation8], 4
          %s415 = int_to_ptr.vmem [resolvable:$true] %s414
          %417 = dma.hbm_to_vmem [thread:$0]  %s3, 16, %s415, [#allocation9]
        $region20: #{spatial_transformer_forward.1} parent=11 // pred_fallthru
          _
        // Predicated region
        $region21: #{spatial_transformer_forward.1} parent=11 // pred_check
          %p418 = pneg %p143
        $region22: #{spatial_transformer_forward.1} parent=11 // pred_check_branch
          %420 = sbr.rel (%p418) target = $region24
        $region23: #{spatial_transformer_forward.1} parent=11 // pred_region
          %s422 = ssub.s32 4608, 4608
          %423 = vsyncadd [#allocation9], %s422
          %s424 = sshll.u32 [#allocation10], 4
          %s425 = int_to_ptr.vmem [resolvable:$true] %s424
          %430 = dma.hbm_to_vmem [thread:$0]  %s4, 4608, %s425, [#allocation9], 64, 64, 4
        $region24: #{spatial_transformer_forward.1} parent=11 // pred_fallthru
          _
        // Predicated region
        $region25: #{spatial_transformer_forward.1} parent=11 // pred_check
          %p431 = pneg %p164
        $region26: #{spatial_transformer_forward.1} parent=11 // pred_check_branch
          %433 = sbr.rel (%p431) target = $region28
        $region27: #{spatial_transformer_forward.1} parent=11 // pred_region
          %s435 = ssub.s32 16, 16
          %436 = vsyncadd [#allocation12], %s435
          %s438 = sshll.u32 [#allocation11], 4
          %s439 = int_to_ptr.vmem [resolvable:$true] %s438
          %441 = dma.hbm_to_vmem [thread:$0]  %s5, 16, %s439, [#allocation12]
        $region28: #{spatial_transformer_forward.1} parent=11 // pred_fallthru
          _
        // Predicated region
        $region29: #{spatial_transformer_forward.1} parent=11 // pred_check
          %p442 = pneg %p185
        $region30: #{spatial_transformer_forward.1} parent=11 // pred_check_branch
          %444 = sbr.rel (%p442) target = $region32
        $region31: #{spatial_transformer_forward.1} parent=11 // pred_region
          %s446 = ssub.s32 18432, 18432
          %447 = vsyncadd [#allocation12], %s446
          %s448 = sshll.u32 [#allocation13], 4
          %s449 = int_to_ptr.vmem [resolvable:$true] %s448
          %454 = dma.hbm_to_vmem [thread:$0]  %s6, 18432, %s449, [#allocation12], 128, 128, 8
        $region32: #{spatial_transformer_forward.1} parent=11 // pred_fallthru
          _
        // Predicated region
        $region33: #{spatial_transformer_forward.1} parent=11 // pred_check
          %p455 = pneg %p206
        $region34: #{spatial_transformer_forward.1} parent=11 // pred_check_branch
          %457 = sbr.rel (%p455) target = $region36
        $region35: #{spatial_transformer_forward.1} parent=11 // pred_region
          %s459 = ssub.s32 32, 32
          %460 = vsyncadd [#allocation15], %s459
          %s462 = sshll.u32 [#allocation14], 4
          %s463 = int_to_ptr.vmem [resolvable:$true] %s462
          %465 = dma.hbm_to_vmem [thread:$0]  %s7, 32, %s463, [#allocation15]
        $region36: #{spatial_transformer_forward.1} parent=11 // pred_fallthru
          _
        // Predicated region
        $region37: #{spatial_transformer_forward.1} parent=11 // pred_check
          %p466 = pneg %p227
        $region38: #{spatial_transformer_forward.1} parent=11 // pred_check_branch
          %468 = sbr.rel (%p466) target = $region40
        $region39: #{spatial_transformer_forward.1} parent=11 // pred_region
          %s470 = ssub.s32 73728, 73728
          %471 = vsyncadd [#allocation15], %s470
          %s472 = sshll.u32 [#allocation16], 4
          %s473 = int_to_ptr.vmem [resolvable:$true] %s472
          %478 = dma.hbm_to_vmem [thread:$0]  %s8, 73728, %s473, [#allocation15], 256, 256, 16
        $region40: #{spatial_transformer_forward.1} parent=11 // pred_fallthru
          _
        // Predicated region
        $region41: #{spatial_transformer_forward.1} parent=11 // pred_check
          %p479 = pneg %p248
        $region42: #{spatial_transformer_forward.1} parent=11 // pred_check_branch
          %481 = sbr.rel (%p479) target = $region44
        $region43: #{spatial_transformer_forward.1} parent=11 // pred_region
          %s483 = ssub.s32 64, 64
          %484 = vsyncadd [#allocation18], %s483
          %s486 = sshll.u32 [#allocation17], 4
          %s487 = int_to_ptr.vmem [resolvable:$true] %s486
          %489 = dma.hbm_to_vmem [thread:$0]  %s9, 64, %s487, [#allocation18]
        $region44: #{spatial_transformer_forward.1} parent=11 // pred_fallthru
          _
        // Predicated region
        $region45: #{spatial_transformer_forward.1} parent=11 // pred_check
          %p490 = pneg %p269
        $region46: #{spatial_transformer_forward.1} parent=11 // pred_check_branch
          %492 = sbr.rel (%p490) target = $region48
        $region47: #{spatial_transformer_forward.1} parent=11 // pred_region
          %s494 = ssub.s32 8192, 8192
          %495 = vsyncadd [#allocation18], %s494
          %s496 = sshll.u32 [#allocation19], 4
          %s497 = int_to_ptr.vmem [resolvable:$true] %s496
          %502 = dma.hbm_to_vmem [thread:$0]  %s10, 8192, %s497, [#allocation18], 128, 128, 8
        $region48: #{spatial_transformer_forward.1} parent=11 // pred_fallthru
          _
        // Predicated region
        $region49: #{spatial_transformer_forward.1} parent=11 // pred_check
          %p503 = pneg %p290
        $region50: #{spatial_transformer_forward.1} parent=11 // pred_check_branch
          %505 = sbr.rel (%p503) target = $region52
        $region51: #{spatial_transformer_forward.1} parent=11 // pred_region
          %s507 = ssub.s32 32, 32
          %508 = vsyncadd [#allocation21], %s507
          %s510 = sshll.u32 [#allocation20], 4
          %s511 = int_to_ptr.vmem [resolvable:$true] %s510
          %513 = dma.hbm_to_vmem [thread:$0]  %s11, 32, %s511, [#allocation21]
        $region52: #{spatial_transformer_forward.1} parent=11 // pred_fallthru
          _
        // Predicated region
        $region53: #{spatial_transformer_forward.1} parent=11 // pred_check
          %p514 = pneg %p311
        $region54: #{spatial_transformer_forward.1} parent=11 // pred_check_branch
          %516 = sbr.rel (%p514) target = $region56
        $region55: #{spatial_transformer_forward.1} parent=11 // pred_region
          _
        $region56: #{spatial_transformer_forward.1} parent=11 // pred_fallthru
          _
        // Predicated region
        $region57: #{spatial_transformer_forward.1} parent=11 // pred_check
          %p517 = pneg %p332
        $region58: #{spatial_transformer_forward.1} parent=11 // pred_check_branch
          %519 = sbr.rel (%p517) target = $region60
        $region59: #{spatial_transformer_forward.1} parent=11 // pred_region
          %s521 = ssub.s32 16, 16
          %522 = vsyncadd [#allocation21], %s521
          %s524 = sshll.u32 [#allocation22], 4
          %s525 = int_to_ptr.vmem [resolvable:$true] %s524
          %527 = dma.hbm_to_vmem [thread:$0]  %s13, 16, %s525, [#allocation21]
        $region60: #{spatial_transformer_forward.1} parent=11 // pred_fallthru
          _
        // Predicated region
        $region61: #{spatial_transformer_forward.1} parent=11 // pred_check
          %p528 = pneg %p353
        $region62: #{spatial_transformer_forward.1} parent=11 // pred_check_branch
          %530 = sbr.rel (%p528) target = $region64
        $region63: #{spatial_transformer_forward.1} parent=11 // pred_region
          %s532 = ssub.s32 128, 128
          %533 = vsyncadd [#allocation24], %s532
          %s535 = sshll.u32 [#allocation23], 4
          %s536 = int_to_ptr.vmem [resolvable:$true] %s535
          %538 = dma.hbm_to_vmem [thread:$0]  %s14, 128, %s536, [#allocation24]
        $region64: #{spatial_transformer_forward.1} parent=11 // pred_fallthru
          _
      $region12: #{spatial_transformer_forward.1} parent=5 // pred_fallthru
        _
      %p539 = scmp.lt.s32.totalorder %s28, 2
      // Predicated region
      $region65: #{spatial_transformer_forward.1} parent=5 // pred_check
        %p540 = pneg %p539
      $region66: #{spatial_transformer_forward.1} parent=5 // pred_check_branch
        %542 = sbr.rel (%p540) target = $region68
      $region67: #{spatial_transformer_forward.1} parent=5 // pred_region
        // Predicated region
        $region69: #{spatial_transformer_forward.1} parent=67 // pred_check
          %p543 = pneg %p48
        $region70: #{spatial_transformer_forward.1} parent=67 // pred_check_branch
          %545 = sbr.rel (%p543) target = $region72
        $region71: #{spatial_transformer_forward.1} parent=67 // pred_region
          %p546 = scmp.lt.s32.totalorder %s28, 1
          %s547 = scalar_select %p546, %s28, 1
          %s548 = smul.addr %s547, 32
          %s549 = smul.addr %s548, 8
          %s550 = scalar_lea.vmem %s0, %s549
        $region72: #{spatial_transformer_forward.1} parent=67 // pred_fallthru
          _
        // Predicated region
        $region73: #{spatial_transformer_forward.1} parent=67 // pred_check
          %p551 = pneg %p74
        $region74: #{spatial_transformer_forward.1} parent=67 // pred_check_branch
          %553 = sbr.rel (%p551) target = $region76
        $region75: #{spatial_transformer_forward.1} parent=67 // pred_region
          %p554 = scmp.lt.s32.totalorder %s28, 1
          %s555 = scalar_select %p554, %s28, 1
          %s556 = smul.addr %s555, 8
          %s557 = smul.addr %s556, 8
          %s558 = scalar_lea.vmem %s1, %s557
        $region76: #{spatial_transformer_forward.1} parent=67 // pred_fallthru
          _
      $region68: #{spatial_transformer_forward.1} parent=5 // pred_fallthru
        _
      %p559 = scmp.le.s32.totalorder 1, %s28
      %p560 = scmp.lt.s32.totalorder %s28, 3
      %p561 = pnand %p559, %p560
      %p562 = pneg %p561
      // Predicated region
      $region77: #{spatial_transformer_forward.1} parent=5 // pred_check
        _
      $region78: #{spatial_transformer_forward.1} parent=5 // pred_check_branch
        %564 = sbr.rel (%p561) target = $region80
      $region79: #{spatial_transformer_forward.1} parent=5 // pred_region
        %s565 = ssub.s32 %s28, 1
        // Predicated region
        $region81: #{spatial_transformer_forward.1} parent=79 // pred_check
          %p566 = pneg %p101
        $region82: #{spatial_transformer_forward.1} parent=79 // pred_check_branch
          %568 = sbr.rel (%p566) target = $region84
        $region83: #{spatial_transformer_forward.1} parent=79 // pred_region
          %569 = dma.done [#allocation7], 320
        $region84: #{spatial_transformer_forward.1} parent=79 // pred_fallthru
          _
        // Predicated region
        $region85: #{spatial_transformer_forward.1} parent=79 // pred_check
          %p570 = pneg %p122
        $region86: #{spatial_transformer_forward.1} parent=79 // pred_check_branch
          %572 = sbr.rel (%p570) target = $region88
        $region87: #{spatial_transformer_forward.1} parent=79 // pred_region
          %573 = dma.done [#allocation9], 16
        $region88: #{spatial_transformer_forward.1} parent=79 // pred_fallthru
          _
        // Predicated region
        $region89: #{spatial_transformer_forward.1} parent=79 // pred_check
          %p574 = pneg %p143
        $region90: #{spatial_transformer_forward.1} parent=79 // pred_check_branch
          %576 = sbr.rel (%p574) target = $region92
        $region91: #{spatial_transformer_forward.1} parent=79 // pred_region
          %577 = dma.done [#allocation9], 4608
        $region92: #{spatial_transformer_forward.1} parent=79 // pred_fallthru
          _
        // Predicated region
        $region93: #{spatial_transformer_forward.1} parent=79 // pred_check
          %p578 = pneg %p164
        $region94: #{spatial_transformer_forward.1} parent=79 // pred_check_branch
          %580 = sbr.rel (%p578) target = $region96
        $region95: #{spatial_transformer_forward.1} parent=79 // pred_region
          %581 = dma.done [#allocation12], 16
        $region96: #{spatial_transformer_forward.1} parent=79 // pred_fallthru
          _
        // Predicated region
        $region97: #{spatial_transformer_forward.1} parent=79 // pred_check
          %p582 = pneg %p185
        $region98: #{spatial_transformer_forward.1} parent=79 // pred_check_branch
          %584 = sbr.rel (%p582) target = $region100
        $region99: #{spatial_transformer_forward.1} parent=79 // pred_region
          %585 = dma.done [#allocation12], 18432
        $region100: #{spatial_transformer_forward.1} parent=79 // pred_fallthru
          _
        // Predicated region
        $region101: #{spatial_transformer_forward.1} parent=79 // pred_check
          %p586 = pneg %p206
        $region102: #{spatial_transformer_forward.1} parent=79 // pred_check_branch
          %588 = sbr.rel (%p586) target = $region104
        $region103: #{spatial_transformer_forward.1} parent=79 // pred_region
          %589 = dma.done [#allocation15], 32
        $region104: #{spatial_transformer_forward.1} parent=79 // pred_fallthru
          _
        // Predicated region
        $region105: #{spatial_transformer_forward.1} parent=79 // pred_check
          %p590 = pneg %p227
        $region106: #{spatial_transformer_forward.1} parent=79 // pred_check_branch
          %592 = sbr.rel (%p590) target = $region108
        $region107: #{spatial_transformer_forward.1} parent=79 // pred_region
          %593 = dma.done [#allocation15], 73728
        $region108: #{spatial_transformer_forward.1} parent=79 // pred_fallthru
          _
        // Predicated region
        $region109: #{spatial_transformer_forward.1} parent=79 // pred_check
          %p594 = pneg %p248
        $region110: #{spatial_transformer_forward.1} parent=79 // pred_check_branch
          %596 = sbr.rel (%p594) target = $region112
        $region111: #{spatial_transformer_forward.1} parent=79 // pred_region
          %597 = dma.done [#allocation18], 64
        $region112: #{spatial_transformer_forward.1} parent=79 // pred_fallthru
          _
        // Predicated region
        $region113: #{spatial_transformer_forward.1} parent=79 // pred_check
          %p598 = pneg %p269
        $region114: #{spatial_transformer_forward.1} parent=79 // pred_check_branch
          %600 = sbr.rel (%p598) target = $region116
        $region115: #{spatial_transformer_forward.1} parent=79 // pred_region
          %601 = dma.done [#allocation18], 8192
        $region116: #{spatial_transformer_forward.1} parent=79 // pred_fallthru
          _
        // Predicated region
        $region117: #{spatial_transformer_forward.1} parent=79 // pred_check
          %p602 = pneg %p290
        $region118: #{spatial_transformer_forward.1} parent=79 // pred_check_branch
          %604 = sbr.rel (%p602) target = $region120
        $region119: #{spatial_transformer_forward.1} parent=79 // pred_region
          %605 = dma.done [#allocation21], 32
        $region120: #{spatial_transformer_forward.1} parent=79 // pred_fallthru
          _
        // Predicated region
        $region121: #{spatial_transformer_forward.1} parent=79 // pred_check
          %p606 = pneg %p332
        $region122: #{spatial_transformer_forward.1} parent=79 // pred_check_branch
          %608 = sbr.rel (%p606) target = $region124
        $region123: #{spatial_transformer_forward.1} parent=79 // pred_region
          %609 = dma.done [#allocation21], 16
        $region124: #{spatial_transformer_forward.1} parent=79 // pred_fallthru
          _
        // Predicated region
        $region125: #{spatial_transformer_forward.1} parent=79 // pred_check
          %p610 = pneg %p353
        $region126: #{spatial_transformer_forward.1} parent=79 // pred_check_branch
          %612 = sbr.rel (%p610) target = $region128
        $region127: #{spatial_transformer_forward.1} parent=79 // pred_region
          %613 = dma.done [#allocation24], 128
        $region128: #{spatial_transformer_forward.1} parent=79 // pred_fallthru
          _
        %p614 = scmp.lt.s32.totalorder %s33, 1
        %s615 = scalar_select %p614, %s33, 1
        %s616 = smul.addr %s615, 32
        %s617 = smul.addr %s616, 8
        %s618 = scalar_lea.vmem %s0, %s617
        %p619 = pneg %p54
        %p620 = pneg %p51
        %p621 = scmp.lt.s32.totalorder %s33, 1
        %s622 = scalar_select %p621, %s33, 1
        %s623 = smul.addr %s622, 8
        %s624 = smul.addr %s623, 8
        %s625 = scalar_lea.vmem %s1, %s624
        %p626 = pneg %p80
        %p627 = pneg %p77
        %p628 = pneg %p101
        %p629 = pneg %p98
        %p630 = pneg %p122
        %p631 = pneg %p119
        %p632 = pneg %p143
        %p633 = pneg %p140
        %p634 = pneg %p164
        %p635 = pneg %p161
        %p636 = pneg %p185
        %p637 = pneg %p182
        %p638 = pneg %p206
        %p639 = pneg %p203
        %p640 = pneg %p227
        %p641 = pneg %p224
        %p642 = pneg %p248
        %p643 = pneg %p245
        %p644 = pneg %p269
        %p645 = pneg %p266
        %p646 = pneg %p290
        %p647 = pneg %p287
        %p648 = pneg %p311
        %p649 = pneg %p308
        %p650 = pneg %p332
        %p651 = pneg %p329
        %p652 = pneg %p353
        %p653 = pneg %p350
        %p654 = pneg %p379
        %p655 = pneg %p376
        %p656 = scmp.lt.s32.totalorder %s33, 1
        %s657 = scalar_select %p656, %s33, 1
        %s658 = smul.addr %s657, 4
        %s659 = scalar_lea.vmem %s15, %s658
        %p660 = scmp.lt.s32.totalorder %s33, 1
        %s661 = scalar_select %p660, %s33, 1
        %s662 = smul.addr %s661, 32
        %s663 = smul.addr %s662, 8
        %s664 = scalar_lea.vmem %s0, %s663
        %p665 = scmp.lt.s32.totalorder %s33, 1
        %s666 = scalar_select %p665, %s33, 1
        %s667 = smul.addr %s666, 8
        %s668 = smul.addr %s667, 8
        %s669 = scalar_lea.vmem %s1, %s668
        %p670 = scmp.lt.s32.totalorder %s33, 1
        %s671 = scalar_select %p670, %s33, 1
        %s672 = smul.addr %s671, 4
        %s673 = scalar_lea.vmem %s15, %s672
        %v675 = vld [vmem:[%s664] sm:$0xff]
        %v676 = vld [vmem:[%s664 + $0x8] sm:$0xff]
        %v677 = vld [vmem:[%s664 + $0x10] sm:$0xff]
        %v678 = vld [vmem:[%s664 + $0x18] sm:$0xff]
        %v679 = vld [vmem:[%s664 + $0x20] sm:$0xff]
        %v680 = vld [vmem:[%s664 + $0x28] sm:$0xff]
        %v681 = vld [vmem:[%s664 + $0x30] sm:$0xff]
        %v682 = vld [vmem:[%s664 + $0x38] sm:$0xff]
        %v683 = vld [vmem:[%s664 + $0x40] sm:$0xff]
        %v684 = vld [vmem:[%s664 + $0x48] sm:$0xff]
        %v685 = vld [vmem:[%s664 + $0x50] sm:$0xff]
        %v686 = vld [vmem:[%s664 + $0x58] sm:$0xff]
        %v687 = vld [vmem:[%s664 + $0x60] sm:$0xff]
        %v688 = vld [vmem:[%s664 + $0x68] sm:$0xff]
        %v689 = vld [vmem:[%s664 + $0x70] sm:$0xff]
        %v690 = vld [vmem:[%s664 + $0x78] sm:$0xff]
        %v691 = vld [vmem:[%s664 + $0x80] sm:$0xff]
        %v692 = vld [vmem:[%s664 + $0x88] sm:$0xff]
        %v693 = vld [vmem:[%s664 + $0x90] sm:$0xff]
        %v694 = vld [vmem:[%s664 + $0x98] sm:$0xff]
        %v695 = vld [vmem:[%s664 + $0xa0] sm:$0xff]
        %v696 = vld [vmem:[%s664 + $0xa8] sm:$0xff]
        %v697 = vld [vmem:[%s664 + $0xb0] sm:$0xff]
        %v698 = vld [vmem:[%s664 + $0xb8] sm:$0xff]
        %v699 = vld [vmem:[%s664 + $0xc0] sm:$0xff]
        %v700 = vld [vmem:[%s664 + $0xc8] sm:$0xff]
        %v701 = vld [vmem:[%s664 + $0xd0] sm:$0xff]
        %v702 = vld [vmem:[%s664 + $0xd8] sm:$0xff]
        %v703 = vld [vmem:[%s664 + $0xe0] sm:$0xff]
        %v704 = vld [vmem:[%s664 + $0xe8] sm:$0xff]
        %v705 = vld [vmem:[%s664 + $0xf0] sm:$0xff]
        %v706 = vld [vmem:[%s664 + $0xf8] sm:$0xff]
        %vm707 = vcmask 31744
        %708 = vst.msk [vmem:[#allocation2] sm:$0xff] %vm707, 0.0
        %709 = vst.msk [vmem:[#allocation2 + $0x8] sm:$0xff] %vm707, 0.0
        %vm710 = vcmask 25600
        %711 = vst.msk [vmem:[#allocation2 + $0x10] sm:$0x3] %vm710, 0.0
        %s712 = scalar_lea.vmem [#allocation2], 408
        %713 = vst.msk [vmem:[%s712] sm:$0xff] %vm707, 0.0
        %714 = vst.msk [vmem:[%s712 + $0x8] sm:$0xff] %vm707, 0.0
        %715 = vst.msk [vmem:[%s712 + $0x10] sm:$0x3] %vm710, 0.0
        %vm716 = vcmask 24576
        %717 = vst.msk [vmem:[#allocation2] sm:$0x1] %vm716, 0.0
        %718 = vst.msk [vmem:[#allocation2 + $0x18] sm:$0x1] %vm716, 0.0
        %719 = vst.msk [vmem:[#allocation2 + $0x30] sm:$0x1] %vm716, 0.0
        %720 = vst.msk [vmem:[#allocation2 + $0x48] sm:$0x1] %vm716, 0.0
        %721 = vst.msk [vmem:[#allocation2 + $0x60] sm:$0x1] %vm716, 0.0
        %722 = vst.msk [vmem:[#allocation2 + $0x78] sm:$0x1] %vm716, 0.0
        %723 = vst.msk [vmem:[#allocation2 + $0x90] sm:$0x1] %vm716, 0.0
        %724 = vst.msk [vmem:[#allocation2 + $0xa8] sm:$0x1] %vm716, 0.0
        %725 = vst.msk [vmem:[#allocation2 + $0xc0] sm:$0x1] %vm716, 0.0
        %726 = vst.msk [vmem:[#allocation2 + $0xd8] sm:$0x1] %vm716, 0.0
        %727 = vst.msk [vmem:[#allocation2 + $0xf0] sm:$0x1] %vm716, 0.0
        %728 = vst.msk [vmem:[#allocation2 + $0x108] sm:$0x1] %vm716, 0.0
        %729 = vst.msk [vmem:[#allocation2 + $0x120] sm:$0x1] %vm716, 0.0
        %730 = vst.msk [vmem:[#allocation2 + $0x138] sm:$0x1] %vm716, 0.0
        %731 = vst.msk [vmem:[#allocation2 + $0x150] sm:$0x1] %vm716, 0.0
        %732 = vst.msk [vmem:[#allocation2 + $0x168] sm:$0x1] %vm716, 0.0
        %733 = vst.msk [vmem:[#allocation2 + $0x180] sm:$0x1] %vm716, 0.0
        %734 = vst.msk [vmem:[#allocation2 + $0x198] sm:$0x1] %vm716, 0.0
        %735 = vst.msk [vmem:[#allocation2 + $0x11] sm:$0x1] %vm716, 0.0
        %736 = vst.msk [vmem:[#allocation2 + $0x29] sm:$0x1] %vm716, 0.0
        %737 = vst.msk [vmem:[#allocation2 + $0x41] sm:$0x1] %vm716, 0.0
        %738 = vst.msk [vmem:[#allocation2 + $0x59] sm:$0x1] %vm716, 0.0
        %739 = vst.msk [vmem:[#allocation2 + $0x71] sm:$0x1] %vm716, 0.0
        %740 = vst.msk [vmem:[#allocation2 + $0x89] sm:$0x1] %vm716, 0.0
        %741 = vst.msk [vmem:[#allocation2 + $0xa1] sm:$0x1] %vm716, 0.0
        %742 = vst.msk [vmem:[#allocation2 + $0xb9] sm:$0x1] %vm716, 0.0
        %743 = vst.msk [vmem:[#allocation2 + $0xd1] sm:$0x1] %vm716, 0.0
        %744 = vst.msk [vmem:[#allocation2 + $0xe9] sm:$0x1] %vm716, 0.0
        %745 = vst.msk [vmem:[#allocation2 + $0x101] sm:$0x1] %vm716, 0.0
        %746 = vst.msk [vmem:[#allocation2 + $0x119] sm:$0x1] %vm716, 0.0
        %747 = vst.msk [vmem:[#allocation2 + $0x131] sm:$0x1] %vm716, 0.0
        %748 = vst.msk [vmem:[#allocation2 + $0x149] sm:$0x1] %vm716, 0.0
        %749 = vst.msk [vmem:[#allocation2 + $0x161] sm:$0x1] %vm716, 0.0
        %750 = vst.msk [vmem:[#allocation2 + $0x179] sm:$0x1] %vm716, 0.0
        %751 = vst.msk [vmem:[#allocation2 + $0x191] sm:$0x1] %vm716, 0.0
        %752 = vst.msk [vmem:[#allocation2 + $0x1a9] sm:$0x1] %vm716, 0.0
        %s753 = scalar_lea.vmem [#allocation2], 24
        %754 = vst.msk [vmem:[%s753 + $0x1] sm:$0xff] %vm707, %v675
        %755 = vst.msk [vmem:[%s753 + $0x9] sm:$0xff] %vm707, %v676
        %756 = vst.msk [vmem:[%s753 + $0x19] sm:$0xff] %vm707, %v677
        %757 = vst.msk [vmem:[%s753 + $0x21] sm:$0xff] %vm707, %v678
        %758 = vst.msk [vmem:[%s753 + $0x31] sm:$0xff] %vm707, %v679
        %759 = vst.msk [vmem:[%s753 + $0x39] sm:$0xff] %vm707, %v680
        %760 = vst.msk [vmem:[%s753 + $0x49] sm:$0xff] %vm707, %v681
        %761 = vst.msk [vmem:[%s753 + $0x51] sm:$0xff] %vm707, %v682
        %762 = vst.msk [vmem:[%s753 + $0x61] sm:$0xff] %vm707, %v683
        %763 = vst.msk [vmem:[%s753 + $0x69] sm:$0xff] %vm707, %v684
        %764 = vst.msk [vmem:[%s753 + $0x79] sm:$0xff] %vm707, %v685
        %765 = vst.msk [vmem:[%s753 + $0x81] sm:$0xff] %vm707, %v686
        %766 = vst.msk [vmem:[%s753 + $0x91] sm:$0xff] %vm707, %v687
        %767 = vst.msk [vmem:[%s753 + $0x99] sm:$0xff] %vm707, %v688
        %768 = vst.msk [vmem:[%s753 + $0xa9] sm:$0xff] %vm707, %v689
        %769 = vst.msk [vmem:[%s753 + $0xb1] sm:$0xff] %vm707, %v690
        %770 = vst.msk [vmem:[%s753 + $0xc1] sm:$0xff] %vm707, %v691
        %771 = vst.msk [vmem:[%s753 + $0xc9] sm:$0xff] %vm707, %v692
        %772 = vst.msk [vmem:[%s753 + $0xd9] sm:$0xff] %vm707, %v693
        %773 = vst.msk [vmem:[%s753 + $0xe1] sm:$0xff] %vm707, %v694
        %774 = vst.msk [vmem:[%s753 + $0xf1] sm:$0xff] %vm707, %v695
        %775 = vst.msk [vmem:[%s753 + $0xf9] sm:$0xff] %vm707, %v696
        %776 = vst.msk [vmem:[%s753 + $0x109] sm:$0xff] %vm707, %v697
        %777 = vst.msk [vmem:[%s753 + $0x111] sm:$0xff] %vm707, %v698
        %778 = vst.msk [vmem:[%s753 + $0x121] sm:$0xff] %vm707, %v699
        %779 = vst.msk [vmem:[%s753 + $0x129] sm:$0xff] %vm707, %v700
        %780 = vst.msk [vmem:[%s753 + $0x139] sm:$0xff] %vm707, %v701
        %781 = vst.msk [vmem:[%s753 + $0x141] sm:$0xff] %vm707, %v702
        %782 = vst.msk [vmem:[%s753 + $0x151] sm:$0xff] %vm707, %v703
        %783 = vst.msk [vmem:[%s753 + $0x159] sm:$0xff] %vm707, %v704
        %784 = vst.msk [vmem:[%s753 + $0x169] sm:$0xff] %vm707, %v705
        %785 = vst.msk [vmem:[%s753 + $0x171] sm:$0xff] %vm707, %v706
        %v786 = vld [vmem:[#allocation2] sm:$0xff]
        %v787 = vld [vmem:[#allocation2 + $0x8] sm:$0xff]
        %v788 = vld [vmem:[#allocation2 + $0x18] sm:$0xff]
        %v789 = vld [vmem:[#allocation2 + $0x20] sm:$0xff]
        %v790 = vld [vmem:[#allocation2 + $0x30] sm:$0xff]
        %v791 = vld [vmem:[#allocation2 + $0x38] sm:$0xff]
        %v792 = vld [vmem:[#allocation2 + $0x48] sm:$0xff]
        %v793 = vld [vmem:[#allocation2 + $0x50] sm:$0xff]
        %v794 = vld [vmem:[#allocation2 + $0x60] sm:$0xff]
        %v795 = vld [vmem:[#allocation2 + $0x68] sm:$0xff]
        %v796 = vld [vmem:[#allocation2 + $0x78] sm:$0xff]
        %v797 = vld [vmem:[#allocation2 + $0x80] sm:$0xff]
        %v798 = vld [vmem:[#allocation2 + $0x90] sm:$0xff]
        %v799 = vld [vmem:[#allocation2 + $0x98] sm:$0xff]
        %v800 = vld [vmem:[#allocation2 + $0xa8] sm:$0xff]
        %v801 = vld [vmem:[#allocation2 + $0xb0] sm:$0xff]
        %v802 = vld [vmem:[#allocation2 + $0xc0] sm:$0xff]
        %v803 = vld [vmem:[#allocation2 + $0xc8] sm:$0xff]
        %v804 = vld [vmem:[#allocation2 + $0xd8] sm:$0xff]
        %v805 = vld [vmem:[#allocation2 + $0xe0] sm:$0xff]
        %v806 = vld [vmem:[#allocation2 + $0xf0] sm:$0xff]
        %v807 = vld [vmem:[#allocation2 + $0xf8] sm:$0xff]
        %v808 = vld [vmem:[#allocation2 + $0x108] sm:$0xff]
        %v809 = vld [vmem:[#allocation2 + $0x110] sm:$0xff]
        %v810 = vld [vmem:[#allocation2 + $0x120] sm:$0xff]
        %v811 = vld [vmem:[#allocation2 + $0x128] sm:$0xff]
        %v812 = vld [vmem:[#allocation2 + $0x138] sm:$0xff]
        %v813 = vld [vmem:[#allocation2 + $0x140] sm:$0xff]
        %v814 = vld [vmem:[#allocation2 + $0x150] sm:$0xff]
        %v815 = vld [vmem:[#allocation2 + $0x158] sm:$0xff]
        %v816 = vld [vmem:[#allocation2 + $0x168] sm:$0xff]
        %v817 = vld [vmem:[#allocation2 + $0x170] sm:$0xff]
        %v818 = vld [vmem:[%s753] sm:$0xff]
        %v819 = vld [vmem:[%s753 + $0x8] sm:$0xff]
        %v820 = vld [vmem:[%s753 + $0x18] sm:$0xff]
        %v821 = vld [vmem:[%s753 + $0x20] sm:$0xff]
        %v822 = vld [vmem:[%s753 + $0x30] sm:$0xff]
        %v823 = vld [vmem:[%s753 + $0x38] sm:$0xff]
        %v824 = vld [vmem:[%s753 + $0x48] sm:$0xff]
        %v825 = vld [vmem:[%s753 + $0x50] sm:$0xff]
        %v826 = vld [vmem:[%s753 + $0x60] sm:$0xff]
        %v827 = vld [vmem:[%s753 + $0x68] sm:$0xff]
        %v828 = vld [vmem:[%s753 + $0x78] sm:$0xff]
        %v829 = vld [vmem:[%s753 + $0x80] sm:$0xff]
        %v830 = vld [vmem:[%s753 + $0x90] sm:$0xff]
        %v831 = vld [vmem:[%s753 + $0x98] sm:$0xff]
        %v832 = vld [vmem:[%s753 + $0xa8] sm:$0xff]
        %v833 = vld [vmem:[%s753 + $0xb0] sm:$0xff]
        %v834 = vld [vmem:[%s753 + $0xc0] sm:$0xff]
        %v835 = vld [vmem:[%s753 + $0xc8] sm:$0xff]
        %v836 = vld [vmem:[%s753 + $0xd8] sm:$0xff]
        %v837 = vld [vmem:[%s753 + $0xe0] sm:$0xff]
        %v838 = vld [vmem:[%s753 + $0xf0] sm:$0xff]
        %v839 = vld [vmem:[%s753 + $0xf8] sm:$0xff]
        %v840 = vld [vmem:[%s753 + $0x108] sm:$0xff]
        %v841 = vld [vmem:[%s753 + $0x110] sm:$0xff]
        %v842 = vld [vmem:[%s753 + $0x120] sm:$0xff]
        %v843 = vld [vmem:[%s753 + $0x128] sm:$0xff]
        %v844 = vld [vmem:[%s753 + $0x138] sm:$0xff]
        %v845 = vld [vmem:[%s753 + $0x140] sm:$0xff]
        %v846 = vld [vmem:[%s753 + $0x150] sm:$0xff]
        %v847 = vld [vmem:[%s753 + $0x158] sm:$0xff]
        %v848 = vld [vmem:[%s753 + $0x168] sm:$0xff]
        %v849 = vld [vmem:[%s753 + $0x170] sm:$0xff]
        %s850 = scalar_lea.vmem [#allocation2], 48
        %v851 = vld [vmem:[%s850] sm:$0xff]
        %v852 = vld [vmem:[%s850 + $0x8] sm:$0xff]
        %v853 = vld [vmem:[%s850 + $0x18] sm:$0xff]
        %v854 = vld [vmem:[%s850 + $0x20] sm:$0xff]
        %v855 = vld [vmem:[%s850 + $0x30] sm:$0xff]
        %v856 = vld [vmem:[%s850 + $0x38] sm:$0xff]
        %v857 = vld [vmem:[%s850 + $0x48] sm:$0xff]
        %v858 = vld [vmem:[%s850 + $0x50] sm:$0xff]
        %v859 = vld [vmem:[%s850 + $0x60] sm:$0xff]
        %v860 = vld [vmem:[%s850 + $0x68] sm:$0xff]
        %v861 = vld [vmem:[%s850 + $0x78] sm:$0xff]
        %v862 = vld [vmem:[%s850 + $0x80] sm:$0xff]
        %v863 = vld [vmem:[%s850 + $0x90] sm:$0xff]
        %v864 = vld [vmem:[%s850 + $0x98] sm:$0xff]
        %v865 = vld [vmem:[%s850 + $0xa8] sm:$0xff]
        %v866 = vld [vmem:[%s850 + $0xb0] sm:$0xff]
        %v867 = vld [vmem:[%s850 + $0xc0] sm:$0xff]
        %v868 = vld [vmem:[%s850 + $0xc8] sm:$0xff]
        %v869 = vld [vmem:[%s850 + $0xd8] sm:$0xff]
        %v870 = vld [vmem:[%s850 + $0xe0] sm:$0xff]
        %v871 = vld [vmem:[%s850 + $0xf0] sm:$0xff]
        %v872 = vld [vmem:[%s850 + $0xf8] sm:$0xff]
        %v873 = vld [vmem:[%s850 + $0x108] sm:$0xff]
        %v874 = vld [vmem:[%s850 + $0x110] sm:$0xff]
        %v875 = vld [vmem:[%s850 + $0x120] sm:$0xff]
        %v876 = vld [vmem:[%s850 + $0x128] sm:$0xff]
        %v877 = vld [vmem:[%s850 + $0x138] sm:$0xff]
        %v878 = vld [vmem:[%s850 + $0x140] sm:$0xff]
        %v879 = vld [vmem:[%s850 + $0x150] sm:$0xff]
        %v880 = vld [vmem:[%s850 + $0x158] sm:$0xff]
        %v881 = vld [vmem:[%s850 + $0x168] sm:$0xff]
        %v882 = vld [vmem:[%s850 + $0x170] sm:$0xff]
        %v883 = vld [vmem:[#allocation2 + $0x1] sm:$0xff]
        %v884 = vld [vmem:[#allocation2 + $0x9] sm:$0xff]
        %v885 = vld [vmem:[#allocation2 + $0x19] sm:$0xff]
        %v886 = vld [vmem:[#allocation2 + $0x21] sm:$0xff]
        %v887 = vld [vmem:[#allocation2 + $0x31] sm:$0xff]
        %v888 = vld [vmem:[#allocation2 + $0x39] sm:$0xff]
        %v889 = vld [vmem:[#allocation2 + $0x49] sm:$0xff]
        %v890 = vld [vmem:[#allocation2 + $0x51] sm:$0xff]
        %v891 = vld [vmem:[#allocation2 + $0x61] sm:$0xff]
        %v892 = vld [vmem:[#allocation2 + $0x69] sm:$0xff]
        %v893 = vld [vmem:[#allocation2 + $0x79] sm:$0xff]
        %v894 = vld [vmem:[#allocation2 + $0x81] sm:$0xff]
        %v895 = vld [vmem:[#allocation2 + $0x91] sm:$0xff]
        %v896 = vld [vmem:[#allocation2 + $0x99] sm:$0xff]
        %v897 = vld [vmem:[#allocation2 + $0xa9] sm:$0xff]
        %v898 = vld [vmem:[#allocation2 + $0xb1] sm:$0xff]
        %v899 = vld [vmem:[#allocation2 + $0xc1] sm:$0xff]
        %v900 = vld [vmem:[#allocation2 + $0xc9] sm:$0xff]
        %v901 = vld [vmem:[#allocation2 + $0xd9] sm:$0xff]
        %v902 = vld [vmem:[#allocation2 + $0xe1] sm:$0xff]
        %v903 = vld [vmem:[#allocation2 + $0xf1] sm:$0xff]
        %v904 = vld [vmem:[#allocation2 + $0xf9] sm:$0xff]
        %v905 = vld [vmem:[#allocation2 + $0x109] sm:$0xff]
        %v906 = vld [vmem:[#allocation2 + $0x111] sm:$0xff]
        %v907 = vld [vmem:[#allocation2 + $0x121] sm:$0xff]
        %v908 = vld [vmem:[#allocation2 + $0x129] sm:$0xff]
        %v909 = vld [vmem:[#allocation2 + $0x139] sm:$0xff]
        %v910 = vld [vmem:[#allocation2 + $0x141] sm:$0xff]
        %v911 = vld [vmem:[#allocation2 + $0x151] sm:$0xff]
        %v912 = vld [vmem:[#allocation2 + $0x159] sm:$0xff]
        %v913 = vld [vmem:[#allocation2 + $0x169] sm:$0xff]
        %v914 = vld [vmem:[#allocation2 + $0x171] sm:$0xff]
        %v915 = vld [vmem:[%s753 + $0x1] sm:$0xff]
        %v916 = vld [vmem:[%s753 + $0x9] sm:$0xff]
        %v917 = vld [vmem:[%s753 + $0x19] sm:$0xff]
        %v918 = vld [vmem:[%s753 + $0x21] sm:$0xff]
        %v919 = vld [vmem:[%s753 + $0x31] sm:$0xff]
        %v920 = vld [vmem:[%s753 + $0x39] sm:$0xff]
        %v921 = vld [vmem:[%s753 + $0x49] sm:$0xff]
        %v922 = vld [vmem:[%s753 + $0x51] sm:$0xff]
        %v923 = vld [vmem:[%s753 + $0x61] sm:$0xff]
        %v924 = vld [vmem:[%s753 + $0x69] sm:$0xff]
        %v925 = vld [vmem:[%s753 + $0x79] sm:$0xff]
        %v926 = vld [vmem:[%s753 + $0x81] sm:$0xff]
        %v927 = vld [vmem:[%s753 + $0x91] sm:$0xff]
        %v928 = vld [vmem:[%s753 + $0x99] sm:$0xff]
        %v929 = vld [vmem:[%s753 + $0xa9] sm:$0xff]
        %v930 = vld [vmem:[%s753 + $0xb1] sm:$0xff]
        %v931 = vld [vmem:[%s753 + $0xc1] sm:$0xff]
        %v932 = vld [vmem:[%s753 + $0xc9] sm:$0xff]
        %v933 = vld [vmem:[%s753 + $0xd9] sm:$0xff]
        %v934 = vld [vmem:[%s753 + $0xe1] sm:$0xff]
        %v935 = vld [vmem:[%s753 + $0xf1] sm:$0xff]
        %v936 = vld [vmem:[%s753 + $0xf9] sm:$0xff]
        %v937 = vld [vmem:[%s753 + $0x109] sm:$0xff]
        %v938 = vld [vmem:[%s753 + $0x111] sm:$0xff]
        %v939 = vld [vmem:[%s753 + $0x121] sm:$0xff]
        %v940 = vld [vmem:[%s753 + $0x129] sm:$0xff]
        %v941 = vld [vmem:[%s753 + $0x139] sm:$0xff]
        %v942 = vld [vmem:[%s753 + $0x141] sm:$0xff]
        %v943 = vld [vmem:[%s753 + $0x151] sm:$0xff]
        %v944 = vld [vmem:[%s753 + $0x159] sm:$0xff]
        %v945 = vld [vmem:[%s753 + $0x169] sm:$0xff]
        %v946 = vld [vmem:[%s753 + $0x171] sm:$0xff]
        %v947 = vld [vmem:[%s850 + $0x1] sm:$0xff]
        %v948 = vld [vmem:[%s850 + $0x9] sm:$0xff]
        %v949 = vld [vmem:[%s850 + $0x19] sm:$0xff]
        %v950 = vld [vmem:[%s850 + $0x21] sm:$0xff]
        %v951 = vld [vmem:[%s850 + $0x31] sm:$0xff]
        %v952 = vld [vmem:[%s850 + $0x39] sm:$0xff]
        %v953 = vld [vmem:[%s850 + $0x49] sm:$0xff]
        %v954 = vld [vmem:[%s850 + $0x51] sm:$0xff]
        %v955 = vld [vmem:[%s850 + $0x61] sm:$0xff]
        %v956 = vld [vmem:[%s850 + $0x69] sm:$0xff]
        %v957 = vld [vmem:[%s850 + $0x79] sm:$0xff]
        %v958 = vld [vmem:[%s850 + $0x81] sm:$0xff]
        %v959 = vld [vmem:[%s850 + $0x91] sm:$0xff]
        %v960 = vld [vmem:[%s850 + $0x99] sm:$0xff]
        %v961 = vld [vmem:[%s850 + $0xa9] sm:$0xff]
        %v962 = vld [vmem:[%s850 + $0xb1] sm:$0xff]
        %v963 = vld [vmem:[%s850 + $0xc1] sm:$0xff]
        %v964 = vld [vmem:[%s850 + $0xc9] sm:$0xff]
        %v965 = vld [vmem:[%s850 + $0xd9] sm:$0xff]
        %v966 = vld [vmem:[%s850 + $0xe1] sm:$0xff]
        %v967 = vld [vmem:[%s850 + $0xf1] sm:$0xff]
        %v968 = vld [vmem:[%s850 + $0xf9] sm:$0xff]
        %v969 = vld [vmem:[%s850 + $0x109] sm:$0xff]
        %v970 = vld [vmem:[%s850 + $0x111] sm:$0xff]
        %v971 = vld [vmem:[%s850 + $0x121] sm:$0xff]
        %v972 = vld [vmem:[%s850 + $0x129] sm:$0xff]
        %v973 = vld [vmem:[%s850 + $0x139] sm:$0xff]
        %v974 = vld [vmem:[%s850 + $0x141] sm:$0xff]
        %v975 = vld [vmem:[%s850 + $0x151] sm:$0xff]
        %v976 = vld [vmem:[%s850 + $0x159] sm:$0xff]
        %v977 = vld [vmem:[%s850 + $0x169] sm:$0xff]
        %v978 = vld [vmem:[%s850 + $0x171] sm:$0xff]
        %v979 = vld [vmem:[#allocation2 + $0x2] sm:$0xff]
        %v980 = vld [vmem:[#allocation2 + $0xa] sm:$0xff]
        %v981 = vld [vmem:[#allocation2 + $0x1a] sm:$0xff]
        %v982 = vld [vmem:[#allocation2 + $0x22] sm:$0xff]
        %v983 = vld [vmem:[#allocation2 + $0x32] sm:$0xff]
        %v984 = vld [vmem:[#allocation2 + $0x3a] sm:$0xff]
        %v985 = vld [vmem:[#allocation2 + $0x4a] sm:$0xff]
        %v986 = vld [vmem:[#allocation2 + $0x52] sm:$0xff]
        %v987 = vld [vmem:[#allocation2 + $0x62] sm:$0xff]
        %v988 = vld [vmem:[#allocation2 + $0x6a] sm:$0xff]
        %v989 = vld [vmem:[#allocation2 + $0x7a] sm:$0xff]
        %v990 = vld [vmem:[#allocation2 + $0x82] sm:$0xff]
        %v991 = vld [vmem:[#allocation2 + $0x92] sm:$0xff]
        %v992 = vld [vmem:[#allocation2 + $0x9a] sm:$0xff]
        %v993 = vld [vmem:[#allocation2 + $0xaa] sm:$0xff]
        %v994 = vld [vmem:[#allocation2 + $0xb2] sm:$0xff]
        %v995 = vld [vmem:[#allocation2 + $0xc2] sm:$0xff]
        %v996 = vld [vmem:[#allocation2 + $0xca] sm:$0xff]
        %v997 = vld [vmem:[#allocation2 + $0xda] sm:$0xff]
        %v998 = vld [vmem:[#allocation2 + $0xe2] sm:$0xff]
        %v999 = vld [vmem:[#allocation2 + $0xf2] sm:$0xff]
        %v1000 = vld [vmem:[#allocation2 + $0xfa] sm:$0xff]
        %v1001 = vld [vmem:[#allocation2 + $0x10a] sm:$0xff]
        %v1002 = vld [vmem:[#allocation2 + $0x112] sm:$0xff]
        %v1003 = vld [vmem:[#allocation2 + $0x122] sm:$0xff]
        %v1004 = vld [vmem:[#allocation2 + $0x12a] sm:$0xff]
        %v1005 = vld [vmem:[#allocation2 + $0x13a] sm:$0xff]
        %v1006 = vld [vmem:[#allocation2 + $0x142] sm:$0xff]
        %v1007 = vld [vmem:[#allocation2 + $0x152] sm:$0xff]
        %v1008 = vld [vmem:[#allocation2 + $0x15a] sm:$0xff]
        %v1009 = vld [vmem:[#allocation2 + $0x16a] sm:$0xff]
        %v1010 = vld [vmem:[#allocation2 + $0x172] sm:$0xff]
        %v1011 = vld [vmem:[%s753 + $0x2] sm:$0xff]
        %v1012 = vld [vmem:[%s753 + $0xa] sm:$0xff]
        %v1013 = vld [vmem:[%s753 + $0x1a] sm:$0xff]
        %v1014 = vld [vmem:[%s753 + $0x22] sm:$0xff]
        %v1015 = vld [vmem:[%s753 + $0x32] sm:$0xff]
        %v1016 = vld [vmem:[%s753 + $0x3a] sm:$0xff]
        %v1017 = vld [vmem:[%s753 + $0x4a] sm:$0xff]
        %v1018 = vld [vmem:[%s753 + $0x52] sm:$0xff]
        %v1019 = vld [vmem:[%s753 + $0x62] sm:$0xff]
        %v1020 = vld [vmem:[%s753 + $0x6a] sm:$0xff]
        %v1021 = vld [vmem:[%s753 + $0x7a] sm:$0xff]
        %v1022 = vld [vmem:[%s753 + $0x82] sm:$0xff]
        %v1023 = vld [vmem:[%s753 + $0x92] sm:$0xff]
        %v1024 = vld [vmem:[%s753 + $0x9a] sm:$0xff]
        %v1025 = vld [vmem:[%s753 + $0xaa] sm:$0xff]
        %v1026 = vld [vmem:[%s753 + $0xb2] sm:$0xff]
        %v1027 = vld [vmem:[%s753 + $0xc2] sm:$0xff]
        %v1028 = vld [vmem:[%s753 + $0xca] sm:$0xff]
        %v1029 = vld [vmem:[%s753 + $0xda] sm:$0xff]
        %v1030 = vld [vmem:[%s753 + $0xe2] sm:$0xff]
        %v1031 = vld [vmem:[%s753 + $0xf2] sm:$0xff]
        %v1032 = vld [vmem:[%s753 + $0xfa] sm:$0xff]
        %v1033 = vld [vmem:[%s753 + $0x10a] sm:$0xff]
        %v1034 = vld [vmem:[%s753 + $0x112] sm:$0xff]
        %v1035 = vld [vmem:[%s753 + $0x122] sm:$0xff]
        %v1036 = vld [vmem:[%s753 + $0x12a] sm:$0xff]
        %v1037 = vld [vmem:[%s753 + $0x13a] sm:$0xff]
        %v1038 = vld [vmem:[%s753 + $0x142] sm:$0xff]
        %v1039 = vld [vmem:[%s753 + $0x152] sm:$0xff]
        %v1040 = vld [vmem:[%s753 + $0x15a] sm:$0xff]
        %v1041 = vld [vmem:[%s753 + $0x16a] sm:$0xff]
        %v1042 = vld [vmem:[%s753 + $0x172] sm:$0xff]
        %v1043 = vld [vmem:[%s850 + $0x2] sm:$0xff]
        %v1044 = vld [vmem:[%s850 + $0xa] sm:$0xff]
        %v1045 = vld [vmem:[%s850 + $0x1a] sm:$0xff]
        %v1046 = vld [vmem:[%s850 + $0x22] sm:$0xff]
        %v1047 = vld [vmem:[%s850 + $0x32] sm:$0xff]
        %v1048 = vld [vmem:[%s850 + $0x3a] sm:$0xff]
        %v1049 = vld [vmem:[%s850 + $0x4a] sm:$0xff]
        %v1050 = vld [vmem:[%s850 + $0x52] sm:$0xff]
        %v1051 = vld [vmem:[%s850 + $0x62] sm:$0xff]
        %v1052 = vld [vmem:[%s850 + $0x6a] sm:$0xff]
        %v1053 = vld [vmem:[%s850 + $0x7a] sm:$0xff]
        %v1054 = vld [vmem:[%s850 + $0x82] sm:$0xff]
        %v1055 = vld [vmem:[%s850 + $0x92] sm:$0xff]
        %v1056 = vld [vmem:[%s850 + $0x9a] sm:$0xff]
        %v1057 = vld [vmem:[%s850 + $0xaa] sm:$0xff]
        %v1058 = vld [vmem:[%s850 + $0xb2] sm:$0xff]
        %v1059 = vld [vmem:[%s850 + $0xc2] sm:$0xff]
        %v1060 = vld [vmem:[%s850 + $0xca] sm:$0xff]
        %v1061 = vld [vmem:[%s850 + $0xda] sm:$0xff]
        %v1062 = vld [vmem:[%s850 + $0xe2] sm:$0xff]
        %v1063 = vld [vmem:[%s850 + $0xf2] sm:$0xff]
        %v1064 = vld [vmem:[%s850 + $0xfa] sm:$0xff]
        %v1065 = vld [vmem:[%s850 + $0x10a] sm:$0xff]
        %v1066 = vld [vmem:[%s850 + $0x112] sm:$0xff]
        %v1067 = vld [vmem:[%s850 + $0x122] sm:$0xff]
        %v1068 = vld [vmem:[%s850 + $0x12a] sm:$0xff]
        %v1069 = vld [vmem:[%s850 + $0x13a] sm:$0xff]
        %v1070 = vld [vmem:[%s850 + $0x142] sm:$0xff]
        %v1071 = vld [vmem:[%s850 + $0x152] sm:$0xff]
        %v1072 = vld [vmem:[%s850 + $0x15a] sm:$0xff]
        %v1073 = vld [vmem:[%s850 + $0x16a] sm:$0xff]
        %v1074 = vld [vmem:[%s850 + $0x172] sm:$0xff]
        %1107 = vrot.lane.b32.xlu0 %v818, 4
        %v1108 = vpop.permute.xlu0 %1107
        %1109 = vrot.lane.b32.xlu0 %v819, 4
        %v1110 = vpop.permute.xlu0 %1109
        %1111 = vrot.lane.b32.xlu0 %v820, 4
        %v1112 = vpop.permute.xlu0 %1111
        %1113 = vrot.lane.b32.xlu0 %v821, 4
        %v1114 = vpop.permute.xlu0 %1113
        %1115 = vrot.lane.b32.xlu0 %v822, 4
        %v1116 = vpop.permute.xlu0 %1115
        %1117 = vrot.lane.b32.xlu0 %v823, 4
        %v1118 = vpop.permute.xlu0 %1117
        %1119 = vrot.lane.b32.xlu0 %v824, 4
        %v1120 = vpop.permute.xlu0 %1119
        %1121 = vrot.lane.b32.xlu0 %v825, 4
        %v1122 = vpop.permute.xlu0 %1121
        %1123 = vrot.lane.b32.xlu0 %v826, 4
        %v1124 = vpop.permute.xlu0 %1123
        %1125 = vrot.lane.b32.xlu0 %v827, 4
        %v1126 = vpop.permute.xlu0 %1125
        %1127 = vrot.lane.b32.xlu0 %v828, 4
        %v1128 = vpop.permute.xlu0 %1127
        %1129 = vrot.lane.b32.xlu0 %v829, 4
        %v1130 = vpop.permute.xlu0 %1129
        %1131 = vrot.lane.b32.xlu0 %v830, 4
        %v1132 = vpop.permute.xlu0 %1131
        %1133 = vrot.lane.b32.xlu0 %v831, 4
        %v1134 = vpop.permute.xlu0 %1133
        %1135 = vrot.lane.b32.xlu0 %v832, 4
        %v1136 = vpop.permute.xlu0 %1135
        %1137 = vrot.lane.b32.xlu0 %v833, 4
        %v1138 = vpop.permute.xlu0 %1137
        %1139 = vrot.lane.b32.xlu0 %v834, 4
        %v1140 = vpop.permute.xlu0 %1139
        %1141 = vrot.lane.b32.xlu0 %v835, 4
        %v1142 = vpop.permute.xlu0 %1141
        %1143 = vrot.lane.b32.xlu0 %v836, 4
        %v1144 = vpop.permute.xlu0 %1143
        %1145 = vrot.lane.b32.xlu0 %v837, 4
        %v1146 = vpop.permute.xlu0 %1145
        %1147 = vrot.lane.b32.xlu0 %v838, 4
        %v1148 = vpop.permute.xlu0 %1147
        %1149 = vrot.lane.b32.xlu0 %v839, 4
        %v1150 = vpop.permute.xlu0 %1149
        %1151 = vrot.lane.b32.xlu0 %v840, 4
        %v1152 = vpop.permute.xlu0 %1151
        %1153 = vrot.lane.b32.xlu0 %v841, 4
        %v1154 = vpop.permute.xlu0 %1153
        %1155 = vrot.lane.b32.xlu0 %v842, 4
        %v1156 = vpop.permute.xlu0 %1155
        %1157 = vrot.lane.b32.xlu0 %v843, 4
        %v1158 = vpop.permute.xlu0 %1157
        %1159 = vrot.lane.b32.xlu0 %v844, 4
        %v1160 = vpop.permute.xlu0 %1159
        %1161 = vrot.lane.b32.xlu0 %v845, 4
        %v1162 = vpop.permute.xlu0 %1161
        %1163 = vrot.lane.b32.xlu0 %v846, 4
        %v1164 = vpop.permute.xlu0 %1163
        %1165 = vrot.lane.b32.xlu0 %v847, 4
        %v1166 = vpop.permute.xlu0 %1165
        %1167 = vrot.lane.b32.xlu0 %v848, 4
        %v1168 = vpop.permute.xlu0 %1167
        %1169 = vrot.lane.b32.xlu0 %v849, 4
        %v1170 = vpop.permute.xlu0 %1169
        %1235 = vrot.lane.b32.xlu0 %v851, 8
        %v1236 = vpop.permute.xlu0 %1235
        %1237 = vrot.lane.b32.xlu0 %v852, 8
        %v1238 = vpop.permute.xlu0 %1237
        %1239 = vrot.lane.b32.xlu0 %v853, 8
        %v1240 = vpop.permute.xlu0 %1239
        %1241 = vrot.lane.b32.xlu0 %v854, 8
        %v1242 = vpop.permute.xlu0 %1241
        %1243 = vrot.lane.b32.xlu0 %v855, 8
        %v1244 = vpop.permute.xlu0 %1243
        %1245 = vrot.lane.b32.xlu0 %v856, 8
        %v1246 = vpop.permute.xlu0 %1245
        %1247 = vrot.lane.b32.xlu0 %v857, 8
        %v1248 = vpop.permute.xlu0 %1247
        %1249 = vrot.lane.b32.xlu0 %v858, 8
        %v1250 = vpop.permute.xlu0 %1249
        %1251 = vrot.lane.b32.xlu0 %v859, 8
        %v1252 = vpop.permute.xlu0 %1251
        %1253 = vrot.lane.b32.xlu0 %v860, 8
        %v1254 = vpop.permute.xlu0 %1253
        %1255 = vrot.lane.b32.xlu0 %v861, 8
        %v1256 = vpop.permute.xlu0 %1255
        %1257 = vrot.lane.b32.xlu0 %v862, 8
        %v1258 = vpop.permute.xlu0 %1257
        %1259 = vrot.lane.b32.xlu0 %v863, 8
        %v1260 = vpop.permute.xlu0 %1259
        %1261 = vrot.lane.b32.xlu0 %v864, 8
        %v1262 = vpop.permute.xlu0 %1261
        %1263 = vrot.lane.b32.xlu0 %v865, 8
        %v1264 = vpop.permute.xlu0 %1263
        %1265 = vrot.lane.b32.xlu0 %v866, 8
        %v1266 = vpop.permute.xlu0 %1265
        %1267 = vrot.lane.b32.xlu0 %v867, 8
        %v1268 = vpop.permute.xlu0 %1267
        %1269 = vrot.lane.b32.xlu0 %v868, 8
        %v1270 = vpop.permute.xlu0 %1269
        %1271 = vrot.lane.b32.xlu0 %v869, 8
        %v1272 = vpop.permute.xlu0 %1271
        %1273 = vrot.lane.b32.xlu0 %v870, 8
        %v1274 = vpop.permute.xlu0 %1273
        %1275 = vrot.lane.b32.xlu0 %v871, 8
        %v1276 = vpop.permute.xlu0 %1275
        %1277 = vrot.lane.b32.xlu0 %v872, 8
        %v1278 = vpop.permute.xlu0 %1277
        %1279 = vrot.lane.b32.xlu0 %v873, 8
        %v1280 = vpop.permute.xlu0 %1279
        %1281 = vrot.lane.b32.xlu0 %v874, 8
        %v1282 = vpop.permute.xlu0 %1281
        %1283 = vrot.lane.b32.xlu0 %v875, 8
        %v1284 = vpop.permute.xlu0 %1283
        %1285 = vrot.lane.b32.xlu0 %v876, 8
        %v1286 = vpop.permute.xlu0 %1285
        %1287 = vrot.lane.b32.xlu0 %v877, 8
        %v1288 = vpop.permute.xlu0 %1287
        %1289 = vrot.lane.b32.xlu0 %v878, 8
        %v1290 = vpop.permute.xlu0 %1289
        %1291 = vrot.lane.b32.xlu0 %v879, 8
        %v1292 = vpop.permute.xlu0 %1291
        %1293 = vrot.lane.b32.xlu0 %v880, 8
        %v1294 = vpop.permute.xlu0 %1293
        %1295 = vrot.lane.b32.xlu0 %v881, 8
        %v1296 = vpop.permute.xlu0 %1295
        %1297 = vrot.lane.b32.xlu0 %v882, 8
        %v1298 = vpop.permute.xlu0 %1297
        %1363 = vrot.lane.b32.xlu0 %v883, 12
        %v1364 = vpop.permute.xlu0 %1363
        %1365 = vrot.lane.b32.xlu0 %v884, 12
        %v1366 = vpop.permute.xlu0 %1365
        %1367 = vrot.lane.b32.xlu0 %v885, 12
        %v1368 = vpop.permute.xlu0 %1367
        %1369 = vrot.lane.b32.xlu0 %v886, 12
        %v1370 = vpop.permute.xlu0 %1369
        %1371 = vrot.lane.b32.xlu0 %v887, 12
        %v1372 = vpop.permute.xlu0 %1371
        %1373 = vrot.lane.b32.xlu0 %v888, 12
        %v1374 = vpop.permute.xlu0 %1373
        %1375 = vrot.lane.b32.xlu0 %v889, 12
        %v1376 = vpop.permute.xlu0 %1375
        %1377 = vrot.lane.b32.xlu0 %v890, 12
        %v1378 = vpop.permute.xlu0 %1377
        %1379 = vrot.lane.b32.xlu0 %v891, 12
        %v1380 = vpop.permute.xlu0 %1379
        %1381 = vrot.lane.b32.xlu0 %v892, 12
        %v1382 = vpop.permute.xlu0 %1381
        %1383 = vrot.lane.b32.xlu0 %v893, 12
        %v1384 = vpop.permute.xlu0 %1383
        %1385 = vrot.lane.b32.xlu0 %v894, 12
        %v1386 = vpop.permute.xlu0 %1385
        %1387 = vrot.lane.b32.xlu0 %v895, 12
        %v1388 = vpop.permute.xlu0 %1387
        %1389 = vrot.lane.b32.xlu0 %v896, 12
        %v1390 = vpop.permute.xlu0 %1389
        %1391 = vrot.lane.b32.xlu0 %v897, 12
        %v1392 = vpop.permute.xlu0 %1391
        %1393 = vrot.lane.b32.xlu0 %v898, 12
        %v1394 = vpop.permute.xlu0 %1393
        %1395 = vrot.lane.b32.xlu0 %v899, 12
        %v1396 = vpop.permute.xlu0 %1395
        %1397 = vrot.lane.b32.xlu0 %v900, 12
        %v1398 = vpop.permute.xlu0 %1397
        %1399 = vrot.lane.b32.xlu0 %v901, 12
        %v1400 = vpop.permute.xlu0 %1399
        %1401 = vrot.lane.b32.xlu0 %v902, 12
        %v1402 = vpop.permute.xlu0 %1401
        %1403 = vrot.lane.b32.xlu0 %v903, 12
        %v1404 = vpop.permute.xlu0 %1403
        %1405 = vrot.lane.b32.xlu0 %v904, 12
        %v1406 = vpop.permute.xlu0 %1405
        %1407 = vrot.lane.b32.xlu0 %v905, 12
        %v1408 = vpop.permute.xlu0 %1407
        %1409 = vrot.lane.b32.xlu0 %v906, 12
        %v1410 = vpop.permute.xlu0 %1409
        %1411 = vrot.lane.b32.xlu0 %v907, 12
        %v1412 = vpop.permute.xlu0 %1411
        %1413 = vrot.lane.b32.xlu0 %v908, 12
        %v1414 = vpop.permute.xlu0 %1413
        %1415 = vrot.lane.b32.xlu0 %v909, 12
        %v1416 = vpop.permute.xlu0 %1415
        %1417 = vrot.lane.b32.xlu0 %v910, 12
        %v1418 = vpop.permute.xlu0 %1417
        %1419 = vrot.lane.b32.xlu0 %v911, 12
        %v1420 = vpop.permute.xlu0 %1419
        %1421 = vrot.lane.b32.xlu0 %v912, 12
        %v1422 = vpop.permute.xlu0 %1421
        %1423 = vrot.lane.b32.xlu0 %v913, 12
        %v1424 = vpop.permute.xlu0 %1423
        %1425 = vrot.lane.b32.xlu0 %v914, 12
        %v1426 = vpop.permute.xlu0 %1425
        %1491 = vrot.lane.b32.xlu0 %v915, 16
        %v1492 = vpop.permute.xlu0 %1491
        %1493 = vrot.lane.b32.xlu0 %v916, 16
        %v1494 = vpop.permute.xlu0 %1493
        %1495 = vrot.lane.b32.xlu0 %v917, 16
        %v1496 = vpop.permute.xlu0 %1495
        %1497 = vrot.lane.b32.xlu0 %v918, 16
        %v1498 = vpop.permute.xlu0 %1497
        %1499 = vrot.lane.b32.xlu0 %v919, 16
        %v1500 = vpop.permute.xlu0 %1499
        %1501 = vrot.lane.b32.xlu0 %v920, 16
        %v1502 = vpop.permute.xlu0 %1501
        %1503 = vrot.lane.b32.xlu0 %v921, 16
        %v1504 = vpop.permute.xlu0 %1503
        %1505 = vrot.lane.b32.xlu0 %v922, 16
        %v1506 = vpop.permute.xlu0 %1505
        %1507 = vrot.lane.b32.xlu0 %v923, 16
        %v1508 = vpop.permute.xlu0 %1507
        %1509 = vrot.lane.b32.xlu0 %v924, 16
        %v1510 = vpop.permute.xlu0 %1509
        %1511 = vrot.lane.b32.xlu0 %v925, 16
        %v1512 = vpop.permute.xlu0 %1511
        %1513 = vrot.lane.b32.xlu0 %v926, 16
        %v1514 = vpop.permute.xlu0 %1513
        %1515 = vrot.lane.b32.xlu0 %v927, 16
        %v1516 = vpop.permute.xlu0 %1515
        %1517 = vrot.lane.b32.xlu0 %v928, 16
        %v1518 = vpop.permute.xlu0 %1517
        %1519 = vrot.lane.b32.xlu0 %v929, 16
        %v1520 = vpop.permute.xlu0 %1519
        %1521 = vrot.lane.b32.xlu0 %v930, 16
        %v1522 = vpop.permute.xlu0 %1521
        %1523 = vrot.lane.b32.xlu0 %v931, 16
        %v1524 = vpop.permute.xlu0 %1523
        %1525 = vrot.lane.b32.xlu0 %v932, 16
        %v1526 = vpop.permute.xlu0 %1525
        %1527 = vrot.lane.b32.xlu0 %v933, 16
        %v1528 = vpop.permute.xlu0 %1527
        %1529 = vrot.lane.b32.xlu0 %v934, 16
        %v1530 = vpop.permute.xlu0 %1529
        %1531 = vrot.lane.b32.xlu0 %v935, 16
        %v1532 = vpop.permute.xlu0 %1531
        %1533 = vrot.lane.b32.xlu0 %v936, 16
        %v1534 = vpop.permute.xlu0 %1533
        %1535 = vrot.lane.b32.xlu0 %v937, 16
        %v1536 = vpop.permute.xlu0 %1535
        %1537 = vrot.lane.b32.xlu0 %v938, 16
        %v1538 = vpop.permute.xlu0 %1537
        %1539 = vrot.lane.b32.xlu0 %v939, 16
        %v1540 = vpop.permute.xlu0 %1539
        %1541 = vrot.lane.b32.xlu0 %v940, 16
        %v1542 = vpop.permute.xlu0 %1541
        %1543 = vrot.lane.b32.xlu0 %v941, 16
        %v1544 = vpop.permute.xlu0 %1543
        %1545 = vrot.lane.b32.xlu0 %v942, 16
        %v1546 = vpop.permute.xlu0 %1545
        %1547 = vrot.lane.b32.xlu0 %v943, 16
        %v1548 = vpop.permute.xlu0 %1547
        %1549 = vrot.lane.b32.xlu0 %v944, 16
        %v1550 = vpop.permute.xlu0 %1549
        %1551 = vrot.lane.b32.xlu0 %v945, 16
        %v1552 = vpop.permute.xlu0 %1551
        %1553 = vrot.lane.b32.xlu0 %v946, 16
        %v1554 = vpop.permute.xlu0 %1553
        %1619 = vrot.lane.b32.xlu0 %v947, 20
        %v1620 = vpop.permute.xlu0 %1619
        %1621 = vrot.lane.b32.xlu0 %v948, 20
        %v1622 = vpop.permute.xlu0 %1621
        %1623 = vrot.lane.b32.xlu0 %v949, 20
        %v1624 = vpop.permute.xlu0 %1623
        %1625 = vrot.lane.b32.xlu0 %v950, 20
        %v1626 = vpop.permute.xlu0 %1625
        %1627 = vrot.lane.b32.xlu0 %v951, 20
        %v1628 = vpop.permute.xlu0 %1627
        %1629 = vrot.lane.b32.xlu0 %v952, 20
        %v1630 = vpop.permute.xlu0 %1629
        %1631 = vrot.lane.b32.xlu0 %v953, 20
        %v1632 = vpop.permute.xlu0 %1631
        %1633 = vrot.lane.b32.xlu0 %v954, 20
        %v1634 = vpop.permute.xlu0 %1633
        %1635 = vrot.lane.b32.xlu0 %v955, 20
        %v1636 = vpop.permute.xlu0 %1635
        %1637 = vrot.lane.b32.xlu0 %v956, 20
        %v1638 = vpop.permute.xlu0 %1637
        %1639 = vrot.lane.b32.xlu0 %v957, 20
        %v1640 = vpop.permute.xlu0 %1639
        %1641 = vrot.lane.b32.xlu0 %v958, 20
        %v1642 = vpop.permute.xlu0 %1641
        %1643 = vrot.lane.b32.xlu0 %v959, 20
        %v1644 = vpop.permute.xlu0 %1643
        %1645 = vrot.lane.b32.xlu0 %v960, 20
        %v1646 = vpop.permute.xlu0 %1645
        %1647 = vrot.lane.b32.xlu0 %v961, 20
        %v1648 = vpop.permute.xlu0 %1647
        %1649 = vrot.lane.b32.xlu0 %v962, 20
        %v1650 = vpop.permute.xlu0 %1649
        %1651 = vrot.lane.b32.xlu0 %v963, 20
        %v1652 = vpop.permute.xlu0 %1651
        %1653 = vrot.lane.b32.xlu0 %v964, 20
        %v1654 = vpop.permute.xlu0 %1653
        %1655 = vrot.lane.b32.xlu0 %v965, 20
        %v1656 = vpop.permute.xlu0 %1655
        %1657 = vrot.lane.b32.xlu0 %v966, 20
        %v1658 = vpop.permute.xlu0 %1657
        %1659 = vrot.lane.b32.xlu0 %v967, 20
        %v1660 = vpop.permute.xlu0 %1659
        %1661 = vrot.lane.b32.xlu0 %v968, 20
        %v1662 = vpop.permute.xlu0 %1661
        %1663 = vrot.lane.b32.xlu0 %v969, 20
        %v1664 = vpop.permute.xlu0 %1663
        %1665 = vrot.lane.b32.xlu0 %v970, 20
        %v1666 = vpop.permute.xlu0 %1665
        %1667 = vrot.lane.b32.xlu0 %v971, 20
        %v1668 = vpop.permute.xlu0 %1667
        %1669 = vrot.lane.b32.xlu0 %v972, 20
        %v1670 = vpop.permute.xlu0 %1669
        %1671 = vrot.lane.b32.xlu0 %v973, 20
        %v1672 = vpop.permute.xlu0 %1671
        %1673 = vrot.lane.b32.xlu0 %v974, 20
        %v1674 = vpop.permute.xlu0 %1673
        %1675 = vrot.lane.b32.xlu0 %v975, 20
        %v1676 = vpop.permute.xlu0 %1675
        %1677 = vrot.lane.b32.xlu0 %v976, 20
        %v1678 = vpop.permute.xlu0 %1677
        %1679 = vrot.lane.b32.xlu0 %v977, 20
        %v1680 = vpop.permute.xlu0 %1679
        %1681 = vrot.lane.b32.xlu0 %v978, 20
        %v1682 = vpop.permute.xlu0 %1681
        %1747 = vrot.lane.b32.xlu0 %v979, 24
        %v1748 = vpop.permute.xlu0 %1747
        %1749 = vrot.lane.b32.xlu0 %v980, 24
        %v1750 = vpop.permute.xlu0 %1749
        %1751 = vrot.lane.b32.xlu0 %v981, 24
        %v1752 = vpop.permute.xlu0 %1751
        %1753 = vrot.lane.b32.xlu0 %v982, 24
        %v1754 = vpop.permute.xlu0 %1753
        %1755 = vrot.lane.b32.xlu0 %v983, 24
        %v1756 = vpop.permute.xlu0 %1755
        %1757 = vrot.lane.b32.xlu0 %v984, 24
        %v1758 = vpop.permute.xlu0 %1757
        %1759 = vrot.lane.b32.xlu0 %v985, 24
        %v1760 = vpop.permute.xlu0 %1759
        %1761 = vrot.lane.b32.xlu0 %v986, 24
        %v1762 = vpop.permute.xlu0 %1761
        %1763 = vrot.lane.b32.xlu0 %v987, 24
        %v1764 = vpop.permute.xlu0 %1763
        %1765 = vrot.lane.b32.xlu0 %v988, 24
        %v1766 = vpop.permute.xlu0 %1765
        %1767 = vrot.lane.b32.xlu0 %v989, 24
        %v1768 = vpop.permute.xlu0 %1767
        %1769 = vrot.lane.b32.xlu0 %v990, 24
        %v1770 = vpop.permute.xlu0 %1769
        %1771 = vrot.lane.b32.xlu0 %v991, 24
        %v1772 = vpop.permute.xlu0 %1771
        %1773 = vrot.lane.b32.xlu0 %v992, 24
        %v1774 = vpop.permute.xlu0 %1773
        %1775 = vrot.lane.b32.xlu0 %v993, 24
        %v1776 = vpop.permute.xlu0 %1775
        %1777 = vrot.lane.b32.xlu0 %v994, 24
        %v1778 = vpop.permute.xlu0 %1777
        %1779 = vrot.lane.b32.xlu0 %v995, 24
        %v1780 = vpop.permute.xlu0 %1779
        %1781 = vrot.lane.b32.xlu0 %v996, 24
        %v1782 = vpop.permute.xlu0 %1781
        %1783 = vrot.lane.b32.xlu0 %v997, 24
        %v1784 = vpop.permute.xlu0 %1783
        %1785 = vrot.lane.b32.xlu0 %v998, 24
        %v1786 = vpop.permute.xlu0 %1785
        %1787 = vrot.lane.b32.xlu0 %v999, 24
        %v1788 = vpop.permute.xlu0 %1787
        %1789 = vrot.lane.b32.xlu0 %v1000, 24
        %v1790 = vpop.permute.xlu0 %1789
        %1791 = vrot.lane.b32.xlu0 %v1001, 24
        %v1792 = vpop.permute.xlu0 %1791
        %1793 = vrot.lane.b32.xlu0 %v1002, 24
        %v1794 = vpop.permute.xlu0 %1793
        %1795 = vrot.lane.b32.xlu0 %v1003, 24
        %v1796 = vpop.permute.xlu0 %1795
        %1797 = vrot.lane.b32.xlu0 %v1004, 24
        %v1798 = vpop.permute.xlu0 %1797
        %1799 = vrot.lane.b32.xlu0 %v1005, 24
        %v1800 = vpop.permute.xlu0 %1799
        %1801 = vrot.lane.b32.xlu0 %v1006, 24
        %v1802 = vpop.permute.xlu0 %1801
        %1803 = vrot.lane.b32.xlu0 %v1007, 24
        %v1804 = vpop.permute.xlu0 %1803
        %1805 = vrot.lane.b32.xlu0 %v1008, 24
        %v1806 = vpop.permute.xlu0 %1805
        %1807 = vrot.lane.b32.xlu0 %v1009, 24
        %v1808 = vpop.permute.xlu0 %1807
        %1809 = vrot.lane.b32.xlu0 %v1010, 24
        %v1810 = vpop.permute.xlu0 %1809
        %1875 = vrot.lane.b32.xlu0 %v1011, 28
        %v1876 = vpop.permute.xlu0 %1875
        %1877 = vrot.lane.b32.xlu0 %v1012, 28
        %v1878 = vpop.permute.xlu0 %1877
        %1879 = vrot.lane.b32.xlu0 %v1013, 28
        %v1880 = vpop.permute.xlu0 %1879
        %1881 = vrot.lane.b32.xlu0 %v1014, 28
        %v1882 = vpop.permute.xlu0 %1881
        %1883 = vrot.lane.b32.xlu0 %v1015, 28
        %v1884 = vpop.permute.xlu0 %1883
        %1885 = vrot.lane.b32.xlu0 %v1016, 28
        %v1886 = vpop.permute.xlu0 %1885
        %1887 = vrot.lane.b32.xlu0 %v1017, 28
        %v1888 = vpop.permute.xlu0 %1887
        %1889 = vrot.lane.b32.xlu0 %v1018, 28
        %v1890 = vpop.permute.xlu0 %1889
        %1891 = vrot.lane.b32.xlu0 %v1019, 28
        %v1892 = vpop.permute.xlu0 %1891
        %1893 = vrot.lane.b32.xlu0 %v1020, 28
        %v1894 = vpop.permute.xlu0 %1893
        %1895 = vrot.lane.b32.xlu0 %v1021, 28
        %v1896 = vpop.permute.xlu0 %1895
        %1897 = vrot.lane.b32.xlu0 %v1022, 28
        %v1898 = vpop.permute.xlu0 %1897
        %1899 = vrot.lane.b32.xlu0 %v1023, 28
        %v1900 = vpop.permute.xlu0 %1899
        %1901 = vrot.lane.b32.xlu0 %v1024, 28
        %v1902 = vpop.permute.xlu0 %1901
        %1903 = vrot.lane.b32.xlu0 %v1025, 28
        %v1904 = vpop.permute.xlu0 %1903
        %1905 = vrot.lane.b32.xlu0 %v1026, 28
        %v1906 = vpop.permute.xlu0 %1905
        %1907 = vrot.lane.b32.xlu0 %v1027, 28
        %v1908 = vpop.permute.xlu0 %1907
        %1909 = vrot.lane.b32.xlu0 %v1028, 28
        %v1910 = vpop.permute.xlu0 %1909
        %1911 = vrot.lane.b32.xlu0 %v1029, 28
        %v1912 = vpop.permute.xlu0 %1911
        %1913 = vrot.lane.b32.xlu0 %v1030, 28
        %v1914 = vpop.permute.xlu0 %1913
        %1915 = vrot.lane.b32.xlu0 %v1031, 28
        %v1916 = vpop.permute.xlu0 %1915
        %1917 = vrot.lane.b32.xlu0 %v1032, 28
        %v1918 = vpop.permute.xlu0 %1917
        %1919 = vrot.lane.b32.xlu0 %v1033, 28
        %v1920 = vpop.permute.xlu0 %1919
        %1921 = vrot.lane.b32.xlu0 %v1034, 28
        %v1922 = vpop.permute.xlu0 %1921
        %1923 = vrot.lane.b32.xlu0 %v1035, 28
        %v1924 = vpop.permute.xlu0 %1923
        %1925 = vrot.lane.b32.xlu0 %v1036, 28
        %v1926 = vpop.permute.xlu0 %1925
        %1927 = vrot.lane.b32.xlu0 %v1037, 28
        %v1928 = vpop.permute.xlu0 %1927
        %1929 = vrot.lane.b32.xlu0 %v1038, 28
        %v1930 = vpop.permute.xlu0 %1929
        %1931 = vrot.lane.b32.xlu0 %v1039, 28
        %v1932 = vpop.permute.xlu0 %1931
        %1933 = vrot.lane.b32.xlu0 %v1040, 28
        %v1934 = vpop.permute.xlu0 %1933
        %1935 = vrot.lane.b32.xlu0 %v1041, 28
        %v1936 = vpop.permute.xlu0 %1935
        %1937 = vrot.lane.b32.xlu0 %v1042, 28
        %v1938 = vpop.permute.xlu0 %1937
        %2003 = vrot.lane.b32.xlu0 %v1043, 32
        %v2004 = vpop.permute.xlu0 %2003
        %2005 = vrot.lane.b32.xlu0 %v1044, 32
        %v2006 = vpop.permute.xlu0 %2005
        %2007 = vrot.lane.b32.xlu0 %v1045, 32
        %v2008 = vpop.permute.xlu0 %2007
        %2009 = vrot.lane.b32.xlu0 %v1046, 32
        %v2010 = vpop.permute.xlu0 %2009
        %2011 = vrot.lane.b32.xlu0 %v1047, 32
        %v2012 = vpop.permute.xlu0 %2011
        %2013 = vrot.lane.b32.xlu0 %v1048, 32
        %v2014 = vpop.permute.xlu0 %2013
        %2015 = vrot.lane.b32.xlu0 %v1049, 32
        %v2016 = vpop.permute.xlu0 %2015
        %2017 = vrot.lane.b32.xlu0 %v1050, 32
        %v2018 = vpop.permute.xlu0 %2017
        %2019 = vrot.lane.b32.xlu0 %v1051, 32
        %v2020 = vpop.permute.xlu0 %2019
        %2021 = vrot.lane.b32.xlu0 %v1052, 32
        %v2022 = vpop.permute.xlu0 %2021
        %2023 = vrot.lane.b32.xlu0 %v1053, 32
        %v2024 = vpop.permute.xlu0 %2023
        %2025 = vrot.lane.b32.xlu0 %v1054, 32
        %v2026 = vpop.permute.xlu0 %2025
        %2027 = vrot.lane.b32.xlu0 %v1055, 32
        %v2028 = vpop.permute.xlu0 %2027
        %2029 = vrot.lane.b32.xlu0 %v1056, 32
        %v2030 = vpop.permute.xlu0 %2029
        %2031 = vrot.lane.b32.xlu0 %v1057, 32
        %v2032 = vpop.permute.xlu0 %2031
        %2033 = vrot.lane.b32.xlu0 %v1058, 32
        %v2034 = vpop.permute.xlu0 %2033
        %2035 = vrot.lane.b32.xlu0 %v1059, 32
        %v2036 = vpop.permute.xlu0 %2035
        %2037 = vrot.lane.b32.xlu0 %v1060, 32
        %v2038 = vpop.permute.xlu0 %2037
        %2039 = vrot.lane.b32.xlu0 %v1061, 32
        %v2040 = vpop.permute.xlu0 %2039
        %2041 = vrot.lane.b32.xlu0 %v1062, 32
        %v2042 = vpop.permute.xlu0 %2041
        %2043 = vrot.lane.b32.xlu0 %v1063, 32
        %v2044 = vpop.permute.xlu0 %2043
        %2045 = vrot.lane.b32.xlu0 %v1064, 32
        %v2046 = vpop.permute.xlu0 %2045
        %2047 = vrot.lane.b32.xlu0 %v1065, 32
        %v2048 = vpop.permute.xlu0 %2047
        %2049 = vrot.lane.b32.xlu0 %v1066, 32
        %v2050 = vpop.permute.xlu0 %2049
        %2051 = vrot.lane.b32.xlu0 %v1067, 32
        %v2052 = vpop.permute.xlu0 %2051
        %2053 = vrot.lane.b32.xlu0 %v1068, 32
        %v2054 = vpop.permute.xlu0 %2053
        %2055 = vrot.lane.b32.xlu0 %v1069, 32
        %v2056 = vpop.permute.xlu0 %2055
        %2057 = vrot.lane.b32.xlu0 %v1070, 32
        %v2058 = vpop.permute.xlu0 %2057
        %2059 = vrot.lane.b32.xlu0 %v1071, 32
        %v2060 = vpop.permute.xlu0 %2059
        %2061 = vrot.lane.b32.xlu0 %v1072, 32
        %v2062 = vpop.permute.xlu0 %2061
        %2063 = vrot.lane.b32.xlu0 %v1073, 32
        %v2064 = vpop.permute.xlu0 %2063
        %2065 = vrot.lane.b32.xlu0 %v1074, 32
        %v2066 = vpop.permute.xlu0 %2065
        %v2099 = vsel %vm707, %v786, %v1108
        %v2100 = vsel %vm707, %v787, %v1110
        %v2101 = vsel %vm707, %v788, %v1112
        %v2102 = vsel %vm707, %v789, %v1114
        %v2103 = vsel %vm707, %v790, %v1116
        %v2104 = vsel %vm707, %v791, %v1118
        %v2105 = vsel %vm707, %v792, %v1120
        %v2106 = vsel %vm707, %v793, %v1122
        %v2107 = vsel %vm707, %v794, %v1124
        %v2108 = vsel %vm707, %v795, %v1126
        %v2109 = vsel %vm707, %v796, %v1128
        %v2110 = vsel %vm707, %v797, %v1130
        %v2111 = vsel %vm707, %v798, %v1132
        %v2112 = vsel %vm707, %v799, %v1134
        %v2113 = vsel %vm707, %v800, %v1136
        %v2114 = vsel %vm707, %v801, %v1138
        %v2115 = vsel %vm707, %v802, %v1140
        %v2116 = vsel %vm707, %v803, %v1142
        %v2117 = vsel %vm707, %v804, %v1144
        %v2118 = vsel %vm707, %v805, %v1146
        %v2119 = vsel %vm707, %v806, %v1148
        %v2120 = vsel %vm707, %v807, %v1150
        %v2121 = vsel %vm707, %v808, %v1152
        %v2122 = vsel %vm707, %v809, %v1154
        %v2123 = vsel %vm707, %v810, %v1156
        %v2124 = vsel %vm707, %v811, %v1158
        %v2125 = vsel %vm707, %v812, %v1160
        %v2126 = vsel %vm707, %v813, %v1162
        %v2127 = vsel %vm707, %v814, %v1164
        %v2128 = vsel %vm707, %v815, %v1166
        %v2129 = vsel %vm707, %v816, %v1168
        %v2130 = vsel %vm707, %v817, %v1170
        %vm2131 = vcmask 64512
        %v2132 = vsel %vm2131, %v2099, %v1236
        %v2133 = vsel %vm2131, %v2100, %v1238
        %v2134 = vsel %vm2131, %v2101, %v1240
        %v2135 = vsel %vm2131, %v2102, %v1242
        %v2136 = vsel %vm2131, %v2103, %v1244
        %v2137 = vsel %vm2131, %v2104, %v1246
        %v2138 = vsel %vm2131, %v2105, %v1248
        %v2139 = vsel %vm2131, %v2106, %v1250
        %v2140 = vsel %vm2131, %v2107, %v1252
        %v2141 = vsel %vm2131, %v2108, %v1254
        %v2142 = vsel %vm2131, %v2109, %v1256
        %v2143 = vsel %vm2131, %v2110, %v1258
        %v2144 = vsel %vm2131, %v2111, %v1260
        %v2145 = vsel %vm2131, %v2112, %v1262
        %v2146 = vsel %vm2131, %v2113, %v1264
        %v2147 = vsel %vm2131, %v2114, %v1266
        %v2148 = vsel %vm2131, %v2115, %v1268
        %v2149 = vsel %vm2131, %v2116, %v1270
        %v2150 = vsel %vm2131, %v2117, %v1272
        %v2151 = vsel %vm2131, %v2118, %v1274
        %v2152 = vsel %vm2131, %v2119, %v1276
        %v2153 = vsel %vm2131, %v2120, %v1278
        %v2154 = vsel %vm2131, %v2121, %v1280
        %v2155 = vsel %vm2131, %v2122, %v1282
        %v2156 = vsel %vm2131, %v2123, %v1284
        %v2157 = vsel %vm2131, %v2124, %v1286
        %v2158 = vsel %vm2131, %v2125, %v1288
        %v2159 = vsel %vm2131, %v2126, %v1290
        %v2160 = vsel %vm2131, %v2127, %v1292
        %v2161 = vsel %vm2131, %v2128, %v1294
        %v2162 = vsel %vm2131, %v2129, %v1296
        %v2163 = vsel %vm2131, %v2130, %v1298
        %vm2164 = vcmask 97280
        %v2165 = vsel %vm2164, %v2132, %v1364
        %v2166 = vsel %vm2164, %v2133, %v1366
        %v2167 = vsel %vm2164, %v2134, %v1368
        %v2168 = vsel %vm2164, %v2135, %v1370
        %v2169 = vsel %vm2164, %v2136, %v1372
        %v2170 = vsel %vm2164, %v2137, %v1374
        %v2171 = vsel %vm2164, %v2138, %v1376
        %v2172 = vsel %vm2164, %v2139, %v1378
        %v2173 = vsel %vm2164, %v2140, %v1380
        %v2174 = vsel %vm2164, %v2141, %v1382
        %v2175 = vsel %vm2164, %v2142, %v1384
        %v2176 = vsel %vm2164, %v2143, %v1386
        %v2177 = vsel %vm2164, %v2144, %v1388
        %v2178 = vsel %vm2164, %v2145, %v1390
        %v2179 = vsel %vm2164, %v2146, %v1392
        %v2180 = vsel %vm2164, %v2147, %v1394
        %v2181 = vsel %vm2164, %v2148, %v1396
        %v2182 = vsel %vm2164, %v2149, %v1398
        %v2183 = vsel %vm2164, %v2150, %v1400
        %v2184 = vsel %vm2164, %v2151, %v1402
        %v2185 = vsel %vm2164, %v2152, %v1404
        %v2186 = vsel %vm2164, %v2153, %v1406
        %v2187 = vsel %vm2164, %v2154, %v1408
        %v2188 = vsel %vm2164, %v2155, %v1410
        %v2189 = vsel %vm2164, %v2156, %v1412
        %v2190 = vsel %vm2164, %v2157, %v1414
        %v2191 = vsel %vm2164, %v2158, %v1416
        %v2192 = vsel %vm2164, %v2159, %v1418
        %v2193 = vsel %vm2164, %v2160, %v1420
        %v2194 = vsel %vm2164, %v2161, %v1422
        %v2195 = vsel %vm2164, %v2162, %v1424
        %v2196 = vsel %vm2164, %v2163, %v1426
        %vm2197 = vcmask 130048
        %v2198 = vsel %vm2197, %v2165, %v1492
        %v2199 = vsel %vm2197, %v2166, %v1494
        %v2200 = vsel %vm2197, %v2167, %v1496
        %v2201 = vsel %vm2197, %v2168, %v1498
        %v2202 = vsel %vm2197, %v2169, %v1500
        %v2203 = vsel %vm2197, %v2170, %v1502
        %v2204 = vsel %vm2197, %v2171, %v1504
        %v2205 = vsel %vm2197, %v2172, %v1506
        %v2206 = vsel %vm2197, %v2173, %v1508
        %v2207 = vsel %vm2197, %v2174, %v1510
        %v2208 = vsel %vm2197, %v2175, %v1512
        %v2209 = vsel %vm2197, %v2176, %v1514
        %v2210 = vsel %vm2197, %v2177, %v1516
        %v2211 = vsel %vm2197, %v2178, %v1518
        %v2212 = vsel %vm2197, %v2179, %v1520
        %v2213 = vsel %vm2197, %v2180, %v1522
        %v2214 = vsel %vm2197, %v2181, %v1524
        %v2215 = vsel %vm2197, %v2182, %v1526
        %v2216 = vsel %vm2197, %v2183, %v1528
        %v2217 = vsel %vm2197, %v2184, %v1530
        %v2218 = vsel %vm2197, %v2185, %v1532
        %v2219 = vsel %vm2197, %v2186, %v1534
        %v2220 = vsel %vm2197, %v2187, %v1536
        %v2221 = vsel %vm2197, %v2188, %v1538
        %v2222 = vsel %vm2197, %v2189, %v1540
        %v2223 = vsel %vm2197, %v2190, %v1542
        %v2224 = vsel %vm2197, %v2191, %v1544
        %v2225 = vsel %vm2197, %v2192, %v1546
        %v2226 = vsel %vm2197, %v2193, %v1548
        %v2227 = vsel %vm2197, %v2194, %v1550
        %v2228 = vsel %vm2197, %v2195, %v1552
        %v2229 = vsel %vm2197, %v2196, %v1554
        %vm2230 = vcmask 162816
        %v2231 = vsel %vm2230, %v2198, %v1620
        %v2232 = vsel %vm2230, %v2199, %v1622
        %v2233 = vsel %vm2230, %v2200, %v1624
        %v2234 = vsel %vm2230, %v2201, %v1626
        %v2235 = vsel %vm2230, %v2202, %v1628
        %v2236 = vsel %vm2230, %v2203, %v1630
        %v2237 = vsel %vm2230, %v2204, %v1632
        %v2238 = vsel %vm2230, %v2205, %v1634
        %v2239 = vsel %vm2230, %v2206, %v1636
        %v2240 = vsel %vm2230, %v2207, %v1638
        %v2241 = vsel %vm2230, %v2208, %v1640
        %v2242 = vsel %vm2230, %v2209, %v1642
        %v2243 = vsel %vm2230, %v2210, %v1644
        %v2244 = vsel %vm2230, %v2211, %v1646
        %v2245 = vsel %vm2230, %v2212, %v1648
        %v2246 = vsel %vm2230, %v2213, %v1650
        %v2247 = vsel %vm2230, %v2214, %v1652
        %v2248 = vsel %vm2230, %v2215, %v1654
        %v2249 = vsel %vm2230, %v2216, %v1656
        %v2250 = vsel %vm2230, %v2217, %v1658
        %v2251 = vsel %vm2230, %v2218, %v1660
        %v2252 = vsel %vm2230, %v2219, %v1662
        %v2253 = vsel %vm2230, %v2220, %v1664
        %v2254 = vsel %vm2230, %v2221, %v1666
        %v2255 = vsel %vm2230, %v2222, %v1668
        %v2256 = vsel %vm2230, %v2223, %v1670
        %v2257 = vsel %vm2230, %v2224, %v1672
        %v2258 = vsel %vm2230, %v2225, %v1674
        %v2259 = vsel %vm2230, %v2226, %v1676
        %v2260 = vsel %vm2230, %v2227, %v1678
        %v2261 = vsel %vm2230, %v2228, %v1680
        %v2262 = vsel %vm2230, %v2229, %v1682
        %vm2263 = vcmask 195584
        %v2264 = vsel %vm2263, %v2231, %v1748
        %v2265 = vsel %vm2263, %v2232, %v1750
        %v2266 = vsel %vm2263, %v2233, %v1752
        %v2267 = vsel %vm2263, %v2234, %v1754
        %v2268 = vsel %vm2263, %v2235, %v1756
        %v2269 = vsel %vm2263, %v2236, %v1758
        %v2270 = vsel %vm2263, %v2237, %v1760
        %v2271 = vsel %vm2263, %v2238, %v1762
        %v2272 = vsel %vm2263, %v2239, %v1764
        %v2273 = vsel %vm2263, %v2240, %v1766
        %v2274 = vsel %vm2263, %v2241, %v1768
        %v2275 = vsel %vm2263, %v2242, %v1770
        %v2276 = vsel %vm2263, %v2243, %v1772
        %v2277 = vsel %vm2263, %v2244, %v1774
        %v2278 = vsel %vm2263, %v2245, %v1776
        %v2279 = vsel %vm2263, %v2246, %v1778
        %v2280 = vsel %vm2263, %v2247, %v1780
        %v2281 = vsel %vm2263, %v2248, %v1782
        %v2282 = vsel %vm2263, %v2249, %v1784
        %v2283 = vsel %vm2263, %v2250, %v1786
        %v2284 = vsel %vm2263, %v2251, %v1788
        %v2285 = vsel %vm2263, %v2252, %v1790
        %v2286 = vsel %vm2263, %v2253, %v1792
        %v2287 = vsel %vm2263, %v2254, %v1794
        %v2288 = vsel %vm2263, %v2255, %v1796
        %v2289 = vsel %vm2263, %v2256, %v1798
        %v2290 = vsel %vm2263, %v2257, %v1800
        %v2291 = vsel %vm2263, %v2258, %v1802
        %v2292 = vsel %vm2263, %v2259, %v1804
        %v2293 = vsel %vm2263, %v2260, %v1806
        %v2294 = vsel %vm2263, %v2261, %v1808
        %v2295 = vsel %vm2263, %v2262, %v1810
        %vm2296 = vcmask 228352
        %v2297 = vsel %vm2296, %v2264, %v1876
        %v2298 = vsel %vm2296, %v2265, %v1878
        %v2299 = vsel %vm2296, %v2266, %v1880
        %v2300 = vsel %vm2296, %v2267, %v1882
        %v2301 = vsel %vm2296, %v2268, %v1884
        %v2302 = vsel %vm2296, %v2269, %v1886
        %v2303 = vsel %vm2296, %v2270, %v1888
        %v2304 = vsel %vm2296, %v2271, %v1890
        %v2305 = vsel %vm2296, %v2272, %v1892
        %v2306 = vsel %vm2296, %v2273, %v1894
        %v2307 = vsel %vm2296, %v2274, %v1896
        %v2308 = vsel %vm2296, %v2275, %v1898
        %v2309 = vsel %vm2296, %v2276, %v1900
        %v2310 = vsel %vm2296, %v2277, %v1902
        %v2311 = vsel %vm2296, %v2278, %v1904
        %v2312 = vsel %vm2296, %v2279, %v1906
        %v2313 = vsel %vm2296, %v2280, %v1908
        %v2314 = vsel %vm2296, %v2281, %v1910
        %v2315 = vsel %vm2296, %v2282, %v1912
        %v2316 = vsel %vm2296, %v2283, %v1914
        %v2317 = vsel %vm2296, %v2284, %v1916
        %v2318 = vsel %vm2296, %v2285, %v1918
        %v2319 = vsel %vm2296, %v2286, %v1920
        %v2320 = vsel %vm2296, %v2287, %v1922
        %v2321 = vsel %vm2296, %v2288, %v1924
        %v2322 = vsel %vm2296, %v2289, %v1926
        %v2323 = vsel %vm2296, %v2290, %v1928
        %v2324 = vsel %vm2296, %v2291, %v1930
        %v2325 = vsel %vm2296, %v2292, %v1932
        %v2326 = vsel %vm2296, %v2293, %v1934
        %v2327 = vsel %vm2296, %v2294, %v1936
        %v2328 = vsel %vm2296, %v2295, %v1938
        %vm2329 = vcmask 261120
        %v2330 = vsel %vm2329, %v2297, %v2004
        %v2331 = vsel %vm2329, %v2298, %v2006
        %v2332 = vsel %vm2329, %v2299, %v2008
        %v2333 = vsel %vm2329, %v2300, %v2010
        %v2334 = vsel %vm2329, %v2301, %v2012
        %v2335 = vsel %vm2329, %v2302, %v2014
        %v2336 = vsel %vm2329, %v2303, %v2016
        %v2337 = vsel %vm2329, %v2304, %v2018
        %v2338 = vsel %vm2329, %v2305, %v2020
        %v2339 = vsel %vm2329, %v2306, %v2022
        %v2340 = vsel %vm2329, %v2307, %v2024
        %v2341 = vsel %vm2329, %v2308, %v2026
        %v2342 = vsel %vm2329, %v2309, %v2028
        %v2343 = vsel %vm2329, %v2310, %v2030
        %v2344 = vsel %vm2329, %v2311, %v2032
        %v2345 = vsel %vm2329, %v2312, %v2034
        %v2346 = vsel %vm2329, %v2313, %v2036
        %v2347 = vsel %vm2329, %v2314, %v2038
        %v2348 = vsel %vm2329, %v2315, %v2040
        %v2349 = vsel %vm2329, %v2316, %v2042
        %v2350 = vsel %vm2329, %v2317, %v2044
        %v2351 = vsel %vm2329, %v2318, %v2046
        %v2352 = vsel %vm2329, %v2319, %v2048
        %v2353 = vsel %vm2329, %v2320, %v2050
        %v2354 = vsel %vm2329, %v2321, %v2052
        %v2355 = vsel %vm2329, %v2322, %v2054
        %v2356 = vsel %vm2329, %v2323, %v2056
        %v2357 = vsel %vm2329, %v2324, %v2058
        %v2358 = vsel %vm2329, %v2325, %v2060
        %v2359 = vsel %vm2329, %v2326, %v2062
        %v2360 = vsel %vm2329, %v2327, %v2064
        %v2361 = vsel %vm2329, %v2328, %v2066
        %v2362 = vpack.c.bf16 %v2331, %v2330
        %v2363 = vpack.c.bf16 %v2333, %v2332
        %v2364 = vpack.c.bf16 %v2335, %v2334
        %v2365 = vpack.c.bf16 %v2337, %v2336
        %v2366 = vpack.c.bf16 %v2339, %v2338
        %v2367 = vpack.c.bf16 %v2341, %v2340
        %v2368 = vpack.c.bf16 %v2343, %v2342
        %v2369 = vpack.c.bf16 %v2345, %v2344
        %v2370 = vpack.c.bf16 %v2347, %v2346
        %v2371 = vpack.c.bf16 %v2349, %v2348
        %v2372 = vpack.c.bf16 %v2351, %v2350
        %v2373 = vpack.c.bf16 %v2353, %v2352
        %v2374 = vpack.c.bf16 %v2355, %v2354
        %v2375 = vpack.c.bf16 %v2357, %v2356
        %v2376 = vpack.c.bf16 %v2359, %v2358
        %v2377 = vpack.c.bf16 %v2361, %v2360
        %v2378 = vld [vmem:[#allocation6] sm:$0xf]
        %v2379 = vld [vmem:[#allocation6 + $0x4] sm:$0xf]
        %v2380 = vld [vmem:[#allocation6 + $0x8] sm:$0xf]
        %v2381 = vld [vmem:[#allocation6 + $0xc] sm:$0xf]
        %v2382 = vld [vmem:[#allocation6 + $0x10] sm:$0x3]
        %v2383 = vld [vmem:[#allocation8] sm:$0x1]
        %v2385 = vlaneseq
        %v2386 = vshrl.u32 %v2385, 7
        %v2387 = vsub.s32 0, %v2386
        %v2388 = vrot.slane %v2383, %v2387
        %v2395 = vunpack.c.l.b16 %v2378
        %v2396 = vunpack.c.l.b16 %v2379
        %v2397 = vunpack.c.l.b16 %v2380
        %v2398 = vunpack.c.l.b16 %v2381
        %v2399 = vunpack.c.l.b16 %v2382
        %v2400 = vpack.c.b16 %v2396, %v2395
        %v2401 = vpack.c.b16 %v2398, %v2397
        %v2402 = vpack.c.b16 %v2399, %v2399
        %vm2405 = vcmask 293888
        %v2407 = vsel %vm2405, %v2362, 0
        %v2410 = vsel %vm2405, %v2363, 0
        %v2413 = vsel %vm2405, %v2364, 0
        %v2416 = vsel %vm2405, %v2365, 0
        %v2419 = vsel %vm2405, %v2366, 0
        %v2422 = vsel %vm2405, %v2367, 0
        %v2425 = vsel %vm2405, %v2368, 0
        %v2428 = vsel %vm2405, %v2369, 0
        %v2431 = vsel %vm2405, %v2370, 0
        %v2434 = vsel %vm2405, %v2371, 0
        %v2437 = vsel %vm2405, %v2372, 0
        %v2440 = vsel %vm2405, %v2373, 0
        %v2443 = vsel %vm2405, %v2374, 0
        %v2446 = vsel %vm2405, %v2375, 0
        %v2449 = vsel %vm2405, %v2376, 0
        %v2452 = vsel %vm2405, %v2377, 0
        %vm2454 = vcmask 1041408
        %v2456 = vsel %vm2454, %v2402, 0
        %2458 = vmatprep.subr.bf16.mxu0 0
        %2459 = vmatpush1.bf16.msra.mxu0 0
        %2460 = vmatprep.subr.bf16.mxu0 0
        %2461 = vmatpush1.bf16.msra.mxu0 0
        %2462 = vmatprep.subr.bf16.mxu0 0
        %2463 = vmatpush1.bf16.msra.mxu0 0
        %2464 = vmatprep.subr.bf16.mxu0 0
        %2465 = vmatpush1.bf16.msra.mxu0 0
        %2466 = vmatprep.subr.bf16.mxu0 0
        %2467 = vmatpush1.bf16.msra.mxu0 0
        %2468 = vmatprep.subr.bf16.mxu0 0
        %2469 = vmatpush1.bf16.msra.mxu0 %v2456
        %2470 = vmatprep.subr.bf16.mxu0 0
        %2471 = vmatpush1.bf16.msra.mxu0 %v2401
        %2472 = vmatprep.subr.bf16.mxu0 0
        %2473 = vmatpush1.bf16.msra.mxu0 %v2400
        %2474 = vmatprep.subr.bf16.mxu0 0
        %2475 = vmatpush2.bf16.msra.mxu0 0
        %2476 = vmatprep.subr.bf16.mxu0 0
        %2477 = vmatpush2.bf16.msra.mxu0 0
        %2478 = vmatprep.subr.bf16.mxu0 0
        %2479 = vmatpush2.bf16.msra.mxu0 0
        %2480 = vmatprep.subr.bf16.mxu0 0
        %2481 = vmatpush2.bf16.msra.mxu0 0
        %2482 = vmatprep.subr.bf16.mxu0 0
        %2483 = vmatpush2.bf16.msra.mxu0 0
        %2484 = vmatprep.subr.bf16.mxu0 0
        %2485 = vmatpush2.bf16.msra.mxu0 0
        %2486 = vmatprep.subr.bf16.mxu0 0
        %2487 = vmatpush2.bf16.msra.mxu0 0
        %2488 = vmatprep.subr.bf16.mxu0 0
        %2489 = vmatpush2.bf16.msra.mxu0 0
        %2490 = vmatprep.mubr.bf16.mxu0 0
        %2491 = vmatmul.mubr.bf16.gmra.mxu0 %v2407
        %v2492 = vpop.f32.mrf.mxu0
        %v2493 = vadd.f32 %v2388, %v2492
        %v2494 = vpop.f32.mrf.mxu0
        %v2495 = vpop.f32.mrf.mxu0
        %v2496 = vadd.f32 %v2388, %v2495
        %v2497 = vpop.f32.mrf.mxu0
        %2498 = vmatprep.mubr.bf16.mxu0 0
        %2499 = vmatmul.mubr.bf16.gmra.mxu0 %v2410
        %v2500 = vpop.f32.mrf.mxu0
        %v2501 = vadd.f32 %v2388, %v2500
        %v2502 = vpop.f32.mrf.mxu0
        %v2503 = vpop.f32.mrf.mxu0
        %v2504 = vadd.f32 %v2388, %v2503
        %v2505 = vpop.f32.mrf.mxu0
        %2506 = vmatprep.mubr.bf16.mxu0 0
        %2507 = vmatmul.mubr.bf16.gmra.mxu0 %v2413
        %v2508 = vpop.f32.mrf.mxu0
        %v2509 = vadd.f32 %v2388, %v2508
        %v2510 = vpop.f32.mrf.mxu0
        %v2511 = vpop.f32.mrf.mxu0
        %v2512 = vadd.f32 %v2388, %v2511
        %v2513 = vpop.f32.mrf.mxu0
        %2514 = vmatprep.mubr.bf16.mxu0 0
        %2515 = vmatmul.mubr.bf16.gmra.mxu0 %v2416
        %v2516 = vpop.f32.mrf.mxu0
        %v2517 = vadd.f32 %v2388, %v2516
        %v2518 = vpop.f32.mrf.mxu0
        %v2519 = vpop.f32.mrf.mxu0
        %v2520 = vadd.f32 %v2388, %v2519
        %v2521 = vpop.f32.mrf.mxu0
        %2522 = vmatprep.mubr.bf16.mxu0 0
        %2523 = vmatmul.mubr.bf16.gmra.mxu0 %v2419
        %v2524 = vpop.f32.mrf.mxu0
        %v2525 = vadd.f32 %v2388, %v2524
        %v2526 = vpop.f32.mrf.mxu0
        %v2527 = vpop.f32.mrf.mxu0
        %v2528 = vadd.f32 %v2388, %v2527
        %v2529 = vpop.f32.mrf.mxu0
        %2530 = vmatprep.mubr.bf16.mxu0 0
        %2531 = vmatmul.mubr.bf16.gmra.mxu0 %v2422
        %v2532 = vpop.f32.mrf.mxu0
        %v2533 = vadd.f32 %v2388, %v2532
        %v2534 = vpop.f32.mrf.mxu0
        %v2535 = vpop.f32.mrf.mxu0
        %v2536 = vadd.f32 %v2388, %v2535
        %v2537 = vpop.f32.mrf.mxu0
        %2538 = vmatprep.mubr.bf16.mxu0 0
        %2539 = vmatmul.mubr.bf16.gmra.mxu0 %v2425
        %v2540 = vpop.f32.mrf.mxu0
        %v2541 = vadd.f32 %v2388, %v2540
        %v2542 = vpop.f32.mrf.mxu0
        %v2543 = vpop.f32.mrf.mxu0
        %v2544 = vadd.f32 %v2388, %v2543
        %v2545 = vpop.f32.mrf.mxu0
        %2546 = vmatprep.mubr.bf16.mxu0 0
        %2547 = vmatmul.mubr.bf16.gmra.mxu0 %v2428
        %v2548 = vpop.f32.mrf.mxu0
        %v2549 = vadd.f32 %v2388, %v2548
        %v2550 = vpop.f32.mrf.mxu0
        %v2551 = vpop.f32.mrf.mxu0
        %v2552 = vadd.f32 %v2388, %v2551
        %v2553 = vpop.f32.mrf.mxu0
        %2554 = vmatprep.mubr.bf16.mxu0 0
        %2555 = vmatmul.mubr.bf16.gmra.mxu0 %v2431
        %v2556 = vpop.f32.mrf.mxu0
        %v2557 = vadd.f32 %v2388, %v2556
        %v2558 = vpop.f32.mrf.mxu0
        %v2559 = vpop.f32.mrf.mxu0
        %v2560 = vadd.f32 %v2388, %v2559
        %v2561 = vpop.f32.mrf.mxu0
        %2562 = vmatprep.mubr.bf16.mxu0 0
        %2563 = vmatmul.mubr.bf16.gmra.mxu0 %v2434
        %v2564 = vpop.f32.mrf.mxu0
        %v2565 = vadd.f32 %v2388, %v2564
        %v2566 = vpop.f32.mrf.mxu0
        %v2567 = vpop.f32.mrf.mxu0
        %v2568 = vadd.f32 %v2388, %v2567
        %v2569 = vpop.f32.mrf.mxu0
        %2570 = vmatprep.mubr.bf16.mxu0 0
        %2571 = vmatmul.mubr.bf16.gmra.mxu0 %v2437
        %v2572 = vpop.f32.mrf.mxu0
        %v2573 = vadd.f32 %v2388, %v2572
        %v2574 = vpop.f32.mrf.mxu0
        %v2575 = vpop.f32.mrf.mxu0
        %v2576 = vadd.f32 %v2388, %v2575
        %v2577 = vpop.f32.mrf.mxu0
        %2578 = vmatprep.mubr.bf16.mxu0 0
        %2579 = vmatmul.mubr.bf16.gmra.mxu0 %v2440
        %v2580 = vpop.f32.mrf.mxu0
        %v2581 = vadd.f32 %v2388, %v2580
        %v2582 = vpop.f32.mrf.mxu0
        %v2583 = vpop.f32.mrf.mxu0
        %v2584 = vadd.f32 %v2388, %v2583
        %v2585 = vpop.f32.mrf.mxu0
        %2586 = vmatprep.mubr.bf16.mxu0 0
        %2587 = vmatmul.mubr.bf16.gmra.mxu0 %v2443
        %v2588 = vpop.f32.mrf.mxu0
        %v2589 = vadd.f32 %v2388, %v2588
        %v2590 = vpop.f32.mrf.mxu0
        %v2591 = vpop.f32.mrf.mxu0
        %v2592 = vadd.f32 %v2388, %v2591
        %v2593 = vpop.f32.mrf.mxu0
        %2594 = vmatprep.mubr.bf16.mxu0 0
        %2595 = vmatmul.mubr.bf16.gmra.mxu0 %v2446
        %v2596 = vpop.f32.mrf.mxu0
        %v2597 = vadd.f32 %v2388, %v2596
        %v2598 = vpop.f32.mrf.mxu0
        %v2599 = vpop.f32.mrf.mxu0
        %v2600 = vadd.f32 %v2388, %v2599
        %v2601 = vpop.f32.mrf.mxu0
        %2602 = vmatprep.mubr.bf16.mxu0 0
        %2603 = vmatmul.mubr.bf16.gmra.mxu0 %v2449
        %v2604 = vpop.f32.mrf.mxu0
        %v2605 = vadd.f32 %v2388, %v2604
        %v2606 = vpop.f32.mrf.mxu0
        %v2607 = vpop.f32.mrf.mxu0
        %v2608 = vadd.f32 %v2388, %v2607
        %v2609 = vpop.f32.mrf.mxu0
        %2610 = vmatprep.mubr.bf16.mxu0 0
        %2611 = vmatmul.mubr.bf16.gmra.mxu0 %v2452
        %v2612 = vpop.f32.mrf.mxu0
        %v2613 = vadd.f32 %v2388, %v2612
        %v2614 = vpop.f32.mrf.mxu0
        %v2615 = vpop.f32.mrf.mxu0
        %v2616 = vadd.f32 %v2388, %v2615
        %v2617 = vpop.f32.mrf.mxu0
        %2618 = vdwg.mxu0
        %v2619 = vmax.f32 %v2493, 0.0
        %v2620 = vmax.f32 %v2496, 0.0
        %v2621 = vmax.f32 %v2501, 0.0
        %v2622 = vmax.f32 %v2504, 0.0
        %v2623 = vmax.f32 %v2509, 0.0
        %v2624 = vmax.f32 %v2512, 0.0
        %v2625 = vmax.f32 %v2517, 0.0
        %v2626 = vmax.f32 %v2520, 0.0
        %v2627 = vmax.f32 %v2525, 0.0
        %v2628 = vmax.f32 %v2528, 0.0
        %v2629 = vmax.f32 %v2533, 0.0
        %v2630 = vmax.f32 %v2536, 0.0
        %v2631 = vmax.f32 %v2541, 0.0
        %v2632 = vmax.f32 %v2544, 0.0
        %v2633 = vmax.f32 %v2549, 0.0
        %v2634 = vmax.f32 %v2552, 0.0
        %v2635 = vmax.f32 %v2557, 0.0
        %v2636 = vmax.f32 %v2560, 0.0
        %v2637 = vmax.f32 %v2565, 0.0
        %v2638 = vmax.f32 %v2568, 0.0
        %v2639 = vmax.f32 %v2573, 0.0
        %v2640 = vmax.f32 %v2576, 0.0
        %v2641 = vmax.f32 %v2581, 0.0
        %v2642 = vmax.f32 %v2584, 0.0
        %v2643 = vmax.f32 %v2589, 0.0
        %v2644 = vmax.f32 %v2592, 0.0
        %v2645 = vmax.f32 %v2597, 0.0
        %v2646 = vmax.f32 %v2600, 0.0
        %v2647 = vmax.f32 %v2605, 0.0
        %v2648 = vmax.f32 %v2608, 0.0
        %v2649 = vmax.f32 %v2613, 0.0
        %v2650 = vmax.f32 %v2616, 0.0
        %v2651 = vmax.f32 %v2619, %v2621
        %v2652 = vmax.f32 %v2620, %v2622
        %v2653 = vmax.f32 %v2623, %v2625
        %v2654 = vmax.f32 %v2624, %v2626
        %v2655 = vmax.f32 %v2627, %v2629
        %v2656 = vmax.f32 %v2628, %v2630
        %v2657 = vmax.f32 %v2631, %v2633
        %v2658 = vmax.f32 %v2632, %v2634
        %v2659 = vmax.f32 %v2635, %v2637
        %v2660 = vmax.f32 %v2636, %v2638
        %v2661 = vmax.f32 %v2639, %v2641
        %v2662 = vmax.f32 %v2640, %v2642
        %v2663 = vmax.f32 %v2643, %v2645
        %v2664 = vmax.f32 %v2644, %v2646
        %v2665 = vmax.f32 %v2647, %v2649
        %v2666 = vmax.f32 %v2648, %v2650
        %v2683 = vcombine.high %v2651, %v2651
        %v2685 = vunpack.c.l.s4 1983009808
        %v2686 = vunpack.c.0.s8 %v2685
        %v2687 = vlaneseq
        %v2688 = vshrl.u32 %v2687, 7
        %v2689 = vsub.s32 %v2686, %v2688
        %v2690 = vrot.slane %v2651, %v2689
        %v2692 = vunpack.c.l.s4 1983009808
        %v2693 = vunpack.c.0.s8 %v2692
        %v2694 = vlaneseq
        %v2695 = vshrl.u32 %v2694, 7
        %v2696 = vsub.s32 %v2693, %v2695
        %v2697 = vrot.slane %v2683, %v2696
        %v2698 = vcombine.high %v2690, %v2690
        %v2699 = vcombine.high %v2697, %v2697
        %v2700 = vcombine.high %v2652, %v2652
        %v2702 = vunpack.c.l.s4 1983009808
        %v2703 = vunpack.c.0.s8 %v2702
        %v2704 = vlaneseq
        %v2705 = vshrl.u32 %v2704, 7
        %v2706 = vsub.s32 %v2703, %v2705
        %v2707 = vrot.slane %v2652, %v2706
        %v2709 = vunpack.c.l.s4 1983009808
        %v2710 = vunpack.c.0.s8 %v2709
        %v2711 = vlaneseq
        %v2712 = vshrl.u32 %v2711, 7
        %v2713 = vsub.s32 %v2710, %v2712
        %v2714 = vrot.slane %v2700, %v2713
        %v2715 = vcombine.high %v2707, %v2707
        %v2716 = vcombine.high %v2714, %v2714
        %v2717 = vcombine.high %v2653, %v2653
        %v2719 = vunpack.c.l.s4 1983009808
        %v2720 = vunpack.c.0.s8 %v2719
        %v2721 = vlaneseq
        %v2722 = vshrl.u32 %v2721, 7
        %v2723 = vsub.s32 %v2720, %v2722
        %v2724 = vrot.slane %v2653, %v2723
        %v2726 = vunpack.c.l.s4 1983009808
        %v2727 = vunpack.c.0.s8 %v2726
        %v2728 = vlaneseq
        %v2729 = vshrl.u32 %v2728, 7
        %v2730 = vsub.s32 %v2727, %v2729
        %v2731 = vrot.slane %v2717, %v2730
        %v2732 = vcombine.high %v2724, %v2724
        %v2733 = vcombine.high %v2731, %v2731
        %v2734 = vcombine.high %v2654, %v2654
        %v2736 = vunpack.c.l.s4 1983009808
        %v2737 = vunpack.c.0.s8 %v2736
        %v2738 = vlaneseq
        %v2739 = vshrl.u32 %v2738, 7
        %v2740 = vsub.s32 %v2737, %v2739
        %v2741 = vrot.slane %v2654, %v2740
        %v2743 = vunpack.c.l.s4 1983009808
        %v2744 = vunpack.c.0.s8 %v2743
        %v2745 = vlaneseq
        %v2746 = vshrl.u32 %v2745, 7
        %v2747 = vsub.s32 %v2744, %v2746
        %v2748 = vrot.slane %v2734, %v2747
        %v2749 = vcombine.high %v2741, %v2741
        %v2750 = vcombine.high %v2748, %v2748
        %v2751 = vcombine.high %v2655, %v2655
        %v2753 = vunpack.c.l.s4 1983009808
        %v2754 = vunpack.c.0.s8 %v2753
        %v2755 = vlaneseq
        %v2756 = vshrl.u32 %v2755, 7
        %v2757 = vsub.s32 %v2754, %v2756
        %v2758 = vrot.slane %v2655, %v2757
        %v2760 = vunpack.c.l.s4 1983009808
        %v2761 = vunpack.c.0.s8 %v2760
        %v2762 = vlaneseq
        %v2763 = vshrl.u32 %v2762, 7
        %v2764 = vsub.s32 %v2761, %v2763
        %v2765 = vrot.slane %v2751, %v2764
        %v2766 = vcombine.high %v2758, %v2758
        %v2767 = vcombine.high %v2765, %v2765
        %v2768 = vcombine.high %v2656, %v2656
        %v2770 = vunpack.c.l.s4 1983009808
        %v2771 = vunpack.c.0.s8 %v2770
        %v2772 = vlaneseq
        %v2773 = vshrl.u32 %v2772, 7
        %v2774 = vsub.s32 %v2771, %v2773
        %v2775 = vrot.slane %v2656, %v2774
        %v2777 = vunpack.c.l.s4 1983009808
        %v2778 = vunpack.c.0.s8 %v2777
        %v2779 = vlaneseq
        %v2780 = vshrl.u32 %v2779, 7
        %v2781 = vsub.s32 %v2778, %v2780
        %v2782 = vrot.slane %v2768, %v2781
        %v2783 = vcombine.high %v2775, %v2775
        %v2784 = vcombine.high %v2782, %v2782
        %v2785 = vcombine.high %v2657, %v2657
        %v2787 = vunpack.c.l.s4 1983009808
        %v2788 = vunpack.c.0.s8 %v2787
        %v2789 = vlaneseq
        %v2790 = vshrl.u32 %v2789, 7
        %v2791 = vsub.s32 %v2788, %v2790
        %v2792 = vrot.slane %v2657, %v2791
        %v2794 = vunpack.c.l.s4 1983009808
        %v2795 = vunpack.c.0.s8 %v2794
        %v2796 = vlaneseq
        %v2797 = vshrl.u32 %v2796, 7
        %v2798 = vsub.s32 %v2795, %v2797
        %v2799 = vrot.slane %v2785, %v2798
        %v2800 = vcombine.high %v2792, %v2792
        %v2801 = vcombine.high %v2799, %v2799
        %v2802 = vcombine.high %v2658, %v2658
        %v2804 = vunpack.c.l.s4 1983009808
        %v2805 = vunpack.c.0.s8 %v2804
        %v2806 = vlaneseq
        %v2807 = vshrl.u32 %v2806, 7
        %v2808 = vsub.s32 %v2805, %v2807
        %v2809 = vrot.slane %v2658, %v2808
        %v2811 = vunpack.c.l.s4 1983009808
        %v2812 = vunpack.c.0.s8 %v2811
        %v2813 = vlaneseq
        %v2814 = vshrl.u32 %v2813, 7
        %v2815 = vsub.s32 %v2812, %v2814
        %v2816 = vrot.slane %v2802, %v2815
        %v2817 = vcombine.high %v2809, %v2809
        %v2818 = vcombine.high %v2816, %v2816
        %v2819 = vcombine.high %v2659, %v2659
        %v2821 = vunpack.c.l.s4 1983009808
        %v2822 = vunpack.c.0.s8 %v2821
        %v2823 = vlaneseq
        %v2824 = vshrl.u32 %v2823, 7
        %v2825 = vsub.s32 %v2822, %v2824
        %v2826 = vrot.slane %v2659, %v2825
        %v2828 = vunpack.c.l.s4 1983009808
        %v2829 = vunpack.c.0.s8 %v2828
        %v2830 = vlaneseq
        %v2831 = vshrl.u32 %v2830, 7
        %v2832 = vsub.s32 %v2829, %v2831
        %v2833 = vrot.slane %v2819, %v2832
        %v2834 = vcombine.high %v2826, %v2826
        %v2835 = vcombine.high %v2833, %v2833
        %v2836 = vcombine.high %v2660, %v2660
        %v2838 = vunpack.c.l.s4 1983009808
        %v2839 = vunpack.c.0.s8 %v2838
        %v2840 = vlaneseq
        %v2841 = vshrl.u32 %v2840, 7
        %v2842 = vsub.s32 %v2839, %v2841
        %v2843 = vrot.slane %v2660, %v2842
        %v2845 = vunpack.c.l.s4 1983009808
        %v2846 = vunpack.c.0.s8 %v2845
        %v2847 = vlaneseq
        %v2848 = vshrl.u32 %v2847, 7
        %v2849 = vsub.s32 %v2846, %v2848
        %v2850 = vrot.slane %v2836, %v2849
        %v2851 = vcombine.high %v2843, %v2843
        %v2852 = vcombine.high %v2850, %v2850
        %v2853 = vcombine.high %v2661, %v2661
        %v2855 = vunpack.c.l.s4 1983009808
        %v2856 = vunpack.c.0.s8 %v2855
        %v2857 = vlaneseq
        %v2858 = vshrl.u32 %v2857, 7
        %v2859 = vsub.s32 %v2856, %v2858
        %v2860 = vrot.slane %v2661, %v2859
        %v2862 = vunpack.c.l.s4 1983009808
        %v2863 = vunpack.c.0.s8 %v2862
        %v2864 = vlaneseq
        %v2865 = vshrl.u32 %v2864, 7
        %v2866 = vsub.s32 %v2863, %v2865
        %v2867 = vrot.slane %v2853, %v2866
        %v2868 = vcombine.high %v2860, %v2860
        %v2869 = vcombine.high %v2867, %v2867
        %v2870 = vcombine.high %v2662, %v2662
        %v2872 = vunpack.c.l.s4 1983009808
        %v2873 = vunpack.c.0.s8 %v2872
        %v2874 = vlaneseq
        %v2875 = vshrl.u32 %v2874, 7
        %v2876 = vsub.s32 %v2873, %v2875
        %v2877 = vrot.slane %v2662, %v2876
        %v2879 = vunpack.c.l.s4 1983009808
        %v2880 = vunpack.c.0.s8 %v2879
        %v2881 = vlaneseq
        %v2882 = vshrl.u32 %v2881, 7
        %v2883 = vsub.s32 %v2880, %v2882
        %v2884 = vrot.slane %v2870, %v2883
        %v2885 = vcombine.high %v2877, %v2877
        %v2886 = vcombine.high %v2884, %v2884
        %v2887 = vcombine.high %v2663, %v2663
        %v2889 = vunpack.c.l.s4 1983009808
        %v2890 = vunpack.c.0.s8 %v2889
        %v2891 = vlaneseq
        %v2892 = vshrl.u32 %v2891, 7
        %v2893 = vsub.s32 %v2890, %v2892
        %v2894 = vrot.slane %v2663, %v2893
        %v2896 = vunpack.c.l.s4 1983009808
        %v2897 = vunpack.c.0.s8 %v2896
        %v2898 = vlaneseq
        %v2899 = vshrl.u32 %v2898, 7
        %v2900 = vsub.s32 %v2897, %v2899
        %v2901 = vrot.slane %v2887, %v2900
        %v2902 = vcombine.high %v2894, %v2894
        %v2903 = vcombine.high %v2901, %v2901
        %v2904 = vcombine.high %v2664, %v2664
        %v2906 = vunpack.c.l.s4 1983009808
        %v2907 = vunpack.c.0.s8 %v2906
        %v2908 = vlaneseq
        %v2909 = vshrl.u32 %v2908, 7
        %v2910 = vsub.s32 %v2907, %v2909
        %v2911 = vrot.slane %v2664, %v2910
        %v2913 = vunpack.c.l.s4 1983009808
        %v2914 = vunpack.c.0.s8 %v2913
        %v2915 = vlaneseq
        %v2916 = vshrl.u32 %v2915, 7
        %v2917 = vsub.s32 %v2914, %v2916
        %v2918 = vrot.slane %v2904, %v2917
        %v2919 = vcombine.high %v2911, %v2911
        %v2920 = vcombine.high %v2918, %v2918
        %v2921 = vcombine.high %v2665, %v2665
        %v2923 = vunpack.c.l.s4 1983009808
        %v2924 = vunpack.c.0.s8 %v2923
        %v2925 = vlaneseq
        %v2926 = vshrl.u32 %v2925, 7
        %v2927 = vsub.s32 %v2924, %v2926
        %v2928 = vrot.slane %v2665, %v2927
        %v2930 = vunpack.c.l.s4 1983009808
        %v2931 = vunpack.c.0.s8 %v2930
        %v2932 = vlaneseq
        %v2933 = vshrl.u32 %v2932, 7
        %v2934 = vsub.s32 %v2931, %v2933
        %v2935 = vrot.slane %v2921, %v2934
        %v2936 = vcombine.high %v2928, %v2928
        %v2937 = vcombine.high %v2935, %v2935
        %v2938 = vcombine.high %v2666, %v2666
        %v2940 = vunpack.c.l.s4 1983009808
        %v2941 = vunpack.c.0.s8 %v2940
        %v2942 = vlaneseq
        %v2943 = vshrl.u32 %v2942, 7
        %v2944 = vsub.s32 %v2941, %v2943
        %v2945 = vrot.slane %v2666, %v2944
        %v2947 = vunpack.c.l.s4 1983009808
        %v2948 = vunpack.c.0.s8 %v2947
        %v2949 = vlaneseq
        %v2950 = vshrl.u32 %v2949, 7
        %v2951 = vsub.s32 %v2948, %v2950
        %v2952 = vrot.slane %v2938, %v2951
        %v2953 = vcombine.high %v2945, %v2945
        %v2954 = vcombine.high %v2952, %v2952
        %v3019 = vrot.slane %v2690, 7
        %v3020 = vrot.slane %v3019, 2
        %v3021 = vrot.slane %v2698, 7
        %v3022 = vrot.slane %v3021, 2
        %v3023 = vrot.slane %v2697, 7
        %v3024 = vrot.slane %v3023, 2
        %v3025 = vrot.slane %v2699, 7
        %v3026 = vrot.slane %v3025, 2
        %v3027 = vrot.slane %v2707, 7
        %v3028 = vrot.slane %v3027, 2
        %v3029 = vrot.slane %v2715, 7
        %v3030 = vrot.slane %v3029, 2
        %v3031 = vrot.slane %v2714, 7
        %v3032 = vrot.slane %v3031, 2
        %v3033 = vrot.slane %v2716, 7
        %v3034 = vrot.slane %v3033, 2
        %v3035 = vrot.slane %v2724, 7
        %v3036 = vrot.slane %v3035, 2
        %v3037 = vrot.slane %v2732, 7
        %v3038 = vrot.slane %v3037, 2
        %v3039 = vrot.slane %v2731, 7
        %v3040 = vrot.slane %v3039, 2
        %v3041 = vrot.slane %v2733, 7
        %v3042 = vrot.slane %v3041, 2
        %v3043 = vrot.slane %v2741, 7
        %v3044 = vrot.slane %v3043, 2
        %v3045 = vrot.slane %v2749, 7
        %v3046 = vrot.slane %v3045, 2
        %v3047 = vrot.slane %v2748, 7
        %v3048 = vrot.slane %v3047, 2
        %v3049 = vrot.slane %v2750, 7
        %v3050 = vrot.slane %v3049, 2
        %v3051 = vrot.slane %v2758, 7
        %v3052 = vrot.slane %v3051, 2
        %v3053 = vrot.slane %v2766, 7
        %v3054 = vrot.slane %v3053, 2
        %v3055 = vrot.slane %v2765, 7
        %v3056 = vrot.slane %v3055, 2
        %v3057 = vrot.slane %v2767, 7
        %v3058 = vrot.slane %v3057, 2
        %v3059 = vrot.slane %v2775, 7
        %v3060 = vrot.slane %v3059, 2
        %v3061 = vrot.slane %v2783, 7
        %v3062 = vrot.slane %v3061, 2
        %v3063 = vrot.slane %v2782, 7
        %v3064 = vrot.slane %v3063, 2
        %v3065 = vrot.slane %v2784, 7
        %v3066 = vrot.slane %v3065, 2
        %v3067 = vrot.slane %v2792, 7
        %v3068 = vrot.slane %v3067, 2
        %v3069 = vrot.slane %v2800, 7
        %v3070 = vrot.slane %v3069, 2
        %v3071 = vrot.slane %v2799, 7
        %v3072 = vrot.slane %v3071, 2
        %v3073 = vrot.slane %v2801, 7
        %v3074 = vrot.slane %v3073, 2
        %v3075 = vrot.slane %v2809, 7
        %v3076 = vrot.slane %v3075, 2
        %v3077 = vrot.slane %v2817, 7
        %v3078 = vrot.slane %v3077, 2
        %v3079 = vrot.slane %v2816, 7
        %v3080 = vrot.slane %v3079, 2
        %v3081 = vrot.slane %v2818, 7
        %v3082 = vrot.slane %v3081, 2
        %v3083 = vrot.slane %v2826, 7
        %v3084 = vrot.slane %v3083, 2
        %v3085 = vrot.slane %v2834, 7
        %v3086 = vrot.slane %v3085, 2
        %v3087 = vrot.slane %v2833, 7
        %v3088 = vrot.slane %v3087, 2
        %v3089 = vrot.slane %v2835, 7
        %v3090 = vrot.slane %v3089, 2
        %v3091 = vrot.slane %v2843, 7
        %v3092 = vrot.slane %v3091, 2
        %v3093 = vrot.slane %v2851, 7
        %v3094 = vrot.slane %v3093, 2
        %v3095 = vrot.slane %v2850, 7
        %v3096 = vrot.slane %v3095, 2
        %v3097 = vrot.slane %v2852, 7
        %v3098 = vrot.slane %v3097, 2
        %v3099 = vrot.slane %v2860, 7
        %v3100 = vrot.slane %v3099, 2
        %v3101 = vrot.slane %v2868, 7
        %v3102 = vrot.slane %v3101, 2
        %v3103 = vrot.slane %v2867, 7
        %v3104 = vrot.slane %v3103, 2
        %v3105 = vrot.slane %v2869, 7
        %v3106 = vrot.slane %v3105, 2
        %v3107 = vrot.slane %v2877, 7
        %v3108 = vrot.slane %v3107, 2
        %v3109 = vrot.slane %v2885, 7
        %v3110 = vrot.slane %v3109, 2
        %v3111 = vrot.slane %v2884, 7
        %v3112 = vrot.slane %v3111, 2
        %v3113 = vrot.slane %v2886, 7
        %v3114 = vrot.slane %v3113, 2
        %v3115 = vrot.slane %v2894, 7
        %v3116 = vrot.slane %v3115, 2
        %v3117 = vrot.slane %v2902, 7
        %v3118 = vrot.slane %v3117, 2
        %v3119 = vrot.slane %v2901, 7
        %v3120 = vrot.slane %v3119, 2
        %v3121 = vrot.slane %v2903, 7
        %v3122 = vrot.slane %v3121, 2
        %v3123 = vrot.slane %v2911, 7
        %v3124 = vrot.slane %v3123, 2
        %v3125 = vrot.slane %v2919, 7
        %v3126 = vrot.slane %v3125, 2
        %v3127 = vrot.slane %v2918, 7
        %v3128 = vrot.slane %v3127, 2
        %v3129 = vrot.slane %v2920, 7
        %v3130 = vrot.slane %v3129, 2
        %v3131 = vrot.slane %v2928, 7
        %v3132 = vrot.slane %v3131, 2
        %v3133 = vrot.slane %v2936, 7
        %v3134 = vrot.slane %v3133, 2
        %v3135 = vrot.slane %v2935, 7
        %v3136 = vrot.slane %v3135, 2
        %v3137 = vrot.slane %v2937, 7
        %v3138 = vrot.slane %v3137, 2
        %v3139 = vrot.slane %v2945, 7
        %v3140 = vrot.slane %v3139, 2
        %v3141 = vrot.slane %v2953, 7
        %v3142 = vrot.slane %v3141, 2
        %v3143 = vrot.slane %v2952, 7
        %v3144 = vrot.slane %v3143, 2
        %v3145 = vrot.slane %v2954, 7
        %v3146 = vrot.slane %v3145, 2
        %v3211 = vmax.f32 %v2690, %v3020
        %v3212 = vmax.f32 %v2698, %v3022
        %v3213 = vmax.f32 %v2697, %v3024
        %v3214 = vmax.f32 %v2699, %v3026
        %v3215 = vmax.f32 %v2707, %v3028
        %v3216 = vmax.f32 %v2715, %v3030
        %v3217 = vmax.f32 %v2714, %v3032
        %v3218 = vmax.f32 %v2716, %v3034
        %v3219 = vmax.f32 %v2724, %v3036
        %v3220 = vmax.f32 %v2732, %v3038
        %v3221 = vmax.f32 %v2731, %v3040
        %v3222 = vmax.f32 %v2733, %v3042
        %v3223 = vmax.f32 %v2741, %v3044
        %v3224 = vmax.f32 %v2749, %v3046
        %v3225 = vmax.f32 %v2748, %v3048
        %v3226 = vmax.f32 %v2750, %v3050
        %v3227 = vmax.f32 %v2758, %v3052
        %v3228 = vmax.f32 %v2766, %v3054
        %v3229 = vmax.f32 %v2765, %v3056
        %v3230 = vmax.f32 %v2767, %v3058
        %v3231 = vmax.f32 %v2775, %v3060
        %v3232 = vmax.f32 %v2783, %v3062
        %v3233 = vmax.f32 %v2782, %v3064
        %v3234 = vmax.f32 %v2784, %v3066
        %v3235 = vmax.f32 %v2792, %v3068
        %v3236 = vmax.f32 %v2800, %v3070
        %v3237 = vmax.f32 %v2799, %v3072
        %v3238 = vmax.f32 %v2801, %v3074
        %v3239 = vmax.f32 %v2809, %v3076
        %v3240 = vmax.f32 %v2817, %v3078
        %v3241 = vmax.f32 %v2816, %v3080
        %v3242 = vmax.f32 %v2818, %v3082
        %v3243 = vmax.f32 %v2826, %v3084
        %v3244 = vmax.f32 %v2834, %v3086
        %v3245 = vmax.f32 %v2833, %v3088
        %v3246 = vmax.f32 %v2835, %v3090
        %v3247 = vmax.f32 %v2843, %v3092
        %v3248 = vmax.f32 %v2851, %v3094
        %v3249 = vmax.f32 %v2850, %v3096
        %v3250 = vmax.f32 %v2852, %v3098
        %v3251 = vmax.f32 %v2860, %v3100
        %v3252 = vmax.f32 %v2868, %v3102
        %v3253 = vmax.f32 %v2867, %v3104
        %v3254 = vmax.f32 %v2869, %v3106
        %v3255 = vmax.f32 %v2877, %v3108
        %v3256 = vmax.f32 %v2885, %v3110
        %v3257 = vmax.f32 %v2884, %v3112
        %v3258 = vmax.f32 %v2886, %v3114
        %v3259 = vmax.f32 %v2894, %v3116
        %v3260 = vmax.f32 %v2902, %v3118
        %v3261 = vmax.f32 %v2901, %v3120
        %v3262 = vmax.f32 %v2903, %v3122
        %v3263 = vmax.f32 %v2911, %v3124
        %v3264 = vmax.f32 %v2919, %v3126
        %v3265 = vmax.f32 %v2918, %v3128
        %v3266 = vmax.f32 %v2920, %v3130
        %v3267 = vmax.f32 %v2928, %v3132
        %v3268 = vmax.f32 %v2936, %v3134
        %v3269 = vmax.f32 %v2935, %v3136
        %v3270 = vmax.f32 %v2937, %v3138
        %v3271 = vmax.f32 %v2945, %v3140
        %v3272 = vmax.f32 %v2953, %v3142
        %v3273 = vmax.f32 %v2952, %v3144
        %v3274 = vmax.f32 %v2954, %v3146
        %vm3275 = vcmask 523264
        %3276 = vst.msk [vmem:[#allocation3] sm:$0xff] %vm3275, 0.0
        %vm3277 = vcmask 517120
        %3278 = vst.msk [vmem:[#allocation3 + $0x8] sm:$0x3] %vm3277, 0.0
        %s3279 = scalar_lea.vmem [#allocation3], 144
        %3280 = vst.msk [vmem:[%s3279] sm:$0xff] %vm3275, 0.0
        %3281 = vst.msk [vmem:[%s3279 + $0x8] sm:$0x3] %vm3277, 0.0
        %vm3282 = vcmask 516096
        %3283 = vst.msk [vmem:[#allocation3] sm:$0x1] %vm3282, 0.0
        %3284 = vst.msk [vmem:[#allocation3 + $0x10] sm:$0x1] %vm3282, 0.0
        %3285 = vst.msk [vmem:[#allocation3 + $0x20] sm:$0x1] %vm3282, 0.0
        %3286 = vst.msk [vmem:[#allocation3 + $0x30] sm:$0x1] %vm3282, 0.0
        %3287 = vst.msk [vmem:[#allocation3 + $0x40] sm:$0x1] %vm3282, 0.0
        %3288 = vst.msk [vmem:[#allocation3 + $0x50] sm:$0x1] %vm3282, 0.0
        %3289 = vst.msk [vmem:[#allocation3 + $0x60] sm:$0x1] %vm3282, 0.0
        %3290 = vst.msk [vmem:[#allocation3 + $0x70] sm:$0x1] %vm3282, 0.0
        %3291 = vst.msk [vmem:[#allocation3 + $0x80] sm:$0x1] %vm3282, 0.0
        %3292 = vst.msk [vmem:[#allocation3 + $0x90] sm:$0x1] %vm3282, 0.0
        %3293 = vst.msk [vmem:[#allocation3 + $0x9] sm:$0x1] %vm3282, 0.0
        %3294 = vst.msk [vmem:[#allocation3 + $0x19] sm:$0x1] %vm3282, 0.0
        %3295 = vst.msk [vmem:[#allocation3 + $0x29] sm:$0x1] %vm3282, 0.0
        %3296 = vst.msk [vmem:[#allocation3 + $0x39] sm:$0x1] %vm3282, 0.0
        %3297 = vst.msk [vmem:[#allocation3 + $0x49] sm:$0x1] %vm3282, 0.0
        %3298 = vst.msk [vmem:[#allocation3 + $0x59] sm:$0x1] %vm3282, 0.0
        %3299 = vst.msk [vmem:[#allocation3 + $0x69] sm:$0x1] %vm3282, 0.0
        %3300 = vst.msk [vmem:[#allocation3 + $0x79] sm:$0x1] %vm3282, 0.0
        %3301 = vst.msk [vmem:[#allocation3 + $0x89] sm:$0x1] %vm3282, 0.0
        %3302 = vst.msk [vmem:[#allocation3 + $0x99] sm:$0x1] %vm3282, 0.0
        %v3367 = vlaneseq
        %v3368 = vshrl.u32 %v3367, 7
        %v3369 = vsub.s32 0, %v3368
        %v3370 = vrot.slane %v3211, %v3369
        %v3371 = vlaneseq
        %v3372 = vshrl.u32 %v3371, 7
        %v3373 = vsub.s32 0, %v3372
        %v3374 = vrot.slane %v3212, %v3373
        %v3375 = vlaneseq
        %v3376 = vshrl.u32 %v3375, 7
        %v3377 = vsub.s32 0, %v3376
        %v3378 = vrot.slane %v3213, %v3377
        %v3379 = vlaneseq
        %v3380 = vshrl.u32 %v3379, 7
        %v3381 = vsub.s32 0, %v3380
        %v3382 = vrot.slane %v3214, %v3381
        %v3383 = vlaneseq
        %v3384 = vshrl.u32 %v3383, 7
        %v3385 = vsub.s32 0, %v3384
        %v3386 = vrot.slane %v3215, %v3385
        %v3387 = vlaneseq
        %v3388 = vshrl.u32 %v3387, 7
        %v3389 = vsub.s32 0, %v3388
        %v3390 = vrot.slane %v3216, %v3389
        %v3391 = vlaneseq
        %v3392 = vshrl.u32 %v3391, 7
        %v3393 = vsub.s32 0, %v3392
        %v3394 = vrot.slane %v3217, %v3393
        %v3395 = vlaneseq
        %v3396 = vshrl.u32 %v3395, 7
        %v3397 = vsub.s32 0, %v3396
        %v3398 = vrot.slane %v3218, %v3397
        %v3399 = vlaneseq
        %v3400 = vshrl.u32 %v3399, 7
        %v3401 = vsub.s32 0, %v3400
        %v3402 = vrot.slane %v3219, %v3401
        %v3403 = vlaneseq
        %v3404 = vshrl.u32 %v3403, 7
        %v3405 = vsub.s32 0, %v3404
        %v3406 = vrot.slane %v3220, %v3405
        %v3407 = vlaneseq
        %v3408 = vshrl.u32 %v3407, 7
        %v3409 = vsub.s32 0, %v3408
        %v3410 = vrot.slane %v3221, %v3409
        %v3411 = vlaneseq
        %v3412 = vshrl.u32 %v3411, 7
        %v3413 = vsub.s32 0, %v3412
        %v3414 = vrot.slane %v3222, %v3413
        %v3415 = vlaneseq
        %v3416 = vshrl.u32 %v3415, 7
        %v3417 = vsub.s32 0, %v3416
        %v3418 = vrot.slane %v3223, %v3417
        %v3419 = vlaneseq
        %v3420 = vshrl.u32 %v3419, 7
        %v3421 = vsub.s32 0, %v3420
        %v3422 = vrot.slane %v3224, %v3421
        %v3423 = vlaneseq
        %v3424 = vshrl.u32 %v3423, 7
        %v3425 = vsub.s32 0, %v3424
        %v3426 = vrot.slane %v3225, %v3425
        %v3427 = vlaneseq
        %v3428 = vshrl.u32 %v3427, 7
        %v3429 = vsub.s32 0, %v3428
        %v3430 = vrot.slane %v3226, %v3429
        %v3431 = vlaneseq
        %v3432 = vshrl.u32 %v3431, 7
        %v3433 = vsub.s32 0, %v3432
        %v3434 = vrot.slane %v3227, %v3433
        %v3435 = vlaneseq
        %v3436 = vshrl.u32 %v3435, 7
        %v3437 = vsub.s32 0, %v3436
        %v3438 = vrot.slane %v3228, %v3437
        %v3439 = vlaneseq
        %v3440 = vshrl.u32 %v3439, 7
        %v3441 = vsub.s32 0, %v3440
        %v3442 = vrot.slane %v3229, %v3441
        %v3443 = vlaneseq
        %v3444 = vshrl.u32 %v3443, 7
        %v3445 = vsub.s32 0, %v3444
        %v3446 = vrot.slane %v3230, %v3445
        %v3447 = vlaneseq
        %v3448 = vshrl.u32 %v3447, 7
        %v3449 = vsub.s32 0, %v3448
        %v3450 = vrot.slane %v3231, %v3449
        %v3451 = vlaneseq
        %v3452 = vshrl.u32 %v3451, 7
        %v3453 = vsub.s32 0, %v3452
        %v3454 = vrot.slane %v3232, %v3453
        %v3455 = vlaneseq
        %v3456 = vshrl.u32 %v3455, 7
        %v3457 = vsub.s32 0, %v3456
        %v3458 = vrot.slane %v3233, %v3457
        %v3459 = vlaneseq
        %v3460 = vshrl.u32 %v3459, 7
        %v3461 = vsub.s32 0, %v3460
        %v3462 = vrot.slane %v3234, %v3461
        %v3463 = vlaneseq
        %v3464 = vshrl.u32 %v3463, 7
        %v3465 = vsub.s32 0, %v3464
        %v3466 = vrot.slane %v3235, %v3465
        %v3467 = vlaneseq
        %v3468 = vshrl.u32 %v3467, 7
        %v3469 = vsub.s32 0, %v3468
        %v3470 = vrot.slane %v3236, %v3469
        %v3471 = vlaneseq
        %v3472 = vshrl.u32 %v3471, 7
        %v3473 = vsub.s32 0, %v3472
        %v3474 = vrot.slane %v3237, %v3473
        %v3475 = vlaneseq
        %v3476 = vshrl.u32 %v3475, 7
        %v3477 = vsub.s32 0, %v3476
        %v3478 = vrot.slane %v3238, %v3477
        %v3479 = vlaneseq
        %v3480 = vshrl.u32 %v3479, 7
        %v3481 = vsub.s32 0, %v3480
        %v3482 = vrot.slane %v3239, %v3481
        %v3483 = vlaneseq
        %v3484 = vshrl.u32 %v3483, 7
        %v3485 = vsub.s32 0, %v3484
        %v3486 = vrot.slane %v3240, %v3485
        %v3487 = vlaneseq
        %v3488 = vshrl.u32 %v3487, 7
        %v3489 = vsub.s32 0, %v3488
        %v3490 = vrot.slane %v3241, %v3489
        %v3491 = vlaneseq
        %v3492 = vshrl.u32 %v3491, 7
        %v3493 = vsub.s32 0, %v3492
        %v3494 = vrot.slane %v3242, %v3493
        %v3495 = vlaneseq
        %v3496 = vshrl.u32 %v3495, 7
        %v3497 = vsub.s32 0, %v3496
        %v3498 = vrot.slane %v3243, %v3497
        %v3499 = vlaneseq
        %v3500 = vshrl.u32 %v3499, 7
        %v3501 = vsub.s32 0, %v3500
        %v3502 = vrot.slane %v3244, %v3501
        %v3503 = vlaneseq
        %v3504 = vshrl.u32 %v3503, 7
        %v3505 = vsub.s32 0, %v3504
        %v3506 = vrot.slane %v3245, %v3505
        %v3507 = vlaneseq
        %v3508 = vshrl.u32 %v3507, 7
        %v3509 = vsub.s32 0, %v3508
        %v3510 = vrot.slane %v3246, %v3509
        %v3511 = vlaneseq
        %v3512 = vshrl.u32 %v3511, 7
        %v3513 = vsub.s32 0, %v3512
        %v3514 = vrot.slane %v3247, %v3513
        %v3515 = vlaneseq
        %v3516 = vshrl.u32 %v3515, 7
        %v3517 = vsub.s32 0, %v3516
        %v3518 = vrot.slane %v3248, %v3517
        %v3519 = vlaneseq
        %v3520 = vshrl.u32 %v3519, 7
        %v3521 = vsub.s32 0, %v3520
        %v3522 = vrot.slane %v3249, %v3521
        %v3523 = vlaneseq
        %v3524 = vshrl.u32 %v3523, 7
        %v3525 = vsub.s32 0, %v3524
        %v3526 = vrot.slane %v3250, %v3525
        %v3527 = vlaneseq
        %v3528 = vshrl.u32 %v3527, 7
        %v3529 = vsub.s32 0, %v3528
        %v3530 = vrot.slane %v3251, %v3529
        %v3531 = vlaneseq
        %v3532 = vshrl.u32 %v3531, 7
        %v3533 = vsub.s32 0, %v3532
        %v3534 = vrot.slane %v3252, %v3533
        %v3535 = vlaneseq
        %v3536 = vshrl.u32 %v3535, 7
        %v3537 = vsub.s32 0, %v3536
        %v3538 = vrot.slane %v3253, %v3537
        %v3539 = vlaneseq
        %v3540 = vshrl.u32 %v3539, 7
        %v3541 = vsub.s32 0, %v3540
        %v3542 = vrot.slane %v3254, %v3541
        %v3543 = vlaneseq
        %v3544 = vshrl.u32 %v3543, 7
        %v3545 = vsub.s32 0, %v3544
        %v3546 = vrot.slane %v3255, %v3545
        %v3547 = vlaneseq
        %v3548 = vshrl.u32 %v3547, 7
        %v3549 = vsub.s32 0, %v3548
        %v3550 = vrot.slane %v3256, %v3549
        %v3551 = vlaneseq
        %v3552 = vshrl.u32 %v3551, 7
        %v3553 = vsub.s32 0, %v3552
        %v3554 = vrot.slane %v3257, %v3553
        %v3555 = vlaneseq
        %v3556 = vshrl.u32 %v3555, 7
        %v3557 = vsub.s32 0, %v3556
        %v3558 = vrot.slane %v3258, %v3557
        %v3559 = vlaneseq
        %v3560 = vshrl.u32 %v3559, 7
        %v3561 = vsub.s32 0, %v3560
        %v3562 = vrot.slane %v3259, %v3561
        %v3563 = vlaneseq
        %v3564 = vshrl.u32 %v3563, 7
        %v3565 = vsub.s32 0, %v3564
        %v3566 = vrot.slane %v3260, %v3565
        %v3567 = vlaneseq
        %v3568 = vshrl.u32 %v3567, 7
        %v3569 = vsub.s32 0, %v3568
        %v3570 = vrot.slane %v3261, %v3569
        %v3571 = vlaneseq
        %v3572 = vshrl.u32 %v3571, 7
        %v3573 = vsub.s32 0, %v3572
        %v3574 = vrot.slane %v3262, %v3573
        %v3575 = vlaneseq
        %v3576 = vshrl.u32 %v3575, 7
        %v3577 = vsub.s32 0, %v3576
        %v3578 = vrot.slane %v3263, %v3577
        %v3579 = vlaneseq
        %v3580 = vshrl.u32 %v3579, 7
        %v3581 = vsub.s32 0, %v3580
        %v3582 = vrot.slane %v3264, %v3581
        %v3583 = vlaneseq
        %v3584 = vshrl.u32 %v3583, 7
        %v3585 = vsub.s32 0, %v3584
        %v3586 = vrot.slane %v3265, %v3585
        %v3587 = vlaneseq
        %v3588 = vshrl.u32 %v3587, 7
        %v3589 = vsub.s32 0, %v3588
        %v3590 = vrot.slane %v3266, %v3589
        %v3591 = vlaneseq
        %v3592 = vshrl.u32 %v3591, 7
        %v3593 = vsub.s32 0, %v3592
        %v3594 = vrot.slane %v3267, %v3593
        %v3595 = vlaneseq
        %v3596 = vshrl.u32 %v3595, 7
        %v3597 = vsub.s32 0, %v3596
        %v3598 = vrot.slane %v3268, %v3597
        %v3599 = vlaneseq
        %v3600 = vshrl.u32 %v3599, 7
        %v3601 = vsub.s32 0, %v3600
        %v3602 = vrot.slane %v3269, %v3601
        %v3603 = vlaneseq
        %v3604 = vshrl.u32 %v3603, 7
        %v3605 = vsub.s32 0, %v3604
        %v3606 = vrot.slane %v3270, %v3605
        %v3607 = vlaneseq
        %v3608 = vshrl.u32 %v3607, 7
        %v3609 = vsub.s32 0, %v3608
        %v3610 = vrot.slane %v3271, %v3609
        %v3611 = vlaneseq
        %v3612 = vshrl.u32 %v3611, 7
        %v3613 = vsub.s32 0, %v3612
        %v3614 = vrot.slane %v3272, %v3613
        %v3615 = vlaneseq
        %v3616 = vshrl.u32 %v3615, 7
        %v3617 = vsub.s32 0, %v3616
        %v3618 = vrot.slane %v3273, %v3617
        %v3619 = vlaneseq
        %v3620 = vshrl.u32 %v3619, 7
        %v3621 = vsub.s32 0, %v3620
        %v3622 = vrot.slane %v3274, %v3621
        %vm3623 = vcmask 1041409
        %v3624 = vsel %vm3623, %v3374, %v3370
        %vm3625 = vcmask 1042434
        %v3626 = vsel %vm3625, %v3378, %v3624
        %vm3627 = vcmask 1043459
        %v3628 = vsel %vm3627, %v3382, %v3626
        %vm3629 = vcmask 1044484
        %v3630 = vsel %vm3629, %v3386, %v3628
        %vm3631 = vcmask 1045509
        %v3632 = vsel %vm3631, %v3390, %v3630
        %vm3633 = vcmask 1046534
        %v3634 = vsel %vm3633, %v3394, %v3632
        %vm3635 = vcmask 1047559
        %v3636 = vsel %vm3635, %v3398, %v3634
        %v3637 = vsel %vm3623, %v3406, %v3402
        %v3638 = vsel %vm3625, %v3410, %v3637
        %v3639 = vsel %vm3627, %v3414, %v3638
        %v3640 = vsel %vm3629, %v3418, %v3639
        %v3641 = vsel %vm3631, %v3422, %v3640
        %v3642 = vsel %vm3633, %v3426, %v3641
        %v3643 = vsel %vm3635, %v3430, %v3642
        %v3644 = vsel %vm3623, %v3438, %v3434
        %v3645 = vsel %vm3625, %v3442, %v3644
        %v3646 = vsel %vm3627, %v3446, %v3645
        %v3647 = vsel %vm3629, %v3450, %v3646
        %v3648 = vsel %vm3631, %v3454, %v3647
        %v3649 = vsel %vm3633, %v3458, %v3648
        %v3650 = vsel %vm3635, %v3462, %v3649
        %v3651 = vsel %vm3623, %v3470, %v3466
        %v3652 = vsel %vm3625, %v3474, %v3651
        %v3653 = vsel %vm3627, %v3478, %v3652
        %v3654 = vsel %vm3629, %v3482, %v3653
        %v3655 = vsel %vm3631, %v3486, %v3654
        %v3656 = vsel %vm3633, %v3490, %v3655
        %v3657 = vsel %vm3635, %v3494, %v3656
        %v3658 = vsel %vm3623, %v3502, %v3498
        %v3659 = vsel %vm3625, %v3506, %v3658
        %v3660 = vsel %vm3627, %v3510, %v3659
        %v3661 = vsel %vm3629, %v3514, %v3660
        %v3662 = vsel %vm3631, %v3518, %v3661
        %v3663 = vsel %vm3633, %v3522, %v3662
        %v3664 = vsel %vm3635, %v3526, %v3663
        %v3665 = vsel %vm3623, %v3534, %v3530
        %v3666 = vsel %vm3625, %v3538, %v3665
        %v3667 = vsel %vm3627, %v3542, %v3666
        %v3668 = vsel %vm3629, %v3546, %v3667
        %v3669 = vsel %vm3631, %v3550, %v3668
        %v3670 = vsel %vm3633, %v3554, %v3669
        %v3671 = vsel %vm3635, %v3558, %v3670
        %v3672 = vsel %vm3623, %v3566, %v3562
        %v3673 = vsel %vm3625, %v3570, %v3672
        %v3674 = vsel %vm3627, %v3574, %v3673
        %v3675 = vsel %vm3629, %v3578, %v3674
        %v3676 = vsel %vm3631, %v3582, %v3675
        %v3677 = vsel %vm3633, %v3586, %v3676
        %v3678 = vsel %vm3635, %v3590, %v3677
        %v3679 = vsel %vm3623, %v3598, %v3594
        %v3680 = vsel %vm3625, %v3602, %v3679
        %v3681 = vsel %vm3627, %v3606, %v3680
        %v3682 = vsel %vm3629, %v3610, %v3681
        %v3683 = vsel %vm3631, %v3614, %v3682
        %v3684 = vsel %vm3633, %v3618, %v3683
        %v3685 = vsel %vm3635, %v3622, %v3684
        %s3694 = scalar_lea.vmem [#allocation3], 16
        %3695 = vst.msk [vmem:[%s3694 + $0x1] sm:$0xff] %vm3275, %v3636
        %3696 = vst.msk [vmem:[%s3694 + $0x11] sm:$0xff] %vm3275, %v3643
        %3697 = vst.msk [vmem:[%s3694 + $0x21] sm:$0xff] %vm3275, %v3650
        %3698 = vst.msk [vmem:[%s3694 + $0x31] sm:$0xff] %vm3275, %v3657
        %3699 = vst.msk [vmem:[%s3694 + $0x41] sm:$0xff] %vm3275, %v3664
        %3700 = vst.msk [vmem:[%s3694 + $0x51] sm:$0xff] %vm3275, %v3671
        %3701 = vst.msk [vmem:[%s3694 + $0x61] sm:$0xff] %vm3275, %v3678
        %3702 = vst.msk [vmem:[%s3694 + $0x71] sm:$0xff] %vm3275, %v3685
        %v3703 = vld [vmem:[#allocation3] sm:$0xff]
        %v3704 = vld [vmem:[#allocation3 + $0x10] sm:$0xff]
        %v3705 = vld [vmem:[#allocation3 + $0x20] sm:$0xff]
        %v3706 = vld [vmem:[#allocation3 + $0x30] sm:$0xff]
        %v3707 = vld [vmem:[#allocation3 + $0x40] sm:$0xff]
        %v3708 = vld [vmem:[#allocation3 + $0x50] sm:$0xff]
        %v3709 = vld [vmem:[#allocation3 + $0x60] sm:$0xff]
        %v3710 = vld [vmem:[#allocation3 + $0x70] sm:$0xff]
        %v3711 = vld [vmem:[%s3694] sm:$0xff]
        %v3712 = vld [vmem:[%s3694 + $0x10] sm:$0xff]
        %v3713 = vld [vmem:[%s3694 + $0x20] sm:$0xff]
        %v3714 = vld [vmem:[%s3694 + $0x30] sm:$0xff]
        %v3715 = vld [vmem:[%s3694 + $0x40] sm:$0xff]
        %v3716 = vld [vmem:[%s3694 + $0x50] sm:$0xff]
        %v3717 = vld [vmem:[%s3694 + $0x60] sm:$0xff]
        %v3718 = vld [vmem:[%s3694 + $0x70] sm:$0xff]
        %s3719 = scalar_lea.vmem [#allocation3], 32
        %v3720 = vld [vmem:[%s3719] sm:$0xff]
        %v3721 = vld [vmem:[%s3719 + $0x10] sm:$0xff]
        %v3722 = vld [vmem:[%s3719 + $0x20] sm:$0xff]
        %v3723 = vld [vmem:[%s3719 + $0x30] sm:$0xff]
        %v3724 = vld [vmem:[%s3719 + $0x40] sm:$0xff]
        %v3725 = vld [vmem:[%s3719 + $0x50] sm:$0xff]
        %v3726 = vld [vmem:[%s3719 + $0x60] sm:$0xff]
        %v3727 = vld [vmem:[%s3719 + $0x70] sm:$0xff]
        %v3728 = vld [vmem:[#allocation3 + $0x1] sm:$0xff]
        %v3729 = vld [vmem:[#allocation3 + $0x11] sm:$0xff]
        %v3730 = vld [vmem:[#allocation3 + $0x21] sm:$0xff]
        %v3731 = vld [vmem:[#allocation3 + $0x31] sm:$0xff]
        %v3732 = vld [vmem:[#allocation3 + $0x41] sm:$0xff]
        %v3733 = vld [vmem:[#allocation3 + $0x51] sm:$0xff]
        %v3734 = vld [vmem:[#allocation3 + $0x61] sm:$0xff]
        %v3735 = vld [vmem:[#allocation3 + $0x71] sm:$0xff]
        %v3736 = vld [vmem:[%s3694 + $0x1] sm:$0xff]
        %v3737 = vld [vmem:[%s3694 + $0x11] sm:$0xff]
        %v3738 = vld [vmem:[%s3694 + $0x21] sm:$0xff]
        %v3739 = vld [vmem:[%s3694 + $0x31] sm:$0xff]
        %v3740 = vld [vmem:[%s3694 + $0x41] sm:$0xff]
        %v3741 = vld [vmem:[%s3694 + $0x51] sm:$0xff]
        %v3742 = vld [vmem:[%s3694 + $0x61] sm:$0xff]
        %v3743 = vld [vmem:[%s3694 + $0x71] sm:$0xff]
        %v3744 = vld [vmem:[%s3719 + $0x1] sm:$0xff]
        %v3745 = vld [vmem:[%s3719 + $0x11] sm:$0xff]
        %v3746 = vld [vmem:[%s3719 + $0x21] sm:$0xff]
        %v3747 = vld [vmem:[%s3719 + $0x31] sm:$0xff]
        %v3748 = vld [vmem:[%s3719 + $0x41] sm:$0xff]
        %v3749 = vld [vmem:[%s3719 + $0x51] sm:$0xff]
        %v3750 = vld [vmem:[%s3719 + $0x61] sm:$0xff]
        %v3751 = vld [vmem:[%s3719 + $0x71] sm:$0xff]
        %v3752 = vld [vmem:[#allocation3 + $0x2] sm:$0xff]
        %v3753 = vld [vmem:[#allocation3 + $0x12] sm:$0xff]
        %v3754 = vld [vmem:[#allocation3 + $0x22] sm:$0xff]
        %v3755 = vld [vmem:[#allocation3 + $0x32] sm:$0xff]
        %v3756 = vld [vmem:[#allocation3 + $0x42] sm:$0xff]
        %v3757 = vld [vmem:[#allocation3 + $0x52] sm:$0xff]
        %v3758 = vld [vmem:[#allocation3 + $0x62] sm:$0xff]
        %v3759 = vld [vmem:[#allocation3 + $0x72] sm:$0xff]
        %v3760 = vld [vmem:[%s3694 + $0x2] sm:$0xff]
        %v3761 = vld [vmem:[%s3694 + $0x12] sm:$0xff]
        %v3762 = vld [vmem:[%s3694 + $0x22] sm:$0xff]
        %v3763 = vld [vmem:[%s3694 + $0x32] sm:$0xff]
        %v3764 = vld [vmem:[%s3694 + $0x42] sm:$0xff]
        %v3765 = vld [vmem:[%s3694 + $0x52] sm:$0xff]
        %v3766 = vld [vmem:[%s3694 + $0x62] sm:$0xff]
        %v3767 = vld [vmem:[%s3694 + $0x72] sm:$0xff]
        %v3768 = vld [vmem:[%s3719 + $0x2] sm:$0xff]
        %v3769 = vld [vmem:[%s3719 + $0x12] sm:$0xff]
        %v3770 = vld [vmem:[%s3719 + $0x22] sm:$0xff]
        %v3771 = vld [vmem:[%s3719 + $0x32] sm:$0xff]
        %v3772 = vld [vmem:[%s3719 + $0x42] sm:$0xff]
        %v3773 = vld [vmem:[%s3719 + $0x52] sm:$0xff]
        %v3774 = vld [vmem:[%s3719 + $0x62] sm:$0xff]
        %v3775 = vld [vmem:[%s3719 + $0x72] sm:$0xff]
        %3784 = vrot.lane.b32.xlu0 %v3711, 64
        %v3785 = vpop.permute.xlu0 %3784
        %3786 = vrot.lane.b32.xlu0 %v3712, 64
        %v3787 = vpop.permute.xlu0 %3786
        %3788 = vrot.lane.b32.xlu0 %v3713, 64
        %v3789 = vpop.permute.xlu0 %3788
        %3790 = vrot.lane.b32.xlu0 %v3714, 64
        %v3791 = vpop.permute.xlu0 %3790
        %3792 = vrot.lane.b32.xlu0 %v3715, 64
        %v3793 = vpop.permute.xlu0 %3792
        %3794 = vrot.lane.b32.xlu0 %v3716, 64
        %v3795 = vpop.permute.xlu0 %3794
        %3796 = vrot.lane.b32.xlu0 %v3717, 64
        %v3797 = vpop.permute.xlu0 %3796
        %3798 = vrot.lane.b32.xlu0 %v3718, 64
        %v3799 = vpop.permute.xlu0 %3798
        %3816 = vrot.lane.b32.xlu0 %v3728, 64
        %v3817 = vpop.permute.xlu0 %3816
        %3818 = vrot.lane.b32.xlu0 %v3729, 64
        %v3819 = vpop.permute.xlu0 %3818
        %3820 = vrot.lane.b32.xlu0 %v3730, 64
        %v3821 = vpop.permute.xlu0 %3820
        %3822 = vrot.lane.b32.xlu0 %v3731, 64
        %v3823 = vpop.permute.xlu0 %3822
        %3824 = vrot.lane.b32.xlu0 %v3732, 64
        %v3825 = vpop.permute.xlu0 %3824
        %3826 = vrot.lane.b32.xlu0 %v3733, 64
        %v3827 = vpop.permute.xlu0 %3826
        %3828 = vrot.lane.b32.xlu0 %v3734, 64
        %v3829 = vpop.permute.xlu0 %3828
        %3830 = vrot.lane.b32.xlu0 %v3735, 64
        %v3831 = vpop.permute.xlu0 %3830
        %3848 = vrot.lane.b32.xlu0 %v3744, 64
        %v3849 = vpop.permute.xlu0 %3848
        %3850 = vrot.lane.b32.xlu0 %v3745, 64
        %v3851 = vpop.permute.xlu0 %3850
        %3852 = vrot.lane.b32.xlu0 %v3746, 64
        %v3853 = vpop.permute.xlu0 %3852
        %3854 = vrot.lane.b32.xlu0 %v3747, 64
        %v3855 = vpop.permute.xlu0 %3854
        %3856 = vrot.lane.b32.xlu0 %v3748, 64
        %v3857 = vpop.permute.xlu0 %3856
        %3858 = vrot.lane.b32.xlu0 %v3749, 64
        %v3859 = vpop.permute.xlu0 %3858
        %3860 = vrot.lane.b32.xlu0 %v3750, 64
        %v3861 = vpop.permute.xlu0 %3860
        %3862 = vrot.lane.b32.xlu0 %v3751, 64
        %v3863 = vpop.permute.xlu0 %3862
        %3880 = vrot.lane.b32.xlu0 %v3760, 64
        %v3881 = vpop.permute.xlu0 %3880
        %3882 = vrot.lane.b32.xlu0 %v3761, 64
        %v3883 = vpop.permute.xlu0 %3882
        %3884 = vrot.lane.b32.xlu0 %v3762, 64
        %v3885 = vpop.permute.xlu0 %3884
        %3886 = vrot.lane.b32.xlu0 %v3763, 64
        %v3887 = vpop.permute.xlu0 %3886
        %3888 = vrot.lane.b32.xlu0 %v3764, 64
        %v3889 = vpop.permute.xlu0 %3888
        %3890 = vrot.lane.b32.xlu0 %v3765, 64
        %v3891 = vpop.permute.xlu0 %3890
        %3892 = vrot.lane.b32.xlu0 %v3766, 64
        %v3893 = vpop.permute.xlu0 %3892
        %3894 = vrot.lane.b32.xlu0 %v3767, 64
        %v3895 = vpop.permute.xlu0 %3894
        %v3904 = vsel %vm3275, %v3703, %v3785
        %v3905 = vsel %vm3275, %v3704, %v3787
        %v3906 = vsel %vm3275, %v3705, %v3789
        %v3907 = vsel %vm3275, %v3706, %v3791
        %v3908 = vsel %vm3275, %v3707, %v3793
        %v3909 = vsel %vm3275, %v3708, %v3795
        %v3910 = vsel %vm3275, %v3709, %v3797
        %v3911 = vsel %vm3275, %v3710, %v3799
        %v3912 = vsel %vm3275, %v3720, %v3817
        %v3913 = vsel %vm3275, %v3721, %v3819
        %v3914 = vsel %vm3275, %v3722, %v3821
        %v3915 = vsel %vm3275, %v3723, %v3823
        %v3916 = vsel %vm3275, %v3724, %v3825
        %v3917 = vsel %vm3275, %v3725, %v3827
        %v3918 = vsel %vm3275, %v3726, %v3829
        %v3919 = vsel %vm3275, %v3727, %v3831
        %v3920 = vsel %vm3275, %v3736, %v3849
        %v3921 = vsel %vm3275, %v3737, %v3851
        %v3922 = vsel %vm3275, %v3738, %v3853
        %v3923 = vsel %vm3275, %v3739, %v3855
        %v3924 = vsel %vm3275, %v3740, %v3857
        %v3925 = vsel %vm3275, %v3741, %v3859
        %v3926 = vsel %vm3275, %v3742, %v3861
        %v3927 = vsel %vm3275, %v3743, %v3863
        %v3928 = vsel %vm3275, %v3752, %v3881
        %v3929 = vsel %vm3275, %v3753, %v3883
        %v3930 = vsel %vm3275, %v3754, %v3885
        %v3931 = vsel %vm3275, %v3755, %v3887
        %v3932 = vsel %vm3275, %v3756, %v3889
        %v3933 = vsel %vm3275, %v3757, %v3891
        %v3934 = vsel %vm3275, %v3758, %v3893
        %v3935 = vsel %vm3275, %v3759, %v3895
        %v3936 = vpack.c.bf16 %v3905, %v3904
        %v3937 = vpack.c.bf16 %v3913, %v3912
        %v3938 = vpack.c.bf16 %v3921, %v3920
        %v3939 = vpack.c.bf16 %v3929, %v3928
        %v3940 = vpack.c.bf16 %v3769, %v3768
        %v3941 = vpack.c.bf16 %v3907, %v3906
        %v3942 = vpack.c.bf16 %v3915, %v3914
        %v3943 = vpack.c.bf16 %v3923, %v3922
        %v3944 = vpack.c.bf16 %v3931, %v3930
        %v3945 = vpack.c.bf16 %v3771, %v3770
        %v3946 = vpack.c.bf16 %v3909, %v3908
        %v3947 = vpack.c.bf16 %v3917, %v3916
        %v3948 = vpack.c.bf16 %v3925, %v3924
        %v3949 = vpack.c.bf16 %v3933, %v3932
        %v3950 = vpack.c.bf16 %v3773, %v3772
        %v3951 = vpack.c.bf16 %v3911, %v3910
        %v3952 = vpack.c.bf16 %v3919, %v3918
        %v3953 = vpack.c.bf16 %v3927, %v3926
        %v3954 = vpack.c.bf16 %v3935, %v3934
        %v3955 = vpack.c.bf16 %v3775, %v3774
        %v3956 = vld [vmem:[#allocation10] sm:$0xf]
        %v3957 = vld [vmem:[#allocation10 + $0x4] sm:$0xf]
        %v3958 = vld [vmem:[#allocation10 + $0x8] sm:$0xf]
        %v3959 = vld [vmem:[#allocation10 + $0xc] sm:$0xf]
        %v3960 = vld [vmem:[#allocation10 + $0x10] sm:$0xf]
        %v3961 = vld [vmem:[#allocation10 + $0x14] sm:$0xf]
        %v3962 = vld [vmem:[#allocation10 + $0x18] sm:$0xf]
        %v3963 = vld [vmem:[#allocation10 + $0x1c] sm:$0xf]
        %v3964 = vld [vmem:[#allocation10 + $0x20] sm:$0xf]
        %v3965 = vld [vmem:[#allocation10 + $0x24] sm:$0xf]
        %v3966 = vld [vmem:[#allocation10 + $0x28] sm:$0xf]
        %v3967 = vld [vmem:[#allocation10 + $0x2c] sm:$0xf]
        %v3968 = vld [vmem:[#allocation10 + $0x30] sm:$0xf]
        %v3969 = vld [vmem:[#allocation10 + $0x34] sm:$0xf]
        %v3970 = vld [vmem:[#allocation10 + $0x38] sm:$0xf]
        %v3971 = vld [vmem:[#allocation10 + $0x3c] sm:$0xf]
        %v3972 = vld [vmem:[#allocation10 + $0x40] sm:$0xf]
        %v3973 = vld [vmem:[#allocation10 + $0x44] sm:$0xf]
        %v3974 = vld [vmem:[#allocation10 + $0x48] sm:$0xf]
        %v3975 = vld [vmem:[#allocation10 + $0x4c] sm:$0xf]
        %v3976 = vld [vmem:[#allocation10 + $0x50] sm:$0xf]
        %v3977 = vld [vmem:[#allocation10 + $0x54] sm:$0xf]
        %v3978 = vld [vmem:[#allocation10 + $0x58] sm:$0xf]
        %v3979 = vld [vmem:[#allocation10 + $0x5c] sm:$0xf]
        %v3980 = vld [vmem:[#allocation10 + $0x60] sm:$0xf]
        %v3981 = vld [vmem:[#allocation10 + $0x64] sm:$0xf]
        %v3982 = vld [vmem:[#allocation10 + $0x68] sm:$0xf]
        %v3983 = vld [vmem:[#allocation10 + $0x6c] sm:$0xf]
        %v3984 = vld [vmem:[#allocation10 + $0x70] sm:$0xf]
        %v3985 = vld [vmem:[#allocation10 + $0x74] sm:$0xf]
        %v3986 = vld [vmem:[#allocation10 + $0x78] sm:$0xf]
        %v3987 = vld [vmem:[#allocation10 + $0x7c] sm:$0xf]
        %v3988 = vld [vmem:[#allocation10 + $0x80] sm:$0xf]
        %v3989 = vld [vmem:[#allocation10 + $0x84] sm:$0xf]
        %v3990 = vld [vmem:[#allocation10 + $0x88] sm:$0xf]
        %v3991 = vld [vmem:[#allocation10 + $0x8c] sm:$0xf]
        %v3992 = vld [vmem:[#allocation10 + $0x90] sm:$0xf]
        %v3993 = vld [vmem:[#allocation10 + $0x94] sm:$0xf]
        %v3994 = vld [vmem:[#allocation10 + $0x98] sm:$0xf]
        %v3995 = vld [vmem:[#allocation10 + $0x9c] sm:$0xf]
        %v3996 = vld [vmem:[#allocation10 + $0xa0] sm:$0xf]
        %v3997 = vld [vmem:[#allocation10 + $0xa4] sm:$0xf]
        %v3998 = vld [vmem:[#allocation10 + $0xa8] sm:$0xf]
        %v3999 = vld [vmem:[#allocation10 + $0xac] sm:$0xf]
        %v4000 = vld [vmem:[#allocation10 + $0xb0] sm:$0xf]
        %v4001 = vld [vmem:[#allocation10 + $0xb4] sm:$0xf]
        %v4002 = vld [vmem:[#allocation10 + $0xb8] sm:$0xf]
        %v4003 = vld [vmem:[#allocation10 + $0xbc] sm:$0xf]
        %v4004 = vld [vmem:[#allocation10 + $0xc0] sm:$0xf]
        %v4005 = vld [vmem:[#allocation10 + $0xc4] sm:$0xf]
        %v4006 = vld [vmem:[#allocation10 + $0xc8] sm:$0xf]
        %v4007 = vld [vmem:[#allocation10 + $0xcc] sm:$0xf]
        %v4008 = vld [vmem:[#allocation10 + $0xd0] sm:$0xf]
        %v4009 = vld [vmem:[#allocation10 + $0xd4] sm:$0xf]
        %v4010 = vld [vmem:[#allocation10 + $0xd8] sm:$0xf]
        %v4011 = vld [vmem:[#allocation10 + $0xdc] sm:$0xf]
        %v4012 = vld [vmem:[#allocation10 + $0xe0] sm:$0xf]
        %v4013 = vld [vmem:[#allocation10 + $0xe4] sm:$0xf]
        %v4014 = vld [vmem:[#allocation10 + $0xe8] sm:$0xf]
        %v4015 = vld [vmem:[#allocation10 + $0xec] sm:$0xf]
        %v4016 = vld [vmem:[#allocation10 + $0xf0] sm:$0xf]
        %v4017 = vld [vmem:[#allocation10 + $0xf4] sm:$0xf]
        %v4018 = vld [vmem:[#allocation10 + $0xf8] sm:$0xf]
        %v4019 = vld [vmem:[#allocation10 + $0xfc] sm:$0xf]
        %v4020 = vld [vmem:[#allocation10 + $0x100] sm:$0xf]
        %v4021 = vld [vmem:[#allocation10 + $0x104] sm:$0xf]
        %v4022 = vld [vmem:[#allocation10 + $0x108] sm:$0xf]
        %v4023 = vld [vmem:[#allocation10 + $0x10c] sm:$0xf]
        %v4024 = vld [vmem:[#allocation10 + $0x110] sm:$0xf]
        %v4025 = vld [vmem:[#allocation10 + $0x114] sm:$0xf]
        %v4026 = vld [vmem:[#allocation10 + $0x118] sm:$0xf]
        %v4027 = vld [vmem:[#allocation10 + $0x11c] sm:$0xf]
        %v4028 = vld [vmem:[#allocation11] sm:$0x1]
        %v4030 = vlaneseq
        %v4031 = vshrl.u32 %v4030, 7
        %v4032 = vsub.s32 0, %v4031
        %v4033 = vrot.slane %v4028, %v4032
        %v4107 = vunpack.c.l.b16 %v3956
        %v4108 = vunpack.c.l.b16 %v3957
        %v4109 = vunpack.c.l.b16 %v3958
        %v4110 = vunpack.c.l.b16 %v3959
        %v4111 = vunpack.c.l.b16 %v3960
        %v4112 = vunpack.c.l.b16 %v3961
        %v4113 = vunpack.c.l.b16 %v3962
        %v4114 = vunpack.c.l.b16 %v3963
        %v4115 = vunpack.c.l.b16 %v3964
        %v4116 = vunpack.c.l.b16 %v3965
        %v4117 = vunpack.c.l.b16 %v3966
        %v4118 = vunpack.c.l.b16 %v3967
        %v4119 = vunpack.c.l.b16 %v3968
        %v4120 = vunpack.c.l.b16 %v3969
        %v4121 = vunpack.c.l.b16 %v3970
        %v4122 = vunpack.c.l.b16 %v3971
        %v4123 = vunpack.c.l.b16 %v3972
        %v4124 = vunpack.c.l.b16 %v3973
        %v4125 = vunpack.c.l.b16 %v3974
        %v4126 = vunpack.c.l.b16 %v3975
        %v4127 = vunpack.c.l.b16 %v3976
        %v4128 = vunpack.c.l.b16 %v3977
        %v4129 = vunpack.c.l.b16 %v3978
        %v4130 = vunpack.c.l.b16 %v3979
        %v4131 = vunpack.c.l.b16 %v3980
        %v4132 = vunpack.c.l.b16 %v3981
        %v4133 = vunpack.c.l.b16 %v3982
        %v4134 = vunpack.c.l.b16 %v3983
        %v4135 = vunpack.c.l.b16 %v3984
        %v4136 = vunpack.c.l.b16 %v3985
        %v4137 = vunpack.c.l.b16 %v3986
        %v4138 = vunpack.c.l.b16 %v3987
        %v4139 = vunpack.c.l.b16 %v3988
        %v4140 = vunpack.c.l.b16 %v3989
        %v4141 = vunpack.c.l.b16 %v3990
        %v4142 = vunpack.c.l.b16 %v3991
        %v4143 = vunpack.c.l.b16 %v3992
        %v4144 = vunpack.c.l.b16 %v3993
        %v4145 = vunpack.c.l.b16 %v3994
        %v4146 = vunpack.c.l.b16 %v3995
        %v4147 = vunpack.c.l.b16 %v3996
        %v4148 = vunpack.c.l.b16 %v3997
        %v4149 = vunpack.c.l.b16 %v3998
        %v4150 = vunpack.c.l.b16 %v3999
        %v4151 = vunpack.c.l.b16 %v4000
        %v4152 = vunpack.c.l.b16 %v4001
        %v4153 = vunpack.c.l.b16 %v4002
        %v4154 = vunpack.c.l.b16 %v4003
        %v4155 = vunpack.c.l.b16 %v4004
        %v4156 = vunpack.c.l.b16 %v4005
        %v4157 = vunpack.c.l.b16 %v4006
        %v4158 = vunpack.c.l.b16 %v4007
        %v4159 = vunpack.c.l.b16 %v4008
        %v4160 = vunpack.c.l.b16 %v4009
        %v4161 = vunpack.c.l.b16 %v4010
        %v4162 = vunpack.c.l.b16 %v4011
        %v4163 = vunpack.c.l.b16 %v4012
        %v4164 = vunpack.c.l.b16 %v4013
        %v4165 = vunpack.c.l.b16 %v4014
        %v4166 = vunpack.c.l.b16 %v4015
        %v4167 = vunpack.c.l.b16 %v4016
        %v4168 = vunpack.c.l.b16 %v4017
        %v4169 = vunpack.c.l.b16 %v4018
        %v4170 = vunpack.c.l.b16 %v4019
        %v4171 = vunpack.c.l.b16 %v4020
        %v4172 = vunpack.c.l.b16 %v4021
        %v4173 = vunpack.c.l.b16 %v4022
        %v4174 = vunpack.c.l.b16 %v4023
        %v4175 = vunpack.c.l.b16 %v4024
        %v4176 = vunpack.c.l.b16 %v4025
        %v4177 = vunpack.c.l.b16 %v4026
        %v4178 = vunpack.c.l.b16 %v4027
        %v4179 = vpack.c.b16 %v4108, %v4107
        %v4180 = vpack.c.b16 %v4110, %v4109
        %v4181 = vpack.c.b16 %v4112, %v4111
        %v4182 = vpack.c.b16 %v4114, %v4113
        %v4183 = vpack.c.b16 %v4116, %v4115
        %v4184 = vpack.c.b16 %v4118, %v4117
        %v4185 = vpack.c.b16 %v4120, %v4119
        %v4186 = vpack.c.b16 %v4122, %v4121
        %v4187 = vpack.c.b16 %v4124, %v4123
        %v4188 = vpack.c.b16 %v4126, %v4125
        %v4189 = vpack.c.b16 %v4128, %v4127
        %v4190 = vpack.c.b16 %v4130, %v4129
        %v4191 = vpack.c.b16 %v4132, %v4131
        %v4192 = vpack.c.b16 %v4134, %v4133
        %v4193 = vpack.c.b16 %v4136, %v4135
        %v4194 = vpack.c.b16 %v4138, %v4137
        %v4195 = vpack.c.b16 %v4140, %v4139
        %v4196 = vpack.c.b16 %v4142, %v4141
        %v4197 = vpack.c.b16 %v4144, %v4143
        %v4198 = vpack.c.b16 %v4146, %v4145
        %v4199 = vpack.c.b16 %v4148, %v4147
        %v4200 = vpack.c.b16 %v4150, %v4149
        %v4201 = vpack.c.b16 %v4152, %v4151
        %v4202 = vpack.c.b16 %v4154, %v4153
        %v4203 = vpack.c.b16 %v4156, %v4155
        %v4204 = vpack.c.b16 %v4158, %v4157
        %v4205 = vpack.c.b16 %v4160, %v4159
        %v4206 = vpack.c.b16 %v4162, %v4161
        %v4207 = vpack.c.b16 %v4164, %v4163
        %v4208 = vpack.c.b16 %v4166, %v4165
        %v4209 = vpack.c.b16 %v4168, %v4167
        %v4210 = vpack.c.b16 %v4170, %v4169
        %v4211 = vpack.c.b16 %v4172, %v4171
        %v4212 = vpack.c.b16 %v4174, %v4173
        %v4213 = vpack.c.b16 %v4176, %v4175
        %v4214 = vpack.c.b16 %v4178, %v4177
        %v4252 = vsel %vm3275, %v3940, 0
        %v4255 = vsel %vm3275, %v3945, 0
        %v4258 = vsel %vm3275, %v3950, 0
        %v4261 = vsel %vm3275, %v3955, 0
        %4263 = vmatprep.subr.bf16.mxu0 0
        %4264 = vmatpush1.bf16.msra.mxu0 %v4186
        %4265 = vmatprep.subr.bf16.mxu0 0
        %4266 = vmatpush1.bf16.msra.mxu0 %v4185
        %4267 = vmatprep.subr.bf16.mxu0 0
        %4268 = vmatpush1.bf16.msra.mxu0 %v4184
        %4269 = vmatprep.subr.bf16.mxu0 0
        %4270 = vmatpush1.bf16.msra.mxu0 %v4183
        %4271 = vmatprep.subr.bf16.mxu0 0
        %4272 = vmatpush1.bf16.msra.mxu0 %v4182
        %4273 = vmatprep.subr.bf16.mxu0 0
        %4274 = vmatpush1.bf16.msra.mxu0 %v4181
        %4275 = vmatprep.subr.bf16.mxu0 0
        %4276 = vmatpush1.bf16.msra.mxu0 %v4180
        %4277 = vmatprep.subr.bf16.mxu0 0
        %4278 = vmatpush1.bf16.msra.mxu0 %v4179
        %4279 = vmatprep.subr.bf16.mxu0 0
        %4280 = vmatpush2.bf16.msra.mxu0 %v4194
        %4281 = vmatprep.subr.bf16.mxu0 0
        %4282 = vmatpush2.bf16.msra.mxu0 %v4193
        %4283 = vmatprep.subr.bf16.mxu0 0
        %4284 = vmatpush2.bf16.msra.mxu0 %v4192
        %4285 = vmatprep.subr.bf16.mxu0 0
        %4286 = vmatpush2.bf16.msra.mxu0 %v4191
        %4287 = vmatprep.subr.bf16.mxu0 0
        %4288 = vmatpush2.bf16.msra.mxu0 %v4190
        %4289 = vmatprep.subr.bf16.mxu0 0
        %4290 = vmatpush2.bf16.msra.mxu0 %v4189
        %4291 = vmatprep.subr.bf16.mxu0 0
        %4292 = vmatpush2.bf16.msra.mxu0 %v4188
        %4293 = vmatprep.subr.bf16.mxu0 0
        %4294 = vmatpush2.bf16.msra.mxu0 %v4187
        %4295 = vmatprep.mubr.bf16.mxu0 %v3937
        %4296 = vmatmul.mubr.bf16.gmra.mxu0 %v3936
        %v4297 = vpop.f32.mrf.mxu0
        %v4298 = vadd.f32 %v4033, %v4297
        %v4299 = vpop.f32.mrf.mxu0
        %v4300 = vpop.f32.mrf.mxu0
        %v4301 = vadd.f32 %v4033, %v4300
        %v4302 = vpop.f32.mrf.mxu0
        %4303 = vmatprep.mubr.bf16.mxu0 %v3942
        %4304 = vmatmul.mubr.bf16.gmra.mxu0 %v3941
        %v4305 = vpop.f32.mrf.mxu0
        %v4306 = vadd.f32 %v4033, %v4305
        %v4307 = vpop.f32.mrf.mxu0
        %v4308 = vpop.f32.mrf.mxu0
        %v4309 = vadd.f32 %v4033, %v4308
        %v4310 = vpop.f32.mrf.mxu0
        %4311 = vmatprep.mubr.bf16.mxu0 %v3947
        %4312 = vmatmul.mubr.bf16.gmra.mxu0 %v3946
        %v4313 = vpop.f32.mrf.mxu0
        %v4314 = vadd.f32 %v4033, %v4313
        %v4315 = vpop.f32.mrf.mxu0
        %v4316 = vpop.f32.mrf.mxu0
        %v4317 = vadd.f32 %v4033, %v4316
        %v4318 = vpop.f32.mrf.mxu0
        %4319 = vmatprep.mubr.bf16.mxu0 %v3952
        %4320 = vmatmul.mubr.bf16.gmra.mxu0 %v3951
        %v4321 = vpop.f32.mrf.mxu0
        %v4322 = vadd.f32 %v4033, %v4321
        %v4323 = vpop.f32.mrf.mxu0
        %v4324 = vpop.f32.mrf.mxu0
        %v4325 = vadd.f32 %v4033, %v4324
        %v4326 = vpop.f32.mrf.mxu0
        %4327 = vdwg.mxu0
        %4328 = vmatprep.subr.bf16.mxu0 0
        %4329 = vmatpush1.bf16.msra.mxu0 %v4202
        %4330 = vmatprep.subr.bf16.mxu0 0
        %4331 = vmatpush1.bf16.msra.mxu0 %v4201
        %4332 = vmatprep.subr.bf16.mxu0 0
        %4333 = vmatpush1.bf16.msra.mxu0 %v4200
        %4334 = vmatprep.subr.bf16.mxu0 0
        %4335 = vmatpush1.bf16.msra.mxu0 %v4199
        %4336 = vmatprep.subr.bf16.mxu0 0
        %4337 = vmatpush1.bf16.msra.mxu0 %v4198
        %4338 = vmatprep.subr.bf16.mxu0 0
        %4339 = vmatpush1.bf16.msra.mxu0 %v4197
        %4340 = vmatprep.subr.bf16.mxu0 0
        %4341 = vmatpush1.bf16.msra.mxu0 %v4196
        %4342 = vmatprep.subr.bf16.mxu0 0
        %4343 = vmatpush1.bf16.msra.mxu0 %v4195
        %4344 = vmatprep.subr.bf16.mxu0 0
        %4345 = vmatpush2.bf16.msra.mxu0 %v4210
        %4346 = vmatprep.subr.bf16.mxu0 0
        %4347 = vmatpush2.bf16.msra.mxu0 %v4209
        %4348 = vmatprep.subr.bf16.mxu0 0
        %4349 = vmatpush2.bf16.msra.mxu0 %v4208
        %4350 = vmatprep.subr.bf16.mxu0 0
        %4351 = vmatpush2.bf16.msra.mxu0 %v4207
        %4352 = vmatprep.subr.bf16.mxu0 0
        %4353 = vmatpush2.bf16.msra.mxu0 %v4206
        %4354 = vmatprep.subr.bf16.mxu0 0
        %4355 = vmatpush2.bf16.msra.mxu0 %v4205
        %4356 = vmatprep.subr.bf16.mxu0 0
        %4357 = vmatpush2.bf16.msra.mxu0 %v4204
        %4358 = vmatprep.subr.bf16.mxu0 0
        %4359 = vmatpush2.bf16.msra.mxu0 %v4203
        %4360 = vmatprep.mubr.bf16.mxu0 %v3939
        %4361 = vmatmul.mubr.bf16.gmra.mxu0 %v3938
        %v4362 = vpop.f32.mrf.mxu0
        %v4363 = vadd.f32 %v4298, %v4362
        %v4364 = vpop.f32.mrf.mxu0
        %v4365 = vpop.f32.mrf.mxu0
        %v4366 = vadd.f32 %v4301, %v4365
        %v4367 = vpop.f32.mrf.mxu0
        %4368 = vmatprep.mubr.bf16.mxu0 %v3944
        %4369 = vmatmul.mubr.bf16.gmra.mxu0 %v3943
        %v4370 = vpop.f32.mrf.mxu0
        %v4371 = vadd.f32 %v4306, %v4370
        %v4372 = vpop.f32.mrf.mxu0
        %v4373 = vpop.f32.mrf.mxu0
        %v4374 = vadd.f32 %v4309, %v4373
        %v4375 = vpop.f32.mrf.mxu0
        %4376 = vmatprep.mubr.bf16.mxu0 %v3949
        %4377 = vmatmul.mubr.bf16.gmra.mxu0 %v3948
        %v4378 = vpop.f32.mrf.mxu0
        %v4379 = vadd.f32 %v4314, %v4378
        %v4380 = vpop.f32.mrf.mxu0
        %v4381 = vpop.f32.mrf.mxu0
        %v4382 = vadd.f32 %v4317, %v4381
        %v4383 = vpop.f32.mrf.mxu0
        %4384 = vmatprep.mubr.bf16.mxu0 %v3954
        %4385 = vmatmul.mubr.bf16.gmra.mxu0 %v3953
        %v4386 = vpop.f32.mrf.mxu0
        %v4387 = vadd.f32 %v4322, %v4386
        %v4388 = vpop.f32.mrf.mxu0
        %v4389 = vpop.f32.mrf.mxu0
        %v4390 = vadd.f32 %v4325, %v4389
        %v4391 = vpop.f32.mrf.mxu0
        %4392 = vdwg.mxu0
        %4393 = vmatprep.subr.bf16.mxu0 0
        %4394 = vmatpush1.bf16.msra.mxu0 0
        %4395 = vmatprep.subr.bf16.mxu0 0
        %4396 = vmatpush1.bf16.msra.mxu0 0
        %4397 = vmatprep.subr.bf16.mxu0 0
        %4398 = vmatpush1.bf16.msra.mxu0 0
        %4399 = vmatprep.subr.bf16.mxu0 0
        %4400 = vmatpush1.bf16.msra.mxu0 0
        %4401 = vmatprep.subr.bf16.mxu0 0
        %4402 = vmatpush1.bf16.msra.mxu0 %v4214
        %4403 = vmatprep.subr.bf16.mxu0 0
        %4404 = vmatpush1.bf16.msra.mxu0 %v4213
        %4405 = vmatprep.subr.bf16.mxu0 0
        %4406 = vmatpush1.bf16.msra.mxu0 %v4212
        %4407 = vmatprep.subr.bf16.mxu0 0
        %4408 = vmatpush1.bf16.msra.mxu0 %v4211
        %4409 = vmatprep.subr.bf16.mxu0 0
        %4410 = vmatpush2.bf16.msra.mxu0 0
        %4411 = vmatprep.subr.bf16.mxu0 0
        %4412 = vmatpush2.bf16.msra.mxu0 0
        %4413 = vmatprep.subr.bf16.mxu0 0
        %4414 = vmatpush2.bf16.msra.mxu0 0
        %4415 = vmatprep.subr.bf16.mxu0 0
        %4416 = vmatpush2.bf16.msra.mxu0 0
        %4417 = vmatprep.subr.bf16.mxu0 0
        %4418 = vmatpush2.bf16.msra.mxu0 0
        %4419 = vmatprep.subr.bf16.mxu0 0
        %4420 = vmatpush2.bf16.msra.mxu0 0
        %4421 = vmatprep.subr.bf16.mxu0 0
        %4422 = vmatpush2.bf16.msra.mxu0 0
        %4423 = vmatprep.subr.bf16.mxu0 0
        %4424 = vmatpush2.bf16.msra.mxu0 0
        %4425 = vmatprep.mubr.bf16.mxu0 0
        %4426 = vmatmul.mubr.bf16.gmra.mxu0 %v4252
        %v4427 = vpop.f32.mrf.mxu0
        %v4428 = vadd.f32 %v4363, %v4427
        %v4429 = vpop.f32.mrf.mxu0
        %v4430 = vpop.f32.mrf.mxu0
        %v4431 = vadd.f32 %v4366, %v4430
        %v4432 = vpop.f32.mrf.mxu0
        %4433 = vmatprep.mubr.bf16.mxu0 0
        %4434 = vmatmul.mubr.bf16.gmra.mxu0 %v4255
        %v4435 = vpop.f32.mrf.mxu0
        %v4436 = vadd.f32 %v4371, %v4435
        %v4437 = vpop.f32.mrf.mxu0
        %v4438 = vpop.f32.mrf.mxu0
        %v4439 = vadd.f32 %v4374, %v4438
        %v4440 = vpop.f32.mrf.mxu0
        %4441 = vmatprep.mubr.bf16.mxu0 0
        %4442 = vmatmul.mubr.bf16.gmra.mxu0 %v4258
        %v4443 = vpop.f32.mrf.mxu0
        %v4444 = vadd.f32 %v4379, %v4443
        %v4445 = vpop.f32.mrf.mxu0
        %v4446 = vpop.f32.mrf.mxu0
        %v4447 = vadd.f32 %v4382, %v4446
        %v4448 = vpop.f32.mrf.mxu0
        %4449 = vmatprep.mubr.bf16.mxu0 0
        %4450 = vmatmul.mubr.bf16.gmra.mxu0 %v4261
        %v4451 = vpop.f32.mrf.mxu0
        %v4452 = vadd.f32 %v4387, %v4451
        %v4453 = vpop.f32.mrf.mxu0
        %v4454 = vpop.f32.mrf.mxu0
        %v4455 = vadd.f32 %v4390, %v4454
        %v4456 = vpop.f32.mrf.mxu0
        %4457 = vdwg.mxu0
        %v4458 = vmax.f32 %v4428, 0.0
        %v4459 = vmax.f32 %v4431, 0.0
        %v4460 = vmax.f32 %v4436, 0.0
        %v4461 = vmax.f32 %v4439, 0.0
        %v4462 = vmax.f32 %v4444, 0.0
        %v4463 = vmax.f32 %v4447, 0.0
        %v4464 = vmax.f32 %v4452, 0.0
        %v4465 = vmax.f32 %v4455, 0.0
        %v4466 = vmax.f32 %v4458, %v4459
        %v4467 = vmax.f32 %v4460, %v4461
        %v4468 = vmax.f32 %v4462, %v4463
        %v4469 = vmax.f32 %v4464, %v4465
        %v4474 = vcombine.high %v4466, %v4466
        %v4476 = vunpack.c.l.s4 1983009808
        %v4477 = vunpack.c.0.s8 %v4476
        %v4478 = vlaneseq
        %v4479 = vshrl.u32 %v4478, 7
        %v4480 = vsub.s32 %v4477, %v4479
        %v4481 = vrot.slane %v4466, %v4480
        %v4483 = vunpack.c.l.s4 1983009808
        %v4484 = vunpack.c.0.s8 %v4483
        %v4485 = vlaneseq
        %v4486 = vshrl.u32 %v4485, 7
        %v4487 = vsub.s32 %v4484, %v4486
        %v4488 = vrot.slane %v4474, %v4487
        %v4489 = vcombine.high %v4481, %v4481
        %v4490 = vcombine.high %v4488, %v4488
        %v4491 = vcombine.high %v4467, %v4467
        %v4493 = vunpack.c.l.s4 1983009808
        %v4494 = vunpack.c.0.s8 %v4493
        %v4495 = vlaneseq
        %v4496 = vshrl.u32 %v4495, 7
        %v4497 = vsub.s32 %v4494, %v4496
        %v4498 = vrot.slane %v4467, %v4497
        %v4500 = vunpack.c.l.s4 1983009808
        %v4501 = vunpack.c.0.s8 %v4500
        %v4502 = vlaneseq
        %v4503 = vshrl.u32 %v4502, 7
        %v4504 = vsub.s32 %v4501, %v4503
        %v4505 = vrot.slane %v4491, %v4504
        %v4506 = vcombine.high %v4498, %v4498
        %v4507 = vcombine.high %v4505, %v4505
        %v4508 = vcombine.high %v4468, %v4468
        %v4510 = vunpack.c.l.s4 1983009808
        %v4511 = vunpack.c.0.s8 %v4510
        %v4512 = vlaneseq
        %v4513 = vshrl.u32 %v4512, 7
        %v4514 = vsub.s32 %v4511, %v4513
        %v4515 = vrot.slane %v4468, %v4514
        %v4517 = vunpack.c.l.s4 1983009808
        %v4518 = vunpack.c.0.s8 %v4517
        %v4519 = vlaneseq
        %v4520 = vshrl.u32 %v4519, 7
        %v4521 = vsub.s32 %v4518, %v4520
        %v4522 = vrot.slane %v4508, %v4521
        %v4523 = vcombine.high %v4515, %v4515
        %v4524 = vcombine.high %v4522, %v4522
        %v4525 = vcombine.high %v4469, %v4469
        %v4527 = vunpack.c.l.s4 1983009808
        %v4528 = vunpack.c.0.s8 %v4527
        %v4529 = vlaneseq
        %v4530 = vshrl.u32 %v4529, 7
        %v4531 = vsub.s32 %v4528, %v4530
        %v4532 = vrot.slane %v4469, %v4531
        %v4534 = vunpack.c.l.s4 1983009808
        %v4535 = vunpack.c.0.s8 %v4534
        %v4536 = vlaneseq
        %v4537 = vshrl.u32 %v4536, 7
        %v4538 = vsub.s32 %v4535, %v4537
        %v4539 = vrot.slane %v4525, %v4538
        %v4540 = vcombine.high %v4532, %v4532
        %v4541 = vcombine.high %v4539, %v4539
        %v4558 = vrot.slane %v4481, 7
        %v4559 = vrot.slane %v4558, 2
        %v4560 = vrot.slane %v4489, 7
        %v4561 = vrot.slane %v4560, 2
        %v4562 = vrot.slane %v4488, 7
        %v4563 = vrot.slane %v4562, 2
        %v4564 = vrot.slane %v4490, 7
        %v4565 = vrot.slane %v4564, 2
        %v4566 = vrot.slane %v4498, 7
        %v4567 = vrot.slane %v4566, 2
        %v4568 = vrot.slane %v4506, 7
        %v4569 = vrot.slane %v4568, 2
        %v4570 = vrot.slane %v4505, 7
        %v4571 = vrot.slane %v4570, 2
        %v4572 = vrot.slane %v4507, 7
        %v4573 = vrot.slane %v4572, 2
        %v4574 = vrot.slane %v4515, 7
        %v4575 = vrot.slane %v4574, 2
        %v4576 = vrot.slane %v4523, 7
        %v4577 = vrot.slane %v4576, 2
        %v4578 = vrot.slane %v4522, 7
        %v4579 = vrot.slane %v4578, 2
        %v4580 = vrot.slane %v4524, 7
        %v4581 = vrot.slane %v4580, 2
        %v4582 = vrot.slane %v4532, 7
        %v4583 = vrot.slane %v4582, 2
        %v4584 = vrot.slane %v4540, 7
        %v4585 = vrot.slane %v4584, 2
        %v4586 = vrot.slane %v4539, 7
        %v4587 = vrot.slane %v4586, 2
        %v4588 = vrot.slane %v4541, 7
        %v4589 = vrot.slane %v4588, 2
        %v4606 = vmax.f32 %v4481, %v4559
        %v4607 = vmax.f32 %v4489, %v4561
        %v4608 = vmax.f32 %v4488, %v4563
        %v4609 = vmax.f32 %v4490, %v4565
        %v4610 = vmax.f32 %v4498, %v4567
        %v4611 = vmax.f32 %v4506, %v4569
        %v4612 = vmax.f32 %v4505, %v4571
        %v4613 = vmax.f32 %v4507, %v4573
        %v4614 = vmax.f32 %v4515, %v4575
        %v4615 = vmax.f32 %v4523, %v4577
        %v4616 = vmax.f32 %v4522, %v4579
        %v4617 = vmax.f32 %v4524, %v4581
        %v4618 = vmax.f32 %v4532, %v4583
        %v4619 = vmax.f32 %v4540, %v4585
        %v4620 = vmax.f32 %v4539, %v4587
        %v4621 = vmax.f32 %v4541, %v4589
        %4622 = vst [vmem:[#allocation4] sm:$0x3f] 0.0
        %s4623 = scalar_lea.vmem [#allocation4], 40
        %4624 = vst [vmem:[%s4623] sm:$0x3f] 0.0
        %4625 = vst [vmem:[#allocation4] sm:$0x1] 0.0
        %4626 = vst [vmem:[#allocation4 + $0x8] sm:$0x1] 0.0
        %4627 = vst [vmem:[#allocation4 + $0x10] sm:$0x1] 0.0
        %4628 = vst [vmem:[#allocation4 + $0x18] sm:$0x1] 0.0
        %4629 = vst [vmem:[#allocation4 + $0x20] sm:$0x1] 0.0
        %4630 = vst [vmem:[#allocation4 + $0x28] sm:$0x1] 0.0
        %4631 = vst [vmem:[#allocation4 + $0x5] sm:$0x1] 0.0
        %4632 = vst [vmem:[#allocation4 + $0xd] sm:$0x1] 0.0
        %4633 = vst [vmem:[#allocation4 + $0x15] sm:$0x1] 0.0
        %4634 = vst [vmem:[#allocation4 + $0x1d] sm:$0x1] 0.0
        %4635 = vst [vmem:[#allocation4 + $0x25] sm:$0x1] 0.0
        %4636 = vst [vmem:[#allocation4 + $0x2d] sm:$0x1] 0.0
        %v4653 = vlaneseq
        %v4654 = vshrl.u32 %v4653, 7
        %v4655 = vsub.s32 0, %v4654
        %v4656 = vrot.slane %v4606, %v4655
        %v4657 = vlaneseq
        %v4658 = vshrl.u32 %v4657, 7
        %v4659 = vsub.s32 0, %v4658
        %v4660 = vrot.slane %v4607, %v4659
        %v4661 = vlaneseq
        %v4662 = vshrl.u32 %v4661, 7
        %v4663 = vsub.s32 0, %v4662
        %v4664 = vrot.slane %v4608, %v4663
        %v4665 = vlaneseq
        %v4666 = vshrl.u32 %v4665, 7
        %v4667 = vsub.s32 0, %v4666
        %v4668 = vrot.slane %v4609, %v4667
        %v4669 = vlaneseq
        %v4670 = vshrl.u32 %v4669, 7
        %v4671 = vsub.s32 0, %v4670
        %v4672 = vrot.slane %v4610, %v4671
        %v4673 = vlaneseq
        %v4674 = vshrl.u32 %v4673, 7
        %v4675 = vsub.s32 0, %v4674
        %v4676 = vrot.slane %v4611, %v4675
        %v4677 = vlaneseq
        %v4678 = vshrl.u32 %v4677, 7
        %v4679 = vsub.s32 0, %v4678
        %v4680 = vrot.slane %v4612, %v4679
        %v4681 = vlaneseq
        %v4682 = vshrl.u32 %v4681, 7
        %v4683 = vsub.s32 0, %v4682
        %v4684 = vrot.slane %v4613, %v4683
        %v4685 = vlaneseq
        %v4686 = vshrl.u32 %v4685, 7
        %v4687 = vsub.s32 0, %v4686
        %v4688 = vrot.slane %v4614, %v4687
        %v4689 = vlaneseq
        %v4690 = vshrl.u32 %v4689, 7
        %v4691 = vsub.s32 0, %v4690
        %v4692 = vrot.slane %v4615, %v4691
        %v4693 = vlaneseq
        %v4694 = vshrl.u32 %v4693, 7
        %v4695 = vsub.s32 0, %v4694
        %v4696 = vrot.slane %v4616, %v4695
        %v4697 = vlaneseq
        %v4698 = vshrl.u32 %v4697, 7
        %v4699 = vsub.s32 0, %v4698
        %v4700 = vrot.slane %v4617, %v4699
        %v4701 = vlaneseq
        %v4702 = vshrl.u32 %v4701, 7
        %v4703 = vsub.s32 0, %v4702
        %v4704 = vrot.slane %v4618, %v4703
        %v4705 = vlaneseq
        %v4706 = vshrl.u32 %v4705, 7
        %v4707 = vsub.s32 0, %v4706
        %v4708 = vrot.slane %v4619, %v4707
        %v4709 = vlaneseq
        %v4710 = vshrl.u32 %v4709, 7
        %v4711 = vsub.s32 0, %v4710
        %v4712 = vrot.slane %v4620, %v4711
        %v4713 = vlaneseq
        %v4714 = vshrl.u32 %v4713, 7
        %v4715 = vsub.s32 0, %v4714
        %v4716 = vrot.slane %v4621, %v4715
        %v4717 = vsel %vm3623, %v4660, %v4656
        %v4718 = vsel %vm3625, %v4664, %v4717
        %v4719 = vsel %vm3627, %v4668, %v4718
        %v4720 = vsel %vm3623, %v4676, %v4672
        %v4721 = vsel %vm3625, %v4680, %v4720
        %v4722 = vsel %vm3627, %v4684, %v4721
        %v4723 = vsel %vm3623, %v4692, %v4688
        %v4724 = vsel %vm3625, %v4696, %v4723
        %v4725 = vsel %vm3627, %v4700, %v4724
        %v4726 = vsel %vm3623, %v4708, %v4704
        %v4727 = vsel %vm3625, %v4712, %v4726
        %v4728 = vsel %vm3627, %v4716, %v4727
        %s4733 = scalar_lea.vmem [#allocation4], 8
        %4734 = vst [vmem:[%s4733 + $0x1] sm:$0xf] %v4719
        %4735 = vst [vmem:[%s4733 + $0x9] sm:$0xf] %v4722
        %4736 = vst [vmem:[%s4733 + $0x11] sm:$0xf] %v4725
        %4737 = vst [vmem:[%s4733 + $0x19] sm:$0xf] %v4728
        %v4738 = vld [vmem:[#allocation4] sm:$0xf]
        %v4739 = vld [vmem:[#allocation4 + $0x8] sm:$0xf]
        %v4740 = vld [vmem:[#allocation4 + $0x10] sm:$0xf]
        %v4741 = vld [vmem:[#allocation4 + $0x18] sm:$0xf]
        %v4742 = vld [vmem:[%s4733] sm:$0xf]
        %v4743 = vld [vmem:[%s4733 + $0x8] sm:$0xf]
        %v4744 = vld [vmem:[%s4733 + $0x10] sm:$0xf]
        %v4745 = vld [vmem:[%s4733 + $0x18] sm:$0xf]
        %s4746 = scalar_lea.vmem [#allocation4], 16
        %v4747 = vld [vmem:[%s4746] sm:$0xf]
        %v4748 = vld [vmem:[%s4746 + $0x8] sm:$0xf]
        %v4749 = vld [vmem:[%s4746 + $0x10] sm:$0xf]
        %v4750 = vld [vmem:[%s4746 + $0x18] sm:$0xf]
        %v4751 = vld [vmem:[#allocation4 + $0x1] sm:$0xf]
        %v4752 = vld [vmem:[#allocation4 + $0x9] sm:$0xf]
        %v4753 = vld [vmem:[#allocation4 + $0x11] sm:$0xf]
        %v4754 = vld [vmem:[#allocation4 + $0x19] sm:$0xf]
        %v4755 = vld [vmem:[%s4733 + $0x1] sm:$0xf]
        %v4756 = vld [vmem:[%s4733 + $0x9] sm:$0xf]
        %v4757 = vld [vmem:[%s4733 + $0x11] sm:$0xf]
        %v4758 = vld [vmem:[%s4733 + $0x19] sm:$0xf]
        %v4759 = vld [vmem:[%s4746 + $0x1] sm:$0xf]
        %v4760 = vld [vmem:[%s4746 + $0x9] sm:$0xf]
        %v4761 = vld [vmem:[%s4746 + $0x11] sm:$0xf]
        %v4762 = vld [vmem:[%s4746 + $0x19] sm:$0xf]
        %v4763 = vld [vmem:[#allocation4 + $0x2] sm:$0xf]
        %v4764 = vld [vmem:[#allocation4 + $0xa] sm:$0xf]
        %v4765 = vld [vmem:[#allocation4 + $0x12] sm:$0xf]
        %v4766 = vld [vmem:[#allocation4 + $0x1a] sm:$0xf]
        %v4767 = vld [vmem:[%s4733 + $0x2] sm:$0xf]
        %v4768 = vld [vmem:[%s4733 + $0xa] sm:$0xf]
        %v4769 = vld [vmem:[%s4733 + $0x12] sm:$0xf]
        %v4770 = vld [vmem:[%s4733 + $0x1a] sm:$0xf]
        %v4771 = vld [vmem:[%s4746 + $0x2] sm:$0xf]
        %v4772 = vld [vmem:[%s4746 + $0xa] sm:$0xf]
        %v4773 = vld [vmem:[%s4746 + $0x12] sm:$0xf]
        %v4774 = vld [vmem:[%s4746 + $0x1a] sm:$0xf]
        %v4811 = vcombine.low %v4738, %v4742
        %v4812 = vcombine.low %v4747, %v4751
        %v4813 = vcombine.low %v4755, %v4759
        %v4814 = vcombine.low %v4763, %v4767
        %v4815 = vcombine.low %v4739, %v4743
        %v4816 = vcombine.low %v4748, %v4752
        %v4817 = vcombine.low %v4756, %v4760
        %v4818 = vcombine.low %v4764, %v4768
        %v4819 = vcombine.low %v4740, %v4744
        %v4820 = vcombine.low %v4749, %v4753
        %v4821 = vcombine.low %v4757, %v4761
        %v4822 = vcombine.low %v4765, %v4769
        %v4823 = vcombine.low %v4741, %v4745
        %v4824 = vcombine.low %v4750, %v4754
        %v4825 = vcombine.low %v4758, %v4762
        %v4826 = vcombine.low %v4766, %v4770
        %v4827 = vcombine.low %v4811, %v4815
        %v4828 = vcombine.high %v4811, %v4815
        %v4829 = vcombine.low %v4812, %v4816
        %v4830 = vcombine.high %v4812, %v4816
        %v4831 = vcombine.low %v4813, %v4817
        %v4832 = vcombine.high %v4813, %v4817
        %v4833 = vcombine.low %v4814, %v4818
        %v4834 = vcombine.high %v4814, %v4818
        %v4835 = vcombine.low %v4771, %v4772
        %v4836 = vcombine.low %v4819, %v4823
        %v4837 = vcombine.high %v4819, %v4823
        %v4838 = vcombine.low %v4820, %v4824
        %v4839 = vcombine.high %v4820, %v4824
        %v4840 = vcombine.low %v4821, %v4825
        %v4841 = vcombine.high %v4821, %v4825
        %v4842 = vcombine.low %v4822, %v4826
        %v4843 = vcombine.high %v4822, %v4826
        %v4844 = vcombine.low %v4773, %v4774
        %v4863 = vpack.c.bf16 %v4836, %v4827
        %v4864 = vpack.c.bf16 %v4837, %v4828
        %v4865 = vpack.c.bf16 %v4838, %v4829
        %v4866 = vpack.c.bf16 %v4839, %v4830
        %v4867 = vpack.c.bf16 %v4840, %v4831
        %v4868 = vpack.c.bf16 %v4841, %v4832
        %v4869 = vpack.c.bf16 %v4842, %v4833
        %v4870 = vpack.c.bf16 %v4843, %v4834
        %v4871 = vpack.c.bf16 %v4844, %v4835
        %v4872 = vld [vmem:[#allocation13] sm:$0xff]
        %v4873 = vld [vmem:[#allocation13 + $0x8] sm:$0xff]
        %v4874 = vld [vmem:[#allocation13 + $0x10] sm:$0xff]
        %v4875 = vld [vmem:[#allocation13 + $0x18] sm:$0xff]
        %v4876 = vld [vmem:[#allocation13 + $0x20] sm:$0xff]
        %v4877 = vld [vmem:[#allocation13 + $0x28] sm:$0xff]
        %v4878 = vld [vmem:[#allocation13 + $0x30] sm:$0xff]
        %v4879 = vld [vmem:[#allocation13 + $0x38] sm:$0xff]
        %v4880 = vld [vmem:[#allocation13 + $0x40] sm:$0xff]
        %v4881 = vld [vmem:[#allocation13 + $0x48] sm:$0xff]
        %v4882 = vld [vmem:[#allocation13 + $0x50] sm:$0xff]
        %v4883 = vld [vmem:[#allocation13 + $0x58] sm:$0xff]
        %v4884 = vld [vmem:[#allocation13 + $0x60] sm:$0xff]
        %v4885 = vld [vmem:[#allocation13 + $0x68] sm:$0xff]
        %v4886 = vld [vmem:[#allocation13 + $0x70] sm:$0xff]
        %v4887 = vld [vmem:[#allocation13 + $0x78] sm:$0xff]
        %v4888 = vld [vmem:[#allocation13 + $0x80] sm:$0xff]
        %v4889 = vld [vmem:[#allocation13 + $0x88] sm:$0xff]
        %v4890 = vld [vmem:[#allocation13 + $0x90] sm:$0xff]
        %v4891 = vld [vmem:[#allocation13 + $0x98] sm:$0xff]
        %v4892 = vld [vmem:[#allocation13 + $0xa0] sm:$0xff]
        %v4893 = vld [vmem:[#allocation13 + $0xa8] sm:$0xff]
        %v4894 = vld [vmem:[#allocation13 + $0xb0] sm:$0xff]
        %v4895 = vld [vmem:[#allocation13 + $0xb8] sm:$0xff]
        %v4896 = vld [vmem:[#allocation13 + $0xc0] sm:$0xff]
        %v4897 = vld [vmem:[#allocation13 + $0xc8] sm:$0xff]
        %v4898 = vld [vmem:[#allocation13 + $0xd0] sm:$0xff]
        %v4899 = vld [vmem:[#allocation13 + $0xd8] sm:$0xff]
        %v4900 = vld [vmem:[#allocation13 + $0xe0] sm:$0xff]
        %v4901 = vld [vmem:[#allocation13 + $0xe8] sm:$0xff]
        %v4902 = vld [vmem:[#allocation13 + $0xf0] sm:$0xff]
        %v4903 = vld [vmem:[#allocation13 + $0xf8] sm:$0xff]
        %v4904 = vld [vmem:[#allocation13 + $0x100] sm:$0xff]
        %v4905 = vld [vmem:[#allocation13 + $0x108] sm:$0xff]
        %v4906 = vld [vmem:[#allocation13 + $0x110] sm:$0xff]
        %v4907 = vld [vmem:[#allocation13 + $0x118] sm:$0xff]
        %v4908 = vld [vmem:[#allocation13 + $0x120] sm:$0xff]
        %v4909 = vld [vmem:[#allocation13 + $0x128] sm:$0xff]
        %v4910 = vld [vmem:[#allocation13 + $0x130] sm:$0xff]
        %v4911 = vld [vmem:[#allocation13 + $0x138] sm:$0xff]
        %v4912 = vld [vmem:[#allocation13 + $0x140] sm:$0xff]
        %v4913 = vld [vmem:[#allocation13 + $0x148] sm:$0xff]
        %v4914 = vld [vmem:[#allocation13 + $0x150] sm:$0xff]
        %v4915 = vld [vmem:[#allocation13 + $0x158] sm:$0xff]
        %v4916 = vld [vmem:[#allocation13 + $0x160] sm:$0xff]
        %v4917 = vld [vmem:[#allocation13 + $0x168] sm:$0xff]
        %v4918 = vld [vmem:[#allocation13 + $0x170] sm:$0xff]
        %v4919 = vld [vmem:[#allocation13 + $0x178] sm:$0xff]
        %v4920 = vld [vmem:[#allocation13 + $0x180] sm:$0xff]
        %v4921 = vld [vmem:[#allocation13 + $0x188] sm:$0xff]
        %v4922 = vld [vmem:[#allocation13 + $0x190] sm:$0xff]
        %v4923 = vld [vmem:[#allocation13 + $0x198] sm:$0xff]
        %v4924 = vld [vmem:[#allocation13 + $0x1a0] sm:$0xff]
        %v4925 = vld [vmem:[#allocation13 + $0x1a8] sm:$0xff]
        %v4926 = vld [vmem:[#allocation13 + $0x1b0] sm:$0xff]
        %v4927 = vld [vmem:[#allocation13 + $0x1b8] sm:$0xff]
        %v4928 = vld [vmem:[#allocation13 + $0x1c0] sm:$0xff]
        %v4929 = vld [vmem:[#allocation13 + $0x1c8] sm:$0xff]
        %v4930 = vld [vmem:[#allocation13 + $0x1d0] sm:$0xff]
        %v4931 = vld [vmem:[#allocation13 + $0x1d8] sm:$0xff]
        %v4932 = vld [vmem:[#allocation13 + $0x1e0] sm:$0xff]
        %v4933 = vld [vmem:[#allocation13 + $0x1e8] sm:$0xff]
        %v4934 = vld [vmem:[#allocation13 + $0x1f0] sm:$0xff]
        %v4935 = vld [vmem:[#allocation13 + $0x1f8] sm:$0xff]
        %v4936 = vld [vmem:[#allocation13 + $0x200] sm:$0xff]
        %v4937 = vld [vmem:[#allocation13 + $0x208] sm:$0xff]
        %v4938 = vld [vmem:[#allocation13 + $0x210] sm:$0xff]
        %v4939 = vld [vmem:[#allocation13 + $0x218] sm:$0xff]
        %v4940 = vld [vmem:[#allocation13 + $0x220] sm:$0xff]
        %v4941 = vld [vmem:[#allocation13 + $0x228] sm:$0xff]
        %v4942 = vld [vmem:[#allocation13 + $0x230] sm:$0xff]
        %v4943 = vld [vmem:[#allocation13 + $0x238] sm:$0xff]
        %v4944 = vld [vmem:[#allocation13 + $0x240] sm:$0xff]
        %v4945 = vld [vmem:[#allocation13 + $0x248] sm:$0xff]
        %v4946 = vld [vmem:[#allocation13 + $0x250] sm:$0xff]
        %v4947 = vld [vmem:[#allocation13 + $0x258] sm:$0xff]
        %v4948 = vld [vmem:[#allocation13 + $0x260] sm:$0xff]
        %v4949 = vld [vmem:[#allocation13 + $0x268] sm:$0xff]
        %v4950 = vld [vmem:[#allocation13 + $0x270] sm:$0xff]
        %v4951 = vld [vmem:[#allocation13 + $0x278] sm:$0xff]
        %v4952 = vld [vmem:[#allocation13 + $0x280] sm:$0xff]
        %v4953 = vld [vmem:[#allocation13 + $0x288] sm:$0xff]
        %v4954 = vld [vmem:[#allocation13 + $0x290] sm:$0xff]
        %v4955 = vld [vmem:[#allocation13 + $0x298] sm:$0xff]
        %v4956 = vld [vmem:[#allocation13 + $0x2a0] sm:$0xff]
        %v4957 = vld [vmem:[#allocation13 + $0x2a8] sm:$0xff]
        %v4958 = vld [vmem:[#allocation13 + $0x2b0] sm:$0xff]
        %v4959 = vld [vmem:[#allocation13 + $0x2b8] sm:$0xff]
        %v4960 = vld [vmem:[#allocation13 + $0x2c0] sm:$0xff]
        %v4961 = vld [vmem:[#allocation13 + $0x2c8] sm:$0xff]
        %v4962 = vld [vmem:[#allocation13 + $0x2d0] sm:$0xff]
        %v4963 = vld [vmem:[#allocation13 + $0x2d8] sm:$0xff]
        %v4964 = vld [vmem:[#allocation13 + $0x2e0] sm:$0xff]
        %v4965 = vld [vmem:[#allocation13 + $0x2e8] sm:$0xff]
        %v4966 = vld [vmem:[#allocation13 + $0x2f0] sm:$0xff]
        %v4967 = vld [vmem:[#allocation13 + $0x2f8] sm:$0xff]
        %v4968 = vld [vmem:[#allocation13 + $0x300] sm:$0xff]
        %v4969 = vld [vmem:[#allocation13 + $0x308] sm:$0xff]
        %v4970 = vld [vmem:[#allocation13 + $0x310] sm:$0xff]
        %v4971 = vld [vmem:[#allocation13 + $0x318] sm:$0xff]
        %v4972 = vld [vmem:[#allocation13 + $0x320] sm:$0xff]
        %v4973 = vld [vmem:[#allocation13 + $0x328] sm:$0xff]
        %v4974 = vld [vmem:[#allocation13 + $0x330] sm:$0xff]
        %v4975 = vld [vmem:[#allocation13 + $0x338] sm:$0xff]
        %v4976 = vld [vmem:[#allocation13 + $0x340] sm:$0xff]
        %v4977 = vld [vmem:[#allocation13 + $0x348] sm:$0xff]
        %v4978 = vld [vmem:[#allocation13 + $0x350] sm:$0xff]
        %v4979 = vld [vmem:[#allocation13 + $0x358] sm:$0xff]
        %v4980 = vld [vmem:[#allocation13 + $0x360] sm:$0xff]
        %v4981 = vld [vmem:[#allocation13 + $0x368] sm:$0xff]
        %v4982 = vld [vmem:[#allocation13 + $0x370] sm:$0xff]
        %v4983 = vld [vmem:[#allocation13 + $0x378] sm:$0xff]
        %v4984 = vld [vmem:[#allocation13 + $0x380] sm:$0xff]
        %v4985 = vld [vmem:[#allocation13 + $0x388] sm:$0xff]
        %v4986 = vld [vmem:[#allocation13 + $0x390] sm:$0xff]
        %v4987 = vld [vmem:[#allocation13 + $0x398] sm:$0xff]
        %v4988 = vld [vmem:[#allocation13 + $0x3a0] sm:$0xff]
        %v4989 = vld [vmem:[#allocation13 + $0x3a8] sm:$0xff]
        %v4990 = vld [vmem:[#allocation13 + $0x3b0] sm:$0xff]
        %v4991 = vld [vmem:[#allocation13 + $0x3b8] sm:$0xff]
        %v4992 = vld [vmem:[#allocation13 + $0x3c0] sm:$0xff]
        %v4993 = vld [vmem:[#allocation13 + $0x3c8] sm:$0xff]
        %v4994 = vld [vmem:[#allocation13 + $0x3d0] sm:$0xff]
        %v4995 = vld [vmem:[#allocation13 + $0x3d8] sm:$0xff]
        %v4996 = vld [vmem:[#allocation13 + $0x3e0] sm:$0xff]
        %v4997 = vld [vmem:[#allocation13 + $0x3e8] sm:$0xff]
        %v4998 = vld [vmem:[#allocation13 + $0x3f0] sm:$0xff]
        %v4999 = vld [vmem:[#allocation13 + $0x3f8] sm:$0xff]
        %v5000 = vld [vmem:[#allocation13 + $0x400] sm:$0xff]
        %v5001 = vld [vmem:[#allocation13 + $0x408] sm:$0xff]
        %v5002 = vld [vmem:[#allocation13 + $0x410] sm:$0xff]
        %v5003 = vld [vmem:[#allocation13 + $0x418] sm:$0xff]
        %v5004 = vld [vmem:[#allocation13 + $0x420] sm:$0xff]
        %v5005 = vld [vmem:[#allocation13 + $0x428] sm:$0xff]
        %v5006 = vld [vmem:[#allocation13 + $0x430] sm:$0xff]
        %v5007 = vld [vmem:[#allocation13 + $0x438] sm:$0xff]
        %v5008 = vld [vmem:[#allocation13 + $0x440] sm:$0xff]
        %v5009 = vld [vmem:[#allocation13 + $0x448] sm:$0xff]
        %v5010 = vld [vmem:[#allocation13 + $0x450] sm:$0xff]
        %v5011 = vld [vmem:[#allocation13 + $0x458] sm:$0xff]
        %v5012 = vld [vmem:[#allocation13 + $0x460] sm:$0xff]
        %v5013 = vld [vmem:[#allocation13 + $0x468] sm:$0xff]
        %v5014 = vld [vmem:[#allocation13 + $0x470] sm:$0xff]
        %v5015 = vld [vmem:[#allocation13 + $0x478] sm:$0xff]
        %v5016 = vld [vmem:[#allocation14] sm:$0x3]
        %v5018 = vlaneseq
        %v5019 = vshrl.u32 %v5018, 7
        %v5020 = vsub.s32 0, %v5019
        %v5021 = vrot.slane %v5016, %v5020
        %v5022 = vlaneseq
        %v5023 = vshrl.u32 %v5022, 7
        %v5024 = vsub.s32 1, %v5023
        %v5025 = vrot.slane %v5016, %v5024
        %v5172 = vunpack.c.l.b16 %v4872
        %v5173 = vunpack.c.h.b16 %v4872
        %v5174 = vunpack.c.l.b16 %v4873
        %v5175 = vunpack.c.h.b16 %v4873
        %v5176 = vunpack.c.l.b16 %v4874
        %v5177 = vunpack.c.h.b16 %v4874
        %v5178 = vunpack.c.l.b16 %v4875
        %v5179 = vunpack.c.h.b16 %v4875
        %v5180 = vunpack.c.l.b16 %v4876
        %v5181 = vunpack.c.h.b16 %v4876
        %v5182 = vunpack.c.l.b16 %v4877
        %v5183 = vunpack.c.h.b16 %v4877
        %v5184 = vunpack.c.l.b16 %v4878
        %v5185 = vunpack.c.h.b16 %v4878
        %v5186 = vunpack.c.l.b16 %v4879
        %v5187 = vunpack.c.h.b16 %v4879
        %v5188 = vunpack.c.l.b16 %v4880
        %v5189 = vunpack.c.h.b16 %v4880
        %v5190 = vunpack.c.l.b16 %v4881
        %v5191 = vunpack.c.h.b16 %v4881
        %v5192 = vunpack.c.l.b16 %v4882
        %v5193 = vunpack.c.h.b16 %v4882
        %v5194 = vunpack.c.l.b16 %v4883
        %v5195 = vunpack.c.h.b16 %v4883
        %v5196 = vunpack.c.l.b16 %v4884
        %v5197 = vunpack.c.h.b16 %v4884
        %v5198 = vunpack.c.l.b16 %v4885
        %v5199 = vunpack.c.h.b16 %v4885
        %v5200 = vunpack.c.l.b16 %v4886
        %v5201 = vunpack.c.h.b16 %v4886
        %v5202 = vunpack.c.l.b16 %v4887
        %v5203 = vunpack.c.h.b16 %v4887
        %v5204 = vunpack.c.l.b16 %v4888
        %v5205 = vunpack.c.h.b16 %v4888
        %v5206 = vunpack.c.l.b16 %v4889
        %v5207 = vunpack.c.h.b16 %v4889
        %v5208 = vunpack.c.l.b16 %v4890
        %v5209 = vunpack.c.h.b16 %v4890
        %v5210 = vunpack.c.l.b16 %v4891
        %v5211 = vunpack.c.h.b16 %v4891
        %v5212 = vunpack.c.l.b16 %v4892
        %v5213 = vunpack.c.h.b16 %v4892
        %v5214 = vunpack.c.l.b16 %v4893
        %v5215 = vunpack.c.h.b16 %v4893
        %v5216 = vunpack.c.l.b16 %v4894
        %v5217 = vunpack.c.h.b16 %v4894
        %v5218 = vunpack.c.l.b16 %v4895
        %v5219 = vunpack.c.h.b16 %v4895
        %v5220 = vunpack.c.l.b16 %v4896
        %v5221 = vunpack.c.h.b16 %v4896
        %v5222 = vunpack.c.l.b16 %v4897
        %v5223 = vunpack.c.h.b16 %v4897
        %v5224 = vunpack.c.l.b16 %v4898
        %v5225 = vunpack.c.h.b16 %v4898
        %v5226 = vunpack.c.l.b16 %v4899
        %v5227 = vunpack.c.h.b16 %v4899
        %v5228 = vunpack.c.l.b16 %v4900
        %v5229 = vunpack.c.h.b16 %v4900
        %v5230 = vunpack.c.l.b16 %v4901
        %v5231 = vunpack.c.h.b16 %v4901
        %v5232 = vunpack.c.l.b16 %v4902
        %v5233 = vunpack.c.h.b16 %v4902
        %v5234 = vunpack.c.l.b16 %v4903
        %v5235 = vunpack.c.h.b16 %v4903
        %v5236 = vunpack.c.l.b16 %v4904
        %v5237 = vunpack.c.h.b16 %v4904
        %v5238 = vunpack.c.l.b16 %v4905
        %v5239 = vunpack.c.h.b16 %v4905
        %v5240 = vunpack.c.l.b16 %v4906
        %v5241 = vunpack.c.h.b16 %v4906
        %v5242 = vunpack.c.l.b16 %v4907
        %v5243 = vunpack.c.h.b16 %v4907
        %v5244 = vunpack.c.l.b16 %v4908
        %v5245 = vunpack.c.h.b16 %v4908
        %v5246 = vunpack.c.l.b16 %v4909
        %v5247 = vunpack.c.h.b16 %v4909
        %v5248 = vunpack.c.l.b16 %v4910
        %v5249 = vunpack.c.h.b16 %v4910
        %v5250 = vunpack.c.l.b16 %v4911
        %v5251 = vunpack.c.h.b16 %v4911
        %v5252 = vunpack.c.l.b16 %v4912
        %v5253 = vunpack.c.h.b16 %v4912
        %v5254 = vunpack.c.l.b16 %v4913
        %v5255 = vunpack.c.h.b16 %v4913
        %v5256 = vunpack.c.l.b16 %v4914
        %v5257 = vunpack.c.h.b16 %v4914
        %v5258 = vunpack.c.l.b16 %v4915
        %v5259 = vunpack.c.h.b16 %v4915
        %v5260 = vunpack.c.l.b16 %v4916
        %v5261 = vunpack.c.h.b16 %v4916
        %v5262 = vunpack.c.l.b16 %v4917
        %v5263 = vunpack.c.h.b16 %v4917
        %v5264 = vunpack.c.l.b16 %v4918
        %v5265 = vunpack.c.h.b16 %v4918
        %v5266 = vunpack.c.l.b16 %v4919
        %v5267 = vunpack.c.h.b16 %v4919
        %v5268 = vunpack.c.l.b16 %v4920
        %v5269 = vunpack.c.h.b16 %v4920
        %v5270 = vunpack.c.l.b16 %v4921
        %v5271 = vunpack.c.h.b16 %v4921
        %v5272 = vunpack.c.l.b16 %v4922
        %v5273 = vunpack.c.h.b16 %v4922
        %v5274 = vunpack.c.l.b16 %v4923
        %v5275 = vunpack.c.h.b16 %v4923
        %v5276 = vunpack.c.l.b16 %v4924
        %v5277 = vunpack.c.h.b16 %v4924
        %v5278 = vunpack.c.l.b16 %v4925
        %v5279 = vunpack.c.h.b16 %v4925
        %v5280 = vunpack.c.l.b16 %v4926
        %v5281 = vunpack.c.h.b16 %v4926
        %v5282 = vunpack.c.l.b16 %v4927
        %v5283 = vunpack.c.h.b16 %v4927
        %v5284 = vunpack.c.l.b16 %v4928
        %v5285 = vunpack.c.h.b16 %v4928
        %v5286 = vunpack.c.l.b16 %v4929
        %v5287 = vunpack.c.h.b16 %v4929
        %v5288 = vunpack.c.l.b16 %v4930
        %v5289 = vunpack.c.h.b16 %v4930
        %v5290 = vunpack.c.l.b16 %v4931
        %v5291 = vunpack.c.h.b16 %v4931
        %v5292 = vunpack.c.l.b16 %v4932
        %v5293 = vunpack.c.h.b16 %v4932
        %v5294 = vunpack.c.l.b16 %v4933
        %v5295 = vunpack.c.h.b16 %v4933
        %v5296 = vunpack.c.l.b16 %v4934
        %v5297 = vunpack.c.h.b16 %v4934
        %v5298 = vunpack.c.l.b16 %v4935
        %v5299 = vunpack.c.h.b16 %v4935
        %v5300 = vunpack.c.l.b16 %v4936
        %v5301 = vunpack.c.h.b16 %v4936
        %v5302 = vunpack.c.l.b16 %v4937
        %v5303 = vunpack.c.h.b16 %v4937
        %v5304 = vunpack.c.l.b16 %v4938
        %v5305 = vunpack.c.h.b16 %v4938
        %v5306 = vunpack.c.l.b16 %v4939
        %v5307 = vunpack.c.h.b16 %v4939
        %v5308 = vunpack.c.l.b16 %v4940
        %v5309 = vunpack.c.h.b16 %v4940
        %v5310 = vunpack.c.l.b16 %v4941
        %v5311 = vunpack.c.h.b16 %v4941
        %v5312 = vunpack.c.l.b16 %v4942
        %v5313 = vunpack.c.h.b16 %v4942
        %v5314 = vunpack.c.l.b16 %v4943
        %v5315 = vunpack.c.h.b16 %v4943
        %v5316 = vunpack.c.l.b16 %v4944
        %v5317 = vunpack.c.h.b16 %v4944
        %v5318 = vunpack.c.l.b16 %v4945
        %v5319 = vunpack.c.h.b16 %v4945
        %v5320 = vunpack.c.l.b16 %v4946
        %v5321 = vunpack.c.h.b16 %v4946
        %v5322 = vunpack.c.l.b16 %v4947
        %v5323 = vunpack.c.h.b16 %v4947
        %v5324 = vunpack.c.l.b16 %v4948
        %v5325 = vunpack.c.h.b16 %v4948
        %v5326 = vunpack.c.l.b16 %v4949
        %v5327 = vunpack.c.h.b16 %v4949
        %v5328 = vunpack.c.l.b16 %v4950
        %v5329 = vunpack.c.h.b16 %v4950
        %v5330 = vunpack.c.l.b16 %v4951
        %v5331 = vunpack.c.h.b16 %v4951
        %v5332 = vunpack.c.l.b16 %v4952
        %v5333 = vunpack.c.h.b16 %v4952
        %v5334 = vunpack.c.l.b16 %v4953
        %v5335 = vunpack.c.h.b16 %v4953
        %v5336 = vunpack.c.l.b16 %v4954
        %v5337 = vunpack.c.h.b16 %v4954
        %v5338 = vunpack.c.l.b16 %v4955
        %v5339 = vunpack.c.h.b16 %v4955
        %v5340 = vunpack.c.l.b16 %v4956
        %v5341 = vunpack.c.h.b16 %v4956
        %v5342 = vunpack.c.l.b16 %v4957
        %v5343 = vunpack.c.h.b16 %v4957
        %v5344 = vunpack.c.l.b16 %v4958
        %v5345 = vunpack.c.h.b16 %v4958
        %v5346 = vunpack.c.l.b16 %v4959
        %v5347 = vunpack.c.h.b16 %v4959
        %v5348 = vunpack.c.l.b16 %v4960
        %v5349 = vunpack.c.h.b16 %v4960
        %v5350 = vunpack.c.l.b16 %v4961
        %v5351 = vunpack.c.h.b16 %v4961
        %v5352 = vunpack.c.l.b16 %v4962
        %v5353 = vunpack.c.h.b16 %v4962
        %v5354 = vunpack.c.l.b16 %v4963
        %v5355 = vunpack.c.h.b16 %v4963
        %v5356 = vunpack.c.l.b16 %v4964
        %v5357 = vunpack.c.h.b16 %v4964
        %v5358 = vunpack.c.l.b16 %v4965
        %v5359 = vunpack.c.h.b16 %v4965
        %v5360 = vunpack.c.l.b16 %v4966
        %v5361 = vunpack.c.h.b16 %v4966
        %v5362 = vunpack.c.l.b16 %v4967
        %v5363 = vunpack.c.h.b16 %v4967
        %v5364 = vunpack.c.l.b16 %v4968
        %v5365 = vunpack.c.h.b16 %v4968
        %v5366 = vunpack.c.l.b16 %v4969
        %v5367 = vunpack.c.h.b16 %v4969
        %v5368 = vunpack.c.l.b16 %v4970
        %v5369 = vunpack.c.h.b16 %v4970
        %v5370 = vunpack.c.l.b16 %v4971
        %v5371 = vunpack.c.h.b16 %v4971
        %v5372 = vunpack.c.l.b16 %v4972
        %v5373 = vunpack.c.h.b16 %v4972
        %v5374 = vunpack.c.l.b16 %v4973
        %v5375 = vunpack.c.h.b16 %v4973
        %v5376 = vunpack.c.l.b16 %v4974
        %v5377 = vunpack.c.h.b16 %v4974
        %v5378 = vunpack.c.l.b16 %v4975
        %v5379 = vunpack.c.h.b16 %v4975
        %v5380 = vunpack.c.l.b16 %v4976
        %v5381 = vunpack.c.h.b16 %v4976
        %v5382 = vunpack.c.l.b16 %v4977
        %v5383 = vunpack.c.h.b16 %v4977
        %v5384 = vunpack.c.l.b16 %v4978
        %v5385 = vunpack.c.h.b16 %v4978
        %v5386 = vunpack.c.l.b16 %v4979
        %v5387 = vunpack.c.h.b16 %v4979
        %v5388 = vunpack.c.l.b16 %v4980
        %v5389 = vunpack.c.h.b16 %v4980
        %v5390 = vunpack.c.l.b16 %v4981
        %v5391 = vunpack.c.h.b16 %v4981
        %v5392 = vunpack.c.l.b16 %v4982
        %v5393 = vunpack.c.h.b16 %v4982
        %v5394 = vunpack.c.l.b16 %v4983
        %v5395 = vunpack.c.h.b16 %v4983
        %v5396 = vunpack.c.l.b16 %v4984
        %v5397 = vunpack.c.h.b16 %v4984
        %v5398 = vunpack.c.l.b16 %v4985
        %v5399 = vunpack.c.h.b16 %v4985
        %v5400 = vunpack.c.l.b16 %v4986
        %v5401 = vunpack.c.h.b16 %v4986
        %v5402 = vunpack.c.l.b16 %v4987
        %v5403 = vunpack.c.h.b16 %v4987
        %v5404 = vunpack.c.l.b16 %v4988
        %v5405 = vunpack.c.h.b16 %v4988
        %v5406 = vunpack.c.l.b16 %v4989
        %v5407 = vunpack.c.h.b16 %v4989
        %v5408 = vunpack.c.l.b16 %v4990
        %v5409 = vunpack.c.h.b16 %v4990
        %v5410 = vunpack.c.l.b16 %v4991
        %v5411 = vunpack.c.h.b16 %v4991
        %v5412 = vunpack.c.l.b16 %v4992
        %v5413 = vunpack.c.h.b16 %v4992
        %v5414 = vunpack.c.l.b16 %v4993
        %v5415 = vunpack.c.h.b16 %v4993
        %v5416 = vunpack.c.l.b16 %v4994
        %v5417 = vunpack.c.h.b16 %v4994
        %v5418 = vunpack.c.l.b16 %v4995
        %v5419 = vunpack.c.h.b16 %v4995
        %v5420 = vunpack.c.l.b16 %v4996
        %v5421 = vunpack.c.h.b16 %v4996
        %v5422 = vunpack.c.l.b16 %v4997
        %v5423 = vunpack.c.h.b16 %v4997
        %v5424 = vunpack.c.l.b16 %v4998
        %v5425 = vunpack.c.h.b16 %v4998
        %v5426 = vunpack.c.l.b16 %v4999
        %v5427 = vunpack.c.h.b16 %v4999
        %v5428 = vunpack.c.l.b16 %v5000
        %v5429 = vunpack.c.h.b16 %v5000
        %v5430 = vunpack.c.l.b16 %v5001
        %v5431 = vunpack.c.h.b16 %v5001
        %v5432 = vunpack.c.l.b16 %v5002
        %v5433 = vunpack.c.h.b16 %v5002
        %v5434 = vunpack.c.l.b16 %v5003
        %v5435 = vunpack.c.h.b16 %v5003
        %v5436 = vunpack.c.l.b16 %v5004
        %v5437 = vunpack.c.h.b16 %v5004
        %v5438 = vunpack.c.l.b16 %v5005
        %v5439 = vunpack.c.h.b16 %v5005
        %v5440 = vunpack.c.l.b16 %v5006
        %v5441 = vunpack.c.h.b16 %v5006
        %v5442 = vunpack.c.l.b16 %v5007
        %v5443 = vunpack.c.h.b16 %v5007
        %v5444 = vunpack.c.l.b16 %v5008
        %v5445 = vunpack.c.h.b16 %v5008
        %v5446 = vunpack.c.l.b16 %v5009
        %v5447 = vunpack.c.h.b16 %v5009
        %v5448 = vunpack.c.l.b16 %v5010
        %v5449 = vunpack.c.h.b16 %v5010
        %v5450 = vunpack.c.l.b16 %v5011
        %v5451 = vunpack.c.h.b16 %v5011
        %v5452 = vunpack.c.l.b16 %v5012
        %v5453 = vunpack.c.h.b16 %v5012
        %v5454 = vunpack.c.l.b16 %v5013
        %v5455 = vunpack.c.h.b16 %v5013
        %v5456 = vunpack.c.l.b16 %v5014
        %v5457 = vunpack.c.h.b16 %v5014
        %v5458 = vunpack.c.l.b16 %v5015
        %v5459 = vunpack.c.h.b16 %v5015
        %v5460 = vpack.c.b16 %v5174, %v5172
        %v5461 = vpack.c.b16 %v5175, %v5173
        %v5462 = vpack.c.b16 %v5178, %v5176
        %v5463 = vpack.c.b16 %v5179, %v5177
        %v5464 = vpack.c.b16 %v5182, %v5180
        %v5465 = vpack.c.b16 %v5183, %v5181
        %v5466 = vpack.c.b16 %v5186, %v5184
        %v5467 = vpack.c.b16 %v5187, %v5185
        %v5468 = vpack.c.b16 %v5190, %v5188
        %v5469 = vpack.c.b16 %v5191, %v5189
        %v5470 = vpack.c.b16 %v5194, %v5192
        %v5471 = vpack.c.b16 %v5195, %v5193
        %v5472 = vpack.c.b16 %v5198, %v5196
        %v5473 = vpack.c.b16 %v5199, %v5197
        %v5474 = vpack.c.b16 %v5202, %v5200
        %v5475 = vpack.c.b16 %v5203, %v5201
        %v5476 = vpack.c.b16 %v5206, %v5204
        %v5477 = vpack.c.b16 %v5207, %v5205
        %v5478 = vpack.c.b16 %v5210, %v5208
        %v5479 = vpack.c.b16 %v5211, %v5209
        %v5480 = vpack.c.b16 %v5214, %v5212
        %v5481 = vpack.c.b16 %v5215, %v5213
        %v5482 = vpack.c.b16 %v5218, %v5216
        %v5483 = vpack.c.b16 %v5219, %v5217
        %v5484 = vpack.c.b16 %v5222, %v5220
        %v5485 = vpack.c.b16 %v5223, %v5221
        %v5486 = vpack.c.b16 %v5226, %v5224
        %v5487 = vpack.c.b16 %v5227, %v5225
        %v5488 = vpack.c.b16 %v5230, %v5228
        %v5489 = vpack.c.b16 %v5231, %v5229
        %v5490 = vpack.c.b16 %v5234, %v5232
        %v5491 = vpack.c.b16 %v5235, %v5233
        %v5492 = vpack.c.b16 %v5238, %v5236
        %v5493 = vpack.c.b16 %v5239, %v5237
        %v5494 = vpack.c.b16 %v5242, %v5240
        %v5495 = vpack.c.b16 %v5243, %v5241
        %v5496 = vpack.c.b16 %v5246, %v5244
        %v5497 = vpack.c.b16 %v5247, %v5245
        %v5498 = vpack.c.b16 %v5250, %v5248
        %v5499 = vpack.c.b16 %v5251, %v5249
        %v5500 = vpack.c.b16 %v5254, %v5252
        %v5501 = vpack.c.b16 %v5255, %v5253
        %v5502 = vpack.c.b16 %v5258, %v5256
        %v5503 = vpack.c.b16 %v5259, %v5257
        %v5504 = vpack.c.b16 %v5262, %v5260
        %v5505 = vpack.c.b16 %v5263, %v5261
        %v5506 = vpack.c.b16 %v5266, %v5264
        %v5507 = vpack.c.b16 %v5267, %v5265
        %v5508 = vpack.c.b16 %v5270, %v5268
        %v5509 = vpack.c.b16 %v5271, %v5269
        %v5510 = vpack.c.b16 %v5274, %v5272
        %v5511 = vpack.c.b16 %v5275, %v5273
        %v5512 = vpack.c.b16 %v5278, %v5276
        %v5513 = vpack.c.b16 %v5279, %v5277
        %v5514 = vpack.c.b16 %v5282, %v5280
        %v5515 = vpack.c.b16 %v5283, %v5281
        %v5516 = vpack.c.b16 %v5286, %v5284
        %v5517 = vpack.c.b16 %v5287, %v5285
        %v5518 = vpack.c.b16 %v5290, %v5288
        %v5519 = vpack.c.b16 %v5291, %v5289
        %v5520 = vpack.c.b16 %v5294, %v5292
        %v5521 = vpack.c.b16 %v5295, %v5293
        %v5522 = vpack.c.b16 %v5298, %v5296
        %v5523 = vpack.c.b16 %v5299, %v5297
        %v5524 = vpack.c.b16 %v5302, %v5300
        %v5525 = vpack.c.b16 %v5303, %v5301
        %v5526 = vpack.c.b16 %v5306, %v5304
        %v5527 = vpack.c.b16 %v5307, %v5305
        %v5528 = vpack.c.b16 %v5310, %v5308
        %v5529 = vpack.c.b16 %v5311, %v5309
        %v5530 = vpack.c.b16 %v5314, %v5312
        %v5531 = vpack.c.b16 %v5315, %v5313
        %v5532 = vpack.c.b16 %v5318, %v5316
        %v5533 = vpack.c.b16 %v5319, %v5317
        %v5534 = vpack.c.b16 %v5322, %v5320
        %v5535 = vpack.c.b16 %v5323, %v5321
        %v5536 = vpack.c.b16 %v5326, %v5324
        %v5537 = vpack.c.b16 %v5327, %v5325
        %v5538 = vpack.c.b16 %v5330, %v5328
        %v5539 = vpack.c.b16 %v5331, %v5329
        %v5540 = vpack.c.b16 %v5334, %v5332
        %v5541 = vpack.c.b16 %v5335, %v5333
        %v5542 = vpack.c.b16 %v5338, %v5336
        %v5543 = vpack.c.b16 %v5339, %v5337
        %v5544 = vpack.c.b16 %v5342, %v5340
        %v5545 = vpack.c.b16 %v5343, %v5341
        %v5546 = vpack.c.b16 %v5346, %v5344
        %v5547 = vpack.c.b16 %v5347, %v5345
        %v5548 = vpack.c.b16 %v5350, %v5348
        %v5549 = vpack.c.b16 %v5351, %v5349
        %v5550 = vpack.c.b16 %v5354, %v5352
        %v5551 = vpack.c.b16 %v5355, %v5353
        %v5552 = vpack.c.b16 %v5358, %v5356
        %v5553 = vpack.c.b16 %v5359, %v5357
        %v5554 = vpack.c.b16 %v5362, %v5360
        %v5555 = vpack.c.b16 %v5363, %v5361
        %v5556 = vpack.c.b16 %v5366, %v5364
        %v5557 = vpack.c.b16 %v5367, %v5365
        %v5558 = vpack.c.b16 %v5370, %v5368
        %v5559 = vpack.c.b16 %v5371, %v5369
        %v5560 = vpack.c.b16 %v5374, %v5372
        %v5561 = vpack.c.b16 %v5375, %v5373
        %v5562 = vpack.c.b16 %v5378, %v5376
        %v5563 = vpack.c.b16 %v5379, %v5377
        %v5564 = vpack.c.b16 %v5382, %v5380
        %v5565 = vpack.c.b16 %v5383, %v5381
        %v5566 = vpack.c.b16 %v5386, %v5384
        %v5567 = vpack.c.b16 %v5387, %v5385
        %v5568 = vpack.c.b16 %v5390, %v5388
        %v5569 = vpack.c.b16 %v5391, %v5389
        %v5570 = vpack.c.b16 %v5394, %v5392
        %v5571 = vpack.c.b16 %v5395, %v5393
        %v5572 = vpack.c.b16 %v5398, %v5396
        %v5573 = vpack.c.b16 %v5399, %v5397
        %v5574 = vpack.c.b16 %v5402, %v5400
        %v5575 = vpack.c.b16 %v5403, %v5401
        %v5576 = vpack.c.b16 %v5406, %v5404
        %v5577 = vpack.c.b16 %v5407, %v5405
        %v5578 = vpack.c.b16 %v5410, %v5408
        %v5579 = vpack.c.b16 %v5411, %v5409
        %v5580 = vpack.c.b16 %v5414, %v5412
        %v5581 = vpack.c.b16 %v5415, %v5413
        %v5582 = vpack.c.b16 %v5418, %v5416
        %v5583 = vpack.c.b16 %v5419, %v5417
        %v5584 = vpack.c.b16 %v5422, %v5420
        %v5585 = vpack.c.b16 %v5423, %v5421
        %v5586 = vpack.c.b16 %v5426, %v5424
        %v5587 = vpack.c.b16 %v5427, %v5425
        %v5588 = vpack.c.b16 %v5430, %v5428
        %v5589 = vpack.c.b16 %v5431, %v5429
        %v5590 = vpack.c.b16 %v5434, %v5432
        %v5591 = vpack.c.b16 %v5435, %v5433
        %v5592 = vpack.c.b16 %v5438, %v5436
        %v5593 = vpack.c.b16 %v5439, %v5437
        %v5594 = vpack.c.b16 %v5442, %v5440
        %v5595 = vpack.c.b16 %v5443, %v5441
        %v5596 = vpack.c.b16 %v5446, %v5444
        %v5597 = vpack.c.b16 %v5447, %v5445
        %v5598 = vpack.c.b16 %v5450, %v5448
        %v5599 = vpack.c.b16 %v5451, %v5449
        %v5600 = vpack.c.b16 %v5454, %v5452
        %v5601 = vpack.c.b16 %v5455, %v5453
        %v5602 = vpack.c.b16 %v5458, %v5456
        %v5603 = vpack.c.b16 %v5459, %v5457
        %5748 = vmatprep.subr.bf16.mxu0 %v5475
        %5749 = vmatpush1.bf16.msra.mxu0 %v5474
        %5750 = vmatprep.subr.bf16.mxu0 %v5473
        %5751 = vmatpush1.bf16.msra.mxu0 %v5472
        %5752 = vmatprep.subr.bf16.mxu0 %v5471
        %5753 = vmatpush1.bf16.msra.mxu0 %v5470
        %5754 = vmatprep.subr.bf16.mxu0 %v5469
        %5755 = vmatpush1.bf16.msra.mxu0 %v5468
        %5756 = vmatprep.subr.bf16.mxu0 %v5467
        %5757 = vmatpush1.bf16.msra.mxu0 %v5466
        %5758 = vmatprep.subr.bf16.mxu0 %v5465
        %5759 = vmatpush1.bf16.msra.mxu0 %v5464
        %5760 = vmatprep.subr.bf16.mxu0 %v5463
        %5761 = vmatpush1.bf16.msra.mxu0 %v5462
        %5762 = vmatprep.subr.bf16.mxu0 %v5461
        %5763 = vmatpush1.bf16.msra.mxu0 %v5460
        %5764 = vmatprep.subr.bf16.mxu0 %v5491
        %5765 = vmatpush2.bf16.msra.mxu0 %v5490
        %5766 = vmatprep.subr.bf16.mxu0 %v5489
        %5767 = vmatpush2.bf16.msra.mxu0 %v5488
        %5768 = vmatprep.subr.bf16.mxu0 %v5487
        %5769 = vmatpush2.bf16.msra.mxu0 %v5486
        %5770 = vmatprep.subr.bf16.mxu0 %v5485
        %5771 = vmatpush2.bf16.msra.mxu0 %v5484
        %5772 = vmatprep.subr.bf16.mxu0 %v5483
        %5773 = vmatpush2.bf16.msra.mxu0 %v5482
        %5774 = vmatprep.subr.bf16.mxu0 %v5481
        %5775 = vmatpush2.bf16.msra.mxu0 %v5480
        %5776 = vmatprep.subr.bf16.mxu0 %v5479
        %5777 = vmatpush2.bf16.msra.mxu0 %v5478
        %5778 = vmatprep.subr.bf16.mxu0 %v5477
        %5779 = vmatpush2.bf16.msra.mxu0 %v5476
        %5780 = vmatprep.mubr.bf16.mxu0 %v4864
        %5781 = vmatmul.mubr.bf16.gmra.mxu0 %v4863
        %v5782 = vpop.f32.mrf.mxu0
        %v5783 = vadd.f32 %v5021, %v5782
        %v5784 = vpop.f32.mrf.mxu0
        %v5785 = vadd.f32 %v5025, %v5784
        %v5786 = vpop.f32.mrf.mxu0
        %v5787 = vadd.f32 %v5021, %v5786
        %v5788 = vpop.f32.mrf.mxu0
        %v5789 = vadd.f32 %v5025, %v5788
        %5790 = vdwg.mxu0
        %5791 = vmatprep.subr.bf16.mxu0 %v5507
        %5792 = vmatpush1.bf16.msra.mxu0 %v5506
        %5793 = vmatprep.subr.bf16.mxu0 %v5505
        %5794 = vmatpush1.bf16.msra.mxu0 %v5504
        %5795 = vmatprep.subr.bf16.mxu0 %v5503
        %5796 = vmatpush1.bf16.msra.mxu0 %v5502
        %5797 = vmatprep.subr.bf16.mxu0 %v5501
        %5798 = vmatpush1.bf16.msra.mxu0 %v5500
        %5799 = vmatprep.subr.bf16.mxu0 %v5499
        %5800 = vmatpush1.bf16.msra.mxu0 %v5498
        %5801 = vmatprep.subr.bf16.mxu0 %v5497
        %5802 = vmatpush1.bf16.msra.mxu0 %v5496
        %5803 = vmatprep.subr.bf16.mxu0 %v5495
        %5804 = vmatpush1.bf16.msra.mxu0 %v5494
        %5805 = vmatprep.subr.bf16.mxu0 %v5493
        %5806 = vmatpush1.bf16.msra.mxu0 %v5492
        %5807 = vmatprep.subr.bf16.mxu0 %v5523
        %5808 = vmatpush2.bf16.msra.mxu0 %v5522
        %5809 = vmatprep.subr.bf16.mxu0 %v5521
        %5810 = vmatpush2.bf16.msra.mxu0 %v5520
        %5811 = vmatprep.subr.bf16.mxu0 %v5519
        %5812 = vmatpush2.bf16.msra.mxu0 %v5518
        %5813 = vmatprep.subr.bf16.mxu0 %v5517
        %5814 = vmatpush2.bf16.msra.mxu0 %v5516
        %5815 = vmatprep.subr.bf16.mxu0 %v5515
        %5816 = vmatpush2.bf16.msra.mxu0 %v5514
        %5817 = vmatprep.subr.bf16.mxu0 %v5513
        %5818 = vmatpush2.bf16.msra.mxu0 %v5512
        %5819 = vmatprep.subr.bf16.mxu0 %v5511
        %5820 = vmatpush2.bf16.msra.mxu0 %v5510
        %5821 = vmatprep.subr.bf16.mxu0 %v5509
        %5822 = vmatpush2.bf16.msra.mxu0 %v5508
        %5823 = vmatprep.mubr.bf16.mxu0 %v4866
        %5824 = vmatmul.mubr.bf16.gmra.mxu0 %v4865
        %v5825 = vpop.f32.mrf.mxu0
        %v5826 = vadd.f32 %v5783, %v5825
        %v5827 = vpop.f32.mrf.mxu0
        %v5828 = vadd.f32 %v5785, %v5827
        %v5829 = vpop.f32.mrf.mxu0
        %v5830 = vadd.f32 %v5787, %v5829
        %v5831 = vpop.f32.mrf.mxu0
        %v5832 = vadd.f32 %v5789, %v5831
        %5833 = vdwg.mxu0
        %5834 = vmatprep.subr.bf16.mxu0 %v5539
        %5835 = vmatpush1.bf16.msra.mxu0 %v5538
        %5836 = vmatprep.subr.bf16.mxu0 %v5537
        %5837 = vmatpush1.bf16.msra.mxu0 %v5536
        %5838 = vmatprep.subr.bf16.mxu0 %v5535
        %5839 = vmatpush1.bf16.msra.mxu0 %v5534
        %5840 = vmatprep.subr.bf16.mxu0 %v5533
        %5841 = vmatpush1.bf16.msra.mxu0 %v5532
        %5842 = vmatprep.subr.bf16.mxu0 %v5531
        %5843 = vmatpush1.bf16.msra.mxu0 %v5530
        %5844 = vmatprep.subr.bf16.mxu0 %v5529
        %5845 = vmatpush1.bf16.msra.mxu0 %v5528
        %5846 = vmatprep.subr.bf16.mxu0 %v5527
        %5847 = vmatpush1.bf16.msra.mxu0 %v5526
        %5848 = vmatprep.subr.bf16.mxu0 %v5525
        %5849 = vmatpush1.bf16.msra.mxu0 %v5524
        %5850 = vmatprep.subr.bf16.mxu0 %v5555
        %5851 = vmatpush2.bf16.msra.mxu0 %v5554
        %5852 = vmatprep.subr.bf16.mxu0 %v5553
        %5853 = vmatpush2.bf16.msra.mxu0 %v5552
        %5854 = vmatprep.subr.bf16.mxu0 %v5551
        %5855 = vmatpush2.bf16.msra.mxu0 %v5550
        %5856 = vmatprep.subr.bf16.mxu0 %v5549
        %5857 = vmatpush2.bf16.msra.mxu0 %v5548
        %5858 = vmatprep.subr.bf16.mxu0 %v5547
        %5859 = vmatpush2.bf16.msra.mxu0 %v5546
        %5860 = vmatprep.subr.bf16.mxu0 %v5545
        %5861 = vmatpush2.bf16.msra.mxu0 %v5544
        %5862 = vmatprep.subr.bf16.mxu0 %v5543
        %5863 = vmatpush2.bf16.msra.mxu0 %v5542
        %5864 = vmatprep.subr.bf16.mxu0 %v5541
        %5865 = vmatpush2.bf16.msra.mxu0 %v5540
        %5866 = vmatprep.mubr.bf16.mxu0 %v4868
        %5867 = vmatmul.mubr.bf16.gmra.mxu0 %v4867
        %v5868 = vpop.f32.mrf.mxu0
        %v5869 = vadd.f32 %v5826, %v5868
        %v5870 = vpop.f32.mrf.mxu0
        %v5871 = vadd.f32 %v5828, %v5870
        %v5872 = vpop.f32.mrf.mxu0
        %v5873 = vadd.f32 %v5830, %v5872
        %v5874 = vpop.f32.mrf.mxu0
        %v5875 = vadd.f32 %v5832, %v5874
        %5876 = vdwg.mxu0
        %5877 = vmatprep.subr.bf16.mxu0 %v5571
        %5878 = vmatpush1.bf16.msra.mxu0 %v5570
        %5879 = vmatprep.subr.bf16.mxu0 %v5569
        %5880 = vmatpush1.bf16.msra.mxu0 %v5568
        %5881 = vmatprep.subr.bf16.mxu0 %v5567
        %5882 = vmatpush1.bf16.msra.mxu0 %v5566
        %5883 = vmatprep.subr.bf16.mxu0 %v5565
        %5884 = vmatpush1.bf16.msra.mxu0 %v5564
        %5885 = vmatprep.subr.bf16.mxu0 %v5563
        %5886 = vmatpush1.bf16.msra.mxu0 %v5562
        %5887 = vmatprep.subr.bf16.mxu0 %v5561
        %5888 = vmatpush1.bf16.msra.mxu0 %v5560
        %5889 = vmatprep.subr.bf16.mxu0 %v5559
        %5890 = vmatpush1.bf16.msra.mxu0 %v5558
        %5891 = vmatprep.subr.bf16.mxu0 %v5557
        %5892 = vmatpush1.bf16.msra.mxu0 %v5556
        %5893 = vmatprep.subr.bf16.mxu0 %v5587
        %5894 = vmatpush2.bf16.msra.mxu0 %v5586
        %5895 = vmatprep.subr.bf16.mxu0 %v5585
        %5896 = vmatpush2.bf16.msra.mxu0 %v5584
        %5897 = vmatprep.subr.bf16.mxu0 %v5583
        %5898 = vmatpush2.bf16.msra.mxu0 %v5582
        %5899 = vmatprep.subr.bf16.mxu0 %v5581
        %5900 = vmatpush2.bf16.msra.mxu0 %v5580
        %5901 = vmatprep.subr.bf16.mxu0 %v5579
        %5902 = vmatpush2.bf16.msra.mxu0 %v5578
        %5903 = vmatprep.subr.bf16.mxu0 %v5577
        %5904 = vmatpush2.bf16.msra.mxu0 %v5576
        %5905 = vmatprep.subr.bf16.mxu0 %v5575
        %5906 = vmatpush2.bf16.msra.mxu0 %v5574
        %5907 = vmatprep.subr.bf16.mxu0 %v5573
        %5908 = vmatpush2.bf16.msra.mxu0 %v5572
        %5909 = vmatprep.mubr.bf16.mxu0 %v4870
        %5910 = vmatmul.mubr.bf16.gmra.mxu0 %v4869
        %v5911 = vpop.f32.mrf.mxu0
        %v5912 = vadd.f32 %v5869, %v5911
        %v5913 = vpop.f32.mrf.mxu0
        %v5914 = vadd.f32 %v5871, %v5913
        %v5915 = vpop.f32.mrf.mxu0
        %v5916 = vadd.f32 %v5873, %v5915
        %v5917 = vpop.f32.mrf.mxu0
        %v5918 = vadd.f32 %v5875, %v5917
        %5919 = vdwg.mxu0
        %5920 = vmatprep.subr.bf16.mxu0 %v5603
        %5921 = vmatpush1.bf16.msra.mxu0 %v5602
        %5922 = vmatprep.subr.bf16.mxu0 %v5601
        %5923 = vmatpush1.bf16.msra.mxu0 %v5600
        %5924 = vmatprep.subr.bf16.mxu0 %v5599
        %5925 = vmatpush1.bf16.msra.mxu0 %v5598
        %5926 = vmatprep.subr.bf16.mxu0 %v5597
        %5927 = vmatpush1.bf16.msra.mxu0 %v5596
        %5928 = vmatprep.subr.bf16.mxu0 %v5595
        %5929 = vmatpush1.bf16.msra.mxu0 %v5594
        %5930 = vmatprep.subr.bf16.mxu0 %v5593
        %5931 = vmatpush1.bf16.msra.mxu0 %v5592
        %5932 = vmatprep.subr.bf16.mxu0 %v5591
        %5933 = vmatpush1.bf16.msra.mxu0 %v5590
        %5934 = vmatprep.subr.bf16.mxu0 %v5589
        %5935 = vmatpush1.bf16.msra.mxu0 %v5588
        %5936 = vmatprep.subr.bf16.mxu0 0
        %5937 = vmatpush2.bf16.msra.mxu0 0
        %5938 = vmatprep.subr.bf16.mxu0 0
        %5939 = vmatpush2.bf16.msra.mxu0 0
        %5940 = vmatprep.subr.bf16.mxu0 0
        %5941 = vmatpush2.bf16.msra.mxu0 0
        %5942 = vmatprep.subr.bf16.mxu0 0
        %5943 = vmatpush2.bf16.msra.mxu0 0
        %5944 = vmatprep.subr.bf16.mxu0 0
        %5945 = vmatpush2.bf16.msra.mxu0 0
        %5946 = vmatprep.subr.bf16.mxu0 0
        %5947 = vmatpush2.bf16.msra.mxu0 0
        %5948 = vmatprep.subr.bf16.mxu0 0
        %5949 = vmatpush2.bf16.msra.mxu0 0
        %5950 = vmatprep.subr.bf16.mxu0 0
        %5951 = vmatpush2.bf16.msra.mxu0 0
        %5952 = vmatprep.mubr.bf16.mxu0 0
        %5953 = vmatmul.mubr.bf16.gmra.mxu0 %v4871
        %v5954 = vpop.f32.mrf.mxu0
        %v5955 = vadd.f32 %v5912, %v5954
        %v5956 = vpop.f32.mrf.mxu0
        %v5957 = vadd.f32 %v5914, %v5956
        %v5958 = vpop.f32.mrf.mxu0
        %v5959 = vadd.f32 %v5916, %v5958
        %v5960 = vpop.f32.mrf.mxu0
        %v5961 = vadd.f32 %v5918, %v5960
        %5962 = vdwg.mxu0
        %v5963 = vmax.f32 %v5955, 0.0
        %v5964 = vmax.f32 %v5957, 0.0
        %v5965 = vmax.f32 %v5959, 0.0
        %v5966 = vmax.f32 %v5961, 0.0
        %v5971 = vcombine.low %v5963, %v5964
        %v5972 = vcombine.high %v5963, %v5964
        %v5973 = vcombine.low %v5965, %v5966
        %v5974 = vcombine.high %v5965, %v5966
        %v5979 = vmax.f32 %v5971, %v5972
        %v5980 = vmax.f32 %v5973, %v5974
        %v5984 = vunpack.c.l.s4 1983009808
        %v5985 = vunpack.c.0.s8 %v5984
        %v5986 = vlaneseq
        %v5987 = vshrl.u32 %v5986, 7
        %v5988 = vsub.s32 %v5985, %v5987
        %v5989 = vrot.slane %v5979, %v5988
        %v5990 = vcombine.high %v5989, %v5989
        %v5992 = vunpack.c.l.s4 1983009808
        %v5993 = vunpack.c.0.s8 %v5992
        %v5994 = vlaneseq
        %v5995 = vshrl.u32 %v5994, 7
        %v5996 = vsub.s32 %v5993, %v5995
        %v5997 = vrot.slane %v5980, %v5996
        %v5998 = vcombine.high %v5997, %v5997
        %v6003 = vrot.slane %v5989, 7
        %v6004 = vrot.slane %v6003, 2
        %v6005 = vrot.slane %v5990, 7
        %v6006 = vrot.slane %v6005, 2
        %v6007 = vrot.slane %v5997, 7
        %v6008 = vrot.slane %v6007, 2
        %v6009 = vrot.slane %v5998, 7
        %v6010 = vrot.slane %v6009, 2
        %v6015 = vmax.f32 %v5989, %v6004
        %v6016 = vmax.f32 %v5990, %v6006
        %v6017 = vmax.f32 %v5997, %v6008
        %v6018 = vmax.f32 %v5998, %v6010
        %6019 = vst [vmem:[#allocation5] sm:$0xff] 0.0
        %s6020 = scalar_lea.vmem [#allocation5], 24
        %6021 = vst [vmem:[%s6020] sm:$0xff] 0.0
        %v6022 = vlaneseq
        %vm6023 = vcmp.ge.s32.totalorder %v6022, 0
        %vm6024 = vcmp.lt.s32.totalorder %v6022, 256
        %vm6025 = vmand %vm6023, %vm6024
        %6026 = vst.msk [vmem:[#allocation5] ss:$4 sm:$0x3] %vm6025, 0.0
        %s6027 = scalar_lea.vmem [#allocation5], 8
        %6028 = vst.msk [vmem:[%s6027] ss:$4 sm:$0x3] %vm6025, 0.0
        %s6029 = scalar_lea.vmem [#allocation5], 16
        %6030 = vst.msk [vmem:[%s6029] ss:$4 sm:$0x3] %vm6025, 0.0
        %s6031 = scalar_lea.vmem [#allocation5], 24
        %6032 = vst.msk [vmem:[%s6031] ss:$4 sm:$0x3] %vm6025, 0.0
        %s6033 = scalar_lea.vmem [#allocation5], 3
        %6034 = vst.msk [vmem:[%s6033] ss:$4 sm:$0x3] %vm6025, 0.0
        %s6035 = scalar_lea.vmem [#allocation5], 11
        %6036 = vst.msk [vmem:[%s6035] ss:$4 sm:$0x3] %vm6025, 0.0
        %s6037 = scalar_lea.vmem [#allocation5], 19
        %6038 = vst.msk [vmem:[%s6037] ss:$4 sm:$0x3] %vm6025, 0.0
        %s6039 = scalar_lea.vmem [#allocation5], 27
        %6040 = vst.msk [vmem:[%s6039] ss:$4 sm:$0x3] %vm6025, 0.0
        %v6046 = vunpack.c.l.s4 572653568
        %v6047 = vunpack.c.0.s8 %v6046
        %v6048 = vlaneseq
        %v6049 = vshrl.u32 %v6048, 7
        %v6050 = vsub.s32 %v6047, %v6049
        %v6051 = vrot.slane %v6015, %v6050
        %v6053 = vunpack.c.l.s4 572653568
        %v6054 = vunpack.c.0.s8 %v6053
        %v6055 = vlaneseq
        %v6056 = vshrl.u32 %v6055, 7
        %v6057 = vsub.s32 %v6054, %v6056
        %v6058 = vrot.slane %v6016, %v6057
        %v6060 = vunpack.c.l.s4 572653568
        %v6061 = vunpack.c.0.s8 %v6060
        %v6062 = vlaneseq
        %v6063 = vshrl.u32 %v6062, 7
        %v6064 = vsub.s32 %v6061, %v6063
        %v6065 = vrot.slane %v6017, %v6064
        %v6067 = vunpack.c.l.s4 572653568
        %v6068 = vunpack.c.0.s8 %v6067
        %v6069 = vlaneseq
        %v6070 = vshrl.u32 %v6069, 7
        %v6071 = vsub.s32 %v6068, %v6070
        %v6072 = vrot.slane %v6018, %v6071
        %v6073 = vsel %vm3625, %v6058, %v6051
        %v6074 = vsel %vm3633, %v6058, %v6073
        %v6075 = vsel %vm3625, %v6072, %v6065
        %v6076 = vsel %vm3633, %v6072, %v6075
        %s6079 = scalar_lea.vmem [#allocation5], 8
        %6080 = vst [vmem:[%s6079] sm:$0x66] %v6074
        %6081 = vst [vmem:[%s6079 + $0x8] sm:$0x66] %v6076
        %v6082 = vld [vmem:[#allocation5] sm:$0x33]
        %v6083 = vld [vmem:[#allocation5 + $0x8] sm:$0x33]
        %v6084 = vld [vmem:[%s6079] sm:$0x33]
        %v6085 = vld [vmem:[%s6079 + $0x8] sm:$0x33]
        %s6086 = scalar_lea.vmem [#allocation5], 16
        %v6087 = vld [vmem:[%s6086] sm:$0x33]
        %v6088 = vld [vmem:[%s6086 + $0x8] sm:$0x33]
        %v6089 = vld [vmem:[#allocation5] sm:$0x66]
        %v6090 = vld [vmem:[#allocation5 + $0x8] sm:$0x66]
        %v6091 = vld [vmem:[%s6079] sm:$0x66]
        %v6092 = vld [vmem:[%s6079 + $0x8] sm:$0x66]
        %v6093 = vld [vmem:[%s6086] sm:$0x66]
        %v6094 = vld [vmem:[%s6086 + $0x8] sm:$0x66]
        %v6095 = vld [vmem:[#allocation5] sm:$0xcc]
        %v6096 = vld [vmem:[#allocation5 + $0x8] sm:$0xcc]
        %v6097 = vld [vmem:[%s6079] sm:$0xcc]
        %v6098 = vld [vmem:[%s6079 + $0x8] sm:$0xcc]
        %v6099 = vld [vmem:[%s6086] sm:$0xcc]
        %v6100 = vld [vmem:[%s6086 + $0x8] sm:$0xcc]
        %v6103 = vcombine.high %v6082, %v6082
        %v6104 = vcombine.high %v6083, %v6083
        %v6107 = vcombine.high %v6084, %v6084
        %v6108 = vcombine.high %v6085, %v6085
        %v6111 = vcombine.high %v6087, %v6087
        %v6112 = vcombine.high %v6088, %v6088
        %v6115 = vcombine.high %v6089, %v6089
        %v6116 = vcombine.high %v6090, %v6090
        %v6117 = vrot.slane %v6089, 1
        %v6118 = vrot.slane %v6115, 1
        %v6119 = vrot.slane %v6090, 1
        %v6120 = vrot.slane %v6116, 1
        %v6123 = vcombine.high %v6091, %v6091
        %v6124 = vcombine.high %v6092, %v6092
        %v6125 = vrot.slane %v6091, 1
        %v6126 = vrot.slane %v6123, 1
        %v6127 = vrot.slane %v6092, 1
        %v6128 = vrot.slane %v6124, 1
        %v6131 = vcombine.high %v6093, %v6093
        %v6132 = vcombine.high %v6094, %v6094
        %v6133 = vrot.slane %v6093, 1
        %v6134 = vrot.slane %v6131, 1
        %v6135 = vrot.slane %v6094, 1
        %v6136 = vrot.slane %v6132, 1
        %v6139 = vcombine.high %v6095, %v6095
        %v6140 = vcombine.high %v6096, %v6096
        %v6141 = vrot.slane %v6095, 2
        %v6142 = vrot.slane %v6139, 2
        %v6143 = vrot.slane %v6096, 2
        %v6144 = vrot.slane %v6140, 2
        %v6147 = vcombine.high %v6097, %v6097
        %v6148 = vcombine.high %v6098, %v6098
        %v6149 = vrot.slane %v6097, 2
        %v6150 = vrot.slane %v6147, 2
        %v6151 = vrot.slane %v6098, 2
        %v6152 = vrot.slane %v6148, 2
        %v6155 = vcombine.high %v6099, %v6099
        %v6156 = vcombine.high %v6100, %v6100
        %v6157 = vrot.slane %v6099, 2
        %v6158 = vrot.slane %v6155, 2
        %v6159 = vrot.slane %v6100, 2
        %v6160 = vrot.slane %v6156, 2
        %v6161 = vcombine.low %v6082, %v6103
        %v6162 = vcombine.low %v6084, %v6107
        %v6164 = vunpack.c.l.s4 1983009808
        %v6165 = vunpack.c.0.s8 %v6164
        %v6166 = vlaneseq
        %v6167 = vshrl.u32 %v6166, 7
        %v6168 = vsub.s32 %v6165, %v6167
        %v6169 = vrot.slane %v6161, %v6168
        %v6171 = vunpack.c.l.s4 1983009808
        %v6172 = vunpack.c.0.s8 %v6171
        %v6173 = vlaneseq
        %v6174 = vshrl.u32 %v6173, 7
        %v6175 = vsub.s32 %v6172, %v6174
        %v6176 = vrot.slane %v6162, %v6175
        %v6177 = vcombine.low %v6169, %v6176
        %v6178 = vcombine.low %v6087, %v6111
        %v6179 = vcombine.low %v6117, %v6118
        %v6181 = vunpack.c.l.s4 1983009808
        %v6182 = vunpack.c.0.s8 %v6181
        %v6183 = vlaneseq
        %v6184 = vshrl.u32 %v6183, 7
        %v6185 = vsub.s32 %v6182, %v6184
        %v6186 = vrot.slane %v6178, %v6185
        %v6188 = vunpack.c.l.s4 1983009808
        %v6189 = vunpack.c.0.s8 %v6188
        %v6190 = vlaneseq
        %v6191 = vshrl.u32 %v6190, 7
        %v6192 = vsub.s32 %v6189, %v6191
        %v6193 = vrot.slane %v6179, %v6192
        %v6194 = vcombine.low %v6186, %v6193
        %v6195 = vcombine.low %v6125, %v6126
        %v6196 = vcombine.low %v6133, %v6134
        %v6198 = vunpack.c.l.s4 1983009808
        %v6199 = vunpack.c.0.s8 %v6198
        %v6200 = vlaneseq
        %v6201 = vshrl.u32 %v6200, 7
        %v6202 = vsub.s32 %v6199, %v6201
        %v6203 = vrot.slane %v6195, %v6202
        %v6205 = vunpack.c.l.s4 1983009808
        %v6206 = vunpack.c.0.s8 %v6205
        %v6207 = vlaneseq
        %v6208 = vshrl.u32 %v6207, 7
        %v6209 = vsub.s32 %v6206, %v6208
        %v6210 = vrot.slane %v6196, %v6209
        %v6211 = vcombine.low %v6203, %v6210
        %v6212 = vcombine.low %v6141, %v6142
        %v6213 = vcombine.low %v6149, %v6150
        %v6215 = vunpack.c.l.s4 1983009808
        %v6216 = vunpack.c.0.s8 %v6215
        %v6217 = vlaneseq
        %v6218 = vshrl.u32 %v6217, 7
        %v6219 = vsub.s32 %v6216, %v6218
        %v6220 = vrot.slane %v6212, %v6219
        %v6222 = vunpack.c.l.s4 1983009808
        %v6223 = vunpack.c.0.s8 %v6222
        %v6224 = vlaneseq
        %v6225 = vshrl.u32 %v6224, 7
        %v6226 = vsub.s32 %v6223, %v6225
        %v6227 = vrot.slane %v6213, %v6226
        %v6228 = vcombine.low %v6220, %v6227
        %v6229 = vcombine.low %v6157, %v6158
        %v6231 = vunpack.c.l.s4 1983009808
        %v6232 = vunpack.c.0.s8 %v6231
        %v6233 = vlaneseq
        %v6234 = vshrl.u32 %v6233, 7
        %v6235 = vsub.s32 %v6232, %v6234
        %v6236 = vrot.slane %v6229, %v6235
        %v6237 = vcombine.low %v6083, %v6104
        %v6238 = vcombine.low %v6085, %v6108
        %v6240 = vunpack.c.l.s4 1983009808
        %v6241 = vunpack.c.0.s8 %v6240
        %v6242 = vlaneseq
        %v6243 = vshrl.u32 %v6242, 7
        %v6244 = vsub.s32 %v6241, %v6243
        %v6245 = vrot.slane %v6237, %v6244
        %v6247 = vunpack.c.l.s4 1983009808
        %v6248 = vunpack.c.0.s8 %v6247
        %v6249 = vlaneseq
        %v6250 = vshrl.u32 %v6249, 7
        %v6251 = vsub.s32 %v6248, %v6250
        %v6252 = vrot.slane %v6238, %v6251
        %v6253 = vcombine.low %v6245, %v6252
        %v6254 = vcombine.low %v6088, %v6112
        %v6255 = vcombine.low %v6119, %v6120
        %v6257 = vunpack.c.l.s4 1983009808
        %v6258 = vunpack.c.0.s8 %v6257
        %v6259 = vlaneseq
        %v6260 = vshrl.u32 %v6259, 7
        %v6261 = vsub.s32 %v6258, %v6260
        %v6262 = vrot.slane %v6254, %v6261
        %v6264 = vunpack.c.l.s4 1983009808
        %v6265 = vunpack.c.0.s8 %v6264
        %v6266 = vlaneseq
        %v6267 = vshrl.u32 %v6266, 7
        %v6268 = vsub.s32 %v6265, %v6267
        %v6269 = vrot.slane %v6255, %v6268
        %v6270 = vcombine.low %v6262, %v6269
        %v6271 = vcombine.low %v6127, %v6128
        %v6272 = vcombine.low %v6135, %v6136
        %v6274 = vunpack.c.l.s4 1983009808
        %v6275 = vunpack.c.0.s8 %v6274
        %v6276 = vlaneseq
        %v6277 = vshrl.u32 %v6276, 7
        %v6278 = vsub.s32 %v6275, %v6277
        %v6279 = vrot.slane %v6271, %v6278
        %v6281 = vunpack.c.l.s4 1983009808
        %v6282 = vunpack.c.0.s8 %v6281
        %v6283 = vlaneseq
        %v6284 = vshrl.u32 %v6283, 7
        %v6285 = vsub.s32 %v6282, %v6284
        %v6286 = vrot.slane %v6272, %v6285
        %v6287 = vcombine.low %v6279, %v6286
        %v6288 = vcombine.low %v6143, %v6144
        %v6289 = vcombine.low %v6151, %v6152
        %v6291 = vunpack.c.l.s4 1983009808
        %v6292 = vunpack.c.0.s8 %v6291
        %v6293 = vlaneseq
        %v6294 = vshrl.u32 %v6293, 7
        %v6295 = vsub.s32 %v6292, %v6294
        %v6296 = vrot.slane %v6288, %v6295
        %v6298 = vunpack.c.l.s4 1983009808
        %v6299 = vunpack.c.0.s8 %v6298
        %v6300 = vlaneseq
        %v6301 = vshrl.u32 %v6300, 7
        %v6302 = vsub.s32 %v6299, %v6301
        %v6303 = vrot.slane %v6289, %v6302
        %v6304 = vcombine.low %v6296, %v6303
        %v6305 = vcombine.low %v6159, %v6160
        %v6307 = vunpack.c.l.s4 1983009808
        %v6308 = vunpack.c.0.s8 %v6307
        %v6309 = vlaneseq
        %v6310 = vshrl.u32 %v6309, 7
        %v6311 = vsub.s32 %v6308, %v6310
        %v6312 = vrot.slane %v6305, %v6311
        %v6313 = vcombine.low %v6177, %v6253
        %v6314 = vcombine.high %v6177, %v6253
        %v6316 = vunpack.c.l.s4 1983009808
        %v6317 = vunpack.c.0.s8 %v6316
        %v6318 = vlaneseq
        %v6319 = vshrl.u32 %v6318, 7
        %v6320 = vsub.s32 %v6317, %v6319
        %v6321 = vrot.slane %v6313, %v6320
        %v6323 = vunpack.c.l.s4 1983009808
        %v6324 = vunpack.c.0.s8 %v6323
        %v6325 = vlaneseq
        %v6326 = vshrl.u32 %v6325, 7
        %v6327 = vsub.s32 %v6324, %v6326
        %v6328 = vrot.slane %v6314, %v6327
        %v6329 = vcombine.high %v6321, %v6321
        %v6330 = vcombine.high %v6328, %v6328
        %v6331 = vcombine.low %v6194, %v6270
        %v6332 = vcombine.high %v6194, %v6270
        %v6334 = vunpack.c.l.s4 1983009808
        %v6335 = vunpack.c.0.s8 %v6334
        %v6336 = vlaneseq
        %v6337 = vshrl.u32 %v6336, 7
        %v6338 = vsub.s32 %v6335, %v6337
        %v6339 = vrot.slane %v6331, %v6338
        %v6341 = vunpack.c.l.s4 1983009808
        %v6342 = vunpack.c.0.s8 %v6341
        %v6343 = vlaneseq
        %v6344 = vshrl.u32 %v6343, 7
        %v6345 = vsub.s32 %v6342, %v6344
        %v6346 = vrot.slane %v6332, %v6345
        %v6347 = vcombine.high %v6339, %v6339
        %v6348 = vcombine.high %v6346, %v6346
        %v6349 = vcombine.low %v6211, %v6287
        %v6350 = vcombine.high %v6211, %v6287
        %v6352 = vunpack.c.l.s4 1983009808
        %v6353 = vunpack.c.0.s8 %v6352
        %v6354 = vlaneseq
        %v6355 = vshrl.u32 %v6354, 7
        %v6356 = vsub.s32 %v6353, %v6355
        %v6357 = vrot.slane %v6349, %v6356
        %v6359 = vunpack.c.l.s4 1983009808
        %v6360 = vunpack.c.0.s8 %v6359
        %v6361 = vlaneseq
        %v6362 = vshrl.u32 %v6361, 7
        %v6363 = vsub.s32 %v6360, %v6362
        %v6364 = vrot.slane %v6350, %v6363
        %v6365 = vcombine.high %v6357, %v6357
        %v6366 = vcombine.high %v6364, %v6364
        %v6367 = vcombine.low %v6228, %v6304
        %v6368 = vcombine.high %v6228, %v6304
        %v6370 = vunpack.c.l.s4 1983009808
        %v6371 = vunpack.c.0.s8 %v6370
        %v6372 = vlaneseq
        %v6373 = vshrl.u32 %v6372, 7
        %v6374 = vsub.s32 %v6371, %v6373
        %v6375 = vrot.slane %v6367, %v6374
        %v6377 = vunpack.c.l.s4 1983009808
        %v6378 = vunpack.c.0.s8 %v6377
        %v6379 = vlaneseq
        %v6380 = vshrl.u32 %v6379, 7
        %v6381 = vsub.s32 %v6378, %v6380
        %v6382 = vrot.slane %v6368, %v6381
        %v6383 = vcombine.high %v6375, %v6375
        %v6384 = vcombine.high %v6382, %v6382
        %v6385 = vcombine.low %v6236, %v6312
        %v6387 = vunpack.c.l.s4 1983009808
        %v6388 = vunpack.c.0.s8 %v6387
        %v6389 = vlaneseq
        %v6390 = vshrl.u32 %v6389, 7
        %v6391 = vsub.s32 %v6388, %v6390
        %v6392 = vrot.slane %v6385, %v6391
        %v6393 = vcombine.high %v6392, %v6392
        %v6412 = vpack.c.bf16 %v6321, %v6321
        %v6413 = vpack.c.bf16 %v6329, %v6329
        %v6414 = vpack.c.bf16 %v6328, %v6328
        %v6415 = vpack.c.bf16 %v6330, %v6330
        %v6416 = vpack.c.bf16 %v6339, %v6339
        %v6417 = vpack.c.bf16 %v6347, %v6347
        %v6418 = vpack.c.bf16 %v6346, %v6346
        %v6419 = vpack.c.bf16 %v6348, %v6348
        %v6420 = vpack.c.bf16 %v6357, %v6357
        %v6421 = vpack.c.bf16 %v6365, %v6365
        %v6422 = vpack.c.bf16 %v6364, %v6364
        %v6423 = vpack.c.bf16 %v6366, %v6366
        %v6424 = vpack.c.bf16 %v6375, %v6375
        %v6425 = vpack.c.bf16 %v6383, %v6383
        %v6426 = vpack.c.bf16 %v6382, %v6382
        %v6427 = vpack.c.bf16 %v6384, %v6384
        %v6428 = vpack.c.bf16 %v6392, %v6392
        %v6429 = vpack.c.bf16 %v6393, %v6393
        %v6430 = vld [vmem:[#allocation16] sm:$0xff]
        %v6431 = vld [vmem:[#allocation16 + $0x8] sm:$0xff]
        %v6432 = vld [vmem:[#allocation16 + $0x10] sm:$0xff]
        %v6433 = vld [vmem:[#allocation16 + $0x18] sm:$0xff]
        %v6434 = vld [vmem:[#allocation16 + $0x20] sm:$0xff]
        %v6435 = vld [vmem:[#allocation16 + $0x28] sm:$0xff]
        %v6436 = vld [vmem:[#allocation16 + $0x30] sm:$0xff]
        %v6437 = vld [vmem:[#allocation16 + $0x38] sm:$0xff]
        %v6438 = vld [vmem:[#allocation16 + $0x40] sm:$0xff]
        %v6439 = vld [vmem:[#allocation16 + $0x48] sm:$0xff]
        %v6440 = vld [vmem:[#allocation16 + $0x50] sm:$0xff]
        %v6441 = vld [vmem:[#allocation16 + $0x58] sm:$0xff]
        %v6442 = vld [vmem:[#allocation16 + $0x60] sm:$0xff]
        %v6443 = vld [vmem:[#allocation16 + $0x68] sm:$0xff]
        %v6444 = vld [vmem:[#allocation16 + $0x70] sm:$0xff]
        %v6445 = vld [vmem:[#allocation16 + $0x78] sm:$0xff]
        %v6446 = vld [vmem:[#allocation16 + $0x80] sm:$0xff]
        %v6447 = vld [vmem:[#allocation16 + $0x88] sm:$0xff]
        %v6448 = vld [vmem:[#allocation16 + $0x90] sm:$0xff]
        %v6449 = vld [vmem:[#allocation16 + $0x98] sm:$0xff]
        %v6450 = vld [vmem:[#allocation16 + $0xa0] sm:$0xff]
        %v6451 = vld [vmem:[#allocation16 + $0xa8] sm:$0xff]
        %v6452 = vld [vmem:[#allocation16 + $0xb0] sm:$0xff]
        %v6453 = vld [vmem:[#allocation16 + $0xb8] sm:$0xff]
        %v6454 = vld [vmem:[#allocation16 + $0xc0] sm:$0xff]
        %v6455 = vld [vmem:[#allocation16 + $0xc8] sm:$0xff]
        %v6456 = vld [vmem:[#allocation16 + $0xd0] sm:$0xff]
        %v6457 = vld [vmem:[#allocation16 + $0xd8] sm:$0xff]
        %v6458 = vld [vmem:[#allocation16 + $0xe0] sm:$0xff]
        %v6459 = vld [vmem:[#allocation16 + $0xe8] sm:$0xff]
        %v6460 = vld [vmem:[#allocation16 + $0xf0] sm:$0xff]
        %v6461 = vld [vmem:[#allocation16 + $0xf8] sm:$0xff]
        %v6462 = vld [vmem:[#allocation16 + $0x100] sm:$0xff]
        %v6463 = vld [vmem:[#allocation16 + $0x108] sm:$0xff]
        %v6464 = vld [vmem:[#allocation16 + $0x110] sm:$0xff]
        %v6465 = vld [vmem:[#allocation16 + $0x118] sm:$0xff]
        %v6466 = vld [vmem:[#allocation16 + $0x120] sm:$0xff]
        %v6467 = vld [vmem:[#allocation16 + $0x128] sm:$0xff]
        %v6468 = vld [vmem:[#allocation16 + $0x130] sm:$0xff]
        %v6469 = vld [vmem:[#allocation16 + $0x138] sm:$0xff]
        %v6470 = vld [vmem:[#allocation16 + $0x140] sm:$0xff]
        %v6471 = vld [vmem:[#allocation16 + $0x148] sm:$0xff]
        %v6472 = vld [vmem:[#allocation16 + $0x150] sm:$0xff]
        %v6473 = vld [vmem:[#allocation16 + $0x158] sm:$0xff]
        %v6474 = vld [vmem:[#allocation16 + $0x160] sm:$0xff]
        %v6475 = vld [vmem:[#allocation16 + $0x168] sm:$0xff]
        %v6476 = vld [vmem:[#allocation16 + $0x170] sm:$0xff]
        %v6477 = vld [vmem:[#allocation16 + $0x178] sm:$0xff]
        %v6478 = vld [vmem:[#allocation16 + $0x180] sm:$0xff]
        %v6479 = vld [vmem:[#allocation16 + $0x188] sm:$0xff]
        %v6480 = vld [vmem:[#allocation16 + $0x190] sm:$0xff]
        %v6481 = vld [vmem:[#allocation16 + $0x198] sm:$0xff]
        %v6482 = vld [vmem:[#allocation16 + $0x1a0] sm:$0xff]
        %v6483 = vld [vmem:[#allocation16 + $0x1a8] sm:$0xff]
        %v6484 = vld [vmem:[#allocation16 + $0x1b0] sm:$0xff]
        %v6485 = vld [vmem:[#allocation16 + $0x1b8] sm:$0xff]
        %v6486 = vld [vmem:[#allocation16 + $0x1c0] sm:$0xff]
        %v6487 = vld [vmem:[#allocation16 + $0x1c8] sm:$0xff]
        %v6488 = vld [vmem:[#allocation16 + $0x1d0] sm:$0xff]
        %v6489 = vld [vmem:[#allocation16 + $0x1d8] sm:$0xff]
        %v6490 = vld [vmem:[#allocation16 + $0x1e0] sm:$0xff]
        %v6491 = vld [vmem:[#allocation16 + $0x1e8] sm:$0xff]
        %v6492 = vld [vmem:[#allocation16 + $0x1f0] sm:$0xff]
        %v6493 = vld [vmem:[#allocation16 + $0x1f8] sm:$0xff]
        %v6494 = vld [vmem:[#allocation16 + $0x200] sm:$0xff]
        %v6495 = vld [vmem:[#allocation16 + $0x208] sm:$0xff]
        %v6496 = vld [vmem:[#allocation16 + $0x210] sm:$0xff]
        %v6497 = vld [vmem:[#allocation16 + $0x218] sm:$0xff]
        %v6498 = vld [vmem:[#allocation16 + $0x220] sm:$0xff]
        %v6499 = vld [vmem:[#allocation16 + $0x228] sm:$0xff]
        %v6500 = vld [vmem:[#allocation16 + $0x230] sm:$0xff]
        %v6501 = vld [vmem:[#allocation16 + $0x238] sm:$0xff]
        %v6502 = vld [vmem:[#allocation16 + $0x240] sm:$0xff]
        %v6503 = vld [vmem:[#allocation16 + $0x248] sm:$0xff]
        %v6504 = vld [vmem:[#allocation16 + $0x250] sm:$0xff]
        %v6505 = vld [vmem:[#allocation16 + $0x258] sm:$0xff]
        %v6506 = vld [vmem:[#allocation16 + $0x260] sm:$0xff]
        %v6507 = vld [vmem:[#allocation16 + $0x268] sm:$0xff]
        %v6508 = vld [vmem:[#allocation16 + $0x270] sm:$0xff]
        %v6509 = vld [vmem:[#allocation16 + $0x278] sm:$0xff]
        %v6510 = vld [vmem:[#allocation16 + $0x280] sm:$0xff]
        %v6511 = vld [vmem:[#allocation16 + $0x288] sm:$0xff]
        %v6512 = vld [vmem:[#allocation16 + $0x290] sm:$0xff]
        %v6513 = vld [vmem:[#allocation16 + $0x298] sm:$0xff]
        %v6514 = vld [vmem:[#allocation16 + $0x2a0] sm:$0xff]
        %v6515 = vld [vmem:[#allocation16 + $0x2a8] sm:$0xff]
        %v6516 = vld [vmem:[#allocation16 + $0x2b0] sm:$0xff]
        %v6517 = vld [vmem:[#allocation16 + $0x2b8] sm:$0xff]
        %v6518 = vld [vmem:[#allocation16 + $0x2c0] sm:$0xff]
        %v6519 = vld [vmem:[#allocation16 + $0x2c8] sm:$0xff]
        %v6520 = vld [vmem:[#allocation16 + $0x2d0] sm:$0xff]
        %v6521 = vld [vmem:[#allocation16 + $0x2d8] sm:$0xff]
        %v6522 = vld [vmem:[#allocation16 + $0x2e0] sm:$0xff]
        %v6523 = vld [vmem:[#allocation16 + $0x2e8] sm:$0xff]
        %v6524 = vld [vmem:[#allocation16 + $0x2f0] sm:$0xff]
        %v6525 = vld [vmem:[#allocation16 + $0x2f8] sm:$0xff]
        %v6526 = vld [vmem:[#allocation16 + $0x300] sm:$0xff]
        %v6527 = vld [vmem:[#allocation16 + $0x308] sm:$0xff]
        %v6528 = vld [vmem:[#allocation16 + $0x310] sm:$0xff]
        %v6529 = vld [vmem:[#allocation16 + $0x318] sm:$0xff]
        %v6530 = vld [vmem:[#allocation16 + $0x320] sm:$0xff]
        %v6531 = vld [vmem:[#allocation16 + $0x328] sm:$0xff]
        %v6532 = vld [vmem:[#allocation16 + $0x330] sm:$0xff]
        %v6533 = vld [vmem:[#allocation16 + $0x338] sm:$0xff]
        %v6534 = vld [vmem:[#allocation16 + $0x340] sm:$0xff]
        %v6535 = vld [vmem:[#allocation16 + $0x348] sm:$0xff]
        %v6536 = vld [vmem:[#allocation16 + $0x350] sm:$0xff]
        %v6537 = vld [vmem:[#allocation16 + $0x358] sm:$0xff]
        %v6538 = vld [vmem:[#allocation16 + $0x360] sm:$0xff]
        %v6539 = vld [vmem:[#allocation16 + $0x368] sm:$0xff]
        %v6540 = vld [vmem:[#allocation16 + $0x370] sm:$0xff]
        %v6541 = vld [vmem:[#allocation16 + $0x378] sm:$0xff]
        %v6542 = vld [vmem:[#allocation16 + $0x380] sm:$0xff]
        %v6543 = vld [vmem:[#allocation16 + $0x388] sm:$0xff]
        %v6544 = vld [vmem:[#allocation16 + $0x390] sm:$0xff]
        %v6545 = vld [vmem:[#allocation16 + $0x398] sm:$0xff]
        %v6546 = vld [vmem:[#allocation16 + $0x3a0] sm:$0xff]
        %v6547 = vld [vmem:[#allocation16 + $0x3a8] sm:$0xff]
        %v6548 = vld [vmem:[#allocation16 + $0x3b0] sm:$0xff]
        %v6549 = vld [vmem:[#allocation16 + $0x3b8] sm:$0xff]
        %v6550 = vld [vmem:[#allocation16 + $0x3c0] sm:$0xff]
        %v6551 = vld [vmem:[#allocation16 + $0x3c8] sm:$0xff]
        %v6552 = vld [vmem:[#allocation16 + $0x3d0] sm:$0xff]
        %v6553 = vld [vmem:[#allocation16 + $0x3d8] sm:$0xff]
        %v6554 = vld [vmem:[#allocation16 + $0x3e0] sm:$0xff]
        %v6555 = vld [vmem:[#allocation16 + $0x3e8] sm:$0xff]
        %v6556 = vld [vmem:[#allocation16 + $0x3f0] sm:$0xff]
        %v6557 = vld [vmem:[#allocation16 + $0x3f8] sm:$0xff]
        %v6558 = vld [vmem:[#allocation16 + $0x400] sm:$0xff]
        %v6559 = vld [vmem:[#allocation16 + $0x408] sm:$0xff]
        %v6560 = vld [vmem:[#allocation16 + $0x410] sm:$0xff]
        %v6561 = vld [vmem:[#allocation16 + $0x418] sm:$0xff]
        %v6562 = vld [vmem:[#allocation16 + $0x420] sm:$0xff]
        %v6563 = vld [vmem:[#allocation16 + $0x428] sm:$0xff]
        %v6564 = vld [vmem:[#allocation16 + $0x430] sm:$0xff]
        %v6565 = vld [vmem:[#allocation16 + $0x438] sm:$0xff]
        %v6566 = vld [vmem:[#allocation16 + $0x440] sm:$0xff]
        %v6567 = vld [vmem:[#allocation16 + $0x448] sm:$0xff]
        %v6568 = vld [vmem:[#allocation16 + $0x450] sm:$0xff]
        %v6569 = vld [vmem:[#allocation16 + $0x458] sm:$0xff]
        %v6570 = vld [vmem:[#allocation16 + $0x460] sm:$0xff]
        %v6571 = vld [vmem:[#allocation16 + $0x468] sm:$0xff]
        %v6572 = vld [vmem:[#allocation16 + $0x470] sm:$0xff]
        %v6573 = vld [vmem:[#allocation16 + $0x478] sm:$0xff]
        %v6574 = vld [vmem:[#allocation16 + $0x480] sm:$0xff]
        %v6575 = vld [vmem:[#allocation16 + $0x488] sm:$0xff]
        %v6576 = vld [vmem:[#allocation16 + $0x490] sm:$0xff]
        %v6577 = vld [vmem:[#allocation16 + $0x498] sm:$0xff]
        %v6578 = vld [vmem:[#allocation16 + $0x4a0] sm:$0xff]
        %v6579 = vld [vmem:[#allocation16 + $0x4a8] sm:$0xff]
        %v6580 = vld [vmem:[#allocation16 + $0x4b0] sm:$0xff]
        %v6581 = vld [vmem:[#allocation16 + $0x4b8] sm:$0xff]
        %v6582 = vld [vmem:[#allocation16 + $0x4c0] sm:$0xff]
        %v6583 = vld [vmem:[#allocation16 + $0x4c8] sm:$0xff]
        %v6584 = vld [vmem:[#allocation16 + $0x4d0] sm:$0xff]
        %v6585 = vld [vmem:[#allocation16 + $0x4d8] sm:$0xff]
        %v6586 = vld [vmem:[#allocation16 + $0x4e0] sm:$0xff]
        %v6587 = vld [vmem:[#allocation16 + $0x4e8] sm:$0xff]
        %v6588 = vld [vmem:[#allocation16 + $0x4f0] sm:$0xff]
        %v6589 = vld [vmem:[#allocation16 + $0x4f8] sm:$0xff]
        %v6590 = vld [vmem:[#allocation16 + $0x500] sm:$0xff]
        %v6591 = vld [vmem:[#allocation16 + $0x508] sm:$0xff]
        %v6592 = vld [vmem:[#allocation16 + $0x510] sm:$0xff]
        %v6593 = vld [vmem:[#allocation16 + $0x518] sm:$0xff]
        %v6594 = vld [vmem:[#allocation16 + $0x520] sm:$0xff]
        %v6595 = vld [vmem:[#allocation16 + $0x528] sm:$0xff]
        %v6596 = vld [vmem:[#allocation16 + $0x530] sm:$0xff]
        %v6597 = vld [vmem:[#allocation16 + $0x538] sm:$0xff]
        %v6598 = vld [vmem:[#allocation16 + $0x540] sm:$0xff]
        %v6599 = vld [vmem:[#allocation16 + $0x548] sm:$0xff]
        %v6600 = vld [vmem:[#allocation16 + $0x550] sm:$0xff]
        %v6601 = vld [vmem:[#allocation16 + $0x558] sm:$0xff]
        %v6602 = vld [vmem:[#allocation16 + $0x560] sm:$0xff]
        %v6603 = vld [vmem:[#allocation16 + $0x568] sm:$0xff]
        %v6604 = vld [vmem:[#allocation16 + $0x570] sm:$0xff]
        %v6605 = vld [vmem:[#allocation16 + $0x578] sm:$0xff]
        %v6606 = vld [vmem:[#allocation16 + $0x580] sm:$0xff]
        %v6607 = vld [vmem:[#allocation16 + $0x588] sm:$0xff]
        %v6608 = vld [vmem:[#allocation16 + $0x590] sm:$0xff]
        %v6609 = vld [vmem:[#allocation16 + $0x598] sm:$0xff]
        %v6610 = vld [vmem:[#allocation16 + $0x5a0] sm:$0xff]
        %v6611 = vld [vmem:[#allocation16 + $0x5a8] sm:$0xff]
        %v6612 = vld [vmem:[#allocation16 + $0x5b0] sm:$0xff]
        %v6613 = vld [vmem:[#allocation16 + $0x5b8] sm:$0xff]
        %v6614 = vld [vmem:[#allocation16 + $0x5c0] sm:$0xff]
        %v6615 = vld [vmem:[#allocation16 + $0x5c8] sm:$0xff]
        %v6616 = vld [vmem:[#allocation16 + $0x5d0] sm:$0xff]
        %v6617 = vld [vmem:[#allocation16 + $0x5d8] sm:$0xff]
        %v6618 = vld [vmem:[#allocation16 + $0x5e0] sm:$0xff]
        %v6619 = vld [vmem:[#allocation16 + $0x5e8] sm:$0xff]
        %v6620 = vld [vmem:[#allocation16 + $0x5f0] sm:$0xff]
        %v6621 = vld [vmem:[#allocation16 + $0x5f8] sm:$0xff]
        %v6622 = vld [vmem:[#allocation16 + $0x600] sm:$0xff]
        %v6623 = vld [vmem:[#allocation16 + $0x608] sm:$0xff]
        %v6624 = vld [vmem:[#allocation16 + $0x610] sm:$0xff]
        %v6625 = vld [vmem:[#allocation16 + $0x618] sm:$0xff]
        %v6626 = vld [vmem:[#allocation16 + $0x620] sm:$0xff]
        %v6627 = vld [vmem:[#allocation16 + $0x628] sm:$0xff]
        %v6628 = vld [vmem:[#allocation16 + $0x630] sm:$0xff]
        %v6629 = vld [vmem:[#allocation16 + $0x638] sm:$0xff]
        %v6630 = vld [vmem:[#allocation16 + $0x640] sm:$0xff]
        %v6631 = vld [vmem:[#allocation16 + $0x648] sm:$0xff]
        %v6632 = vld [vmem:[#allocation16 + $0x650] sm:$0xff]
        %v6633 = vld [vmem:[#allocation16 + $0x658] sm:$0xff]
        %v6634 = vld [vmem:[#allocation16 + $0x660] sm:$0xff]
        %v6635 = vld [vmem:[#allocation16 + $0x668] sm:$0xff]
        %v6636 = vld [vmem:[#allocation16 + $0x670] sm:$0xff]
        %v6637 = vld [vmem:[#allocation16 + $0x678] sm:$0xff]
        %v6638 = vld [vmem:[#allocation16 + $0x680] sm:$0xff]
        %v6639 = vld [vmem:[#allocation16 + $0x688] sm:$0xff]
        %v6640 = vld [vmem:[#allocation16 + $0x690] sm:$0xff]
        %v6641 = vld [vmem:[#allocation16 + $0x698] sm:$0xff]
        %v6642 = vld [vmem:[#allocation16 + $0x6a0] sm:$0xff]
        %v6643 = vld [vmem:[#allocation16 + $0x6a8] sm:$0xff]
        %v6644 = vld [vmem:[#allocation16 + $0x6b0] sm:$0xff]
        %v6645 = vld [vmem:[#allocation16 + $0x6b8] sm:$0xff]
        %v6646 = vld [vmem:[#allocation16 + $0x6c0] sm:$0xff]
        %v6647 = vld [vmem:[#allocation16 + $0x6c8] sm:$0xff]
        %v6648 = vld [vmem:[#allocation16 + $0x6d0] sm:$0xff]
        %v6649 = vld [vmem:[#allocation16 + $0x6d8] sm:$0xff]
        %v6650 = vld [vmem:[#allocation16 + $0x6e0] sm:$0xff]
        %v6651 = vld [vmem:[#allocation16 + $0x6e8] sm:$0xff]
        %v6652 = vld [vmem:[#allocation16 + $0x6f0] sm:$0xff]
        %v6653 = vld [vmem:[#allocation16 + $0x6f8] sm:$0xff]
        %v6654 = vld [vmem:[#allocation16 + $0x700] sm:$0xff]
        %v6655 = vld [vmem:[#allocation16 + $0x708] sm:$0xff]
        %v6656 = vld [vmem:[#allocation16 + $0x710] sm:$0xff]
        %v6657 = vld [vmem:[#allocation16 + $0x718] sm:$0xff]
        %v6658 = vld [vmem:[#allocation16 + $0x720] sm:$0xff]
        %v6659 = vld [vmem:[#allocation16 + $0x728] sm:$0xff]
        %v6660 = vld [vmem:[#allocation16 + $0x730] sm:$0xff]
        %v6661 = vld [vmem:[#allocation16 + $0x738] sm:$0xff]
        %v6662 = vld [vmem:[#allocation16 + $0x740] sm:$0xff]
        %v6663 = vld [vmem:[#allocation16 + $0x748] sm:$0xff]
        %v6664 = vld [vmem:[#allocation16 + $0x750] sm:$0xff]
        %v6665 = vld [vmem:[#allocation16 + $0x758] sm:$0xff]
        %v6666 = vld [vmem:[#allocation16 + $0x760] sm:$0xff]
        %v6667 = vld [vmem:[#allocation16 + $0x768] sm:$0xff]
        %v6668 = vld [vmem:[#allocation16 + $0x770] sm:$0xff]
        %v6669 = vld [vmem:[#allocation16 + $0x778] sm:$0xff]
        %v6670 = vld [vmem:[#allocation16 + $0x780] sm:$0xff]
        %v6671 = vld [vmem:[#allocation16 + $0x788] sm:$0xff]
        %v6672 = vld [vmem:[#allocation16 + $0x790] sm:$0xff]
        %v6673 = vld [vmem:[#allocation16 + $0x798] sm:$0xff]
        %v6674 = vld [vmem:[#allocation16 + $0x7a0] sm:$0xff]
        %v6675 = vld [vmem:[#allocation16 + $0x7a8] sm:$0xff]
        %v6676 = vld [vmem:[#allocation16 + $0x7b0] sm:$0xff]
        %v6677 = vld [vmem:[#allocation16 + $0x7b8] sm:$0xff]
        %v6678 = vld [vmem:[#allocation16 + $0x7c0] sm:$0xff]
        %v6679 = vld [vmem:[#allocation16 + $0x7c8] sm:$0xff]
        %v6680 = vld [vmem:[#allocation16 + $0x7d0] sm:$0xff]
        %v6681 = vld [vmem:[#allocation16 + $0x7d8] sm:$0xff]
        %v6682 = vld [vmem:[#allocation16 + $0x7e0] sm:$0xff]
        %v6683 = vld [vmem:[#allocation16 + $0x7e8] sm:$0xff]
        %v6684 = vld [vmem:[#allocation16 + $0x7f0] sm:$0xff]
        %v6685 = vld [vmem:[#allocation16 + $0x7f8] sm:$0xff]
        %v6686 = vld [vmem:[#allocation16 + $0x800] sm:$0xff]
        %v6687 = vld [vmem:[#allocation16 + $0x808] sm:$0xff]
        %v6688 = vld [vmem:[#allocation16 + $0x810] sm:$0xff]
        %v6689 = vld [vmem:[#allocation16 + $0x818] sm:$0xff]
        %v6690 = vld [vmem:[#allocation16 + $0x820] sm:$0xff]
        %v6691 = vld [vmem:[#allocation16 + $0x828] sm:$0xff]
        %v6692 = vld [vmem:[#allocation16 + $0x830] sm:$0xff]
        %v6693 = vld [vmem:[#allocation16 + $0x838] sm:$0xff]
        %v6694 = vld [vmem:[#allocation16 + $0x840] sm:$0xff]
        %v6695 = vld [vmem:[#allocation16 + $0x848] sm:$0xff]
        %v6696 = vld [vmem:[#allocation16 + $0x850] sm:$0xff]
        %v6697 = vld [vmem:[#allocation16 + $0x858] sm:$0xff]
        %v6698 = vld [vmem:[#allocation16 + $0x860] sm:$0xff]
        %v6699 = vld [vmem:[#allocation16 + $0x868] sm:$0xff]
        %v6700 = vld [vmem:[#allocation16 + $0x870] sm:$0xff]
        %v6701 = vld [vmem:[#allocation16 + $0x878] sm:$0xff]
        %v6702 = vld [vmem:[#allocation16 + $0x880] sm:$0xff]
        %v6703 = vld [vmem:[#allocation16 + $0x888] sm:$0xff]
        %v6704 = vld [vmem:[#allocation16 + $0x890] sm:$0xff]
        %v6705 = vld [vmem:[#allocation16 + $0x898] sm:$0xff]
        %v6706 = vld [vmem:[#allocation16 + $0x8a0] sm:$0xff]
        %v6707 = vld [vmem:[#allocation16 + $0x8a8] sm:$0xff]
        %v6708 = vld [vmem:[#allocation16 + $0x8b0] sm:$0xff]
        %v6709 = vld [vmem:[#allocation16 + $0x8b8] sm:$0xff]
        %v6710 = vld [vmem:[#allocation16 + $0x8c0] sm:$0xff]
        %v6711 = vld [vmem:[#allocation16 + $0x8c8] sm:$0xff]
        %v6712 = vld [vmem:[#allocation16 + $0x8d0] sm:$0xff]
        %v6713 = vld [vmem:[#allocation16 + $0x8d8] sm:$0xff]
        %v6714 = vld [vmem:[#allocation16 + $0x8e0] sm:$0xff]
        %v6715 = vld [vmem:[#allocation16 + $0x8e8] sm:$0xff]
        %v6716 = vld [vmem:[#allocation16 + $0x8f0] sm:$0xff]
        %v6717 = vld [vmem:[#allocation16 + $0x8f8] sm:$0xff]
        %v6718 = vld [vmem:[#allocation16 + $0x900] sm:$0xff]
        %v6719 = vld [vmem:[#allocation16 + $0x908] sm:$0xff]
        %v6720 = vld [vmem:[#allocation16 + $0x910] sm:$0xff]
        %v6721 = vld [vmem:[#allocation16 + $0x918] sm:$0xff]
        %v6722 = vld [vmem:[#allocation16 + $0x920] sm:$0xff]
        %v6723 = vld [vmem:[#allocation16 + $0x928] sm:$0xff]
        %v6724 = vld [vmem:[#allocation16 + $0x930] sm:$0xff]
        %v6725 = vld [vmem:[#allocation16 + $0x938] sm:$0xff]
        %v6726 = vld [vmem:[#allocation16 + $0x940] sm:$0xff]
        %v6727 = vld [vmem:[#allocation16 + $0x948] sm:$0xff]
        %v6728 = vld [vmem:[#allocation16 + $0x950] sm:$0xff]
        %v6729 = vld [vmem:[#allocation16 + $0x958] sm:$0xff]
        %v6730 = vld [vmem:[#allocation16 + $0x960] sm:$0xff]
        %v6731 = vld [vmem:[#allocation16 + $0x968] sm:$0xff]
        %v6732 = vld [vmem:[#allocation16 + $0x970] sm:$0xff]
        %v6733 = vld [vmem:[#allocation16 + $0x978] sm:$0xff]
        %v6734 = vld [vmem:[#allocation16 + $0x980] sm:$0xff]
        %v6735 = vld [vmem:[#allocation16 + $0x988] sm:$0xff]
        %v6736 = vld [vmem:[#allocation16 + $0x990] sm:$0xff]
        %v6737 = vld [vmem:[#allocation16 + $0x998] sm:$0xff]
        %v6738 = vld [vmem:[#allocation16 + $0x9a0] sm:$0xff]
        %v6739 = vld [vmem:[#allocation16 + $0x9a8] sm:$0xff]
        %v6740 = vld [vmem:[#allocation16 + $0x9b0] sm:$0xff]
        %v6741 = vld [vmem:[#allocation16 + $0x9b8] sm:$0xff]
        %v6742 = vld [vmem:[#allocation16 + $0x9c0] sm:$0xff]
        %v6743 = vld [vmem:[#allocation16 + $0x9c8] sm:$0xff]
        %v6744 = vld [vmem:[#allocation16 + $0x9d0] sm:$0xff]
        %v6745 = vld [vmem:[#allocation16 + $0x9d8] sm:$0xff]
        %v6746 = vld [vmem:[#allocation16 + $0x9e0] sm:$0xff]
        %v6747 = vld [vmem:[#allocation16 + $0x9e8] sm:$0xff]
        %v6748 = vld [vmem:[#allocation16 + $0x9f0] sm:$0xff]
        %v6749 = vld [vmem:[#allocation16 + $0x9f8] sm:$0xff]
        %v6750 = vld [vmem:[#allocation16 + $0xa00] sm:$0xff]
        %v6751 = vld [vmem:[#allocation16 + $0xa08] sm:$0xff]
        %v6752 = vld [vmem:[#allocation16 + $0xa10] sm:$0xff]
        %v6753 = vld [vmem:[#allocation16 + $0xa18] sm:$0xff]
        %v6754 = vld [vmem:[#allocation16 + $0xa20] sm:$0xff]
        %v6755 = vld [vmem:[#allocation16 + $0xa28] sm:$0xff]
        %v6756 = vld [vmem:[#allocation16 + $0xa30] sm:$0xff]
        %v6757 = vld [vmem:[#allocation16 + $0xa38] sm:$0xff]
        %v6758 = vld [vmem:[#allocation16 + $0xa40] sm:$0xff]
        %v6759 = vld [vmem:[#allocation16 + $0xa48] sm:$0xff]
        %v6760 = vld [vmem:[#allocation16 + $0xa50] sm:$0xff]
        %v6761 = vld [vmem:[#allocation16 + $0xa58] sm:$0xff]
        %v6762 = vld [vmem:[#allocation16 + $0xa60] sm:$0xff]
        %v6763 = vld [vmem:[#allocation16 + $0xa68] sm:$0xff]
        %v6764 = vld [vmem:[#allocation16 + $0xa70] sm:$0xff]
        %v6765 = vld [vmem:[#allocation16 + $0xa78] sm:$0xff]
        %v6766 = vld [vmem:[#allocation16 + $0xa80] sm:$0xff]
        %v6767 = vld [vmem:[#allocation16 + $0xa88] sm:$0xff]
        %v6768 = vld [vmem:[#allocation16 + $0xa90] sm:$0xff]
        %v6769 = vld [vmem:[#allocation16 + $0xa98] sm:$0xff]
        %v6770 = vld [vmem:[#allocation16 + $0xaa0] sm:$0xff]
        %v6771 = vld [vmem:[#allocation16 + $0xaa8] sm:$0xff]
        %v6772 = vld [vmem:[#allocation16 + $0xab0] sm:$0xff]
        %v6773 = vld [vmem:[#allocation16 + $0xab8] sm:$0xff]
        %v6774 = vld [vmem:[#allocation16 + $0xac0] sm:$0xff]
        %v6775 = vld [vmem:[#allocation16 + $0xac8] sm:$0xff]
        %v6776 = vld [vmem:[#allocation16 + $0xad0] sm:$0xff]
        %v6777 = vld [vmem:[#allocation16 + $0xad8] sm:$0xff]
        %v6778 = vld [vmem:[#allocation16 + $0xae0] sm:$0xff]
        %v6779 = vld [vmem:[#allocation16 + $0xae8] sm:$0xff]
        %v6780 = vld [vmem:[#allocation16 + $0xaf0] sm:$0xff]
        %v6781 = vld [vmem:[#allocation16 + $0xaf8] sm:$0xff]
        %v6782 = vld [vmem:[#allocation16 + $0xb00] sm:$0xff]
        %v6783 = vld [vmem:[#allocation16 + $0xb08] sm:$0xff]
        %v6784 = vld [vmem:[#allocation16 + $0xb10] sm:$0xff]
        %v6785 = vld [vmem:[#allocation16 + $0xb18] sm:$0xff]
        %v6786 = vld [vmem:[#allocation16 + $0xb20] sm:$0xff]
        %v6787 = vld [vmem:[#allocation16 + $0xb28] sm:$0xff]
        %v6788 = vld [vmem:[#allocation16 + $0xb30] sm:$0xff]
        %v6789 = vld [vmem:[#allocation16 + $0xb38] sm:$0xff]
        %v6790 = vld [vmem:[#allocation16 + $0xb40] sm:$0xff]
        %v6791 = vld [vmem:[#allocation16 + $0xb48] sm:$0xff]
        %v6792 = vld [vmem:[#allocation16 + $0xb50] sm:$0xff]
        %v6793 = vld [vmem:[#allocation16 + $0xb58] sm:$0xff]
        %v6794 = vld [vmem:[#allocation16 + $0xb60] sm:$0xff]
        %v6795 = vld [vmem:[#allocation16 + $0xb68] sm:$0xff]
        %v6796 = vld [vmem:[#allocation16 + $0xb70] sm:$0xff]
        %v6797 = vld [vmem:[#allocation16 + $0xb78] sm:$0xff]
        %v6798 = vld [vmem:[#allocation16 + $0xb80] sm:$0xff]
        %v6799 = vld [vmem:[#allocation16 + $0xb88] sm:$0xff]
        %v6800 = vld [vmem:[#allocation16 + $0xb90] sm:$0xff]
        %v6801 = vld [vmem:[#allocation16 + $0xb98] sm:$0xff]
        %v6802 = vld [vmem:[#allocation16 + $0xba0] sm:$0xff]
        %v6803 = vld [vmem:[#allocation16 + $0xba8] sm:$0xff]
        %v6804 = vld [vmem:[#allocation16 + $0xbb0] sm:$0xff]
        %v6805 = vld [vmem:[#allocation16 + $0xbb8] sm:$0xff]
        %v6806 = vld [vmem:[#allocation16 + $0xbc0] sm:$0xff]
        %v6807 = vld [vmem:[#allocation16 + $0xbc8] sm:$0xff]
        %v6808 = vld [vmem:[#allocation16 + $0xbd0] sm:$0xff]
        %v6809 = vld [vmem:[#allocation16 + $0xbd8] sm:$0xff]
        %v6810 = vld [vmem:[#allocation16 + $0xbe0] sm:$0xff]
        %v6811 = vld [vmem:[#allocation16 + $0xbe8] sm:$0xff]
        %v6812 = vld [vmem:[#allocation16 + $0xbf0] sm:$0xff]
        %v6813 = vld [vmem:[#allocation16 + $0xbf8] sm:$0xff]
        %v6814 = vld [vmem:[#allocation16 + $0xc00] sm:$0xff]
        %v6815 = vld [vmem:[#allocation16 + $0xc08] sm:$0xff]
        %v6816 = vld [vmem:[#allocation16 + $0xc10] sm:$0xff]
        %v6817 = vld [vmem:[#allocation16 + $0xc18] sm:$0xff]
        %v6818 = vld [vmem:[#allocation16 + $0xc20] sm:$0xff]
        %v6819 = vld [vmem:[#allocation16 + $0xc28] sm:$0xff]
        %v6820 = vld [vmem:[#allocation16 + $0xc30] sm:$0xff]
        %v6821 = vld [vmem:[#allocation16 + $0xc38] sm:$0xff]
        %v6822 = vld [vmem:[#allocation16 + $0xc40] sm:$0xff]
        %v6823 = vld [vmem:[#allocation16 + $0xc48] sm:$0xff]
        %v6824 = vld [vmem:[#allocation16 + $0xc50] sm:$0xff]
        %v6825 = vld [vmem:[#allocation16 + $0xc58] sm:$0xff]
        %v6826 = vld [vmem:[#allocation16 + $0xc60] sm:$0xff]
        %v6827 = vld [vmem:[#allocation16 + $0xc68] sm:$0xff]
        %v6828 = vld [vmem:[#allocation16 + $0xc70] sm:$0xff]
        %v6829 = vld [vmem:[#allocation16 + $0xc78] sm:$0xff]
        %v6830 = vld [vmem:[#allocation16 + $0xc80] sm:$0xff]
        %v6831 = vld [vmem:[#allocation16 + $0xc88] sm:$0xff]
        %v6832 = vld [vmem:[#allocation16 + $0xc90] sm:$0xff]
        %v6833 = vld [vmem:[#allocation16 + $0xc98] sm:$0xff]
        %v6834 = vld [vmem:[#allocation16 + $0xca0] sm:$0xff]
        %v6835 = vld [vmem:[#allocation16 + $0xca8] sm:$0xff]
        %v6836 = vld [vmem:[#allocation16 + $0xcb0] sm:$0xff]
        %v6837 = vld [vmem:[#allocation16 + $0xcb8] sm:$0xff]
        %v6838 = vld [vmem:[#allocation16 + $0xcc0] sm:$0xff]
        %v6839 = vld [vmem:[#allocation16 + $0xcc8] sm:$0xff]
        %v6840 = vld [vmem:[#allocation16 + $0xcd0] sm:$0xff]
        %v6841 = vld [vmem:[#allocation16 + $0xcd8] sm:$0xff]
        %v6842 = vld [vmem:[#allocation16 + $0xce0] sm:$0xff]
        %v6843 = vld [vmem:[#allocation16 + $0xce8] sm:$0xff]
        %v6844 = vld [vmem:[#allocation16 + $0xcf0] sm:$0xff]
        %v6845 = vld [vmem:[#allocation16 + $0xcf8] sm:$0xff]
        %v6846 = vld [vmem:[#allocation16 + $0xd00] sm:$0xff]
        %v6847 = vld [vmem:[#allocation16 + $0xd08] sm:$0xff]
        %v6848 = vld [vmem:[#allocation16 + $0xd10] sm:$0xff]
        %v6849 = vld [vmem:[#allocation16 + $0xd18] sm:$0xff]
        %v6850 = vld [vmem:[#allocation16 + $0xd20] sm:$0xff]
        %v6851 = vld [vmem:[#allocation16 + $0xd28] sm:$0xff]
        %v6852 = vld [vmem:[#allocation16 + $0xd30] sm:$0xff]
        %v6853 = vld [vmem:[#allocation16 + $0xd38] sm:$0xff]
        %v6854 = vld [vmem:[#allocation16 + $0xd40] sm:$0xff]
        %v6855 = vld [vmem:[#allocation16 + $0xd48] sm:$0xff]
        %v6856 = vld [vmem:[#allocation16 + $0xd50] sm:$0xff]
        %v6857 = vld [vmem:[#allocation16 + $0xd58] sm:$0xff]
        %v6858 = vld [vmem:[#allocation16 + $0xd60] sm:$0xff]
        %v6859 = vld [vmem:[#allocation16 + $0xd68] sm:$0xff]
        %v6860 = vld [vmem:[#allocation16 + $0xd70] sm:$0xff]
        %v6861 = vld [vmem:[#allocation16 + $0xd78] sm:$0xff]
        %v6862 = vld [vmem:[#allocation16 + $0xd80] sm:$0xff]
        %v6863 = vld [vmem:[#allocation16 + $0xd88] sm:$0xff]
        %v6864 = vld [vmem:[#allocation16 + $0xd90] sm:$0xff]
        %v6865 = vld [vmem:[#allocation16 + $0xd98] sm:$0xff]
        %v6866 = vld [vmem:[#allocation16 + $0xda0] sm:$0xff]
        %v6867 = vld [vmem:[#allocation16 + $0xda8] sm:$0xff]
        %v6868 = vld [vmem:[#allocation16 + $0xdb0] sm:$0xff]
        %v6869 = vld [vmem:[#allocation16 + $0xdb8] sm:$0xff]
        %v6870 = vld [vmem:[#allocation16 + $0xdc0] sm:$0xff]
        %v6871 = vld [vmem:[#allocation16 + $0xdc8] sm:$0xff]
        %v6872 = vld [vmem:[#allocation16 + $0xdd0] sm:$0xff]
        %v6873 = vld [vmem:[#allocation16 + $0xdd8] sm:$0xff]
        %v6874 = vld [vmem:[#allocation16 + $0xde0] sm:$0xff]
        %v6875 = vld [vmem:[#allocation16 + $0xde8] sm:$0xff]
        %v6876 = vld [vmem:[#allocation16 + $0xdf0] sm:$0xff]
        %v6877 = vld [vmem:[#allocation16 + $0xdf8] sm:$0xff]
        %v6878 = vld [vmem:[#allocation16 + $0xe00] sm:$0xff]
        %v6879 = vld [vmem:[#allocation16 + $0xe08] sm:$0xff]
        %v6880 = vld [vmem:[#allocation16 + $0xe10] sm:$0xff]
        %v6881 = vld [vmem:[#allocation16 + $0xe18] sm:$0xff]
        %v6882 = vld [vmem:[#allocation16 + $0xe20] sm:$0xff]
        %v6883 = vld [vmem:[#allocation16 + $0xe28] sm:$0xff]
        %v6884 = vld [vmem:[#allocation16 + $0xe30] sm:$0xff]
        %v6885 = vld [vmem:[#allocation16 + $0xe38] sm:$0xff]
        %v6886 = vld [vmem:[#allocation16 + $0xe40] sm:$0xff]
        %v6887 = vld [vmem:[#allocation16 + $0xe48] sm:$0xff]
        %v6888 = vld [vmem:[#allocation16 + $0xe50] sm:$0xff]
        %v6889 = vld [vmem:[#allocation16 + $0xe58] sm:$0xff]
        %v6890 = vld [vmem:[#allocation16 + $0xe60] sm:$0xff]
        %v6891 = vld [vmem:[#allocation16 + $0xe68] sm:$0xff]
        %v6892 = vld [vmem:[#allocation16 + $0xe70] sm:$0xff]
        %v6893 = vld [vmem:[#allocation16 + $0xe78] sm:$0xff]
        %v6894 = vld [vmem:[#allocation16 + $0xe80] sm:$0xff]
        %v6895 = vld [vmem:[#allocation16 + $0xe88] sm:$0xff]
        %v6896 = vld [vmem:[#allocation16 + $0xe90] sm:$0xff]
        %v6897 = vld [vmem:[#allocation16 + $0xe98] sm:$0xff]
        %v6898 = vld [vmem:[#allocation16 + $0xea0] sm:$0xff]
        %v6899 = vld [vmem:[#allocation16 + $0xea8] sm:$0xff]
        %v6900 = vld [vmem:[#allocation16 + $0xeb0] sm:$0xff]
        %v6901 = vld [vmem:[#allocation16 + $0xeb8] sm:$0xff]
        %v6902 = vld [vmem:[#allocation16 + $0xec0] sm:$0xff]
        %v6903 = vld [vmem:[#allocation16 + $0xec8] sm:$0xff]
        %v6904 = vld [vmem:[#allocation16 + $0xed0] sm:$0xff]
        %v6905 = vld [vmem:[#allocation16 + $0xed8] sm:$0xff]
        %v6906 = vld [vmem:[#allocation16 + $0xee0] sm:$0xff]
        %v6907 = vld [vmem:[#allocation16 + $0xee8] sm:$0xff]
        %v6908 = vld [vmem:[#allocation16 + $0xef0] sm:$0xff]
        %v6909 = vld [vmem:[#allocation16 + $0xef8] sm:$0xff]
        %v6910 = vld [vmem:[#allocation16 + $0xf00] sm:$0xff]
        %v6911 = vld [vmem:[#allocation16 + $0xf08] sm:$0xff]
        %v6912 = vld [vmem:[#allocation16 + $0xf10] sm:$0xff]
        %v6913 = vld [vmem:[#allocation16 + $0xf18] sm:$0xff]
        %v6914 = vld [vmem:[#allocation16 + $0xf20] sm:$0xff]
        %v6915 = vld [vmem:[#allocation16 + $0xf28] sm:$0xff]
        %v6916 = vld [vmem:[#allocation16 + $0xf30] sm:$0xff]
        %v6917 = vld [vmem:[#allocation16 + $0xf38] sm:$0xff]
        %v6918 = vld [vmem:[#allocation16 + $0xf40] sm:$0xff]
        %v6919 = vld [vmem:[#allocation16 + $0xf48] sm:$0xff]
        %v6920 = vld [vmem:[#allocation16 + $0xf50] sm:$0xff]
        %v6921 = vld [vmem:[#allocation16 + $0xf58] sm:$0xff]
        %v6922 = vld [vmem:[#allocation16 + $0xf60] sm:$0xff]
        %v6923 = vld [vmem:[#allocation16 + $0xf68] sm:$0xff]
        %v6924 = vld [vmem:[#allocation16 + $0xf70] sm:$0xff]
        %v6925 = vld [vmem:[#allocation16 + $0xf78] sm:$0xff]
        %v6926 = vld [vmem:[#allocation16 + $0xf80] sm:$0xff]
        %v6927 = vld [vmem:[#allocation16 + $0xf88] sm:$0xff]
        %v6928 = vld [vmem:[#allocation16 + $0xf90] sm:$0xff]
        %v6929 = vld [vmem:[#allocation16 + $0xf98] sm:$0xff]
        %v6930 = vld [vmem:[#allocation16 + $0xfa0] sm:$0xff]
        %v6931 = vld [vmem:[#allocation16 + $0xfa8] sm:$0xff]
        %v6932 = vld [vmem:[#allocation16 + $0xfb0] sm:$0xff]
        %v6933 = vld [vmem:[#allocation16 + $0xfb8] sm:$0xff]
        %v6934 = vld [vmem:[#allocation16 + $0xfc0] sm:$0xff]
        %v6935 = vld [vmem:[#allocation16 + $0xfc8] sm:$0xff]
        %v6936 = vld [vmem:[#allocation16 + $0xfd0] sm:$0xff]
        %v6937 = vld [vmem:[#allocation16 + $0xfd8] sm:$0xff]
        %v6938 = vld [vmem:[#allocation16 + $0xfe0] sm:$0xff]
        %v6939 = vld [vmem:[#allocation16 + $0xfe8] sm:$0xff]
        %v6940 = vld [vmem:[#allocation16 + $0xff0] sm:$0xff]
        %v6941 = vld [vmem:[#allocation16 + $0xff8] sm:$0xff]
        %v6942 = vld [vmem:[#allocation16 + $0x1000] sm:$0xff]
        %v6943 = vld [vmem:[#allocation16 + $0x1008] sm:$0xff]
        %v6944 = vld [vmem:[#allocation16 + $0x1010] sm:$0xff]
        %v6945 = vld [vmem:[#allocation16 + $0x1018] sm:$0xff]
        %v6946 = vld [vmem:[#allocation16 + $0x1020] sm:$0xff]
        %v6947 = vld [vmem:[#allocation16 + $0x1028] sm:$0xff]
        %v6948 = vld [vmem:[#allocation16 + $0x1030] sm:$0xff]
        %v6949 = vld [vmem:[#allocation16 + $0x1038] sm:$0xff]
        %v6950 = vld [vmem:[#allocation16 + $0x1040] sm:$0xff]
        %v6951 = vld [vmem:[#allocation16 + $0x1048] sm:$0xff]
        %v6952 = vld [vmem:[#allocation16 + $0x1050] sm:$0xff]
        %v6953 = vld [vmem:[#allocation16 + $0x1058] sm:$0xff]
        %v6954 = vld [vmem:[#allocation16 + $0x1060] sm:$0xff]
        %v6955 = vld [vmem:[#allocation16 + $0x1068] sm:$0xff]
        %v6956 = vld [vmem:[#allocation16 + $0x1070] sm:$0xff]
        %v6957 = vld [vmem:[#allocation16 + $0x1078] sm:$0xff]
        %v6958 = vld [vmem:[#allocation16 + $0x1080] sm:$0xff]
        %v6959 = vld [vmem:[#allocation16 + $0x1088] sm:$0xff]
        %v6960 = vld [vmem:[#allocation16 + $0x1090] sm:$0xff]
        %v6961 = vld [vmem:[#allocation16 + $0x1098] sm:$0xff]
        %v6962 = vld [vmem:[#allocation16 + $0x10a0] sm:$0xff]
        %v6963 = vld [vmem:[#allocation16 + $0x10a8] sm:$0xff]
        %v6964 = vld [vmem:[#allocation16 + $0x10b0] sm:$0xff]
        %v6965 = vld [vmem:[#allocation16 + $0x10b8] sm:$0xff]
        %v6966 = vld [vmem:[#allocation16 + $0x10c0] sm:$0xff]
        %v6967 = vld [vmem:[#allocation16 + $0x10c8] sm:$0xff]
        %v6968 = vld [vmem:[#allocation16 + $0x10d0] sm:$0xff]
        %v6969 = vld [vmem:[#allocation16 + $0x10d8] sm:$0xff]
        %v6970 = vld [vmem:[#allocation16 + $0x10e0] sm:$0xff]
        %v6971 = vld [vmem:[#allocation16 + $0x10e8] sm:$0xff]
        %v6972 = vld [vmem:[#allocation16 + $0x10f0] sm:$0xff]
        %v6973 = vld [vmem:[#allocation16 + $0x10f8] sm:$0xff]
        %v6974 = vld [vmem:[#allocation16 + $0x1100] sm:$0xff]
        %v6975 = vld [vmem:[#allocation16 + $0x1108] sm:$0xff]
        %v6976 = vld [vmem:[#allocation16 + $0x1110] sm:$0xff]
        %v6977 = vld [vmem:[#allocation16 + $0x1118] sm:$0xff]
        %v6978 = vld [vmem:[#allocation16 + $0x1120] sm:$0xff]
        %v6979 = vld [vmem:[#allocation16 + $0x1128] sm:$0xff]
        %v6980 = vld [vmem:[#allocation16 + $0x1130] sm:$0xff]
        %v6981 = vld [vmem:[#allocation16 + $0x1138] sm:$0xff]
        %v6982 = vld [vmem:[#allocation16 + $0x1140] sm:$0xff]
        %v6983 = vld [vmem:[#allocation16 + $0x1148] sm:$0xff]
        %v6984 = vld [vmem:[#allocation16 + $0x1150] sm:$0xff]
        %v6985 = vld [vmem:[#allocation16 + $0x1158] sm:$0xff]
        %v6986 = vld [vmem:[#allocation16 + $0x1160] sm:$0xff]
        %v6987 = vld [vmem:[#allocation16 + $0x1168] sm:$0xff]
        %v6988 = vld [vmem:[#allocation16 + $0x1170] sm:$0xff]
        %v6989 = vld [vmem:[#allocation16 + $0x1178] sm:$0xff]
        %v6990 = vld [vmem:[#allocation16 + $0x1180] sm:$0xff]
        %v6991 = vld [vmem:[#allocation16 + $0x1188] sm:$0xff]
        %v6992 = vld [vmem:[#allocation16 + $0x1190] sm:$0xff]
        %v6993 = vld [vmem:[#allocation16 + $0x1198] sm:$0xff]
        %v6994 = vld [vmem:[#allocation16 + $0x11a0] sm:$0xff]
        %v6995 = vld [vmem:[#allocation16 + $0x11a8] sm:$0xff]
        %v6996 = vld [vmem:[#allocation16 + $0x11b0] sm:$0xff]
        %v6997 = vld [vmem:[#allocation16 + $0x11b8] sm:$0xff]
        %v6998 = vld [vmem:[#allocation16 + $0x11c0] sm:$0xff]
        %v6999 = vld [vmem:[#allocation16 + $0x11c8] sm:$0xff]
        %v7000 = vld [vmem:[#allocation16 + $0x11d0] sm:$0xff]
        %v7001 = vld [vmem:[#allocation16 + $0x11d8] sm:$0xff]
        %v7002 = vld [vmem:[#allocation16 + $0x11e0] sm:$0xff]
        %v7003 = vld [vmem:[#allocation16 + $0x11e8] sm:$0xff]
        %v7004 = vld [vmem:[#allocation16 + $0x11f0] sm:$0xff]
        %v7005 = vld [vmem:[#allocation16 + $0x11f8] sm:$0xff]
        %v7006 = vld [vmem:[#allocation17] sm:$0xf]
        %v7008 = vlaneseq
        %v7009 = vshrl.u32 %v7008, 7
        %v7010 = vsub.s32 0, %v7009
        %v7011 = vrot.slane %v7006, %v7010
        %v7012 = vlaneseq
        %v7013 = vshrl.u32 %v7012, 7
        %v7014 = vsub.s32 1, %v7013
        %v7015 = vrot.slane %v7006, %v7014
        %v7016 = vlaneseq
        %v7017 = vshrl.u32 %v7016, 7
        %v7018 = vsub.s32 2, %v7017
        %v7019 = vrot.slane %v7006, %v7018
        %v7020 = vlaneseq
        %v7021 = vshrl.u32 %v7020, 7
        %v7022 = vsub.s32 3, %v7021
        %v7023 = vrot.slane %v7006, %v7022
        %v7604 = vunpack.c.l.b16 %v6430
        %v7605 = vunpack.c.h.b16 %v6430
        %v7606 = vunpack.c.l.b16 %v6431
        %v7607 = vunpack.c.h.b16 %v6431
        %v7608 = vunpack.c.l.b16 %v6432
        %v7609 = vunpack.c.h.b16 %v6432
        %v7610 = vunpack.c.l.b16 %v6433
        %v7611 = vunpack.c.h.b16 %v6433
        %v7612 = vunpack.c.l.b16 %v6434
        %v7613 = vunpack.c.h.b16 %v6434
        %v7614 = vunpack.c.l.b16 %v6435
        %v7615 = vunpack.c.h.b16 %v6435
        %v7616 = vunpack.c.l.b16 %v6436
        %v7617 = vunpack.c.h.b16 %v6436
        %v7618 = vunpack.c.l.b16 %v6437
        %v7619 = vunpack.c.h.b16 %v6437
        %v7620 = vunpack.c.l.b16 %v6438
        %v7621 = vunpack.c.h.b16 %v6438
        %v7622 = vunpack.c.l.b16 %v6439
        %v7623 = vunpack.c.h.b16 %v6439
        %v7624 = vunpack.c.l.b16 %v6440
        %v7625 = vunpack.c.h.b16 %v6440
        %v7626 = vunpack.c.l.b16 %v6441
        %v7627 = vunpack.c.h.b16 %v6441
        %v7628 = vunpack.c.l.b16 %v6442
        %v7629 = vunpack.c.h.b16 %v6442
        %v7630 = vunpack.c.l.b16 %v6443
        %v7631 = vunpack.c.h.b16 %v6443
        %v7632 = vunpack.c.l.b16 %v6444
        %v7633 = vunpack.c.h.b16 %v6444
        %v7634 = vunpack.c.l.b16 %v6445
        %v7635 = vunpack.c.h.b16 %v6445
        %v7636 = vunpack.c.l.b16 %v6446
        %v7637 = vunpack.c.h.b16 %v6446
        %v7638 = vunpack.c.l.b16 %v6447
        %v7639 = vunpack.c.h.b16 %v6447
        %v7640 = vunpack.c.l.b16 %v6448
        %v7641 = vunpack.c.h.b16 %v6448
        %v7642 = vunpack.c.l.b16 %v6449
        %v7643 = vunpack.c.h.b16 %v6449
        %v7644 = vunpack.c.l.b16 %v6450
        %v7645 = vunpack.c.h.b16 %v6450
        %v7646 = vunpack.c.l.b16 %v6451
        %v7647 = vunpack.c.h.b16 %v6451
        %v7648 = vunpack.c.l.b16 %v6452
        %v7649 = vunpack.c.h.b16 %v6452
        %v7650 = vunpack.c.l.b16 %v6453
        %v7651 = vunpack.c.h.b16 %v6453
        %v7652 = vunpack.c.l.b16 %v6454
        %v7653 = vunpack.c.h.b16 %v6454
        %v7654 = vunpack.c.l.b16 %v6455
        %v7655 = vunpack.c.h.b16 %v6455
        %v7656 = vunpack.c.l.b16 %v6456
        %v7657 = vunpack.c.h.b16 %v6456
        %v7658 = vunpack.c.l.b16 %v6457
        %v7659 = vunpack.c.h.b16 %v6457
        %v7660 = vunpack.c.l.b16 %v6458
        %v7661 = vunpack.c.h.b16 %v6458
        %v7662 = vunpack.c.l.b16 %v6459
        %v7663 = vunpack.c.h.b16 %v6459
        %v7664 = vunpack.c.l.b16 %v6460
        %v7665 = vunpack.c.h.b16 %v6460
        %v7666 = vunpack.c.l.b16 %v6461
        %v7667 = vunpack.c.h.b16 %v6461
        %v7668 = vunpack.c.l.b16 %v6462
        %v7669 = vunpack.c.h.b16 %v6462
        %v7670 = vunpack.c.l.b16 %v6463
        %v7671 = vunpack.c.h.b16 %v6463
        %v7672 = vunpack.c.l.b16 %v6464
        %v7673 = vunpack.c.h.b16 %v6464
        %v7674 = vunpack.c.l.b16 %v6465
        %v7675 = vunpack.c.h.b16 %v6465
        %v7676 = vunpack.c.l.b16 %v6466
        %v7677 = vunpack.c.h.b16 %v6466
        %v7678 = vunpack.c.l.b16 %v6467
        %v7679 = vunpack.c.h.b16 %v6467
        %v7680 = vunpack.c.l.b16 %v6468
        %v7681 = vunpack.c.h.b16 %v6468
        %v7682 = vunpack.c.l.b16 %v6469
        %v7683 = vunpack.c.h.b16 %v6469
        %v7684 = vunpack.c.l.b16 %v6470
        %v7685 = vunpack.c.h.b16 %v6470
        %v7686 = vunpack.c.l.b16 %v6471
        %v7687 = vunpack.c.h.b16 %v6471
        %v7688 = vunpack.c.l.b16 %v6472
        %v7689 = vunpack.c.h.b16 %v6472
        %v7690 = vunpack.c.l.b16 %v6473
        %v7691 = vunpack.c.h.b16 %v6473
        %v7692 = vunpack.c.l.b16 %v6474
        %v7693 = vunpack.c.h.b16 %v6474
        %v7694 = vunpack.c.l.b16 %v6475
        %v7695 = vunpack.c.h.b16 %v6475
        %v7696 = vunpack.c.l.b16 %v6476
        %v7697 = vunpack.c.h.b16 %v6476
        %v7698 = vunpack.c.l.b16 %v6477
        %v7699 = vunpack.c.h.b16 %v6477
        %v7700 = vunpack.c.l.b16 %v6478
        %v7701 = vunpack.c.h.b16 %v6478
        %v7702 = vunpack.c.l.b16 %v6479
        %v7703 = vunpack.c.h.b16 %v6479
        %v7704 = vunpack.c.l.b16 %v6480
        %v7705 = vunpack.c.h.b16 %v6480
        %v7706 = vunpack.c.l.b16 %v6481
        %v7707 = vunpack.c.h.b16 %v6481
        %v7708 = vunpack.c.l.b16 %v6482
        %v7709 = vunpack.c.h.b16 %v6482
        %v7710 = vunpack.c.l.b16 %v6483
        %v7711 = vunpack.c.h.b16 %v6483
        %v7712 = vunpack.c.l.b16 %v6484
        %v7713 = vunpack.c.h.b16 %v6484
        %v7714 = vunpack.c.l.b16 %v6485
        %v7715 = vunpack.c.h.b16 %v6485
        %v7716 = vunpack.c.l.b16 %v6486
        %v7717 = vunpack.c.h.b16 %v6486
        %v7718 = vunpack.c.l.b16 %v6487
        %v7719 = vunpack.c.h.b16 %v6487
        %v7720 = vunpack.c.l.b16 %v6488
        %v7721 = vunpack.c.h.b16 %v6488
        %v7722 = vunpack.c.l.b16 %v6489
        %v7723 = vunpack.c.h.b16 %v6489
        %v7724 = vunpack.c.l.b16 %v6490
        %v7725 = vunpack.c.h.b16 %v6490
        %v7726 = vunpack.c.l.b16 %v6491
        %v7727 = vunpack.c.h.b16 %v6491
        %v7728 = vunpack.c.l.b16 %v6492
        %v7729 = vunpack.c.h.b16 %v6492
        %v7730 = vunpack.c.l.b16 %v6493
        %v7731 = vunpack.c.h.b16 %v6493
        %v7732 = vunpack.c.l.b16 %v6494
        %v7733 = vunpack.c.h.b16 %v6494
        %v7734 = vunpack.c.l.b16 %v6495
        %v7735 = vunpack.c.h.b16 %v6495
        %v7736 = vunpack.c.l.b16 %v6496
        %v7737 = vunpack.c.h.b16 %v6496
        %v7738 = vunpack.c.l.b16 %v6497
        %v7739 = vunpack.c.h.b16 %v6497
        %v7740 = vunpack.c.l.b16 %v6498
        %v7741 = vunpack.c.h.b16 %v6498
        %v7742 = vunpack.c.l.b16 %v6499
        %v7743 = vunpack.c.h.b16 %v6499
        %v7744 = vunpack.c.l.b16 %v6500
        %v7745 = vunpack.c.h.b16 %v6500
        %v7746 = vunpack.c.l.b16 %v6501
        %v7747 = vunpack.c.h.b16 %v6501
        %v7748 = vunpack.c.l.b16 %v6502
        %v7749 = vunpack.c.h.b16 %v6502
        %v7750 = vunpack.c.l.b16 %v6503
        %v7751 = vunpack.c.h.b16 %v6503
        %v7752 = vunpack.c.l.b16 %v6504
        %v7753 = vunpack.c.h.b16 %v6504
        %v7754 = vunpack.c.l.b16 %v6505
        %v7755 = vunpack.c.h.b16 %v6505
        %v7756 = vunpack.c.l.b16 %v6506
        %v7757 = vunpack.c.h.b16 %v6506
        %v7758 = vunpack.c.l.b16 %v6507
        %v7759 = vunpack.c.h.b16 %v6507
        %v7760 = vunpack.c.l.b16 %v6508
        %v7761 = vunpack.c.h.b16 %v6508
        %v7762 = vunpack.c.l.b16 %v6509
        %v7763 = vunpack.c.h.b16 %v6509
        %v7764 = vunpack.c.l.b16 %v6510
        %v7765 = vunpack.c.h.b16 %v6510
        %v7766 = vunpack.c.l.b16 %v6511
        %v7767 = vunpack.c.h.b16 %v6511
        %v7768 = vunpack.c.l.b16 %v6512
        %v7769 = vunpack.c.h.b16 %v6512
        %v7770 = vunpack.c.l.b16 %v6513
        %v7771 = vunpack.c.h.b16 %v6513
        %v7772 = vunpack.c.l.b16 %v6514
        %v7773 = vunpack.c.h.b16 %v6514
        %v7774 = vunpack.c.l.b16 %v6515
        %v7775 = vunpack.c.h.b16 %v6515
        %v7776 = vunpack.c.l.b16 %v6516
        %v7777 = vunpack.c.h.b16 %v6516
        %v7778 = vunpack.c.l.b16 %v6517
        %v7779 = vunpack.c.h.b16 %v6517
        %v7780 = vunpack.c.l.b16 %v6518
        %v7781 = vunpack.c.h.b16 %v6518
        %v7782 = vunpack.c.l.b16 %v6519
        %v7783 = vunpack.c.h.b16 %v6519
        %v7784 = vunpack.c.l.b16 %v6520
        %v7785 = vunpack.c.h.b16 %v6520
        %v7786 = vunpack.c.l.b16 %v6521
        %v7787 = vunpack.c.h.b16 %v6521
        %v7788 = vunpack.c.l.b16 %v6522
        %v7789 = vunpack.c.h.b16 %v6522
        %v7790 = vunpack.c.l.b16 %v6523
        %v7791 = vunpack.c.h.b16 %v6523
        %v7792 = vunpack.c.l.b16 %v6524
        %v7793 = vunpack.c.h.b16 %v6524
        %v7794 = vunpack.c.l.b16 %v6525
        %v7795 = vunpack.c.h.b16 %v6525
        %v7796 = vunpack.c.l.b16 %v6526
        %v7797 = vunpack.c.h.b16 %v6526
        %v7798 = vunpack.c.l.b16 %v6527
        %v7799 = vunpack.c.h.b16 %v6527
        %v7800 = vunpack.c.l.b16 %v6528
        %v7801 = vunpack.c.h.b16 %v6528
        %v7802 = vunpack.c.l.b16 %v6529
        %v7803 = vunpack.c.h.b16 %v6529
        %v7804 = vunpack.c.l.b16 %v6530
        %v7805 = vunpack.c.h.b16 %v6530
        %v7806 = vunpack.c.l.b16 %v6531
        %v7807 = vunpack.c.h.b16 %v6531
        %v7808 = vunpack.c.l.b16 %v6532
        %v7809 = vunpack.c.h.b16 %v6532
        %v7810 = vunpack.c.l.b16 %v6533
        %v7811 = vunpack.c.h.b16 %v6533
        %v7812 = vunpack.c.l.b16 %v6534
        %v7813 = vunpack.c.h.b16 %v6534
        %v7814 = vunpack.c.l.b16 %v6535
        %v7815 = vunpack.c.h.b16 %v6535
        %v7816 = vunpack.c.l.b16 %v6536
        %v7817 = vunpack.c.h.b16 %v6536
        %v7818 = vunpack.c.l.b16 %v6537
        %v7819 = vunpack.c.h.b16 %v6537
        %v7820 = vunpack.c.l.b16 %v6538
        %v7821 = vunpack.c.h.b16 %v6538
        %v7822 = vunpack.c.l.b16 %v6539
        %v7823 = vunpack.c.h.b16 %v6539
        %v7824 = vunpack.c.l.b16 %v6540
        %v7825 = vunpack.c.h.b16 %v6540
        %v7826 = vunpack.c.l.b16 %v6541
        %v7827 = vunpack.c.h.b16 %v6541
        %v7828 = vunpack.c.l.b16 %v6542
        %v7829 = vunpack.c.h.b16 %v6542
        %v7830 = vunpack.c.l.b16 %v6543
        %v7831 = vunpack.c.h.b16 %v6543
        %v7832 = vunpack.c.l.b16 %v6544
        %v7833 = vunpack.c.h.b16 %v6544
        %v7834 = vunpack.c.l.b16 %v6545
        %v7835 = vunpack.c.h.b16 %v6545
        %v7836 = vunpack.c.l.b16 %v6546
        %v7837 = vunpack.c.h.b16 %v6546
        %v7838 = vunpack.c.l.b16 %v6547
        %v7839 = vunpack.c.h.b16 %v6547
        %v7840 = vunpack.c.l.b16 %v6548
        %v7841 = vunpack.c.h.b16 %v6548
        %v7842 = vunpack.c.l.b16 %v6549
        %v7843 = vunpack.c.h.b16 %v6549
        %v7844 = vunpack.c.l.b16 %v6550
        %v7845 = vunpack.c.h.b16 %v6550
        %v7846 = vunpack.c.l.b16 %v6551
        %v7847 = vunpack.c.h.b16 %v6551
        %v7848 = vunpack.c.l.b16 %v6552
        %v7849 = vunpack.c.h.b16 %v6552
        %v7850 = vunpack.c.l.b16 %v6553
        %v7851 = vunpack.c.h.b16 %v6553
        %v7852 = vunpack.c.l.b16 %v6554
        %v7853 = vunpack.c.h.b16 %v6554
        %v7854 = vunpack.c.l.b16 %v6555
        %v7855 = vunpack.c.h.b16 %v6555
        %v7856 = vunpack.c.l.b16 %v6556
        %v7857 = vunpack.c.h.b16 %v6556
        %v7858 = vunpack.c.l.b16 %v6557
        %v7859 = vunpack.c.h.b16 %v6557
        %v7860 = vunpack.c.l.b16 %v6558
        %v7861 = vunpack.c.h.b16 %v6558
        %v7862 = vunpack.c.l.b16 %v6559
        %v7863 = vunpack.c.h.b16 %v6559
        %v7864 = vunpack.c.l.b16 %v6560
        %v7865 = vunpack.c.h.b16 %v6560
        %v7866 = vunpack.c.l.b16 %v6561
        %v7867 = vunpack.c.h.b16 %v6561
        %v7868 = vunpack.c.l.b16 %v6562
        %v7869 = vunpack.c.h.b16 %v6562
        %v7870 = vunpack.c.l.b16 %v6563
        %v7871 = vunpack.c.h.b16 %v6563
        %v7872 = vunpack.c.l.b16 %v6564
        %v7873 = vunpack.c.h.b16 %v6564
        %v7874 = vunpack.c.l.b16 %v6565
        %v7875 = vunpack.c.h.b16 %v6565
        %v7876 = vunpack.c.l.b16 %v6566
        %v7877 = vunpack.c.h.b16 %v6566
        %v7878 = vunpack.c.l.b16 %v6567
        %v7879 = vunpack.c.h.b16 %v6567
        %v7880 = vunpack.c.l.b16 %v6568
        %v7881 = vunpack.c.h.b16 %v6568
        %v7882 = vunpack.c.l.b16 %v6569
        %v7883 = vunpack.c.h.b16 %v6569
        %v7884 = vunpack.c.l.b16 %v6570
        %v7885 = vunpack.c.h.b16 %v6570
        %v7886 = vunpack.c.l.b16 %v6571
        %v7887 = vunpack.c.h.b16 %v6571
        %v7888 = vunpack.c.l.b16 %v6572
        %v7889 = vunpack.c.h.b16 %v6572
        %v7890 = vunpack.c.l.b16 %v6573
        %v7891 = vunpack.c.h.b16 %v6573
        %v7892 = vunpack.c.l.b16 %v6574
        %v7893 = vunpack.c.h.b16 %v6574
        %v7894 = vunpack.c.l.b16 %v6575
        %v7895 = vunpack.c.h.b16 %v6575
        %v7896 = vunpack.c.l.b16 %v6576
        %v7897 = vunpack.c.h.b16 %v6576
        %v7898 = vunpack.c.l.b16 %v6577
        %v7899 = vunpack.c.h.b16 %v6577
        %v7900 = vunpack.c.l.b16 %v6578
        %v7901 = vunpack.c.h.b16 %v6578
        %v7902 = vunpack.c.l.b16 %v6579
        %v7903 = vunpack.c.h.b16 %v6579
        %v7904 = vunpack.c.l.b16 %v6580
        %v7905 = vunpack.c.h.b16 %v6580
        %v7906 = vunpack.c.l.b16 %v6581
        %v7907 = vunpack.c.h.b16 %v6581
        %v7908 = vunpack.c.l.b16 %v6582
        %v7909 = vunpack.c.h.b16 %v6582
        %v7910 = vunpack.c.l.b16 %v6583
        %v7911 = vunpack.c.h.b16 %v6583
        %v7912 = vunpack.c.l.b16 %v6584
        %v7913 = vunpack.c.h.b16 %v6584
        %v7914 = vunpack.c.l.b16 %v6585
        %v7915 = vunpack.c.h.b16 %v6585
        %v7916 = vunpack.c.l.b16 %v6586
        %v7917 = vunpack.c.h.b16 %v6586
        %v7918 = vunpack.c.l.b16 %v6587
        %v7919 = vunpack.c.h.b16 %v6587
        %v7920 = vunpack.c.l.b16 %v6588
        %v7921 = vunpack.c.h.b16 %v6588
        %v7922 = vunpack.c.l.b16 %v6589
        %v7923 = vunpack.c.h.b16 %v6589
        %v7924 = vunpack.c.l.b16 %v6590
        %v7925 = vunpack.c.h.b16 %v6590
        %v7926 = vunpack.c.l.b16 %v6591
        %v7927 = vunpack.c.h.b16 %v6591
        %v7928 = vunpack.c.l.b16 %v6592
        %v7929 = vunpack.c.h.b16 %v6592
        %v7930 = vunpack.c.l.b16 %v6593
        %v7931 = vunpack.c.h.b16 %v6593
        %v7932 = vunpack.c.l.b16 %v6594
        %v7933 = vunpack.c.h.b16 %v6594
        %v7934 = vunpack.c.l.b16 %v6595
        %v7935 = vunpack.c.h.b16 %v6595
        %v7936 = vunpack.c.l.b16 %v6596
        %v7937 = vunpack.c.h.b16 %v6596
        %v7938 = vunpack.c.l.b16 %v6597
        %v7939 = vunpack.c.h.b16 %v6597
        %v7940 = vunpack.c.l.b16 %v6598
        %v7941 = vunpack.c.h.b16 %v6598
        %v7942 = vunpack.c.l.b16 %v6599
        %v7943 = vunpack.c.h.b16 %v6599
        %v7944 = vunpack.c.l.b16 %v6600
        %v7945 = vunpack.c.h.b16 %v6600
        %v7946 = vunpack.c.l.b16 %v6601
        %v7947 = vunpack.c.h.b16 %v6601
        %v7948 = vunpack.c.l.b16 %v6602
        %v7949 = vunpack.c.h.b16 %v6602
        %v7950 = vunpack.c.l.b16 %v6603
        %v7951 = vunpack.c.h.b16 %v6603
        %v7952 = vunpack.c.l.b16 %v6604
        %v7953 = vunpack.c.h.b16 %v6604
        %v7954 = vunpack.c.l.b16 %v6605
        %v7955 = vunpack.c.h.b16 %v6605
        %v7956 = vunpack.c.l.b16 %v6606
        %v7957 = vunpack.c.h.b16 %v6606
        %v7958 = vunpack.c.l.b16 %v6607
        %v7959 = vunpack.c.h.b16 %v6607
        %v7960 = vunpack.c.l.b16 %v6608
        %v7961 = vunpack.c.h.b16 %v6608
        %v7962 = vunpack.c.l.b16 %v6609
        %v7963 = vunpack.c.h.b16 %v6609
        %v7964 = vunpack.c.l.b16 %v6610
        %v7965 = vunpack.c.h.b16 %v6610
        %v7966 = vunpack.c.l.b16 %v6611
        %v7967 = vunpack.c.h.b16 %v6611
        %v7968 = vunpack.c.l.b16 %v6612
        %v7969 = vunpack.c.h.b16 %v6612
        %v7970 = vunpack.c.l.b16 %v6613
        %v7971 = vunpack.c.h.b16 %v6613
        %v7972 = vunpack.c.l.b16 %v6614
        %v7973 = vunpack.c.h.b16 %v6614
        %v7974 = vunpack.c.l.b16 %v6615
        %v7975 = vunpack.c.h.b16 %v6615
        %v7976 = vunpack.c.l.b16 %v6616
        %v7977 = vunpack.c.h.b16 %v6616
        %v7978 = vunpack.c.l.b16 %v6617
        %v7979 = vunpack.c.h.b16 %v6617
        %v7980 = vunpack.c.l.b16 %v6618
        %v7981 = vunpack.c.h.b16 %v6618
        %v7982 = vunpack.c.l.b16 %v6619
        %v7983 = vunpack.c.h.b16 %v6619
        %v7984 = vunpack.c.l.b16 %v6620
        %v7985 = vunpack.c.h.b16 %v6620
        %v7986 = vunpack.c.l.b16 %v6621
        %v7987 = vunpack.c.h.b16 %v6621
        %v7988 = vunpack.c.l.b16 %v6622
        %v7989 = vunpack.c.h.b16 %v6622
        %v7990 = vunpack.c.l.b16 %v6623
        %v7991 = vunpack.c.h.b16 %v6623
        %v7992 = vunpack.c.l.b16 %v6624
        %v7993 = vunpack.c.h.b16 %v6624
        %v7994 = vunpack.c.l.b16 %v6625
        %v7995 = vunpack.c.h.b16 %v6625
        %v7996 = vunpack.c.l.b16 %v6626
        %v7997 = vunpack.c.h.b16 %v6626
        %v7998 = vunpack.c.l.b16 %v6627
        %v7999 = vunpack.c.h.b16 %v6627
        %v8000 = vunpack.c.l.b16 %v6628
        %v8001 = vunpack.c.h.b16 %v6628
        %v8002 = vunpack.c.l.b16 %v6629
        %v8003 = vunpack.c.h.b16 %v6629
        %v8004 = vunpack.c.l.b16 %v6630
        %v8005 = vunpack.c.h.b16 %v6630
        %v8006 = vunpack.c.l.b16 %v6631
        %v8007 = vunpack.c.h.b16 %v6631
        %v8008 = vunpack.c.l.b16 %v6632
        %v8009 = vunpack.c.h.b16 %v6632
        %v8010 = vunpack.c.l.b16 %v6633
        %v8011 = vunpack.c.h.b16 %v6633
        %v8012 = vunpack.c.l.b16 %v6634
        %v8013 = vunpack.c.h.b16 %v6634
        %v8014 = vunpack.c.l.b16 %v6635
        %v8015 = vunpack.c.h.b16 %v6635
        %v8016 = vunpack.c.l.b16 %v6636
        %v8017 = vunpack.c.h.b16 %v6636
        %v8018 = vunpack.c.l.b16 %v6637
        %v8019 = vunpack.c.h.b16 %v6637
        %v8020 = vunpack.c.l.b16 %v6638
        %v8021 = vunpack.c.h.b16 %v6638
        %v8022 = vunpack.c.l.b16 %v6639
        %v8023 = vunpack.c.h.b16 %v6639
        %v8024 = vunpack.c.l.b16 %v6640
        %v8025 = vunpack.c.h.b16 %v6640
        %v8026 = vunpack.c.l.b16 %v6641
        %v8027 = vunpack.c.h.b16 %v6641
        %v8028 = vunpack.c.l.b16 %v6642
        %v8029 = vunpack.c.h.b16 %v6642
        %v8030 = vunpack.c.l.b16 %v6643
        %v8031 = vunpack.c.h.b16 %v6643
        %v8032 = vunpack.c.l.b16 %v6644
        %v8033 = vunpack.c.h.b16 %v6644
        %v8034 = vunpack.c.l.b16 %v6645
        %v8035 = vunpack.c.h.b16 %v6645
        %v8036 = vunpack.c.l.b16 %v6646
        %v8037 = vunpack.c.h.b16 %v6646
        %v8038 = vunpack.c.l.b16 %v6647
        %v8039 = vunpack.c.h.b16 %v6647
        %v8040 = vunpack.c.l.b16 %v6648
        %v8041 = vunpack.c.h.b16 %v6648
        %v8042 = vunpack.c.l.b16 %v6649
        %v8043 = vunpack.c.h.b16 %v6649
        %v8044 = vunpack.c.l.b16 %v6650
        %v8045 = vunpack.c.h.b16 %v6650
        %v8046 = vunpack.c.l.b16 %v6651
        %v8047 = vunpack.c.h.b16 %v6651
        %v8048 = vunpack.c.l.b16 %v6652
        %v8049 = vunpack.c.h.b16 %v6652
        %v8050 = vunpack.c.l.b16 %v6653
        %v8051 = vunpack.c.h.b16 %v6653
        %v8052 = vunpack.c.l.b16 %v6654
        %v8053 = vunpack.c.h.b16 %v6654
        %v8054 = vunpack.c.l.b16 %v6655
        %v8055 = vunpack.c.h.b16 %v6655
        %v8056 = vunpack.c.l.b16 %v6656
        %v8057 = vunpack.c.h.b16 %v6656
        %v8058 = vunpack.c.l.b16 %v6657
        %v8059 = vunpack.c.h.b16 %v6657
        %v8060 = vunpack.c.l.b16 %v6658
        %v8061 = vunpack.c.h.b16 %v6658
        %v8062 = vunpack.c.l.b16 %v6659
        %v8063 = vunpack.c.h.b16 %v6659
        %v8064 = vunpack.c.l.b16 %v6660
        %v8065 = vunpack.c.h.b16 %v6660
        %v8066 = vunpack.c.l.b16 %v6661
        %v8067 = vunpack.c.h.b16 %v6661
        %v8068 = vunpack.c.l.b16 %v6662
        %v8069 = vunpack.c.h.b16 %v6662
        %v8070 = vunpack.c.l.b16 %v6663
        %v8071 = vunpack.c.h.b16 %v6663
        %v8072 = vunpack.c.l.b16 %v6664
        %v8073 = vunpack.c.h.b16 %v6664
        %v8074 = vunpack.c.l.b16 %v6665
        %v8075 = vunpack.c.h.b16 %v6665
        %v8076 = vunpack.c.l.b16 %v6666
        %v8077 = vunpack.c.h.b16 %v6666
        %v8078 = vunpack.c.l.b16 %v6667
        %v8079 = vunpack.c.h.b16 %v6667
        %v8080 = vunpack.c.l.b16 %v6668
        %v8081 = vunpack.c.h.b16 %v6668
        %v8082 = vunpack.c.l.b16 %v6669
        %v8083 = vunpack.c.h.b16 %v6669
        %v8084 = vunpack.c.l.b16 %v6670
        %v8085 = vunpack.c.h.b16 %v6670
        %v8086 = vunpack.c.l.b16 %v6671
        %v8087 = vunpack.c.h.b16 %v6671
        %v8088 = vunpack.c.l.b16 %v6672
        %v8089 = vunpack.c.h.b16 %v6672
        %v8090 = vunpack.c.l.b16 %v6673
        %v8091 = vunpack.c.h.b16 %v6673
        %v8092 = vunpack.c.l.b16 %v6674
        %v8093 = vunpack.c.h.b16 %v6674
        %v8094 = vunpack.c.l.b16 %v6675
        %v8095 = vunpack.c.h.b16 %v6675
        %v8096 = vunpack.c.l.b16 %v6676
        %v8097 = vunpack.c.h.b16 %v6676
        %v8098 = vunpack.c.l.b16 %v6677
        %v8099 = vunpack.c.h.b16 %v6677
        %v8100 = vunpack.c.l.b16 %v6678
        %v8101 = vunpack.c.h.b16 %v6678
        %v8102 = vunpack.c.l.b16 %v6679
        %v8103 = vunpack.c.h.b16 %v6679
        %v8104 = vunpack.c.l.b16 %v6680
        %v8105 = vunpack.c.h.b16 %v6680
        %v8106 = vunpack.c.l.b16 %v6681
        %v8107 = vunpack.c.h.b16 %v6681
        %v8108 = vunpack.c.l.b16 %v6682
        %v8109 = vunpack.c.h.b16 %v6682
        %v8110 = vunpack.c.l.b16 %v6683
        %v8111 = vunpack.c.h.b16 %v6683
        %v8112 = vunpack.c.l.b16 %v6684
        %v8113 = vunpack.c.h.b16 %v6684
        %v8114 = vunpack.c.l.b16 %v6685
        %v8115 = vunpack.c.h.b16 %v6685
        %v8116 = vunpack.c.l.b16 %v6686
        %v8117 = vunpack.c.h.b16 %v6686
        %v8118 = vunpack.c.l.b16 %v6687
        %v8119 = vunpack.c.h.b16 %v6687
        %v8120 = vunpack.c.l.b16 %v6688
        %v8121 = vunpack.c.h.b16 %v6688
        %v8122 = vunpack.c.l.b16 %v6689
        %v8123 = vunpack.c.h.b16 %v6689
        %v8124 = vunpack.c.l.b16 %v6690
        %v8125 = vunpack.c.h.b16 %v6690
        %v8126 = vunpack.c.l.b16 %v6691
        %v8127 = vunpack.c.h.b16 %v6691
        %v8128 = vunpack.c.l.b16 %v6692
        %v8129 = vunpack.c.h.b16 %v6692
        %v8130 = vunpack.c.l.b16 %v6693
        %v8131 = vunpack.c.h.b16 %v6693
        %v8132 = vunpack.c.l.b16 %v6694
        %v8133 = vunpack.c.h.b16 %v6694
        %v8134 = vunpack.c.l.b16 %v6695
        %v8135 = vunpack.c.h.b16 %v6695
        %v8136 = vunpack.c.l.b16 %v6696
        %v8137 = vunpack.c.h.b16 %v6696
        %v8138 = vunpack.c.l.b16 %v6697
        %v8139 = vunpack.c.h.b16 %v6697
        %v8140 = vunpack.c.l.b16 %v6698
        %v8141 = vunpack.c.h.b16 %v6698
        %v8142 = vunpack.c.l.b16 %v6699
        %v8143 = vunpack.c.h.b16 %v6699
        %v8144 = vunpack.c.l.b16 %v6700
        %v8145 = vunpack.c.h.b16 %v6700
        %v8146 = vunpack.c.l.b16 %v6701
        %v8147 = vunpack.c.h.b16 %v6701
        %v8148 = vunpack.c.l.b16 %v6702
        %v8149 = vunpack.c.h.b16 %v6702
        %v8150 = vunpack.c.l.b16 %v6703
        %v8151 = vunpack.c.h.b16 %v6703
        %v8152 = vunpack.c.l.b16 %v6704
        %v8153 = vunpack.c.h.b16 %v6704
        %v8154 = vunpack.c.l.b16 %v6705
        %v8155 = vunpack.c.h.b16 %v6705
        %v8156 = vunpack.c.l.b16 %v6706
        %v8157 = vunpack.c.h.b16 %v6706
        %v8158 = vunpack.c.l.b16 %v6707
        %v8159 = vunpack.c.h.b16 %v6707
        %v8160 = vunpack.c.l.b16 %v6708
        %v8161 = vunpack.c.h.b16 %v6708
        %v8162 = vunpack.c.l.b16 %v6709
        %v8163 = vunpack.c.h.b16 %v6709
        %v8164 = vunpack.c.l.b16 %v6710
        %v8165 = vunpack.c.h.b16 %v6710
        %v8166 = vunpack.c.l.b16 %v6711
        %v8167 = vunpack.c.h.b16 %v6711
        %v8168 = vunpack.c.l.b16 %v6712
        %v8169 = vunpack.c.h.b16 %v6712
        %v8170 = vunpack.c.l.b16 %v6713
        %v8171 = vunpack.c.h.b16 %v6713
        %v8172 = vunpack.c.l.b16 %v6714
        %v8173 = vunpack.c.h.b16 %v6714
        %v8174 = vunpack.c.l.b16 %v6715
        %v8175 = vunpack.c.h.b16 %v6715
        %v8176 = vunpack.c.l.b16 %v6716
        %v8177 = vunpack.c.h.b16 %v6716
        %v8178 = vunpack.c.l.b16 %v6717
        %v8179 = vunpack.c.h.b16 %v6717
        %v8180 = vunpack.c.l.b16 %v6718
        %v8181 = vunpack.c.h.b16 %v6718
        %v8182 = vunpack.c.l.b16 %v6719
        %v8183 = vunpack.c.h.b16 %v6719
        %v8184 = vunpack.c.l.b16 %v6720
        %v8185 = vunpack.c.h.b16 %v6720
        %v8186 = vunpack.c.l.b16 %v6721
        %v8187 = vunpack.c.h.b16 %v6721
        %v8188 = vunpack.c.l.b16 %v6722
        %v8189 = vunpack.c.h.b16 %v6722
        %v8190 = vunpack.c.l.b16 %v6723
        %v8191 = vunpack.c.h.b16 %v6723
        %v8192 = vunpack.c.l.b16 %v6724
        %v8193 = vunpack.c.h.b16 %v6724
        %v8194 = vunpack.c.l.b16 %v6725
        %v8195 = vunpack.c.h.b16 %v6725
        %v8196 = vunpack.c.l.b16 %v6726
        %v8197 = vunpack.c.h.b16 %v6726
        %v8198 = vunpack.c.l.b16 %v6727
        %v8199 = vunpack.c.h.b16 %v6727
        %v8200 = vunpack.c.l.b16 %v6728
        %v8201 = vunpack.c.h.b16 %v6728
        %v8202 = vunpack.c.l.b16 %v6729
        %v8203 = vunpack.c.h.b16 %v6729
        %v8204 = vunpack.c.l.b16 %v6730
        %v8205 = vunpack.c.h.b16 %v6730
        %v8206 = vunpack.c.l.b16 %v6731
        %v8207 = vunpack.c.h.b16 %v6731
        %v8208 = vunpack.c.l.b16 %v6732
        %v8209 = vunpack.c.h.b16 %v6732
        %v8210 = vunpack.c.l.b16 %v6733
        %v8211 = vunpack.c.h.b16 %v6733
        %v8212 = vunpack.c.l.b16 %v6734
        %v8213 = vunpack.c.h.b16 %v6734
        %v8214 = vunpack.c.l.b16 %v6735
        %v8215 = vunpack.c.h.b16 %v6735
        %v8216 = vunpack.c.l.b16 %v6736
        %v8217 = vunpack.c.h.b16 %v6736
        %v8218 = vunpack.c.l.b16 %v6737
        %v8219 = vunpack.c.h.b16 %v6737
        %v8220 = vunpack.c.l.b16 %v6738
        %v8221 = vunpack.c.h.b16 %v6738
        %v8222 = vunpack.c.l.b16 %v6739
        %v8223 = vunpack.c.h.b16 %v6739
        %v8224 = vunpack.c.l.b16 %v6740
        %v8225 = vunpack.c.h.b16 %v6740
        %v8226 = vunpack.c.l.b16 %v6741
        %v8227 = vunpack.c.h.b16 %v6741
        %v8228 = vunpack.c.l.b16 %v6742
        %v8229 = vunpack.c.h.b16 %v6742
        %v8230 = vunpack.c.l.b16 %v6743
        %v8231 = vunpack.c.h.b16 %v6743
        %v8232 = vunpack.c.l.b16 %v6744
        %v8233 = vunpack.c.h.b16 %v6744
        %v8234 = vunpack.c.l.b16 %v6745
        %v8235 = vunpack.c.h.b16 %v6745
        %v8236 = vunpack.c.l.b16 %v6746
        %v8237 = vunpack.c.h.b16 %v6746
        %v8238 = vunpack.c.l.b16 %v6747
        %v8239 = vunpack.c.h.b16 %v6747
        %v8240 = vunpack.c.l.b16 %v6748
        %v8241 = vunpack.c.h.b16 %v6748
        %v8242 = vunpack.c.l.b16 %v6749
        %v8243 = vunpack.c.h.b16 %v6749
        %v8244 = vunpack.c.l.b16 %v6750
        %v8245 = vunpack.c.h.b16 %v6750
        %v8246 = vunpack.c.l.b16 %v6751
        %v8247 = vunpack.c.h.b16 %v6751
        %v8248 = vunpack.c.l.b16 %v6752
        %v8249 = vunpack.c.h.b16 %v6752
        %v8250 = vunpack.c.l.b16 %v6753
        %v8251 = vunpack.c.h.b16 %v6753
        %v8252 = vunpack.c.l.b16 %v6754
        %v8253 = vunpack.c.h.b16 %v6754
        %v8254 = vunpack.c.l.b16 %v6755
        %v8255 = vunpack.c.h.b16 %v6755
        %v8256 = vunpack.c.l.b16 %v6756
        %v8257 = vunpack.c.h.b16 %v6756
        %v8258 = vunpack.c.l.b16 %v6757
        %v8259 = vunpack.c.h.b16 %v6757
        %v8260 = vunpack.c.l.b16 %v6758
        %v8261 = vunpack.c.h.b16 %v6758
        %v8262 = vunpack.c.l.b16 %v6759
        %v8263 = vunpack.c.h.b16 %v6759
        %v8264 = vunpack.c.l.b16 %v6760
        %v8265 = vunpack.c.h.b16 %v6760
        %v8266 = vunpack.c.l.b16 %v6761
        %v8267 = vunpack.c.h.b16 %v6761
        %v8268 = vunpack.c.l.b16 %v6762
        %v8269 = vunpack.c.h.b16 %v6762
        %v8270 = vunpack.c.l.b16 %v6763
        %v8271 = vunpack.c.h.b16 %v6763
        %v8272 = vunpack.c.l.b16 %v6764
        %v8273 = vunpack.c.h.b16 %v6764
        %v8274 = vunpack.c.l.b16 %v6765
        %v8275 = vunpack.c.h.b16 %v6765
        %v8276 = vunpack.c.l.b16 %v6766
        %v8277 = vunpack.c.h.b16 %v6766
        %v8278 = vunpack.c.l.b16 %v6767
        %v8279 = vunpack.c.h.b16 %v6767
        %v8280 = vunpack.c.l.b16 %v6768
        %v8281 = vunpack.c.h.b16 %v6768
        %v8282 = vunpack.c.l.b16 %v6769
        %v8283 = vunpack.c.h.b16 %v6769
        %v8284 = vunpack.c.l.b16 %v6770
        %v8285 = vunpack.c.h.b16 %v6770
        %v8286 = vunpack.c.l.b16 %v6771
        %v8287 = vunpack.c.h.b16 %v6771
        %v8288 = vunpack.c.l.b16 %v6772
        %v8289 = vunpack.c.h.b16 %v6772
        %v8290 = vunpack.c.l.b16 %v6773
        %v8291 = vunpack.c.h.b16 %v6773
        %v8292 = vunpack.c.l.b16 %v6774
        %v8293 = vunpack.c.h.b16 %v6774
        %v8294 = vunpack.c.l.b16 %v6775
        %v8295 = vunpack.c.h.b16 %v6775
        %v8296 = vunpack.c.l.b16 %v6776
        %v8297 = vunpack.c.h.b16 %v6776
        %v8298 = vunpack.c.l.b16 %v6777
        %v8299 = vunpack.c.h.b16 %v6777
        %v8300 = vunpack.c.l.b16 %v6778
        %v8301 = vunpack.c.h.b16 %v6778
        %v8302 = vunpack.c.l.b16 %v6779
        %v8303 = vunpack.c.h.b16 %v6779
        %v8304 = vunpack.c.l.b16 %v6780
        %v8305 = vunpack.c.h.b16 %v6780
        %v8306 = vunpack.c.l.b16 %v6781
        %v8307 = vunpack.c.h.b16 %v6781
        %v8308 = vunpack.c.l.b16 %v6782
        %v8309 = vunpack.c.h.b16 %v6782
        %v8310 = vunpack.c.l.b16 %v6783
        %v8311 = vunpack.c.h.b16 %v6783
        %v8312 = vunpack.c.l.b16 %v6784
        %v8313 = vunpack.c.h.b16 %v6784
        %v8314 = vunpack.c.l.b16 %v6785
        %v8315 = vunpack.c.h.b16 %v6785
        %v8316 = vunpack.c.l.b16 %v6786
        %v8317 = vunpack.c.h.b16 %v6786
        %v8318 = vunpack.c.l.b16 %v6787
        %v8319 = vunpack.c.h.b16 %v6787
        %v8320 = vunpack.c.l.b16 %v6788
        %v8321 = vunpack.c.h.b16 %v6788
        %v8322 = vunpack.c.l.b16 %v6789
        %v8323 = vunpack.c.h.b16 %v6789
        %v8324 = vunpack.c.l.b16 %v6790
        %v8325 = vunpack.c.h.b16 %v6790
        %v8326 = vunpack.c.l.b16 %v6791
        %v8327 = vunpack.c.h.b16 %v6791
        %v8328 = vunpack.c.l.b16 %v6792
        %v8329 = vunpack.c.h.b16 %v6792
        %v8330 = vunpack.c.l.b16 %v6793
        %v8331 = vunpack.c.h.b16 %v6793
        %v8332 = vunpack.c.l.b16 %v6794
        %v8333 = vunpack.c.h.b16 %v6794
        %v8334 = vunpack.c.l.b16 %v6795
        %v8335 = vunpack.c.h.b16 %v6795
        %v8336 = vunpack.c.l.b16 %v6796
        %v8337 = vunpack.c.h.b16 %v6796
        %v8338 = vunpack.c.l.b16 %v6797
        %v8339 = vunpack.c.h.b16 %v6797
        %v8340 = vunpack.c.l.b16 %v6798
        %v8341 = vunpack.c.h.b16 %v6798
        %v8342 = vunpack.c.l.b16 %v6799
        %v8343 = vunpack.c.h.b16 %v6799
        %v8344 = vunpack.c.l.b16 %v6800
        %v8345 = vunpack.c.h.b16 %v6800
        %v8346 = vunpack.c.l.b16 %v6801
        %v8347 = vunpack.c.h.b16 %v6801
        %v8348 = vunpack.c.l.b16 %v6802
        %v8349 = vunpack.c.h.b16 %v6802
        %v8350 = vunpack.c.l.b16 %v6803
        %v8351 = vunpack.c.h.b16 %v6803
        %v8352 = vunpack.c.l.b16 %v6804
        %v8353 = vunpack.c.h.b16 %v6804
        %v8354 = vunpack.c.l.b16 %v6805
        %v8355 = vunpack.c.h.b16 %v6805
        %v8356 = vunpack.c.l.b16 %v6806
        %v8357 = vunpack.c.h.b16 %v6806
        %v8358 = vunpack.c.l.b16 %v6807
        %v8359 = vunpack.c.h.b16 %v6807
        %v8360 = vunpack.c.l.b16 %v6808
        %v8361 = vunpack.c.h.b16 %v6808
        %v8362 = vunpack.c.l.b16 %v6809
        %v8363 = vunpack.c.h.b16 %v6809
        %v8364 = vunpack.c.l.b16 %v6810
        %v8365 = vunpack.c.h.b16 %v6810
        %v8366 = vunpack.c.l.b16 %v6811
        %v8367 = vunpack.c.h.b16 %v6811
        %v8368 = vunpack.c.l.b16 %v6812
        %v8369 = vunpack.c.h.b16 %v6812
        %v8370 = vunpack.c.l.b16 %v6813
        %v8371 = vunpack.c.h.b16 %v6813
        %v8372 = vunpack.c.l.b16 %v6814
        %v8373 = vunpack.c.h.b16 %v6814
        %v8374 = vunpack.c.l.b16 %v6815
        %v8375 = vunpack.c.h.b16 %v6815
        %v8376 = vunpack.c.l.b16 %v6816
        %v8377 = vunpack.c.h.b16 %v6816
        %v8378 = vunpack.c.l.b16 %v6817
        %v8379 = vunpack.c.h.b16 %v6817
        %v8380 = vunpack.c.l.b16 %v6818
        %v8381 = vunpack.c.h.b16 %v6818
        %v8382 = vunpack.c.l.b16 %v6819
        %v8383 = vunpack.c.h.b16 %v6819
        %v8384 = vunpack.c.l.b16 %v6820
        %v8385 = vunpack.c.h.b16 %v6820
        %v8386 = vunpack.c.l.b16 %v6821
        %v8387 = vunpack.c.h.b16 %v6821
        %v8388 = vunpack.c.l.b16 %v6822
        %v8389 = vunpack.c.h.b16 %v6822
        %v8390 = vunpack.c.l.b16 %v6823
        %v8391 = vunpack.c.h.b16 %v6823
        %v8392 = vunpack.c.l.b16 %v6824
        %v8393 = vunpack.c.h.b16 %v6824
        %v8394 = vunpack.c.l.b16 %v6825
        %v8395 = vunpack.c.h.b16 %v6825
        %v8396 = vunpack.c.l.b16 %v6826
        %v8397 = vunpack.c.h.b16 %v6826
        %v8398 = vunpack.c.l.b16 %v6827
        %v8399 = vunpack.c.h.b16 %v6827
        %v8400 = vunpack.c.l.b16 %v6828
        %v8401 = vunpack.c.h.b16 %v6828
        %v8402 = vunpack.c.l.b16 %v6829
        %v8403 = vunpack.c.h.b16 %v6829
        %v8404 = vunpack.c.l.b16 %v6830
        %v8405 = vunpack.c.h.b16 %v6830
        %v8406 = vunpack.c.l.b16 %v6831
        %v8407 = vunpack.c.h.b16 %v6831
        %v8408 = vunpack.c.l.b16 %v6832
        %v8409 = vunpack.c.h.b16 %v6832
        %v8410 = vunpack.c.l.b16 %v6833
        %v8411 = vunpack.c.h.b16 %v6833
        %v8412 = vunpack.c.l.b16 %v6834
        %v8413 = vunpack.c.h.b16 %v6834
        %v8414 = vunpack.c.l.b16 %v6835
        %v8415 = vunpack.c.h.b16 %v6835
        %v8416 = vunpack.c.l.b16 %v6836
        %v8417 = vunpack.c.h.b16 %v6836
        %v8418 = vunpack.c.l.b16 %v6837
        %v8419 = vunpack.c.h.b16 %v6837
        %v8420 = vunpack.c.l.b16 %v6838
        %v8421 = vunpack.c.h.b16 %v6838
        %v8422 = vunpack.c.l.b16 %v6839
        %v8423 = vunpack.c.h.b16 %v6839
        %v8424 = vunpack.c.l.b16 %v6840
        %v8425 = vunpack.c.h.b16 %v6840
        %v8426 = vunpack.c.l.b16 %v6841
        %v8427 = vunpack.c.h.b16 %v6841
        %v8428 = vunpack.c.l.b16 %v6842
        %v8429 = vunpack.c.h.b16 %v6842
        %v8430 = vunpack.c.l.b16 %v6843
        %v8431 = vunpack.c.h.b16 %v6843
        %v8432 = vunpack.c.l.b16 %v6844
        %v8433 = vunpack.c.h.b16 %v6844
        %v8434 = vunpack.c.l.b16 %v6845
        %v8435 = vunpack.c.h.b16 %v6845
        %v8436 = vunpack.c.l.b16 %v6846
        %v8437 = vunpack.c.h.b16 %v6846
        %v8438 = vunpack.c.l.b16 %v6847
        %v8439 = vunpack.c.h.b16 %v6847
        %v8440 = vunpack.c.l.b16 %v6848
        %v8441 = vunpack.c.h.b16 %v6848
        %v8442 = vunpack.c.l.b16 %v6849
        %v8443 = vunpack.c.h.b16 %v6849
        %v8444 = vunpack.c.l.b16 %v6850
        %v8445 = vunpack.c.h.b16 %v6850
        %v8446 = vunpack.c.l.b16 %v6851
        %v8447 = vunpack.c.h.b16 %v6851
        %v8448 = vunpack.c.l.b16 %v6852
        %v8449 = vunpack.c.h.b16 %v6852
        %v8450 = vunpack.c.l.b16 %v6853
        %v8451 = vunpack.c.h.b16 %v6853
        %v8452 = vunpack.c.l.b16 %v6854
        %v8453 = vunpack.c.h.b16 %v6854
        %v8454 = vunpack.c.l.b16 %v6855
        %v8455 = vunpack.c.h.b16 %v6855
        %v8456 = vunpack.c.l.b16 %v6856
        %v8457 = vunpack.c.h.b16 %v6856
        %v8458 = vunpack.c.l.b16 %v6857
        %v8459 = vunpack.c.h.b16 %v6857
        %v8460 = vunpack.c.l.b16 %v6858
        %v8461 = vunpack.c.h.b16 %v6858
        %v8462 = vunpack.c.l.b16 %v6859
        %v8463 = vunpack.c.h.b16 %v6859
        %v8464 = vunpack.c.l.b16 %v6860
        %v8465 = vunpack.c.h.b16 %v6860
        %v8466 = vunpack.c.l.b16 %v6861
        %v8467 = vunpack.c.h.b16 %v6861
        %v8468 = vunpack.c.l.b16 %v6862
        %v8469 = vunpack.c.h.b16 %v6862
        %v8470 = vunpack.c.l.b16 %v6863
        %v8471 = vunpack.c.h.b16 %v6863
        %v8472 = vunpack.c.l.b16 %v6864
        %v8473 = vunpack.c.h.b16 %v6864
        %v8474 = vunpack.c.l.b16 %v6865
        %v8475 = vunpack.c.h.b16 %v6865
        %v8476 = vunpack.c.l.b16 %v6866
        %v8477 = vunpack.c.h.b16 %v6866
        %v8478 = vunpack.c.l.b16 %v6867
        %v8479 = vunpack.c.h.b16 %v6867
        %v8480 = vunpack.c.l.b16 %v6868
        %v8481 = vunpack.c.h.b16 %v6868
        %v8482 = vunpack.c.l.b16 %v6869
        %v8483 = vunpack.c.h.b16 %v6869
        %v8484 = vunpack.c.l.b16 %v6870
        %v8485 = vunpack.c.h.b16 %v6870
        %v8486 = vunpack.c.l.b16 %v6871
        %v8487 = vunpack.c.h.b16 %v6871
        %v8488 = vunpack.c.l.b16 %v6872
        %v8489 = vunpack.c.h.b16 %v6872
        %v8490 = vunpack.c.l.b16 %v6873
        %v8491 = vunpack.c.h.b16 %v6873
        %v8492 = vunpack.c.l.b16 %v6874
        %v8493 = vunpack.c.h.b16 %v6874
        %v8494 = vunpack.c.l.b16 %v6875
        %v8495 = vunpack.c.h.b16 %v6875
        %v8496 = vunpack.c.l.b16 %v6876
        %v8497 = vunpack.c.h.b16 %v6876
        %v8498 = vunpack.c.l.b16 %v6877
        %v8499 = vunpack.c.h.b16 %v6877
        %v8500 = vunpack.c.l.b16 %v6878
        %v8501 = vunpack.c.h.b16 %v6878
        %v8502 = vunpack.c.l.b16 %v6879
        %v8503 = vunpack.c.h.b16 %v6879
        %v8504 = vunpack.c.l.b16 %v6880
        %v8505 = vunpack.c.h.b16 %v6880
        %v8506 = vunpack.c.l.b16 %v6881
        %v8507 = vunpack.c.h.b16 %v6881
        %v8508 = vunpack.c.l.b16 %v6882
        %v8509 = vunpack.c.h.b16 %v6882
        %v8510 = vunpack.c.l.b16 %v6883
        %v8511 = vunpack.c.h.b16 %v6883
        %v8512 = vunpack.c.l.b16 %v6884
        %v8513 = vunpack.c.h.b16 %v6884
        %v8514 = vunpack.c.l.b16 %v6885
        %v8515 = vunpack.c.h.b16 %v6885
        %v8516 = vunpack.c.l.b16 %v6886
        %v8517 = vunpack.c.h.b16 %v6886
        %v8518 = vunpack.c.l.b16 %v6887
        %v8519 = vunpack.c.h.b16 %v6887
        %v8520 = vunpack.c.l.b16 %v6888
        %v8521 = vunpack.c.h.b16 %v6888
        %v8522 = vunpack.c.l.b16 %v6889
        %v8523 = vunpack.c.h.b16 %v6889
        %v8524 = vunpack.c.l.b16 %v6890
        %v8525 = vunpack.c.h.b16 %v6890
        %v8526 = vunpack.c.l.b16 %v6891
        %v8527 = vunpack.c.h.b16 %v6891
        %v8528 = vunpack.c.l.b16 %v6892
        %v8529 = vunpack.c.h.b16 %v6892
        %v8530 = vunpack.c.l.b16 %v6893
        %v8531 = vunpack.c.h.b16 %v6893
        %v8532 = vunpack.c.l.b16 %v6894
        %v8533 = vunpack.c.h.b16 %v6894
        %v8534 = vunpack.c.l.b16 %v6895
        %v8535 = vunpack.c.h.b16 %v6895
        %v8536 = vunpack.c.l.b16 %v6896
        %v8537 = vunpack.c.h.b16 %v6896
        %v8538 = vunpack.c.l.b16 %v6897
        %v8539 = vunpack.c.h.b16 %v6897
        %v8540 = vunpack.c.l.b16 %v6898
        %v8541 = vunpack.c.h.b16 %v6898
        %v8542 = vunpack.c.l.b16 %v6899
        %v8543 = vunpack.c.h.b16 %v6899
        %v8544 = vunpack.c.l.b16 %v6900
        %v8545 = vunpack.c.h.b16 %v6900
        %v8546 = vunpack.c.l.b16 %v6901
        %v8547 = vunpack.c.h.b16 %v6901
        %v8548 = vunpack.c.l.b16 %v6902
        %v8549 = vunpack.c.h.b16 %v6902
        %v8550 = vunpack.c.l.b16 %v6903
        %v8551 = vunpack.c.h.b16 %v6903
        %v8552 = vunpack.c.l.b16 %v6904
        %v8553 = vunpack.c.h.b16 %v6904
        %v8554 = vunpack.c.l.b16 %v6905
        %v8555 = vunpack.c.h.b16 %v6905
        %v8556 = vunpack.c.l.b16 %v6906
        %v8557 = vunpack.c.h.b16 %v6906
        %v8558 = vunpack.c.l.b16 %v6907
        %v8559 = vunpack.c.h.b16 %v6907
        %v8560 = vunpack.c.l.b16 %v6908
        %v8561 = vunpack.c.h.b16 %v6908
        %v8562 = vunpack.c.l.b16 %v6909
        %v8563 = vunpack.c.h.b16 %v6909
        %v8564 = vunpack.c.l.b16 %v6910
        %v8565 = vunpack.c.h.b16 %v6910
        %v8566 = vunpack.c.l.b16 %v6911
        %v8567 = vunpack.c.h.b16 %v6911
        %v8568 = vunpack.c.l.b16 %v6912
        %v8569 = vunpack.c.h.b16 %v6912
        %v8570 = vunpack.c.l.b16 %v6913
        %v8571 = vunpack.c.h.b16 %v6913
        %v8572 = vunpack.c.l.b16 %v6914
        %v8573 = vunpack.c.h.b16 %v6914
        %v8574 = vunpack.c.l.b16 %v6915
        %v8575 = vunpack.c.h.b16 %v6915
        %v8576 = vunpack.c.l.b16 %v6916
        %v8577 = vunpack.c.h.b16 %v6916
        %v8578 = vunpack.c.l.b16 %v6917
        %v8579 = vunpack.c.h.b16 %v6917
        %v8580 = vunpack.c.l.b16 %v6918
        %v8581 = vunpack.c.h.b16 %v6918
        %v8582 = vunpack.c.l.b16 %v6919
        %v8583 = vunpack.c.h.b16 %v6919
        %v8584 = vunpack.c.l.b16 %v6920
        %v8585 = vunpack.c.h.b16 %v6920
        %v8586 = vunpack.c.l.b16 %v6921
        %v8587 = vunpack.c.h.b16 %v6921
        %v8588 = vunpack.c.l.b16 %v6922
        %v8589 = vunpack.c.h.b16 %v6922
        %v8590 = vunpack.c.l.b16 %v6923
        %v8591 = vunpack.c.h.b16 %v6923
        %v8592 = vunpack.c.l.b16 %v6924
        %v8593 = vunpack.c.h.b16 %v6924
        %v8594 = vunpack.c.l.b16 %v6925
        %v8595 = vunpack.c.h.b16 %v6925
        %v8596 = vunpack.c.l.b16 %v6926
        %v8597 = vunpack.c.h.b16 %v6926
        %v8598 = vunpack.c.l.b16 %v6927
        %v8599 = vunpack.c.h.b16 %v6927
        %v8600 = vunpack.c.l.b16 %v6928
        %v8601 = vunpack.c.h.b16 %v6928
        %v8602 = vunpack.c.l.b16 %v6929
        %v8603 = vunpack.c.h.b16 %v6929
        %v8604 = vunpack.c.l.b16 %v6930
        %v8605 = vunpack.c.h.b16 %v6930
        %v8606 = vunpack.c.l.b16 %v6931
        %v8607 = vunpack.c.h.b16 %v6931
        %v8608 = vunpack.c.l.b16 %v6932
        %v8609 = vunpack.c.h.b16 %v6932
        %v8610 = vunpack.c.l.b16 %v6933
        %v8611 = vunpack.c.h.b16 %v6933
        %v8612 = vunpack.c.l.b16 %v6934
        %v8613 = vunpack.c.h.b16 %v6934
        %v8614 = vunpack.c.l.b16 %v6935
        %v8615 = vunpack.c.h.b16 %v6935
        %v8616 = vunpack.c.l.b16 %v6936
        %v8617 = vunpack.c.h.b16 %v6936
        %v8618 = vunpack.c.l.b16 %v6937
        %v8619 = vunpack.c.h.b16 %v6937
        %v8620 = vunpack.c.l.b16 %v6938
        %v8621 = vunpack.c.h.b16 %v6938
        %v8622 = vunpack.c.l.b16 %v6939
        %v8623 = vunpack.c.h.b16 %v6939
        %v8624 = vunpack.c.l.b16 %v6940
        %v8625 = vunpack.c.h.b16 %v6940
        %v8626 = vunpack.c.l.b16 %v6941
        %v8627 = vunpack.c.h.b16 %v6941
        %v8628 = vunpack.c.l.b16 %v6942
        %v8629 = vunpack.c.h.b16 %v6942
        %v8630 = vunpack.c.l.b16 %v6943
        %v8631 = vunpack.c.h.b16 %v6943
        %v8632 = vunpack.c.l.b16 %v6944
        %v8633 = vunpack.c.h.b16 %v6944
        %v8634 = vunpack.c.l.b16 %v6945
        %v8635 = vunpack.c.h.b16 %v6945
        %v8636 = vunpack.c.l.b16 %v6946
        %v8637 = vunpack.c.h.b16 %v6946
        %v8638 = vunpack.c.l.b16 %v6947
        %v8639 = vunpack.c.h.b16 %v6947
        %v8640 = vunpack.c.l.b16 %v6948
        %v8641 = vunpack.c.h.b16 %v6948
        %v8642 = vunpack.c.l.b16 %v6949
        %v8643 = vunpack.c.h.b16 %v6949
        %v8644 = vunpack.c.l.b16 %v6950
        %v8645 = vunpack.c.h.b16 %v6950
        %v8646 = vunpack.c.l.b16 %v6951
        %v8647 = vunpack.c.h.b16 %v6951
        %v8648 = vunpack.c.l.b16 %v6952
        %v8649 = vunpack.c.h.b16 %v6952
        %v8650 = vunpack.c.l.b16 %v6953
        %v8651 = vunpack.c.h.b16 %v6953
        %v8652 = vunpack.c.l.b16 %v6954
        %v8653 = vunpack.c.h.b16 %v6954
        %v8654 = vunpack.c.l.b16 %v6955
        %v8655 = vunpack.c.h.b16 %v6955
        %v8656 = vunpack.c.l.b16 %v6956
        %v8657 = vunpack.c.h.b16 %v6956
        %v8658 = vunpack.c.l.b16 %v6957
        %v8659 = vunpack.c.h.b16 %v6957
        %v8660 = vunpack.c.l.b16 %v6958
        %v8661 = vunpack.c.h.b16 %v6958
        %v8662 = vunpack.c.l.b16 %v6959
        %v8663 = vunpack.c.h.b16 %v6959
        %v8664 = vunpack.c.l.b16 %v6960
        %v8665 = vunpack.c.h.b16 %v6960
        %v8666 = vunpack.c.l.b16 %v6961
        %v8667 = vunpack.c.h.b16 %v6961
        %v8668 = vunpack.c.l.b16 %v6962
        %v8669 = vunpack.c.h.b16 %v6962
        %v8670 = vunpack.c.l.b16 %v6963
        %v8671 = vunpack.c.h.b16 %v6963
        %v8672 = vunpack.c.l.b16 %v6964
        %v8673 = vunpack.c.h.b16 %v6964
        %v8674 = vunpack.c.l.b16 %v6965
        %v8675 = vunpack.c.h.b16 %v6965
        %v8676 = vunpack.c.l.b16 %v6966
        %v8677 = vunpack.c.h.b16 %v6966
        %v8678 = vunpack.c.l.b16 %v6967
        %v8679 = vunpack.c.h.b16 %v6967
        %v8680 = vunpack.c.l.b16 %v6968
        %v8681 = vunpack.c.h.b16 %v6968
        %v8682 = vunpack.c.l.b16 %v6969
        %v8683 = vunpack.c.h.b16 %v6969
        %v8684 = vunpack.c.l.b16 %v6970
        %v8685 = vunpack.c.h.b16 %v6970
        %v8686 = vunpack.c.l.b16 %v6971
        %v8687 = vunpack.c.h.b16 %v6971
        %v8688 = vunpack.c.l.b16 %v6972
        %v8689 = vunpack.c.h.b16 %v6972
        %v8690 = vunpack.c.l.b16 %v6973
        %v8691 = vunpack.c.h.b16 %v6973
        %v8692 = vunpack.c.l.b16 %v6974
        %v8693 = vunpack.c.h.b16 %v6974
        %v8694 = vunpack.c.l.b16 %v6975
        %v8695 = vunpack.c.h.b16 %v6975
        %v8696 = vunpack.c.l.b16 %v6976
        %v8697 = vunpack.c.h.b16 %v6976
        %v8698 = vunpack.c.l.b16 %v6977
        %v8699 = vunpack.c.h.b16 %v6977
        %v8700 = vunpack.c.l.b16 %v6978
        %v8701 = vunpack.c.h.b16 %v6978
        %v8702 = vunpack.c.l.b16 %v6979
        %v8703 = vunpack.c.h.b16 %v6979
        %v8704 = vunpack.c.l.b16 %v6980
        %v8705 = vunpack.c.h.b16 %v6980
        %v8706 = vunpack.c.l.b16 %v6981
        %v8707 = vunpack.c.h.b16 %v6981
        %v8708 = vunpack.c.l.b16 %v6982
        %v8709 = vunpack.c.h.b16 %v6982
        %v8710 = vunpack.c.l.b16 %v6983
        %v8711 = vunpack.c.h.b16 %v6983
        %v8712 = vunpack.c.l.b16 %v6984
        %v8713 = vunpack.c.h.b16 %v6984
        %v8714 = vunpack.c.l.b16 %v6985
        %v8715 = vunpack.c.h.b16 %v6985
        %v8716 = vunpack.c.l.b16 %v6986
        %v8717 = vunpack.c.h.b16 %v6986
        %v8718 = vunpack.c.l.b16 %v6987
        %v8719 = vunpack.c.h.b16 %v6987
        %v8720 = vunpack.c.l.b16 %v6988
        %v8721 = vunpack.c.h.b16 %v6988
        %v8722 = vunpack.c.l.b16 %v6989
        %v8723 = vunpack.c.h.b16 %v6989
        %v8724 = vunpack.c.l.b16 %v6990
        %v8725 = vunpack.c.h.b16 %v6990
        %v8726 = vunpack.c.l.b16 %v6991
        %v8727 = vunpack.c.h.b16 %v6991
        %v8728 = vunpack.c.l.b16 %v6992
        %v8729 = vunpack.c.h.b16 %v6992
        %v8730 = vunpack.c.l.b16 %v6993
        %v8731 = vunpack.c.h.b16 %v6993
        %v8732 = vunpack.c.l.b16 %v6994
        %v8733 = vunpack.c.h.b16 %v6994
        %v8734 = vunpack.c.l.b16 %v6995
        %v8735 = vunpack.c.h.b16 %v6995
        %v8736 = vunpack.c.l.b16 %v6996
        %v8737 = vunpack.c.h.b16 %v6996
        %v8738 = vunpack.c.l.b16 %v6997
        %v8739 = vunpack.c.h.b16 %v6997
        %v8740 = vunpack.c.l.b16 %v6998
        %v8741 = vunpack.c.h.b16 %v6998
        %v8742 = vunpack.c.l.b16 %v6999
        %v8743 = vunpack.c.h.b16 %v6999
        %v8744 = vunpack.c.l.b16 %v7000
        %v8745 = vunpack.c.h.b16 %v7000
        %v8746 = vunpack.c.l.b16 %v7001
        %v8747 = vunpack.c.h.b16 %v7001
        %v8748 = vunpack.c.l.b16 %v7002
        %v8749 = vunpack.c.h.b16 %v7002
        %v8750 = vunpack.c.l.b16 %v7003
        %v8751 = vunpack.c.h.b16 %v7003
        %v8752 = vunpack.c.l.b16 %v7004
        %v8753 = vunpack.c.h.b16 %v7004
        %v8754 = vunpack.c.l.b16 %v7005
        %v8755 = vunpack.c.h.b16 %v7005
        %v8756 = vpack.c.b16 %v7608, %v7604
        %v8757 = vpack.c.b16 %v7609, %v7605
        %v8758 = vpack.c.b16 %v7610, %v7606
        %v8759 = vpack.c.b16 %v7611, %v7607
        %v8760 = vpack.c.b16 %v7616, %v7612
        %v8761 = vpack.c.b16 %v7617, %v7613
        %v8762 = vpack.c.b16 %v7618, %v7614
        %v8763 = vpack.c.b16 %v7619, %v7615
        %v8764 = vpack.c.b16 %v7624, %v7620
        %v8765 = vpack.c.b16 %v7625, %v7621
        %v8766 = vpack.c.b16 %v7626, %v7622
        %v8767 = vpack.c.b16 %v7627, %v7623
        %v8768 = vpack.c.b16 %v7632, %v7628
        %v8769 = vpack.c.b16 %v7633, %v7629
        %v8770 = vpack.c.b16 %v7634, %v7630
        %v8771 = vpack.c.b16 %v7635, %v7631
        %v8772 = vpack.c.b16 %v7640, %v7636
        %v8773 = vpack.c.b16 %v7641, %v7637
        %v8774 = vpack.c.b16 %v7642, %v7638
        %v8775 = vpack.c.b16 %v7643, %v7639
        %v8776 = vpack.c.b16 %v7648, %v7644
        %v8777 = vpack.c.b16 %v7649, %v7645
        %v8778 = vpack.c.b16 %v7650, %v7646
        %v8779 = vpack.c.b16 %v7651, %v7647
        %v8780 = vpack.c.b16 %v7656, %v7652
        %v8781 = vpack.c.b16 %v7657, %v7653
        %v8782 = vpack.c.b16 %v7658, %v7654
        %v8783 = vpack.c.b16 %v7659, %v7655
        %v8784 = vpack.c.b16 %v7664, %v7660
        %v8785 = vpack.c.b16 %v7665, %v7661
        %v8786 = vpack.c.b16 %v7666, %v7662
        %v8787 = vpack.c.b16 %v7667, %v7663
        %v8788 = vpack.c.b16 %v7672, %v7668
        %v8789 = vpack.c.b16 %v7673, %v7669
        %v8790 = vpack.c.b16 %v7674, %v7670
        %v8791 = vpack.c.b16 %v7675, %v7671
        %v8792 = vpack.c.b16 %v7680, %v7676
        %v8793 = vpack.c.b16 %v7681, %v7677
        %v8794 = vpack.c.b16 %v7682, %v7678
        %v8795 = vpack.c.b16 %v7683, %v7679
        %v8796 = vpack.c.b16 %v7688, %v7684
        %v8797 = vpack.c.b16 %v7689, %v7685
        %v8798 = vpack.c.b16 %v7690, %v7686
        %v8799 = vpack.c.b16 %v7691, %v7687
        %v8800 = vpack.c.b16 %v7696, %v7692
        %v8801 = vpack.c.b16 %v7697, %v7693
        %v8802 = vpack.c.b16 %v7698, %v7694
        %v8803 = vpack.c.b16 %v7699, %v7695
        %v8804 = vpack.c.b16 %v7704, %v7700
        %v8805 = vpack.c.b16 %v7705, %v7701
        %v8806 = vpack.c.b16 %v7706, %v7702
        %v8807 = vpack.c.b16 %v7707, %v7703
        %v8808 = vpack.c.b16 %v7712, %v7708
        %v8809 = vpack.c.b16 %v7713, %v7709
        %v8810 = vpack.c.b16 %v7714, %v7710
        %v8811 = vpack.c.b16 %v7715, %v7711
        %v8812 = vpack.c.b16 %v7720, %v7716
        %v8813 = vpack.c.b16 %v7721, %v7717
        %v8814 = vpack.c.b16 %v7722, %v7718
        %v8815 = vpack.c.b16 %v7723, %v7719
        %v8816 = vpack.c.b16 %v7728, %v7724
        %v8817 = vpack.c.b16 %v7729, %v7725
        %v8818 = vpack.c.b16 %v7730, %v7726
        %v8819 = vpack.c.b16 %v7731, %v7727
        %v8820 = vpack.c.b16 %v7736, %v7732
        %v8821 = vpack.c.b16 %v7737, %v7733
        %v8822 = vpack.c.b16 %v7738, %v7734
        %v8823 = vpack.c.b16 %v7739, %v7735
        %v8824 = vpack.c.b16 %v7744, %v7740
        %v8825 = vpack.c.b16 %v7745, %v7741
        %v8826 = vpack.c.b16 %v7746, %v7742
        %v8827 = vpack.c.b16 %v7747, %v7743
        %v8828 = vpack.c.b16 %v7752, %v7748
        %v8829 = vpack.c.b16 %v7753, %v7749
        %v8830 = vpack.c.b16 %v7754, %v7750
        %v8831 = vpack.c.b16 %v7755, %v7751
        %v8832 = vpack.c.b16 %v7760, %v7756
        %v8833 = vpack.c.b16 %v7761, %v7757
        %v8834 = vpack.c.b16 %v7762, %v7758
        %v8835 = vpack.c.b16 %v7763, %v7759
        %v8836 = vpack.c.b16 %v7768, %v7764
        %v8837 = vpack.c.b16 %v7769, %v7765
        %v8838 = vpack.c.b16 %v7770, %v7766
        %v8839 = vpack.c.b16 %v7771, %v7767
        %v8840 = vpack.c.b16 %v7776, %v7772
        %v8841 = vpack.c.b16 %v7777, %v7773
        %v8842 = vpack.c.b16 %v7778, %v7774
        %v8843 = vpack.c.b16 %v7779, %v7775
        %v8844 = vpack.c.b16 %v7784, %v7780
        %v8845 = vpack.c.b16 %v7785, %v7781
        %v8846 = vpack.c.b16 %v7786, %v7782
        %v8847 = vpack.c.b16 %v7787, %v7783
        %v8848 = vpack.c.b16 %v7792, %v7788
        %v8849 = vpack.c.b16 %v7793, %v7789
        %v8850 = vpack.c.b16 %v7794, %v7790
        %v8851 = vpack.c.b16 %v7795, %v7791
        %v8852 = vpack.c.b16 %v7800, %v7796
        %v8853 = vpack.c.b16 %v7801, %v7797
        %v8854 = vpack.c.b16 %v7802, %v7798
        %v8855 = vpack.c.b16 %v7803, %v7799
        %v8856 = vpack.c.b16 %v7808, %v7804
        %v8857 = vpack.c.b16 %v7809, %v7805
        %v8858 = vpack.c.b16 %v7810, %v7806
        %v8859 = vpack.c.b16 %v7811, %v7807
        %v8860 = vpack.c.b16 %v7816, %v7812
        %v8861 = vpack.c.b16 %v7817, %v7813
        %v8862 = vpack.c.b16 %v7818, %v7814
        %v8863 = vpack.c.b16 %v7819, %v7815
        %v8864 = vpack.c.b16 %v7824, %v7820
        %v8865 = vpack.c.b16 %v7825, %v7821
        %v8866 = vpack.c.b16 %v7826, %v7822
        %v8867 = vpack.c.b16 %v7827, %v7823
        %v8868 = vpack.c.b16 %v7832, %v7828
        %v8869 = vpack.c.b16 %v7833, %v7829
        %v8870 = vpack.c.b16 %v7834, %v7830
        %v8871 = vpack.c.b16 %v7835, %v7831
        %v8872 = vpack.c.b16 %v7840, %v7836
        %v8873 = vpack.c.b16 %v7841, %v7837
        %v8874 = vpack.c.b16 %v7842, %v7838
        %v8875 = vpack.c.b16 %v7843, %v7839
        %v8876 = vpack.c.b16 %v7848, %v7844
        %v8877 = vpack.c.b16 %v7849, %v7845
        %v8878 = vpack.c.b16 %v7850, %v7846
        %v8879 = vpack.c.b16 %v7851, %v7847
        %v8880 = vpack.c.b16 %v7856, %v7852
        %v8881 = vpack.c.b16 %v7857, %v7853
        %v8882 = vpack.c.b16 %v7858, %v7854
        %v8883 = vpack.c.b16 %v7859, %v7855
        %v8884 = vpack.c.b16 %v7864, %v7860
        %v8885 = vpack.c.b16 %v7865, %v7861
        %v8886 = vpack.c.b16 %v7866, %v7862
        %v8887 = vpack.c.b16 %v7867, %v7863
        %v8888 = vpack.c.b16 %v7872, %v7868
        %v8889 = vpack.c.b16 %v7873, %v7869
        %v8890 = vpack.c.b16 %v7874, %v7870
        %v8891 = vpack.c.b16 %v7875, %v7871
        %v8892 = vpack.c.b16 %v7880, %v7876
        %v8893 = vpack.c.b16 %v7881, %v7877
        %v8894 = vpack.c.b16 %v7882, %v7878
        %v8895 = vpack.c.b16 %v7883, %v7879
        %v8896 = vpack.c.b16 %v7888, %v7884
        %v8897 = vpack.c.b16 %v7889, %v7885
        %v8898 = vpack.c.b16 %v7890, %v7886
        %v8899 = vpack.c.b16 %v7891, %v7887
        %v8900 = vpack.c.b16 %v7896, %v7892
        %v8901 = vpack.c.b16 %v7897, %v7893
        %v8902 = vpack.c.b16 %v7898, %v7894
        %v8903 = vpack.c.b16 %v7899, %v7895
        %v8904 = vpack.c.b16 %v7904, %v7900
        %v8905 = vpack.c.b16 %v7905, %v7901
        %v8906 = vpack.c.b16 %v7906, %v7902
        %v8907 = vpack.c.b16 %v7907, %v7903
        %v8908 = vpack.c.b16 %v7912, %v7908
        %v8909 = vpack.c.b16 %v7913, %v7909
        %v8910 = vpack.c.b16 %v7914, %v7910
        %v8911 = vpack.c.b16 %v7915, %v7911
        %v8912 = vpack.c.b16 %v7920, %v7916
        %v8913 = vpack.c.b16 %v7921, %v7917
        %v8914 = vpack.c.b16 %v7922, %v7918
        %v8915 = vpack.c.b16 %v7923, %v7919
        %v8916 = vpack.c.b16 %v7928, %v7924
        %v8917 = vpack.c.b16 %v7929, %v7925
        %v8918 = vpack.c.b16 %v7930, %v7926
        %v8919 = vpack.c.b16 %v7931, %v7927
        %v8920 = vpack.c.b16 %v7936, %v7932
        %v8921 = vpack.c.b16 %v7937, %v7933
        %v8922 = vpack.c.b16 %v7938, %v7934
        %v8923 = vpack.c.b16 %v7939, %v7935
        %v8924 = vpack.c.b16 %v7944, %v7940
        %v8925 = vpack.c.b16 %v7945, %v7941
        %v8926 = vpack.c.b16 %v7946, %v7942
        %v8927 = vpack.c.b16 %v7947, %v7943
        %v8928 = vpack.c.b16 %v7952, %v7948
        %v8929 = vpack.c.b16 %v7953, %v7949
        %v8930 = vpack.c.b16 %v7954, %v7950
        %v8931 = vpack.c.b16 %v7955, %v7951
        %v8932 = vpack.c.b16 %v7960, %v7956
        %v8933 = vpack.c.b16 %v7961, %v7957
        %v8934 = vpack.c.b16 %v7962, %v7958
        %v8935 = vpack.c.b16 %v7963, %v7959
        %v8936 = vpack.c.b16 %v7968, %v7964
        %v8937 = vpack.c.b16 %v7969, %v7965
        %v8938 = vpack.c.b16 %v7970, %v7966
        %v8939 = vpack.c.b16 %v7971, %v7967
        %v8940 = vpack.c.b16 %v7976, %v7972
        %v8941 = vpack.c.b16 %v7977, %v7973
        %v8942 = vpack.c.b16 %v7978, %v7974
        %v8943 = vpack.c.b16 %v7979, %v7975
        %v8944 = vpack.c.b16 %v7984, %v7980
        %v8945 = vpack.c.b16 %v7985, %v7981
        %v8946 = vpack.c.b16 %v7986, %v7982
        %v8947 = vpack.c.b16 %v7987, %v7983
        %v8948 = vpack.c.b16 %v7992, %v7988
        %v8949 = vpack.c.b16 %v7993, %v7989
        %v8950 = vpack.c.b16 %v7994, %v7990
        %v8951 = vpack.c.b16 %v7995, %v7991
        %v8952 = vpack.c.b16 %v8000, %v7996
        %v8953 = vpack.c.b16 %v8001, %v7997
        %v8954 = vpack.c.b16 %v8002, %v7998
        %v8955 = vpack.c.b16 %v8003, %v7999
        %v8956 = vpack.c.b16 %v8008, %v8004
        %v8957 = vpack.c.b16 %v8009, %v8005
        %v8958 = vpack.c.b16 %v8010, %v8006
        %v8959 = vpack.c.b16 %v8011, %v8007
        %v8960 = vpack.c.b16 %v8016, %v8012
        %v8961 = vpack.c.b16 %v8017, %v8013
        %v8962 = vpack.c.b16 %v8018, %v8014
        %v8963 = vpack.c.b16 %v8019, %v8015
        %v8964 = vpack.c.b16 %v8024, %v8020
        %v8965 = vpack.c.b16 %v8025, %v8021
        %v8966 = vpack.c.b16 %v8026, %v8022
        %v8967 = vpack.c.b16 %v8027, %v8023
        %v8968 = vpack.c.b16 %v8032, %v8028
        %v8969 = vpack.c.b16 %v8033, %v8029
        %v8970 = vpack.c.b16 %v8034, %v8030
        %v8971 = vpack.c.b16 %v8035, %v8031
        %v8972 = vpack.c.b16 %v8040, %v8036
        %v8973 = vpack.c.b16 %v8041, %v8037
        %v8974 = vpack.c.b16 %v8042, %v8038
        %v8975 = vpack.c.b16 %v8043, %v8039
        %v8976 = vpack.c.b16 %v8048, %v8044
        %v8977 = vpack.c.b16 %v8049, %v8045
        %v8978 = vpack.c.b16 %v8050, %v8046
        %v8979 = vpack.c.b16 %v8051, %v8047
        %v8980 = vpack.c.b16 %v8056, %v8052
        %v8981 = vpack.c.b16 %v8057, %v8053
        %v8982 = vpack.c.b16 %v8058, %v8054
        %v8983 = vpack.c.b16 %v8059, %v8055
        %v8984 = vpack.c.b16 %v8064, %v8060
        %v8985 = vpack.c.b16 %v8065, %v8061
        %v8986 = vpack.c.b16 %v8066, %v8062
        %v8987 = vpack.c.b16 %v8067, %v8063
        %v8988 = vpack.c.b16 %v8072, %v8068
        %v8989 = vpack.c.b16 %v8073, %v8069
        %v8990 = vpack.c.b16 %v8074, %v8070
        %v8991 = vpack.c.b16 %v8075, %v8071
        %v8992 = vpack.c.b16 %v8080, %v8076
        %v8993 = vpack.c.b16 %v8081, %v8077
        %v8994 = vpack.c.b16 %v8082, %v8078
        %v8995 = vpack.c.b16 %v8083, %v8079
        %v8996 = vpack.c.b16 %v8088, %v8084
        %v8997 = vpack.c.b16 %v8089, %v8085
        %v8998 = vpack.c.b16 %v8090, %v8086
        %v8999 = vpack.c.b16 %v8091, %v8087
        %v9000 = vpack.c.b16 %v8096, %v8092
        %v9001 = vpack.c.b16 %v8097, %v8093
        %v9002 = vpack.c.b16 %v8098, %v8094
        %v9003 = vpack.c.b16 %v8099, %v8095
        %v9004 = vpack.c.b16 %v8104, %v8100
        %v9005 = vpack.c.b16 %v8105, %v8101
        %v9006 = vpack.c.b16 %v8106, %v8102
        %v9007 = vpack.c.b16 %v8107, %v8103
        %v9008 = vpack.c.b16 %v8112, %v8108
        %v9009 = vpack.c.b16 %v8113, %v8109
        %v9010 = vpack.c.b16 %v8114, %v8110
        %v9011 = vpack.c.b16 %v8115, %v8111
        %v9012 = vpack.c.b16 %v8120, %v8116
        %v9013 = vpack.c.b16 %v8121, %v8117
        %v9014 = vpack.c.b16 %v8122, %v8118
        %v9015 = vpack.c.b16 %v8123, %v8119
        %v9016 = vpack.c.b16 %v8128, %v8124
        %v9017 = vpack.c.b16 %v8129, %v8125
        %v9018 = vpack.c.b16 %v8130, %v8126
        %v9019 = vpack.c.b16 %v8131, %v8127
        %v9020 = vpack.c.b16 %v8136, %v8132
        %v9021 = vpack.c.b16 %v8137, %v8133
        %v9022 = vpack.c.b16 %v8138, %v8134
        %v9023 = vpack.c.b16 %v8139, %v8135
        %v9024 = vpack.c.b16 %v8144, %v8140
        %v9025 = vpack.c.b16 %v8145, %v8141
        %v9026 = vpack.c.b16 %v8146, %v8142
        %v9027 = vpack.c.b16 %v8147, %v8143
        %v9028 = vpack.c.b16 %v8152, %v8148
        %v9029 = vpack.c.b16 %v8153, %v8149
        %v9030 = vpack.c.b16 %v8154, %v8150
        %v9031 = vpack.c.b16 %v8155, %v8151
        %v9032 = vpack.c.b16 %v8160, %v8156
        %v9033 = vpack.c.b16 %v8161, %v8157
        %v9034 = vpack.c.b16 %v8162, %v8158
        %v9035 = vpack.c.b16 %v8163, %v8159
        %v9036 = vpack.c.b16 %v8168, %v8164
        %v9037 = vpack.c.b16 %v8169, %v8165
        %v9038 = vpack.c.b16 %v8170, %v8166
        %v9039 = vpack.c.b16 %v8171, %v8167
        %v9040 = vpack.c.b16 %v8176, %v8172
        %v9041 = vpack.c.b16 %v8177, %v8173
        %v9042 = vpack.c.b16 %v8178, %v8174
        %v9043 = vpack.c.b16 %v8179, %v8175
        %v9044 = vpack.c.b16 %v8184, %v8180
        %v9045 = vpack.c.b16 %v8185, %v8181
        %v9046 = vpack.c.b16 %v8186, %v8182
        %v9047 = vpack.c.b16 %v8187, %v8183
        %v9048 = vpack.c.b16 %v8192, %v8188
        %v9049 = vpack.c.b16 %v8193, %v8189
        %v9050 = vpack.c.b16 %v8194, %v8190
        %v9051 = vpack.c.b16 %v8195, %v8191
        %v9052 = vpack.c.b16 %v8200, %v8196
        %v9053 = vpack.c.b16 %v8201, %v8197
        %v9054 = vpack.c.b16 %v8202, %v8198
        %v9055 = vpack.c.b16 %v8203, %v8199
        %v9056 = vpack.c.b16 %v8208, %v8204
        %v9057 = vpack.c.b16 %v8209, %v8205
        %v9058 = vpack.c.b16 %v8210, %v8206
        %v9059 = vpack.c.b16 %v8211, %v8207
        %v9060 = vpack.c.b16 %v8216, %v8212
        %v9061 = vpack.c.b16 %v8217, %v8213
        %v9062 = vpack.c.b16 %v8218, %v8214
        %v9063 = vpack.c.b16 %v8219, %v8215
        %v9064 = vpack.c.b16 %v8224, %v8220
        %v9065 = vpack.c.b16 %v8225, %v8221
        %v9066 = vpack.c.b16 %v8226, %v8222
        %v9067 = vpack.c.b16 %v8227, %v8223
        %v9068 = vpack.c.b16 %v8232, %v8228
        %v9069 = vpack.c.b16 %v8233, %v8229
        %v9070 = vpack.c.b16 %v8234, %v8230
        %v9071 = vpack.c.b16 %v8235, %v8231
        %v9072 = vpack.c.b16 %v8240, %v8236
        %v9073 = vpack.c.b16 %v8241, %v8237
        %v9074 = vpack.c.b16 %v8242, %v8238
        %v9075 = vpack.c.b16 %v8243, %v8239
        %v9076 = vpack.c.b16 %v8248, %v8244
        %v9077 = vpack.c.b16 %v8249, %v8245
        %v9078 = vpack.c.b16 %v8250, %v8246
        %v9079 = vpack.c.b16 %v8251, %v8247
        %v9080 = vpack.c.b16 %v8256, %v8252
        %v9081 = vpack.c.b16 %v8257, %v8253
        %v9082 = vpack.c.b16 %v8258, %v8254
        %v9083 = vpack.c.b16 %v8259, %v8255
        %v9084 = vpack.c.b16 %v8264, %v8260
        %v9085 = vpack.c.b16 %v8265, %v8261
        %v9086 = vpack.c.b16 %v8266, %v8262
        %v9087 = vpack.c.b16 %v8267, %v8263
        %v9088 = vpack.c.b16 %v8272, %v8268
        %v9089 = vpack.c.b16 %v8273, %v8269
        %v9090 = vpack.c.b16 %v8274, %v8270
        %v9091 = vpack.c.b16 %v8275, %v8271
        %v9092 = vpack.c.b16 %v8280, %v8276
        %v9093 = vpack.c.b16 %v8281, %v8277
        %v9094 = vpack.c.b16 %v8282, %v8278
        %v9095 = vpack.c.b16 %v8283, %v8279
        %v9096 = vpack.c.b16 %v8288, %v8284
        %v9097 = vpack.c.b16 %v8289, %v8285
        %v9098 = vpack.c.b16 %v8290, %v8286
        %v9099 = vpack.c.b16 %v8291, %v8287
        %v9100 = vpack.c.b16 %v8296, %v8292
        %v9101 = vpack.c.b16 %v8297, %v8293
        %v9102 = vpack.c.b16 %v8298, %v8294
        %v9103 = vpack.c.b16 %v8299, %v8295
        %v9104 = vpack.c.b16 %v8304, %v8300
        %v9105 = vpack.c.b16 %v8305, %v8301
        %v9106 = vpack.c.b16 %v8306, %v8302
        %v9107 = vpack.c.b16 %v8307, %v8303
        %v9108 = vpack.c.b16 %v8312, %v8308
        %v9109 = vpack.c.b16 %v8313, %v8309
        %v9110 = vpack.c.b16 %v8314, %v8310
        %v9111 = vpack.c.b16 %v8315, %v8311
        %v9112 = vpack.c.b16 %v8320, %v8316
        %v9113 = vpack.c.b16 %v8321, %v8317
        %v9114 = vpack.c.b16 %v8322, %v8318
        %v9115 = vpack.c.b16 %v8323, %v8319
        %v9116 = vpack.c.b16 %v8328, %v8324
        %v9117 = vpack.c.b16 %v8329, %v8325
        %v9118 = vpack.c.b16 %v8330, %v8326
        %v9119 = vpack.c.b16 %v8331, %v8327
        %v9120 = vpack.c.b16 %v8336, %v8332
        %v9121 = vpack.c.b16 %v8337, %v8333
        %v9122 = vpack.c.b16 %v8338, %v8334
        %v9123 = vpack.c.b16 %v8339, %v8335
        %v9124 = vpack.c.b16 %v8344, %v8340
        %v9125 = vpack.c.b16 %v8345, %v8341
        %v9126 = vpack.c.b16 %v8346, %v8342
        %v9127 = vpack.c.b16 %v8347, %v8343
        %v9128 = vpack.c.b16 %v8352, %v8348
        %v9129 = vpack.c.b16 %v8353, %v8349
        %v9130 = vpack.c.b16 %v8354, %v8350
        %v9131 = vpack.c.b16 %v8355, %v8351
        %v9132 = vpack.c.b16 %v8360, %v8356
        %v9133 = vpack.c.b16 %v8361, %v8357
        %v9134 = vpack.c.b16 %v8362, %v8358
        %v9135 = vpack.c.b16 %v8363, %v8359
        %v9136 = vpack.c.b16 %v8368, %v8364
        %v9137 = vpack.c.b16 %v8369, %v8365
        %v9138 = vpack.c.b16 %v8370, %v8366
        %v9139 = vpack.c.b16 %v8371, %v8367
        %v9140 = vpack.c.b16 %v8376, %v8372
        %v9141 = vpack.c.b16 %v8377, %v8373
        %v9142 = vpack.c.b16 %v8378, %v8374
        %v9143 = vpack.c.b16 %v8379, %v8375
        %v9144 = vpack.c.b16 %v8384, %v8380
        %v9145 = vpack.c.b16 %v8385, %v8381
        %v9146 = vpack.c.b16 %v8386, %v8382
        %v9147 = vpack.c.b16 %v8387, %v8383
        %v9148 = vpack.c.b16 %v8392, %v8388
        %v9149 = vpack.c.b16 %v8393, %v8389
        %v9150 = vpack.c.b16 %v8394, %v8390
        %v9151 = vpack.c.b16 %v8395, %v8391
        %v9152 = vpack.c.b16 %v8400, %v8396
        %v9153 = vpack.c.b16 %v8401, %v8397
        %v9154 = vpack.c.b16 %v8402, %v8398
        %v9155 = vpack.c.b16 %v8403, %v8399
        %v9156 = vpack.c.b16 %v8408, %v8404
        %v9157 = vpack.c.b16 %v8409, %v8405
        %v9158 = vpack.c.b16 %v8410, %v8406
        %v9159 = vpack.c.b16 %v8411, %v8407
        %v9160 = vpack.c.b16 %v8416, %v8412
        %v9161 = vpack.c.b16 %v8417, %v8413
        %v9162 = vpack.c.b16 %v8418, %v8414
        %v9163 = vpack.c.b16 %v8419, %v8415
        %v9164 = vpack.c.b16 %v8424, %v8420
        %v9165 = vpack.c.b16 %v8425, %v8421
        %v9166 = vpack.c.b16 %v8426, %v8422
        %v9167 = vpack.c.b16 %v8427, %v8423
        %v9168 = vpack.c.b16 %v8432, %v8428
        %v9169 = vpack.c.b16 %v8433, %v8429
        %v9170 = vpack.c.b16 %v8434, %v8430
        %v9171 = vpack.c.b16 %v8435, %v8431
        %v9172 = vpack.c.b16 %v8440, %v8436
        %v9173 = vpack.c.b16 %v8441, %v8437
        %v9174 = vpack.c.b16 %v8442, %v8438
        %v9175 = vpack.c.b16 %v8443, %v8439
        %v9176 = vpack.c.b16 %v8448, %v8444
        %v9177 = vpack.c.b16 %v8449, %v8445
        %v9178 = vpack.c.b16 %v8450, %v8446
        %v9179 = vpack.c.b16 %v8451, %v8447
        %v9180 = vpack.c.b16 %v8456, %v8452
        %v9181 = vpack.c.b16 %v8457, %v8453
        %v9182 = vpack.c.b16 %v8458, %v8454
        %v9183 = vpack.c.b16 %v8459, %v8455
        %v9184 = vpack.c.b16 %v8464, %v8460
        %v9185 = vpack.c.b16 %v8465, %v8461
        %v9186 = vpack.c.b16 %v8466, %v8462
        %v9187 = vpack.c.b16 %v8467, %v8463
        %v9188 = vpack.c.b16 %v8472, %v8468
        %v9189 = vpack.c.b16 %v8473, %v8469
        %v9190 = vpack.c.b16 %v8474, %v8470
        %v9191 = vpack.c.b16 %v8475, %v8471
        %v9192 = vpack.c.b16 %v8480, %v8476
        %v9193 = vpack.c.b16 %v8481, %v8477
        %v9194 = vpack.c.b16 %v8482, %v8478
        %v9195 = vpack.c.b16 %v8483, %v8479
        %v9196 = vpack.c.b16 %v8488, %v8484
        %v9197 = vpack.c.b16 %v8489, %v8485
        %v9198 = vpack.c.b16 %v8490, %v8486
        %v9199 = vpack.c.b16 %v8491, %v8487
        %v9200 = vpack.c.b16 %v8496, %v8492
        %v9201 = vpack.c.b16 %v8497, %v8493
        %v9202 = vpack.c.b16 %v8498, %v8494
        %v9203 = vpack.c.b16 %v8499, %v8495
        %v9204 = vpack.c.b16 %v8504, %v8500
        %v9205 = vpack.c.b16 %v8505, %v8501
        %v9206 = vpack.c.b16 %v8506, %v8502
        %v9207 = vpack.c.b16 %v8507, %v8503
        %v9208 = vpack.c.b16 %v8512, %v8508
        %v9209 = vpack.c.b16 %v8513, %v8509
        %v9210 = vpack.c.b16 %v8514, %v8510
        %v9211 = vpack.c.b16 %v8515, %v8511
        %v9212 = vpack.c.b16 %v8520, %v8516
        %v9213 = vpack.c.b16 %v8521, %v8517
        %v9214 = vpack.c.b16 %v8522, %v8518
        %v9215 = vpack.c.b16 %v8523, %v8519
        %v9216 = vpack.c.b16 %v8528, %v8524
        %v9217 = vpack.c.b16 %v8529, %v8525
        %v9218 = vpack.c.b16 %v8530, %v8526
        %v9219 = vpack.c.b16 %v8531, %v8527
        %v9220 = vpack.c.b16 %v8536, %v8532
        %v9221 = vpack.c.b16 %v8537, %v8533
        %v9222 = vpack.c.b16 %v8538, %v8534
        %v9223 = vpack.c.b16 %v8539, %v8535
        %v9224 = vpack.c.b16 %v8544, %v8540
        %v9225 = vpack.c.b16 %v8545, %v8541
        %v9226 = vpack.c.b16 %v8546, %v8542
        %v9227 = vpack.c.b16 %v8547, %v8543
        %v9228 = vpack.c.b16 %v8552, %v8548
        %v9229 = vpack.c.b16 %v8553, %v8549
        %v9230 = vpack.c.b16 %v8554, %v8550
        %v9231 = vpack.c.b16 %v8555, %v8551
        %v9232 = vpack.c.b16 %v8560, %v8556
        %v9233 = vpack.c.b16 %v8561, %v8557
        %v9234 = vpack.c.b16 %v8562, %v8558
        %v9235 = vpack.c.b16 %v8563, %v8559
        %v9236 = vpack.c.b16 %v8568, %v8564
        %v9237 = vpack.c.b16 %v8569, %v8565
        %v9238 = vpack.c.b16 %v8570, %v8566
        %v9239 = vpack.c.b16 %v8571, %v8567
        %v9240 = vpack.c.b16 %v8576, %v8572
        %v9241 = vpack.c.b16 %v8577, %v8573
        %v9242 = vpack.c.b16 %v8578, %v8574
        %v9243 = vpack.c.b16 %v8579, %v8575
        %v9244 = vpack.c.b16 %v8584, %v8580
        %v9245 = vpack.c.b16 %v8585, %v8581
        %v9246 = vpack.c.b16 %v8586, %v8582
        %v9247 = vpack.c.b16 %v8587, %v8583
        %v9248 = vpack.c.b16 %v8592, %v8588
        %v9249 = vpack.c.b16 %v8593, %v8589
        %v9250 = vpack.c.b16 %v8594, %v8590
        %v9251 = vpack.c.b16 %v8595, %v8591
        %v9252 = vpack.c.b16 %v8600, %v8596
        %v9253 = vpack.c.b16 %v8601, %v8597
        %v9254 = vpack.c.b16 %v8602, %v8598
        %v9255 = vpack.c.b16 %v8603, %v8599
        %v9256 = vpack.c.b16 %v8608, %v8604
        %v9257 = vpack.c.b16 %v8609, %v8605
        %v9258 = vpack.c.b16 %v8610, %v8606
        %v9259 = vpack.c.b16 %v8611, %v8607
        %v9260 = vpack.c.b16 %v8616, %v8612
        %v9261 = vpack.c.b16 %v8617, %v8613
        %v9262 = vpack.c.b16 %v8618, %v8614
        %v9263 = vpack.c.b16 %v8619, %v8615
        %v9264 = vpack.c.b16 %v8624, %v8620
        %v9265 = vpack.c.b16 %v8625, %v8621
        %v9266 = vpack.c.b16 %v8626, %v8622
        %v9267 = vpack.c.b16 %v8627, %v8623
        %v9268 = vpack.c.b16 %v8632, %v8628
        %v9269 = vpack.c.b16 %v8633, %v8629
        %v9270 = vpack.c.b16 %v8634, %v8630
        %v9271 = vpack.c.b16 %v8635, %v8631
        %v9272 = vpack.c.b16 %v8640, %v8636
        %v9273 = vpack.c.b16 %v8641, %v8637
        %v9274 = vpack.c.b16 %v8642, %v8638
        %v9275 = vpack.c.b16 %v8643, %v8639
        %v9276 = vpack.c.b16 %v8648, %v8644
        %v9277 = vpack.c.b16 %v8649, %v8645
        %v9278 = vpack.c.b16 %v8650, %v8646
        %v9279 = vpack.c.b16 %v8651, %v8647
        %v9280 = vpack.c.b16 %v8656, %v8652
        %v9281 = vpack.c.b16 %v8657, %v8653
        %v9282 = vpack.c.b16 %v8658, %v8654
        %v9283 = vpack.c.b16 %v8659, %v8655
        %v9284 = vpack.c.b16 %v8664, %v8660
        %v9285 = vpack.c.b16 %v8665, %v8661
        %v9286 = vpack.c.b16 %v8666, %v8662
        %v9287 = vpack.c.b16 %v8667, %v8663
        %v9288 = vpack.c.b16 %v8672, %v8668
        %v9289 = vpack.c.b16 %v8673, %v8669
        %v9290 = vpack.c.b16 %v8674, %v8670
        %v9291 = vpack.c.b16 %v8675, %v8671
        %v9292 = vpack.c.b16 %v8680, %v8676
        %v9293 = vpack.c.b16 %v8681, %v8677
        %v9294 = vpack.c.b16 %v8682, %v8678
        %v9295 = vpack.c.b16 %v8683, %v8679
        %v9296 = vpack.c.b16 %v8688, %v8684
        %v9297 = vpack.c.b16 %v8689, %v8685
        %v9298 = vpack.c.b16 %v8690, %v8686
        %v9299 = vpack.c.b16 %v8691, %v8687
        %v9300 = vpack.c.b16 %v8696, %v8692
        %v9301 = vpack.c.b16 %v8697, %v8693
        %v9302 = vpack.c.b16 %v8698, %v8694
        %v9303 = vpack.c.b16 %v8699, %v8695
        %v9304 = vpack.c.b16 %v8704, %v8700
        %v9305 = vpack.c.b16 %v8705, %v8701
        %v9306 = vpack.c.b16 %v8706, %v8702
        %v9307 = vpack.c.b16 %v8707, %v8703
        %v9308 = vpack.c.b16 %v8712, %v8708
        %v9309 = vpack.c.b16 %v8713, %v8709
        %v9310 = vpack.c.b16 %v8714, %v8710
        %v9311 = vpack.c.b16 %v8715, %v8711
        %v9312 = vpack.c.b16 %v8720, %v8716
        %v9313 = vpack.c.b16 %v8721, %v8717
        %v9314 = vpack.c.b16 %v8722, %v8718
        %v9315 = vpack.c.b16 %v8723, %v8719
        %v9316 = vpack.c.b16 %v8728, %v8724
        %v9317 = vpack.c.b16 %v8729, %v8725
        %v9318 = vpack.c.b16 %v8730, %v8726
        %v9319 = vpack.c.b16 %v8731, %v8727
        %v9320 = vpack.c.b16 %v8736, %v8732
        %v9321 = vpack.c.b16 %v8737, %v8733
        %v9322 = vpack.c.b16 %v8738, %v8734
        %v9323 = vpack.c.b16 %v8739, %v8735
        %v9324 = vpack.c.b16 %v8744, %v8740
        %v9325 = vpack.c.b16 %v8745, %v8741
        %v9326 = vpack.c.b16 %v8746, %v8742
        %v9327 = vpack.c.b16 %v8747, %v8743
        %v9328 = vpack.c.b16 %v8752, %v8748
        %v9329 = vpack.c.b16 %v8753, %v8749
        %v9330 = vpack.c.b16 %v8754, %v8750
        %v9331 = vpack.c.b16 %v8755, %v8751
        %9908 = vmatprep.subr.bf16.mxu0 %v8785
        %9909 = vmatpush1.bf16.msra.mxu0 %v8784
        %9910 = vmatprep.subr.bf16.mxu0 %v8781
        %9911 = vmatpush1.bf16.msra.mxu0 %v8780
        %9912 = vmatprep.subr.bf16.mxu0 %v8777
        %9913 = vmatpush1.bf16.msra.mxu0 %v8776
        %9914 = vmatprep.subr.bf16.mxu0 %v8773
        %9915 = vmatpush1.bf16.msra.mxu0 %v8772
        %9916 = vmatprep.subr.bf16.mxu0 %v8769
        %9917 = vmatpush1.bf16.msra.mxu0 %v8768
        %9918 = vmatprep.subr.bf16.mxu0 %v8765
        %9919 = vmatpush1.bf16.msra.mxu0 %v8764
        %9920 = vmatprep.subr.bf16.mxu0 %v8761
        %9921 = vmatpush1.bf16.msra.mxu0 %v8760
        %9922 = vmatprep.subr.bf16.mxu0 %v8757
        %9923 = vmatpush1.bf16.msra.mxu0 %v8756
        %9924 = vmatprep.subr.bf16.mxu0 %v8817
        %9925 = vmatpush2.bf16.msra.mxu0 %v8816
        %9926 = vmatprep.subr.bf16.mxu0 %v8813
        %9927 = vmatpush2.bf16.msra.mxu0 %v8812
        %9928 = vmatprep.subr.bf16.mxu0 %v8809
        %9929 = vmatpush2.bf16.msra.mxu0 %v8808
        %9930 = vmatprep.subr.bf16.mxu0 %v8805
        %9931 = vmatpush2.bf16.msra.mxu0 %v8804
        %9932 = vmatprep.subr.bf16.mxu0 %v8801
        %9933 = vmatpush2.bf16.msra.mxu0 %v8800
        %9934 = vmatprep.subr.bf16.mxu0 %v8797
        %9935 = vmatpush2.bf16.msra.mxu0 %v8796
        %9936 = vmatprep.subr.bf16.mxu0 %v8793
        %9937 = vmatpush2.bf16.msra.mxu0 %v8792
        %9938 = vmatprep.subr.bf16.mxu0 %v8789
        %9939 = vmatpush2.bf16.msra.mxu0 %v8788
        %9940 = vmatprep.mubr.bf16.mxu0 %v6413
        %9941 = vmatmul.mubr.bf16.gmra.mxu0 %v6412
        %v9942 = vpop.f32.mrf.mxu0
        %v9943 = vadd.f32 %v7011, %v9942
        %v9944 = vpop.f32.mrf.mxu0
        %v9945 = vadd.f32 %v7015, %v9944
        %v9946 = vpop.f32.mrf.mxu0
        %v9947 = vpop.f32.mrf.mxu0
        %9948 = vdwg.mxu0
        %9949 = vmatprep.subr.bf16.mxu0 %v8849
        %9950 = vmatpush1.bf16.msra.mxu0 %v8848
        %9951 = vmatprep.subr.bf16.mxu0 %v8845
        %9952 = vmatpush1.bf16.msra.mxu0 %v8844
        %9953 = vmatprep.subr.bf16.mxu0 %v8841
        %9954 = vmatpush1.bf16.msra.mxu0 %v8840
        %9955 = vmatprep.subr.bf16.mxu0 %v8837
        %9956 = vmatpush1.bf16.msra.mxu0 %v8836
        %9957 = vmatprep.subr.bf16.mxu0 %v8833
        %9958 = vmatpush1.bf16.msra.mxu0 %v8832
        %9959 = vmatprep.subr.bf16.mxu0 %v8829
        %9960 = vmatpush1.bf16.msra.mxu0 %v8828
        %9961 = vmatprep.subr.bf16.mxu0 %v8825
        %9962 = vmatpush1.bf16.msra.mxu0 %v8824
        %9963 = vmatprep.subr.bf16.mxu0 %v8821
        %9964 = vmatpush1.bf16.msra.mxu0 %v8820
        %9965 = vmatprep.subr.bf16.mxu0 %v8881
        %9966 = vmatpush2.bf16.msra.mxu0 %v8880
        %9967 = vmatprep.subr.bf16.mxu0 %v8877
        %9968 = vmatpush2.bf16.msra.mxu0 %v8876
        %9969 = vmatprep.subr.bf16.mxu0 %v8873
        %9970 = vmatpush2.bf16.msra.mxu0 %v8872
        %9971 = vmatprep.subr.bf16.mxu0 %v8869
        %9972 = vmatpush2.bf16.msra.mxu0 %v8868
        %9973 = vmatprep.subr.bf16.mxu0 %v8865
        %9974 = vmatpush2.bf16.msra.mxu0 %v8864
        %9975 = vmatprep.subr.bf16.mxu0 %v8861
        %9976 = vmatpush2.bf16.msra.mxu0 %v8860
        %9977 = vmatprep.subr.bf16.mxu0 %v8857
        %9978 = vmatpush2.bf16.msra.mxu0 %v8856
        %9979 = vmatprep.subr.bf16.mxu0 %v8853
        %9980 = vmatpush2.bf16.msra.mxu0 %v8852
        %9981 = vmatprep.mubr.bf16.mxu0 %v6415
        %9982 = vmatmul.mubr.bf16.gmra.mxu0 %v6414
        %v9983 = vpop.f32.mrf.mxu0
        %v9984 = vadd.f32 %v9943, %v9983
        %v9985 = vpop.f32.mrf.mxu0
        %v9986 = vadd.f32 %v9945, %v9985
        %v9987 = vpop.f32.mrf.mxu0
        %v9988 = vpop.f32.mrf.mxu0
        %9989 = vdwg.mxu0
        %9990 = vmatprep.subr.bf16.mxu0 %v8913
        %9991 = vmatpush1.bf16.msra.mxu0 %v8912
        %9992 = vmatprep.subr.bf16.mxu0 %v8909
        %9993 = vmatpush1.bf16.msra.mxu0 %v8908
        %9994 = vmatprep.subr.bf16.mxu0 %v8905
        %9995 = vmatpush1.bf16.msra.mxu0 %v8904
        %9996 = vmatprep.subr.bf16.mxu0 %v8901
        %9997 = vmatpush1.bf16.msra.mxu0 %v8900
        %9998 = vmatprep.subr.bf16.mxu0 %v8897
        %9999 = vmatpush1.bf16.msra.mxu0 %v8896
        %10000 = vmatprep.subr.bf16.mxu0 %v8893
        %10001 = vmatpush1.bf16.msra.mxu0 %v8892
        %10002 = vmatprep.subr.bf16.mxu0 %v8889
        %10003 = vmatpush1.bf16.msra.mxu0 %v8888
        %10004 = vmatprep.subr.bf16.mxu0 %v8885
        %10005 = vmatpush1.bf16.msra.mxu0 %v8884
        %10006 = vmatprep.subr.bf16.mxu0 %v8945
        %10007 = vmatpush2.bf16.msra.mxu0 %v8944
        %10008 = vmatprep.subr.bf16.mxu0 %v8941
        %10009 = vmatpush2.bf16.msra.mxu0 %v8940
        %10010 = vmatprep.subr.bf16.mxu0 %v8937
        %10011 = vmatpush2.bf16.msra.mxu0 %v8936
        %10012 = vmatprep.subr.bf16.mxu0 %v8933
        %10013 = vmatpush2.bf16.msra.mxu0 %v8932
        %10014 = vmatprep.subr.bf16.mxu0 %v8929
        %10015 = vmatpush2.bf16.msra.mxu0 %v8928
        %10016 = vmatprep.subr.bf16.mxu0 %v8925
        %10017 = vmatpush2.bf16.msra.mxu0 %v8924
        %10018 = vmatprep.subr.bf16.mxu0 %v8921
        %10019 = vmatpush2.bf16.msra.mxu0 %v8920
        %10020 = vmatprep.subr.bf16.mxu0 %v8917
        %10021 = vmatpush2.bf16.msra.mxu0 %v8916
        %10022 = vmatprep.mubr.bf16.mxu0 %v6417
        %10023 = vmatmul.mubr.bf16.gmra.mxu0 %v6416
        %v10024 = vpop.f32.mrf.mxu0
        %v10025 = vadd.f32 %v9984, %v10024
        %v10026 = vpop.f32.mrf.mxu0
        %v10027 = vadd.f32 %v9986, %v10026
        %v10028 = vpop.f32.mrf.mxu0
        %v10029 = vpop.f32.mrf.mxu0
        %10030 = vdwg.mxu0
        %10031 = vmatprep.subr.bf16.mxu0 %v8977
        %10032 = vmatpush1.bf16.msra.mxu0 %v8976
        %10033 = vmatprep.subr.bf16.mxu0 %v8973
        %10034 = vmatpush1.bf16.msra.mxu0 %v8972
        %10035 = vmatprep.subr.bf16.mxu0 %v8969
        %10036 = vmatpush1.bf16.msra.mxu0 %v8968
        %10037 = vmatprep.subr.bf16.mxu0 %v8965
        %10038 = vmatpush1.bf16.msra.mxu0 %v8964
        %10039 = vmatprep.subr.bf16.mxu0 %v8961
        %10040 = vmatpush1.bf16.msra.mxu0 %v8960
        %10041 = vmatprep.subr.bf16.mxu0 %v8957
        %10042 = vmatpush1.bf16.msra.mxu0 %v8956
        %10043 = vmatprep.subr.bf16.mxu0 %v8953
        %10044 = vmatpush1.bf16.msra.mxu0 %v8952
        %10045 = vmatprep.subr.bf16.mxu0 %v8949
        %10046 = vmatpush1.bf16.msra.mxu0 %v8948
        %10047 = vmatprep.subr.bf16.mxu0 %v9009
        %10048 = vmatpush2.bf16.msra.mxu0 %v9008
        %10049 = vmatprep.subr.bf16.mxu0 %v9005
        %10050 = vmatpush2.bf16.msra.mxu0 %v9004
        %10051 = vmatprep.subr.bf16.mxu0 %v9001
        %10052 = vmatpush2.bf16.msra.mxu0 %v9000
        %10053 = vmatprep.subr.bf16.mxu0 %v8997
        %10054 = vmatpush2.bf16.msra.mxu0 %v8996
        %10055 = vmatprep.subr.bf16.mxu0 %v8993
        %10056 = vmatpush2.bf16.msra.mxu0 %v8992
        %10057 = vmatprep.subr.bf16.mxu0 %v8989
        %10058 = vmatpush2.bf16.msra.mxu0 %v8988
        %10059 = vmatprep.subr.bf16.mxu0 %v8985
        %10060 = vmatpush2.bf16.msra.mxu0 %v8984
        %10061 = vmatprep.subr.bf16.mxu0 %v8981
        %10062 = vmatpush2.bf16.msra.mxu0 %v8980
        %10063 = vmatprep.mubr.bf16.mxu0 %v6419
        %10064 = vmatmul.mubr.bf16.gmra.mxu0 %v6418
        %v10065 = vpop.f32.mrf.mxu0
        %v10066 = vadd.f32 %v10025, %v10065
        %v10067 = vpop.f32.mrf.mxu0
        %v10068 = vadd.f32 %v10027, %v10067
        %v10069 = vpop.f32.mrf.mxu0
        %v10070 = vpop.f32.mrf.mxu0
        %10071 = vdwg.mxu0
        %10072 = vmatprep.subr.bf16.mxu0 %v9041
        %10073 = vmatpush1.bf16.msra.mxu0 %v9040
        %10074 = vmatprep.subr.bf16.mxu0 %v9037
        %10075 = vmatpush1.bf16.msra.mxu0 %v9036
        %10076 = vmatprep.subr.bf16.mxu0 %v9033
        %10077 = vmatpush1.bf16.msra.mxu0 %v9032
        %10078 = vmatprep.subr.bf16.mxu0 %v9029
        %10079 = vmatpush1.bf16.msra.mxu0 %v9028
        %10080 = vmatprep.subr.bf16.mxu0 %v9025
        %10081 = vmatpush1.bf16.msra.mxu0 %v9024
        %10082 = vmatprep.subr.bf16.mxu0 %v9021
        %10083 = vmatpush1.bf16.msra.mxu0 %v9020
        %10084 = vmatprep.subr.bf16.mxu0 %v9017
        %10085 = vmatpush1.bf16.msra.mxu0 %v9016
        %10086 = vmatprep.subr.bf16.mxu0 %v9013
        %10087 = vmatpush1.bf16.msra.mxu0 %v9012
        %10088 = vmatprep.subr.bf16.mxu0 %v9073
        %10089 = vmatpush2.bf16.msra.mxu0 %v9072
        %10090 = vmatprep.subr.bf16.mxu0 %v9069
        %10091 = vmatpush2.bf16.msra.mxu0 %v9068
        %10092 = vmatprep.subr.bf16.mxu0 %v9065
        %10093 = vmatpush2.bf16.msra.mxu0 %v9064
        %10094 = vmatprep.subr.bf16.mxu0 %v9061
        %10095 = vmatpush2.bf16.msra.mxu0 %v9060
        %10096 = vmatprep.subr.bf16.mxu0 %v9057
        %10097 = vmatpush2.bf16.msra.mxu0 %v9056
        %10098 = vmatprep.subr.bf16.mxu0 %v9053
        %10099 = vmatpush2.bf16.msra.mxu0 %v9052
        %10100 = vmatprep.subr.bf16.mxu0 %v9049
        %10101 = vmatpush2.bf16.msra.mxu0 %v9048
        %10102 = vmatprep.subr.bf16.mxu0 %v9045
        %10103 = vmatpush2.bf16.msra.mxu0 %v9044
        %10104 = vmatprep.mubr.bf16.mxu0 %v6421
        %10105 = vmatmul.mubr.bf16.gmra.mxu0 %v6420
        %v10106 = vpop.f32.mrf.mxu0
        %v10107 = vadd.f32 %v10066, %v10106
        %v10108 = vpop.f32.mrf.mxu0
        %v10109 = vadd.f32 %v10068, %v10108
        %v10110 = vpop.f32.mrf.mxu0
        %v10111 = vpop.f32.mrf.mxu0
        %10112 = vdwg.mxu0
        %10113 = vmatprep.subr.bf16.mxu0 %v9105
        %10114 = vmatpush1.bf16.msra.mxu0 %v9104
        %10115 = vmatprep.subr.bf16.mxu0 %v9101
        %10116 = vmatpush1.bf16.msra.mxu0 %v9100
        %10117 = vmatprep.subr.bf16.mxu0 %v9097
        %10118 = vmatpush1.bf16.msra.mxu0 %v9096
        %10119 = vmatprep.subr.bf16.mxu0 %v9093
        %10120 = vmatpush1.bf16.msra.mxu0 %v9092
        %10121 = vmatprep.subr.bf16.mxu0 %v9089
        %10122 = vmatpush1.bf16.msra.mxu0 %v9088
        %10123 = vmatprep.subr.bf16.mxu0 %v9085
        %10124 = vmatpush1.bf16.msra.mxu0 %v9084
        %10125 = vmatprep.subr.bf16.mxu0 %v9081
        %10126 = vmatpush1.bf16.msra.mxu0 %v9080
        %10127 = vmatprep.subr.bf16.mxu0 %v9077
        %10128 = vmatpush1.bf16.msra.mxu0 %v9076
        %10129 = vmatprep.subr.bf16.mxu0 %v9137
        %10130 = vmatpush2.bf16.msra.mxu0 %v9136
        %10131 = vmatprep.subr.bf16.mxu0 %v9133
        %10132 = vmatpush2.bf16.msra.mxu0 %v9132
        %10133 = vmatprep.subr.bf16.mxu0 %v9129
        %10134 = vmatpush2.bf16.msra.mxu0 %v9128
        %10135 = vmatprep.subr.bf16.mxu0 %v9125
        %10136 = vmatpush2.bf16.msra.mxu0 %v9124
        %10137 = vmatprep.subr.bf16.mxu0 %v9121
        %10138 = vmatpush2.bf16.msra.mxu0 %v9120
        %10139 = vmatprep.subr.bf16.mxu0 %v9117
        %10140 = vmatpush2.bf16.msra.mxu0 %v9116
        %10141 = vmatprep.subr.bf16.mxu0 %v9113
        %10142 = vmatpush2.bf16.msra.mxu0 %v9112
        %10143 = vmatprep.subr.bf16.mxu0 %v9109
        %10144 = vmatpush2.bf16.msra.mxu0 %v9108
        %10145 = vmatprep.mubr.bf16.mxu0 %v6423
        %10146 = vmatmul.mubr.bf16.gmra.mxu0 %v6422
        %v10147 = vpop.f32.mrf.mxu0
        %v10148 = vadd.f32 %v10107, %v10147
        %v10149 = vpop.f32.mrf.mxu0
        %v10150 = vadd.f32 %v10109, %v10149
        %v10151 = vpop.f32.mrf.mxu0
        %v10152 = vpop.f32.mrf.mxu0
        %10153 = vdwg.mxu0
        %10154 = vmatprep.subr.bf16.mxu0 %v9169
        %10155 = vmatpush1.bf16.msra.mxu0 %v9168
        %10156 = vmatprep.subr.bf16.mxu0 %v9165
        %10157 = vmatpush1.bf16.msra.mxu0 %v9164
        %10158 = vmatprep.subr.bf16.mxu0 %v9161
        %10159 = vmatpush1.bf16.msra.mxu0 %v9160
        %10160 = vmatprep.subr.bf16.mxu0 %v9157
        %10161 = vmatpush1.bf16.msra.mxu0 %v9156
        %10162 = vmatprep.subr.bf16.mxu0 %v9153
        %10163 = vmatpush1.bf16.msra.mxu0 %v9152
        %10164 = vmatprep.subr.bf16.mxu0 %v9149
        %10165 = vmatpush1.bf16.msra.mxu0 %v9148
        %10166 = vmatprep.subr.bf16.mxu0 %v9145
        %10167 = vmatpush1.bf16.msra.mxu0 %v9144
        %10168 = vmatprep.subr.bf16.mxu0 %v9141
        %10169 = vmatpush1.bf16.msra.mxu0 %v9140
        %10170 = vmatprep.subr.bf16.mxu0 %v9201
        %10171 = vmatpush2.bf16.msra.mxu0 %v9200
        %10172 = vmatprep.subr.bf16.mxu0 %v9197
        %10173 = vmatpush2.bf16.msra.mxu0 %v9196
        %10174 = vmatprep.subr.bf16.mxu0 %v9193
        %10175 = vmatpush2.bf16.msra.mxu0 %v9192
        %10176 = vmatprep.subr.bf16.mxu0 %v9189
        %10177 = vmatpush2.bf16.msra.mxu0 %v9188
        %10178 = vmatprep.subr.bf16.mxu0 %v9185
        %10179 = vmatpush2.bf16.msra.mxu0 %v9184
        %10180 = vmatprep.subr.bf16.mxu0 %v9181
        %10181 = vmatpush2.bf16.msra.mxu0 %v9180
        %10182 = vmatprep.subr.bf16.mxu0 %v9177
        %10183 = vmatpush2.bf16.msra.mxu0 %v9176
        %10184 = vmatprep.subr.bf16.mxu0 %v9173
        %10185 = vmatpush2.bf16.msra.mxu0 %v9172
        %10186 = vmatprep.mubr.bf16.mxu0 %v6425
        %10187 = vmatmul.mubr.bf16.gmra.mxu0 %v6424
        %v10188 = vpop.f32.mrf.mxu0
        %v10189 = vadd.f32 %v10148, %v10188
        %v10190 = vpop.f32.mrf.mxu0
        %v10191 = vadd.f32 %v10150, %v10190
        %v10192 = vpop.f32.mrf.mxu0
        %v10193 = vpop.f32.mrf.mxu0
        %10194 = vdwg.mxu0
        %10195 = vmatprep.subr.bf16.mxu0 %v9233
        %10196 = vmatpush1.bf16.msra.mxu0 %v9232
        %10197 = vmatprep.subr.bf16.mxu0 %v9229
        %10198 = vmatpush1.bf16.msra.mxu0 %v9228
        %10199 = vmatprep.subr.bf16.mxu0 %v9225
        %10200 = vmatpush1.bf16.msra.mxu0 %v9224
        %10201 = vmatprep.subr.bf16.mxu0 %v9221
        %10202 = vmatpush1.bf16.msra.mxu0 %v9220
        %10203 = vmatprep.subr.bf16.mxu0 %v9217
        %10204 = vmatpush1.bf16.msra.mxu0 %v9216
        %10205 = vmatprep.subr.bf16.mxu0 %v9213
        %10206 = vmatpush1.bf16.msra.mxu0 %v9212
        %10207 = vmatprep.subr.bf16.mxu0 %v9209
        %10208 = vmatpush1.bf16.msra.mxu0 %v9208
        %10209 = vmatprep.subr.bf16.mxu0 %v9205
        %10210 = vmatpush1.bf16.msra.mxu0 %v9204
        %10211 = vmatprep.subr.bf16.mxu0 %v9265
        %10212 = vmatpush2.bf16.msra.mxu0 %v9264
        %10213 = vmatprep.subr.bf16.mxu0 %v9261
        %10214 = vmatpush2.bf16.msra.mxu0 %v9260
        %10215 = vmatprep.subr.bf16.mxu0 %v9257
        %10216 = vmatpush2.bf16.msra.mxu0 %v9256
        %10217 = vmatprep.subr.bf16.mxu0 %v9253
        %10218 = vmatpush2.bf16.msra.mxu0 %v9252
        %10219 = vmatprep.subr.bf16.mxu0 %v9249
        %10220 = vmatpush2.bf16.msra.mxu0 %v9248
        %10221 = vmatprep.subr.bf16.mxu0 %v9245
        %10222 = vmatpush2.bf16.msra.mxu0 %v9244
        %10223 = vmatprep.subr.bf16.mxu0 %v9241
        %10224 = vmatpush2.bf16.msra.mxu0 %v9240
        %10225 = vmatprep.subr.bf16.mxu0 %v9237
        %10226 = vmatpush2.bf16.msra.mxu0 %v9236
        %10227 = vmatprep.mubr.bf16.mxu0 %v6427
        %10228 = vmatmul.mubr.bf16.gmra.mxu0 %v6426
        %v10229 = vpop.f32.mrf.mxu0
        %v10230 = vadd.f32 %v10189, %v10229
        %v10231 = vpop.f32.mrf.mxu0
        %v10232 = vadd.f32 %v10191, %v10231
        %v10233 = vpop.f32.mrf.mxu0
        %v10234 = vpop.f32.mrf.mxu0
        %10235 = vdwg.mxu0
        %10236 = vmatprep.subr.bf16.mxu0 %v9297
        %10237 = vmatpush1.bf16.msra.mxu0 %v9296
        %10238 = vmatprep.subr.bf16.mxu0 %v9293
        %10239 = vmatpush1.bf16.msra.mxu0 %v9292
        %10240 = vmatprep.subr.bf16.mxu0 %v9289
        %10241 = vmatpush1.bf16.msra.mxu0 %v9288
        %10242 = vmatprep.subr.bf16.mxu0 %v9285
        %10243 = vmatpush1.bf16.msra.mxu0 %v9284
        %10244 = vmatprep.subr.bf16.mxu0 %v9281
        %10245 = vmatpush1.bf16.msra.mxu0 %v9280
        %10246 = vmatprep.subr.bf16.mxu0 %v9277
        %10247 = vmatpush1.bf16.msra.mxu0 %v9276
        %10248 = vmatprep.subr.bf16.mxu0 %v9273
        %10249 = vmatpush1.bf16.msra.mxu0 %v9272
        %10250 = vmatprep.subr.bf16.mxu0 %v9269
        %10251 = vmatpush1.bf16.msra.mxu0 %v9268
        %10252 = vmatprep.subr.bf16.mxu0 %v9329
        %10253 = vmatpush2.bf16.msra.mxu0 %v9328
        %10254 = vmatprep.subr.bf16.mxu0 %v9325
        %10255 = vmatpush2.bf16.msra.mxu0 %v9324
        %10256 = vmatprep.subr.bf16.mxu0 %v9321
        %10257 = vmatpush2.bf16.msra.mxu0 %v9320
        %10258 = vmatprep.subr.bf16.mxu0 %v9317
        %10259 = vmatpush2.bf16.msra.mxu0 %v9316
        %10260 = vmatprep.subr.bf16.mxu0 %v9313
        %10261 = vmatpush2.bf16.msra.mxu0 %v9312
        %10262 = vmatprep.subr.bf16.mxu0 %v9309
        %10263 = vmatpush2.bf16.msra.mxu0 %v9308
        %10264 = vmatprep.subr.bf16.mxu0 %v9305
        %10265 = vmatpush2.bf16.msra.mxu0 %v9304
        %10266 = vmatprep.subr.bf16.mxu0 %v9301
        %10267 = vmatpush2.bf16.msra.mxu0 %v9300
        %10268 = vmatprep.mubr.bf16.mxu0 %v6429
        %10269 = vmatmul.mubr.bf16.gmra.mxu0 %v6428
        %v10270 = vpop.f32.mrf.mxu0
        %v10271 = vadd.f32 %v10230, %v10270
        %v10272 = vpop.f32.mrf.mxu0
        %v10273 = vadd.f32 %v10232, %v10272
        %v10274 = vpop.f32.mrf.mxu0
        %v10275 = vpop.f32.mrf.mxu0
        %10276 = vdwg.mxu0
        %10277 = vmatprep.subr.bf16.mxu0 %v8787
        %10278 = vmatpush1.bf16.msra.mxu0 %v8786
        %10279 = vmatprep.subr.bf16.mxu0 %v8783
        %10280 = vmatpush1.bf16.msra.mxu0 %v8782
        %10281 = vmatprep.subr.bf16.mxu0 %v8779
        %10282 = vmatpush1.bf16.msra.mxu0 %v8778
        %10283 = vmatprep.subr.bf16.mxu0 %v8775
        %10284 = vmatpush1.bf16.msra.mxu0 %v8774
        %10285 = vmatprep.subr.bf16.mxu0 %v8771
        %10286 = vmatpush1.bf16.msra.mxu0 %v8770
        %10287 = vmatprep.subr.bf16.mxu0 %v8767
        %10288 = vmatpush1.bf16.msra.mxu0 %v8766
        %10289 = vmatprep.subr.bf16.mxu0 %v8763
        %10290 = vmatpush1.bf16.msra.mxu0 %v8762
        %10291 = vmatprep.subr.bf16.mxu0 %v8759
        %10292 = vmatpush1.bf16.msra.mxu0 %v8758
        %10293 = vmatprep.subr.bf16.mxu0 %v8819
        %10294 = vmatpush2.bf16.msra.mxu0 %v8818
        %10295 = vmatprep.subr.bf16.mxu0 %v8815
        %10296 = vmatpush2.bf16.msra.mxu0 %v8814
        %10297 = vmatprep.subr.bf16.mxu0 %v8811
        %10298 = vmatpush2.bf16.msra.mxu0 %v8810
        %10299 = vmatprep.subr.bf16.mxu0 %v8807
        %10300 = vmatpush2.bf16.msra.mxu0 %v8806
        %10301 = vmatprep.subr.bf16.mxu0 %v8803
        %10302 = vmatpush2.bf16.msra.mxu0 %v8802
        %10303 = vmatprep.subr.bf16.mxu0 %v8799
        %10304 = vmatpush2.bf16.msra.mxu0 %v8798
        %10305 = vmatprep.subr.bf16.mxu0 %v8795
        %10306 = vmatpush2.bf16.msra.mxu0 %v8794
        %10307 = vmatprep.subr.bf16.mxu0 %v8791
        %10308 = vmatpush2.bf16.msra.mxu0 %v8790
        %10309 = vmatprep.mubr.bf16.mxu0 %v6413
        %10310 = vmatmul.mubr.bf16.gmra.mxu0 %v6412
        %v10311 = vpop.f32.mrf.mxu0
        %v10312 = vadd.f32 %v7019, %v10311
        %v10313 = vpop.f32.mrf.mxu0
        %v10314 = vadd.f32 %v7023, %v10313
        %v10315 = vpop.f32.mrf.mxu0
        %v10316 = vpop.f32.mrf.mxu0
        %10317 = vdwg.mxu0
        %10318 = vmatprep.subr.bf16.mxu0 %v8851
        %10319 = vmatpush1.bf16.msra.mxu0 %v8850
        %10320 = vmatprep.subr.bf16.mxu0 %v8847
        %10321 = vmatpush1.bf16.msra.mxu0 %v8846
        %10322 = vmatprep.subr.bf16.mxu0 %v8843
        %10323 = vmatpush1.bf16.msra.mxu0 %v8842
        %10324 = vmatprep.subr.bf16.mxu0 %v8839
        %10325 = vmatpush1.bf16.msra.mxu0 %v8838
        %10326 = vmatprep.subr.bf16.mxu0 %v8835
        %10327 = vmatpush1.bf16.msra.mxu0 %v8834
        %10328 = vmatprep.subr.bf16.mxu0 %v8831
        %10329 = vmatpush1.bf16.msra.mxu0 %v8830
        %10330 = vmatprep.subr.bf16.mxu0 %v8827
        %10331 = vmatpush1.bf16.msra.mxu0 %v8826
        %10332 = vmatprep.subr.bf16.mxu0 %v8823
        %10333 = vmatpush1.bf16.msra.mxu0 %v8822
        %10334 = vmatprep.subr.bf16.mxu0 %v8883
        %10335 = vmatpush2.bf16.msra.mxu0 %v8882
        %10336 = vmatprep.subr.bf16.mxu0 %v8879
        %10337 = vmatpush2.bf16.msra.mxu0 %v8878
        %10338 = vmatprep.subr.bf16.mxu0 %v8875
        %10339 = vmatpush2.bf16.msra.mxu0 %v8874
        %10340 = vmatprep.subr.bf16.mxu0 %v8871
        %10341 = vmatpush2.bf16.msra.mxu0 %v8870
        %10342 = vmatprep.subr.bf16.mxu0 %v8867
        %10343 = vmatpush2.bf16.msra.mxu0 %v8866
        %10344 = vmatprep.subr.bf16.mxu0 %v8863
        %10345 = vmatpush2.bf16.msra.mxu0 %v8862
        %10346 = vmatprep.subr.bf16.mxu0 %v8859
        %10347 = vmatpush2.bf16.msra.mxu0 %v8858
        %10348 = vmatprep.subr.bf16.mxu0 %v8855
        %10349 = vmatpush2.bf16.msra.mxu0 %v8854
        %10350 = vmatprep.mubr.bf16.mxu0 %v6415
        %10351 = vmatmul.mubr.bf16.gmra.mxu0 %v6414
        %v10352 = vpop.f32.mrf.mxu0
        %v10353 = vadd.f32 %v10312, %v10352
        %v10354 = vpop.f32.mrf.mxu0
        %v10355 = vadd.f32 %v10314, %v10354
        %v10356 = vpop.f32.mrf.mxu0
        %v10357 = vpop.f32.mrf.mxu0
        %10358 = vdwg.mxu0
        %10359 = vmatprep.subr.bf16.mxu0 %v8915
        %10360 = vmatpush1.bf16.msra.mxu0 %v8914
        %10361 = vmatprep.subr.bf16.mxu0 %v8911
        %10362 = vmatpush1.bf16.msra.mxu0 %v8910
        %10363 = vmatprep.subr.bf16.mxu0 %v8907
        %10364 = vmatpush1.bf16.msra.mxu0 %v8906
        %10365 = vmatprep.subr.bf16.mxu0 %v8903
        %10366 = vmatpush1.bf16.msra.mxu0 %v8902
        %10367 = vmatprep.subr.bf16.mxu0 %v8899
        %10368 = vmatpush1.bf16.msra.mxu0 %v8898
        %10369 = vmatprep.subr.bf16.mxu0 %v8895
        %10370 = vmatpush1.bf16.msra.mxu0 %v8894
        %10371 = vmatprep.subr.bf16.mxu0 %v8891
        %10372 = vmatpush1.bf16.msra.mxu0 %v8890
        %10373 = vmatprep.subr.bf16.mxu0 %v8887
        %10374 = vmatpush1.bf16.msra.mxu0 %v8886
        %10375 = vmatprep.subr.bf16.mxu0 %v8947
        %10376 = vmatpush2.bf16.msra.mxu0 %v8946
        %10377 = vmatprep.subr.bf16.mxu0 %v8943
        %10378 = vmatpush2.bf16.msra.mxu0 %v8942
        %10379 = vmatprep.subr.bf16.mxu0 %v8939
        %10380 = vmatpush2.bf16.msra.mxu0 %v8938
        %10381 = vmatprep.subr.bf16.mxu0 %v8935
        %10382 = vmatpush2.bf16.msra.mxu0 %v8934
        %10383 = vmatprep.subr.bf16.mxu0 %v8931
        %10384 = vmatpush2.bf16.msra.mxu0 %v8930
        %10385 = vmatprep.subr.bf16.mxu0 %v8927
        %10386 = vmatpush2.bf16.msra.mxu0 %v8926
        %10387 = vmatprep.subr.bf16.mxu0 %v8923
        %10388 = vmatpush2.bf16.msra.mxu0 %v8922
        %10389 = vmatprep.subr.bf16.mxu0 %v8919
        %10390 = vmatpush2.bf16.msra.mxu0 %v8918
        %10391 = vmatprep.mubr.bf16.mxu0 %v6417
        %10392 = vmatmul.mubr.bf16.gmra.mxu0 %v6416
        %v10393 = vpop.f32.mrf.mxu0
        %v10394 = vadd.f32 %v10353, %v10393
        %v10395 = vpop.f32.mrf.mxu0
        %v10396 = vadd.f32 %v10355, %v10395
        %v10397 = vpop.f32.mrf.mxu0
        %v10398 = vpop.f32.mrf.mxu0
        %10399 = vdwg.mxu0
        %10400 = vmatprep.subr.bf16.mxu0 %v8979
        %10401 = vmatpush1.bf16.msra.mxu0 %v8978
        %10402 = vmatprep.subr.bf16.mxu0 %v8975
        %10403 = vmatpush1.bf16.msra.mxu0 %v8974
        %10404 = vmatprep.subr.bf16.mxu0 %v8971
        %10405 = vmatpush1.bf16.msra.mxu0 %v8970
        %10406 = vmatprep.subr.bf16.mxu0 %v8967
        %10407 = vmatpush1.bf16.msra.mxu0 %v8966
        %10408 = vmatprep.subr.bf16.mxu0 %v8963
        %10409 = vmatpush1.bf16.msra.mxu0 %v8962
        %10410 = vmatprep.subr.bf16.mxu0 %v8959
        %10411 = vmatpush1.bf16.msra.mxu0 %v8958
        %10412 = vmatprep.subr.bf16.mxu0 %v8955
        %10413 = vmatpush1.bf16.msra.mxu0 %v8954
        %10414 = vmatprep.subr.bf16.mxu0 %v8951
        %10415 = vmatpush1.bf16.msra.mxu0 %v8950
        %10416 = vmatprep.subr.bf16.mxu0 %v9011
        %10417 = vmatpush2.bf16.msra.mxu0 %v9010
        %10418 = vmatprep.subr.bf16.mxu0 %v9007
        %10419 = vmatpush2.bf16.msra.mxu0 %v9006
        %10420 = vmatprep.subr.bf16.mxu0 %v9003
        %10421 = vmatpush2.bf16.msra.mxu0 %v9002
        %10422 = vmatprep.subr.bf16.mxu0 %v8999
        %10423 = vmatpush2.bf16.msra.mxu0 %v8998
        %10424 = vmatprep.subr.bf16.mxu0 %v8995
        %10425 = vmatpush2.bf16.msra.mxu0 %v8994
        %10426 = vmatprep.subr.bf16.mxu0 %v8991
        %10427 = vmatpush2.bf16.msra.mxu0 %v8990
        %10428 = vmatprep.subr.bf16.mxu0 %v8987
        %10429 = vmatpush2.bf16.msra.mxu0 %v8986
        %10430 = vmatprep.subr.bf16.mxu0 %v8983
        %10431 = vmatpush2.bf16.msra.mxu0 %v8982
        %10432 = vmatprep.mubr.bf16.mxu0 %v6419
        %10433 = vmatmul.mubr.bf16.gmra.mxu0 %v6418
        %v10434 = vpop.f32.mrf.mxu0
        %v10435 = vadd.f32 %v10394, %v10434
        %v10436 = vpop.f32.mrf.mxu0
        %v10437 = vadd.f32 %v10396, %v10436
        %v10438 = vpop.f32.mrf.mxu0
        %v10439 = vpop.f32.mrf.mxu0
        %10440 = vdwg.mxu0
        %10441 = vmatprep.subr.bf16.mxu0 %v9043
        %10442 = vmatpush1.bf16.msra.mxu0 %v9042
        %10443 = vmatprep.subr.bf16.mxu0 %v9039
        %10444 = vmatpush1.bf16.msra.mxu0 %v9038
        %10445 = vmatprep.subr.bf16.mxu0 %v9035
        %10446 = vmatpush1.bf16.msra.mxu0 %v9034
        %10447 = vmatprep.subr.bf16.mxu0 %v9031
        %10448 = vmatpush1.bf16.msra.mxu0 %v9030
        %10449 = vmatprep.subr.bf16.mxu0 %v9027
        %10450 = vmatpush1.bf16.msra.mxu0 %v9026
        %10451 = vmatprep.subr.bf16.mxu0 %v9023
        %10452 = vmatpush1.bf16.msra.mxu0 %v9022
        %10453 = vmatprep.subr.bf16.mxu0 %v9019
        %10454 = vmatpush1.bf16.msra.mxu0 %v9018
        %10455 = vmatprep.subr.bf16.mxu0 %v9015
        %10456 = vmatpush1.bf16.msra.mxu0 %v9014
        %10457 = vmatprep.subr.bf16.mxu0 %v9075
        %10458 = vmatpush2.bf16.msra.mxu0 %v9074
        %10459 = vmatprep.subr.bf16.mxu0 %v9071
        %10460 = vmatpush2.bf16.msra.mxu0 %v9070
        %10461 = vmatprep.subr.bf16.mxu0 %v9067
        %10462 = vmatpush2.bf16.msra.mxu0 %v9066
        %10463 = vmatprep.subr.bf16.mxu0 %v9063
        %10464 = vmatpush2.bf16.msra.mxu0 %v9062
        %10465 = vmatprep.subr.bf16.mxu0 %v9059
        %10466 = vmatpush2.bf16.msra.mxu0 %v9058
        %10467 = vmatprep.subr.bf16.mxu0 %v9055
        %10468 = vmatpush2.bf16.msra.mxu0 %v9054
        %10469 = vmatprep.subr.bf16.mxu0 %v9051
        %10470 = vmatpush2.bf16.msra.mxu0 %v9050
        %10471 = vmatprep.subr.bf16.mxu0 %v9047
        %10472 = vmatpush2.bf16.msra.mxu0 %v9046
        %10473 = vmatprep.mubr.bf16.mxu0 %v6421
        %10474 = vmatmul.mubr.bf16.gmra.mxu0 %v6420
        %v10475 = vpop.f32.mrf.mxu0
        %v10476 = vadd.f32 %v10435, %v10475
        %v10477 = vpop.f32.mrf.mxu0
        %v10478 = vadd.f32 %v10437, %v10477
        %v10479 = vpop.f32.mrf.mxu0
        %v10480 = vpop.f32.mrf.mxu0
        %10481 = vdwg.mxu0
        %10482 = vmatprep.subr.bf16.mxu0 %v9107
        %10483 = vmatpush1.bf16.msra.mxu0 %v9106
        %10484 = vmatprep.subr.bf16.mxu0 %v9103
        %10485 = vmatpush1.bf16.msra.mxu0 %v9102
        %10486 = vmatprep.subr.bf16.mxu0 %v9099
        %10487 = vmatpush1.bf16.msra.mxu0 %v9098
        %10488 = vmatprep.subr.bf16.mxu0 %v9095
        %10489 = vmatpush1.bf16.msra.mxu0 %v9094
        %10490 = vmatprep.subr.bf16.mxu0 %v9091
        %10491 = vmatpush1.bf16.msra.mxu0 %v9090
        %10492 = vmatprep.subr.bf16.mxu0 %v9087
        %10493 = vmatpush1.bf16.msra.mxu0 %v9086
        %10494 = vmatprep.subr.bf16.mxu0 %v9083
        %10495 = vmatpush1.bf16.msra.mxu0 %v9082
        %10496 = vmatprep.subr.bf16.mxu0 %v9079
        %10497 = vmatpush1.bf16.msra.mxu0 %v9078
        %10498 = vmatprep.subr.bf16.mxu0 %v9139
        %10499 = vmatpush2.bf16.msra.mxu0 %v9138
        %10500 = vmatprep.subr.bf16.mxu0 %v9135
        %10501 = vmatpush2.bf16.msra.mxu0 %v9134
        %10502 = vmatprep.subr.bf16.mxu0 %v9131
        %10503 = vmatpush2.bf16.msra.mxu0 %v9130
        %10504 = vmatprep.subr.bf16.mxu0 %v9127
        %10505 = vmatpush2.bf16.msra.mxu0 %v9126
        %10506 = vmatprep.subr.bf16.mxu0 %v9123
        %10507 = vmatpush2.bf16.msra.mxu0 %v9122
        %10508 = vmatprep.subr.bf16.mxu0 %v9119
        %10509 = vmatpush2.bf16.msra.mxu0 %v9118
        %10510 = vmatprep.subr.bf16.mxu0 %v9115
        %10511 = vmatpush2.bf16.msra.mxu0 %v9114
        %10512 = vmatprep.subr.bf16.mxu0 %v9111
        %10513 = vmatpush2.bf16.msra.mxu0 %v9110
        %10514 = vmatprep.mubr.bf16.mxu0 %v6423
        %10515 = vmatmul.mubr.bf16.gmra.mxu0 %v6422
        %v10516 = vpop.f32.mrf.mxu0
        %v10517 = vadd.f32 %v10476, %v10516
        %v10518 = vpop.f32.mrf.mxu0
        %v10519 = vadd.f32 %v10478, %v10518
        %v10520 = vpop.f32.mrf.mxu0
        %v10521 = vpop.f32.mrf.mxu0
        %10522 = vdwg.mxu0
        %10523 = vmatprep.subr.bf16.mxu0 %v9171
        %10524 = vmatpush1.bf16.msra.mxu0 %v9170
        %10525 = vmatprep.subr.bf16.mxu0 %v9167
        %10526 = vmatpush1.bf16.msra.mxu0 %v9166
        %10527 = vmatprep.subr.bf16.mxu0 %v9163
        %10528 = vmatpush1.bf16.msra.mxu0 %v9162
        %10529 = vmatprep.subr.bf16.mxu0 %v9159
        %10530 = vmatpush1.bf16.msra.mxu0 %v9158
        %10531 = vmatprep.subr.bf16.mxu0 %v9155
        %10532 = vmatpush1.bf16.msra.mxu0 %v9154
        %10533 = vmatprep.subr.bf16.mxu0 %v9151
        %10534 = vmatpush1.bf16.msra.mxu0 %v9150
        %10535 = vmatprep.subr.bf16.mxu0 %v9147
        %10536 = vmatpush1.bf16.msra.mxu0 %v9146
        %10537 = vmatprep.subr.bf16.mxu0 %v9143
        %10538 = vmatpush1.bf16.msra.mxu0 %v9142
        %10539 = vmatprep.subr.bf16.mxu0 %v9203
        %10540 = vmatpush2.bf16.msra.mxu0 %v9202
        %10541 = vmatprep.subr.bf16.mxu0 %v9199
        %10542 = vmatpush2.bf16.msra.mxu0 %v9198
        %10543 = vmatprep.subr.bf16.mxu0 %v9195
        %10544 = vmatpush2.bf16.msra.mxu0 %v9194
        %10545 = vmatprep.subr.bf16.mxu0 %v9191
        %10546 = vmatpush2.bf16.msra.mxu0 %v9190
        %10547 = vmatprep.subr.bf16.mxu0 %v9187
        %10548 = vmatpush2.bf16.msra.mxu0 %v9186
        %10549 = vmatprep.subr.bf16.mxu0 %v9183
        %10550 = vmatpush2.bf16.msra.mxu0 %v9182
        %10551 = vmatprep.subr.bf16.mxu0 %v9179
        %10552 = vmatpush2.bf16.msra.mxu0 %v9178
        %10553 = vmatprep.subr.bf16.mxu0 %v9175
        %10554 = vmatpush2.bf16.msra.mxu0 %v9174
        %10555 = vmatprep.mubr.bf16.mxu0 %v6425
        %10556 = vmatmul.mubr.bf16.gmra.mxu0 %v6424
        %v10557 = vpop.f32.mrf.mxu0
        %v10558 = vadd.f32 %v10517, %v10557
        %v10559 = vpop.f32.mrf.mxu0
        %v10560 = vadd.f32 %v10519, %v10559
        %v10561 = vpop.f32.mrf.mxu0
        %v10562 = vpop.f32.mrf.mxu0
        %10563 = vdwg.mxu0
        %10564 = vmatprep.subr.bf16.mxu0 %v9235
        %10565 = vmatpush1.bf16.msra.mxu0 %v9234
        %10566 = vmatprep.subr.bf16.mxu0 %v9231
        %10567 = vmatpush1.bf16.msra.mxu0 %v9230
        %10568 = vmatprep.subr.bf16.mxu0 %v9227
        %10569 = vmatpush1.bf16.msra.mxu0 %v9226
        %10570 = vmatprep.subr.bf16.mxu0 %v9223
        %10571 = vmatpush1.bf16.msra.mxu0 %v9222
        %10572 = vmatprep.subr.bf16.mxu0 %v9219
        %10573 = vmatpush1.bf16.msra.mxu0 %v9218
        %10574 = vmatprep.subr.bf16.mxu0 %v9215
        %10575 = vmatpush1.bf16.msra.mxu0 %v9214
        %10576 = vmatprep.subr.bf16.mxu0 %v9211
        %10577 = vmatpush1.bf16.msra.mxu0 %v9210
        %10578 = vmatprep.subr.bf16.mxu0 %v9207
        %10579 = vmatpush1.bf16.msra.mxu0 %v9206
        %10580 = vmatprep.subr.bf16.mxu0 %v9267
        %10581 = vmatpush2.bf16.msra.mxu0 %v9266
        %10582 = vmatprep.subr.bf16.mxu0 %v9263
        %10583 = vmatpush2.bf16.msra.mxu0 %v9262
        %10584 = vmatprep.subr.bf16.mxu0 %v9259
        %10585 = vmatpush2.bf16.msra.mxu0 %v9258
        %10586 = vmatprep.subr.bf16.mxu0 %v9255
        %10587 = vmatpush2.bf16.msra.mxu0 %v9254
        %10588 = vmatprep.subr.bf16.mxu0 %v9251
        %10589 = vmatpush2.bf16.msra.mxu0 %v9250
        %10590 = vmatprep.subr.bf16.mxu0 %v9247
        %10591 = vmatpush2.bf16.msra.mxu0 %v9246
        %10592 = vmatprep.subr.bf16.mxu0 %v9243
        %10593 = vmatpush2.bf16.msra.mxu0 %v9242
        %10594 = vmatprep.subr.bf16.mxu0 %v9239
        %10595 = vmatpush2.bf16.msra.mxu0 %v9238
        %10596 = vmatprep.mubr.bf16.mxu0 %v6427
        %10597 = vmatmul.mubr.bf16.gmra.mxu0 %v6426
        %v10598 = vpop.f32.mrf.mxu0
        %v10599 = vadd.f32 %v10558, %v10598
        %v10600 = vpop.f32.mrf.mxu0
        %v10601 = vadd.f32 %v10560, %v10600
        %v10602 = vpop.f32.mrf.mxu0
        %v10603 = vpop.f32.mrf.mxu0
        %10604 = vdwg.mxu0
        %10605 = vmatprep.subr.bf16.mxu0 %v9299
        %10606 = vmatpush1.bf16.msra.mxu0 %v9298
        %10607 = vmatprep.subr.bf16.mxu0 %v9295
        %10608 = vmatpush1.bf16.msra.mxu0 %v9294
        %10609 = vmatprep.subr.bf16.mxu0 %v9291
        %10610 = vmatpush1.bf16.msra.mxu0 %v9290
        %10611 = vmatprep.subr.bf16.mxu0 %v9287
        %10612 = vmatpush1.bf16.msra.mxu0 %v9286
        %10613 = vmatprep.subr.bf16.mxu0 %v9283
        %10614 = vmatpush1.bf16.msra.mxu0 %v9282
        %10615 = vmatprep.subr.bf16.mxu0 %v9279
        %10616 = vmatpush1.bf16.msra.mxu0 %v9278
        %10617 = vmatprep.subr.bf16.mxu0 %v9275
        %10618 = vmatpush1.bf16.msra.mxu0 %v9274
        %10619 = vmatprep.subr.bf16.mxu0 %v9271
        %10620 = vmatpush1.bf16.msra.mxu0 %v9270
        %10621 = vmatprep.subr.bf16.mxu0 %v9331
        %10622 = vmatpush2.bf16.msra.mxu0 %v9330
        %10623 = vmatprep.subr.bf16.mxu0 %v9327
        %10624 = vmatpush2.bf16.msra.mxu0 %v9326
        %10625 = vmatprep.subr.bf16.mxu0 %v9323
        %10626 = vmatpush2.bf16.msra.mxu0 %v9322
        %10627 = vmatprep.subr.bf16.mxu0 %v9319
        %10628 = vmatpush2.bf16.msra.mxu0 %v9318
        %10629 = vmatprep.subr.bf16.mxu0 %v9315
        %10630 = vmatpush2.bf16.msra.mxu0 %v9314
        %10631 = vmatprep.subr.bf16.mxu0 %v9311
        %10632 = vmatpush2.bf16.msra.mxu0 %v9310
        %10633 = vmatprep.subr.bf16.mxu0 %v9307
        %10634 = vmatpush2.bf16.msra.mxu0 %v9306
        %10635 = vmatprep.subr.bf16.mxu0 %v9303
        %10636 = vmatpush2.bf16.msra.mxu0 %v9302
        %10637 = vmatprep.mubr.bf16.mxu0 %v6429
        %10638 = vmatmul.mubr.bf16.gmra.mxu0 %v6428
        %v10639 = vpop.f32.mrf.mxu0
        %v10640 = vadd.f32 %v10599, %v10639
        %v10641 = vpop.f32.mrf.mxu0
        %v10642 = vadd.f32 %v10601, %v10641
        %v10643 = vpop.f32.mrf.mxu0
        %v10644 = vpop.f32.mrf.mxu0
        %10645 = vdwg.mxu0
        %v10646 = vmax.f32 %v10271, 0.0
        %v10647 = vmax.f32 %v10273, 0.0
        %v10648 = vmax.f32 %v10640, 0.0
        %v10649 = vmax.f32 %v10642, 0.0
        %vm10650 = vcmask 1043456
        %v10651 = vsel %vm10650, %v10646, 0.0
        %v10652 = vrot.slane %v10651, 4
        %v10653 = vadd.f32 %v10651, %v10652
        %v10654 = vrot.slane %v10653, 2
        %v10655 = vadd.f32 %v10653, %v10654
        %v10656 = vrot.slane %v10655, 1
        %v10657 = vadd.f32 %v10655, %v10656
        %v10658 = vsel %vm10650, %v10647, 0.0
        %v10659 = vrot.slane %v10658, 4
        %v10660 = vadd.f32 %v10658, %v10659
        %v10661 = vrot.slane %v10660, 2
        %v10662 = vadd.f32 %v10660, %v10661
        %v10663 = vrot.slane %v10662, 1
        %v10664 = vadd.f32 %v10662, %v10663
        %v10665 = vsel %vm10650, %v10648, 0.0
        %v10666 = vrot.slane %v10665, 4
        %v10667 = vadd.f32 %v10665, %v10666
        %v10668 = vrot.slane %v10667, 2
        %v10669 = vadd.f32 %v10667, %v10668
        %v10670 = vrot.slane %v10669, 1
        %v10671 = vadd.f32 %v10669, %v10670
        %v10672 = vsel %vm10650, %v10649, 0.0
        %v10673 = vrot.slane %v10672, 4
        %v10674 = vadd.f32 %v10672, %v10673
        %v10675 = vrot.slane %v10674, 2
        %v10676 = vadd.f32 %v10674, %v10675
        %v10677 = vrot.slane %v10676, 1
        %v10678 = vadd.f32 %v10676, %v10677
        %v10679 = vrcp.pop 4.0
        %v10680 = vmul.f32 %v10657, %v10679
        %v10681 = vmul.f32 %v10664, %v10679
        %v10682 = vmul.f32 %v10671, %v10679
        %v10683 = vmul.f32 %v10678, %v10679
        %v10684 = vpack.c.bf16 %v10680, %v10680
        %v10685 = vpack.c.bf16 %v10681, %v10681
        %v10686 = vpack.c.bf16 %v10682, %v10682
        %v10687 = vpack.c.bf16 %v10683, %v10683
        %v10688 = vld [vmem:[#allocation19] sm:$0xff]
        %v10689 = vld [vmem:[#allocation19 + $0x8] sm:$0xff]
        %v10690 = vld [vmem:[#allocation19 + $0x10] sm:$0xff]
        %v10691 = vld [vmem:[#allocation19 + $0x18] sm:$0xff]
        %v10692 = vld [vmem:[#allocation19 + $0x20] sm:$0xff]
        %v10693 = vld [vmem:[#allocation19 + $0x28] sm:$0xff]
        %v10694 = vld [vmem:[#allocation19 + $0x30] sm:$0xff]
        %v10695 = vld [vmem:[#allocation19 + $0x38] sm:$0xff]
        %v10696 = vld [vmem:[#allocation19 + $0x40] sm:$0xff]
        %v10697 = vld [vmem:[#allocation19 + $0x48] sm:$0xff]
        %v10698 = vld [vmem:[#allocation19 + $0x50] sm:$0xff]
        %v10699 = vld [vmem:[#allocation19 + $0x58] sm:$0xff]
        %v10700 = vld [vmem:[#allocation19 + $0x60] sm:$0xff]
        %v10701 = vld [vmem:[#allocation19 + $0x68] sm:$0xff]
        %v10702 = vld [vmem:[#allocation19 + $0x70] sm:$0xff]
        %v10703 = vld [vmem:[#allocation19 + $0x78] sm:$0xff]
        %v10704 = vld [vmem:[#allocation19 + $0x80] sm:$0xff]
        %v10705 = vld [vmem:[#allocation19 + $0x88] sm:$0xff]
        %v10706 = vld [vmem:[#allocation19 + $0x90] sm:$0xff]
        %v10707 = vld [vmem:[#allocation19 + $0x98] sm:$0xff]
        %v10708 = vld [vmem:[#allocation19 + $0xa0] sm:$0xff]
        %v10709 = vld [vmem:[#allocation19 + $0xa8] sm:$0xff]
        %v10710 = vld [vmem:[#allocation19 + $0xb0] sm:$0xff]
        %v10711 = vld [vmem:[#allocation19 + $0xb8] sm:$0xff]
        %v10712 = vld [vmem:[#allocation19 + $0xc0] sm:$0xff]
        %v10713 = vld [vmem:[#allocation19 + $0xc8] sm:$0xff]
        %v10714 = vld [vmem:[#allocation19 + $0xd0] sm:$0xff]
        %v10715 = vld [vmem:[#allocation19 + $0xd8] sm:$0xff]
        %v10716 = vld [vmem:[#allocation19 + $0xe0] sm:$0xff]
        %v10717 = vld [vmem:[#allocation19 + $0xe8] sm:$0xff]
        %v10718 = vld [vmem:[#allocation19 + $0xf0] sm:$0xff]
        %v10719 = vld [vmem:[#allocation19 + $0xf8] sm:$0xff]
        %v10720 = vld [vmem:[#allocation19 + $0x100] sm:$0xff]
        %v10721 = vld [vmem:[#allocation19 + $0x108] sm:$0xff]
        %v10722 = vld [vmem:[#allocation19 + $0x110] sm:$0xff]
        %v10723 = vld [vmem:[#allocation19 + $0x118] sm:$0xff]
        %v10724 = vld [vmem:[#allocation19 + $0x120] sm:$0xff]
        %v10725 = vld [vmem:[#allocation19 + $0x128] sm:$0xff]
        %v10726 = vld [vmem:[#allocation19 + $0x130] sm:$0xff]
        %v10727 = vld [vmem:[#allocation19 + $0x138] sm:$0xff]
        %v10728 = vld [vmem:[#allocation19 + $0x140] sm:$0xff]
        %v10729 = vld [vmem:[#allocation19 + $0x148] sm:$0xff]
        %v10730 = vld [vmem:[#allocation19 + $0x150] sm:$0xff]
        %v10731 = vld [vmem:[#allocation19 + $0x158] sm:$0xff]
        %v10732 = vld [vmem:[#allocation19 + $0x160] sm:$0xff]
        %v10733 = vld [vmem:[#allocation19 + $0x168] sm:$0xff]
        %v10734 = vld [vmem:[#allocation19 + $0x170] sm:$0xff]
        %v10735 = vld [vmem:[#allocation19 + $0x178] sm:$0xff]
        %v10736 = vld [vmem:[#allocation19 + $0x180] sm:$0xff]
        %v10737 = vld [vmem:[#allocation19 + $0x188] sm:$0xff]
        %v10738 = vld [vmem:[#allocation19 + $0x190] sm:$0xff]
        %v10739 = vld [vmem:[#allocation19 + $0x198] sm:$0xff]
        %v10740 = vld [vmem:[#allocation19 + $0x1a0] sm:$0xff]
        %v10741 = vld [vmem:[#allocation19 + $0x1a8] sm:$0xff]
        %v10742 = vld [vmem:[#allocation19 + $0x1b0] sm:$0xff]
        %v10743 = vld [vmem:[#allocation19 + $0x1b8] sm:$0xff]
        %v10744 = vld [vmem:[#allocation19 + $0x1c0] sm:$0xff]
        %v10745 = vld [vmem:[#allocation19 + $0x1c8] sm:$0xff]
        %v10746 = vld [vmem:[#allocation19 + $0x1d0] sm:$0xff]
        %v10747 = vld [vmem:[#allocation19 + $0x1d8] sm:$0xff]
        %v10748 = vld [vmem:[#allocation19 + $0x1e0] sm:$0xff]
        %v10749 = vld [vmem:[#allocation19 + $0x1e8] sm:$0xff]
        %v10750 = vld [vmem:[#allocation19 + $0x1f0] sm:$0xff]
        %v10751 = vld [vmem:[#allocation19 + $0x1f8] sm:$0xff]
        %v10752 = vld [vmem:[#allocation20] sm:$0x3]
        %v10817 = vunpack.c.l.b16 %v10688
        %v10818 = vunpack.c.h.b16 %v10688
        %v10819 = vunpack.c.l.b16 %v10689
        %v10820 = vunpack.c.h.b16 %v10689
        %v10821 = vunpack.c.l.b16 %v10690
        %v10822 = vunpack.c.h.b16 %v10690
        %v10823 = vunpack.c.l.b16 %v10691
        %v10824 = vunpack.c.h.b16 %v10691
        %v10825 = vunpack.c.l.b16 %v10692
        %v10826 = vunpack.c.h.b16 %v10692
        %v10827 = vunpack.c.l.b16 %v10693
        %v10828 = vunpack.c.h.b16 %v10693
        %v10829 = vunpack.c.l.b16 %v10694
        %v10830 = vunpack.c.h.b16 %v10694
        %v10831 = vunpack.c.l.b16 %v10695
        %v10832 = vunpack.c.h.b16 %v10695
        %v10833 = vunpack.c.l.b16 %v10696
        %v10834 = vunpack.c.h.b16 %v10696
        %v10835 = vunpack.c.l.b16 %v10697
        %v10836 = vunpack.c.h.b16 %v10697
        %v10837 = vunpack.c.l.b16 %v10698
        %v10838 = vunpack.c.h.b16 %v10698
        %v10839 = vunpack.c.l.b16 %v10699
        %v10840 = vunpack.c.h.b16 %v10699
        %v10841 = vunpack.c.l.b16 %v10700
        %v10842 = vunpack.c.h.b16 %v10700
        %v10843 = vunpack.c.l.b16 %v10701
        %v10844 = vunpack.c.h.b16 %v10701
        %v10845 = vunpack.c.l.b16 %v10702
        %v10846 = vunpack.c.h.b16 %v10702
        %v10847 = vunpack.c.l.b16 %v10703
        %v10848 = vunpack.c.h.b16 %v10703
        %v10849 = vunpack.c.l.b16 %v10704
        %v10850 = vunpack.c.h.b16 %v10704
        %v10851 = vunpack.c.l.b16 %v10705
        %v10852 = vunpack.c.h.b16 %v10705
        %v10853 = vunpack.c.l.b16 %v10706
        %v10854 = vunpack.c.h.b16 %v10706
        %v10855 = vunpack.c.l.b16 %v10707
        %v10856 = vunpack.c.h.b16 %v10707
        %v10857 = vunpack.c.l.b16 %v10708
        %v10858 = vunpack.c.h.b16 %v10708
        %v10859 = vunpack.c.l.b16 %v10709
        %v10860 = vunpack.c.h.b16 %v10709
        %v10861 = vunpack.c.l.b16 %v10710
        %v10862 = vunpack.c.h.b16 %v10710
        %v10863 = vunpack.c.l.b16 %v10711
        %v10864 = vunpack.c.h.b16 %v10711
        %v10865 = vunpack.c.l.b16 %v10712
        %v10866 = vunpack.c.h.b16 %v10712
        %v10867 = vunpack.c.l.b16 %v10713
        %v10868 = vunpack.c.h.b16 %v10713
        %v10869 = vunpack.c.l.b16 %v10714
        %v10870 = vunpack.c.h.b16 %v10714
        %v10871 = vunpack.c.l.b16 %v10715
        %v10872 = vunpack.c.h.b16 %v10715
        %v10873 = vunpack.c.l.b16 %v10716
        %v10874 = vunpack.c.h.b16 %v10716
        %v10875 = vunpack.c.l.b16 %v10717
        %v10876 = vunpack.c.h.b16 %v10717
        %v10877 = vunpack.c.l.b16 %v10718
        %v10878 = vunpack.c.h.b16 %v10718
        %v10879 = vunpack.c.l.b16 %v10719
        %v10880 = vunpack.c.h.b16 %v10719
        %v10881 = vunpack.c.l.b16 %v10720
        %v10882 = vunpack.c.h.b16 %v10720
        %v10883 = vunpack.c.l.b16 %v10721
        %v10884 = vunpack.c.h.b16 %v10721
        %v10885 = vunpack.c.l.b16 %v10722
        %v10886 = vunpack.c.h.b16 %v10722
        %v10887 = vunpack.c.l.b16 %v10723
        %v10888 = vunpack.c.h.b16 %v10723
        %v10889 = vunpack.c.l.b16 %v10724
        %v10890 = vunpack.c.h.b16 %v10724
        %v10891 = vunpack.c.l.b16 %v10725
        %v10892 = vunpack.c.h.b16 %v10725
        %v10893 = vunpack.c.l.b16 %v10726
        %v10894 = vunpack.c.h.b16 %v10726
        %v10895 = vunpack.c.l.b16 %v10727
        %v10896 = vunpack.c.h.b16 %v10727
        %v10897 = vunpack.c.l.b16 %v10728
        %v10898 = vunpack.c.h.b16 %v10728
        %v10899 = vunpack.c.l.b16 %v10729
        %v10900 = vunpack.c.h.b16 %v10729
        %v10901 = vunpack.c.l.b16 %v10730
        %v10902 = vunpack.c.h.b16 %v10730
        %v10903 = vunpack.c.l.b16 %v10731
        %v10904 = vunpack.c.h.b16 %v10731
        %v10905 = vunpack.c.l.b16 %v10732
        %v10906 = vunpack.c.h.b16 %v10732
        %v10907 = vunpack.c.l.b16 %v10733
        %v10908 = vunpack.c.h.b16 %v10733
        %v10909 = vunpack.c.l.b16 %v10734
        %v10910 = vunpack.c.h.b16 %v10734
        %v10911 = vunpack.c.l.b16 %v10735
        %v10912 = vunpack.c.h.b16 %v10735
        %v10913 = vunpack.c.l.b16 %v10736
        %v10914 = vunpack.c.h.b16 %v10736
        %v10915 = vunpack.c.l.b16 %v10737
        %v10916 = vunpack.c.h.b16 %v10737
        %v10917 = vunpack.c.l.b16 %v10738
        %v10918 = vunpack.c.h.b16 %v10738
        %v10919 = vunpack.c.l.b16 %v10739
        %v10920 = vunpack.c.h.b16 %v10739
        %v10921 = vunpack.c.l.b16 %v10740
        %v10922 = vunpack.c.h.b16 %v10740
        %v10923 = vunpack.c.l.b16 %v10741
        %v10924 = vunpack.c.h.b16 %v10741
        %v10925 = vunpack.c.l.b16 %v10742
        %v10926 = vunpack.c.h.b16 %v10742
        %v10927 = vunpack.c.l.b16 %v10743
        %v10928 = vunpack.c.h.b16 %v10743
        %v10929 = vunpack.c.l.b16 %v10744
        %v10930 = vunpack.c.h.b16 %v10744
        %v10931 = vunpack.c.l.b16 %v10745
        %v10932 = vunpack.c.h.b16 %v10745
        %v10933 = vunpack.c.l.b16 %v10746
        %v10934 = vunpack.c.h.b16 %v10746
        %v10935 = vunpack.c.l.b16 %v10747
        %v10936 = vunpack.c.h.b16 %v10747
        %v10937 = vunpack.c.l.b16 %v10748
        %v10938 = vunpack.c.h.b16 %v10748
        %v10939 = vunpack.c.l.b16 %v10749
        %v10940 = vunpack.c.h.b16 %v10749
        %v10941 = vunpack.c.l.b16 %v10750
        %v10942 = vunpack.c.h.b16 %v10750
        %v10943 = vunpack.c.l.b16 %v10751
        %v10944 = vunpack.c.h.b16 %v10751
        %v10945 = vpack.c.b16 %v10819, %v10817
        %v10946 = vpack.c.b16 %v10820, %v10818
        %v10947 = vpack.c.b16 %v10823, %v10821
        %v10948 = vpack.c.b16 %v10824, %v10822
        %v10949 = vpack.c.b16 %v10827, %v10825
        %v10950 = vpack.c.b16 %v10828, %v10826
        %v10951 = vpack.c.b16 %v10831, %v10829
        %v10952 = vpack.c.b16 %v10832, %v10830
        %v10953 = vpack.c.b16 %v10835, %v10833
        %v10954 = vpack.c.b16 %v10836, %v10834
        %v10955 = vpack.c.b16 %v10839, %v10837
        %v10956 = vpack.c.b16 %v10840, %v10838
        %v10957 = vpack.c.b16 %v10843, %v10841
        %v10958 = vpack.c.b16 %v10844, %v10842
        %v10959 = vpack.c.b16 %v10847, %v10845
        %v10960 = vpack.c.b16 %v10848, %v10846
        %v10961 = vpack.c.b16 %v10851, %v10849
        %v10962 = vpack.c.b16 %v10852, %v10850
        %v10963 = vpack.c.b16 %v10855, %v10853
        %v10964 = vpack.c.b16 %v10856, %v10854
        %v10965 = vpack.c.b16 %v10859, %v10857
        %v10966 = vpack.c.b16 %v10860, %v10858
        %v10967 = vpack.c.b16 %v10863, %v10861
        %v10968 = vpack.c.b16 %v10864, %v10862
        %v10969 = vpack.c.b16 %v10867, %v10865
        %v10970 = vpack.c.b16 %v10868, %v10866
        %v10971 = vpack.c.b16 %v10871, %v10869
        %v10972 = vpack.c.b16 %v10872, %v10870
        %v10973 = vpack.c.b16 %v10875, %v10873
        %v10974 = vpack.c.b16 %v10876, %v10874
        %v10975 = vpack.c.b16 %v10879, %v10877
        %v10976 = vpack.c.b16 %v10880, %v10878
        %v10977 = vpack.c.b16 %v10883, %v10881
        %v10978 = vpack.c.b16 %v10884, %v10882
        %v10979 = vpack.c.b16 %v10887, %v10885
        %v10980 = vpack.c.b16 %v10888, %v10886
        %v10981 = vpack.c.b16 %v10891, %v10889
        %v10982 = vpack.c.b16 %v10892, %v10890
        %v10983 = vpack.c.b16 %v10895, %v10893
        %v10984 = vpack.c.b16 %v10896, %v10894
        %v10985 = vpack.c.b16 %v10899, %v10897
        %v10986 = vpack.c.b16 %v10900, %v10898
        %v10987 = vpack.c.b16 %v10903, %v10901
        %v10988 = vpack.c.b16 %v10904, %v10902
        %v10989 = vpack.c.b16 %v10907, %v10905
        %v10990 = vpack.c.b16 %v10908, %v10906
        %v10991 = vpack.c.b16 %v10911, %v10909
        %v10992 = vpack.c.b16 %v10912, %v10910
        %v10993 = vpack.c.b16 %v10915, %v10913
        %v10994 = vpack.c.b16 %v10916, %v10914
        %v10995 = vpack.c.b16 %v10919, %v10917
        %v10996 = vpack.c.b16 %v10920, %v10918
        %v10997 = vpack.c.b16 %v10923, %v10921
        %v10998 = vpack.c.b16 %v10924, %v10922
        %v10999 = vpack.c.b16 %v10927, %v10925
        %v11000 = vpack.c.b16 %v10928, %v10926
        %v11001 = vpack.c.b16 %v10931, %v10929
        %v11002 = vpack.c.b16 %v10932, %v10930
        %v11003 = vpack.c.b16 %v10935, %v10933
        %v11004 = vpack.c.b16 %v10936, %v10934
        %v11005 = vpack.c.b16 %v10939, %v10937
        %v11006 = vpack.c.b16 %v10940, %v10938
        %v11007 = vpack.c.b16 %v10943, %v10941
        %v11008 = vpack.c.b16 %v10944, %v10942
        %v11074 = vlaneseq
        %v11075 = vshrl.u32 %v11074, 7
        %v11076 = vsub.s32 0, %v11075
        %v11077 = vrot.slane %v10752, %v11076
        %v11078 = vlaneseq
        %v11079 = vshrl.u32 %v11078, 7
        %v11080 = vsub.s32 1, %v11079
        %v11081 = vrot.slane %v10752, %v11080
        %11084 = vmatprep.subr.bf16.mxu0 %v10960
        %11085 = vmatpush1.bf16.msra.mxu0 %v10959
        %11086 = vmatprep.subr.bf16.mxu0 %v10958
        %11087 = vmatpush1.bf16.msra.mxu0 %v10957
        %11088 = vmatprep.subr.bf16.mxu0 %v10956
        %11089 = vmatpush1.bf16.msra.mxu0 %v10955
        %11090 = vmatprep.subr.bf16.mxu0 %v10954
        %11091 = vmatpush1.bf16.msra.mxu0 %v10953
        %11092 = vmatprep.subr.bf16.mxu0 %v10952
        %11093 = vmatpush1.bf16.msra.mxu0 %v10951
        %11094 = vmatprep.subr.bf16.mxu0 %v10950
        %11095 = vmatpush1.bf16.msra.mxu0 %v10949
        %11096 = vmatprep.subr.bf16.mxu0 %v10948
        %11097 = vmatpush1.bf16.msra.mxu0 %v10947
        %11098 = vmatprep.subr.bf16.mxu0 %v10946
        %11099 = vmatpush1.bf16.msra.mxu0 %v10945
        %11100 = vmatprep.subr.bf16.mxu0 %v10976
        %11101 = vmatpush2.bf16.msra.mxu0 %v10975
        %11102 = vmatprep.subr.bf16.mxu0 %v10974
        %11103 = vmatpush2.bf16.msra.mxu0 %v10973
        %11104 = vmatprep.subr.bf16.mxu0 %v10972
        %11105 = vmatpush2.bf16.msra.mxu0 %v10971
        %11106 = vmatprep.subr.bf16.mxu0 %v10970
        %11107 = vmatpush2.bf16.msra.mxu0 %v10969
        %11108 = vmatprep.subr.bf16.mxu0 %v10968
        %11109 = vmatpush2.bf16.msra.mxu0 %v10967
        %11110 = vmatprep.subr.bf16.mxu0 %v10966
        %11111 = vmatpush2.bf16.msra.mxu0 %v10965
        %11112 = vmatprep.subr.bf16.mxu0 %v10964
        %11113 = vmatpush2.bf16.msra.mxu0 %v10963
        %11114 = vmatprep.subr.bf16.mxu0 %v10962
        %11115 = vmatpush2.bf16.msra.mxu0 %v10961
        %11116 = vmatprep.mubr.bf16.mxu0 %v10685
        %11117 = vmatmul.mubr.bf16.gmra.mxu0 %v10684
        %v11118 = vpop.f32.mrf.mxu0
        %v11119 = vadd.f32 %v11077, %v11118
        %v11120 = vpop.f32.mrf.mxu0
        %v11121 = vadd.f32 %v11081, %v11120
        %v11122 = vpop.f32.mrf.mxu0
        %v11123 = vpop.f32.mrf.mxu0
        %11124 = vdwg.mxu0
        %11125 = vmatprep.subr.bf16.mxu0 %v10992
        %11126 = vmatpush1.bf16.msra.mxu0 %v10991
        %11127 = vmatprep.subr.bf16.mxu0 %v10990
        %11128 = vmatpush1.bf16.msra.mxu0 %v10989
        %11129 = vmatprep.subr.bf16.mxu0 %v10988
        %11130 = vmatpush1.bf16.msra.mxu0 %v10987
        %11131 = vmatprep.subr.bf16.mxu0 %v10986
        %11132 = vmatpush1.bf16.msra.mxu0 %v10985
        %11133 = vmatprep.subr.bf16.mxu0 %v10984
        %11134 = vmatpush1.bf16.msra.mxu0 %v10983
        %11135 = vmatprep.subr.bf16.mxu0 %v10982
        %11136 = vmatpush1.bf16.msra.mxu0 %v10981
        %11137 = vmatprep.subr.bf16.mxu0 %v10980
        %11138 = vmatpush1.bf16.msra.mxu0 %v10979
        %11139 = vmatprep.subr.bf16.mxu0 %v10978
        %11140 = vmatpush1.bf16.msra.mxu0 %v10977
        %11141 = vmatprep.subr.bf16.mxu0 %v11008
        %11142 = vmatpush2.bf16.msra.mxu0 %v11007
        %11143 = vmatprep.subr.bf16.mxu0 %v11006
        %11144 = vmatpush2.bf16.msra.mxu0 %v11005
        %11145 = vmatprep.subr.bf16.mxu0 %v11004
        %11146 = vmatpush2.bf16.msra.mxu0 %v11003
        %11147 = vmatprep.subr.bf16.mxu0 %v11002
        %11148 = vmatpush2.bf16.msra.mxu0 %v11001
        %11149 = vmatprep.subr.bf16.mxu0 %v11000
        %11150 = vmatpush2.bf16.msra.mxu0 %v10999
        %11151 = vmatprep.subr.bf16.mxu0 %v10998
        %11152 = vmatpush2.bf16.msra.mxu0 %v10997
        %11153 = vmatprep.subr.bf16.mxu0 %v10996
        %11154 = vmatpush2.bf16.msra.mxu0 %v10995
        %11155 = vmatprep.subr.bf16.mxu0 %v10994
        %11156 = vmatpush2.bf16.msra.mxu0 %v10993
        %11157 = vmatprep.mubr.bf16.mxu0 %v10687
        %11158 = vmatmul.mubr.bf16.gmra.mxu0 %v10686
        %v11159 = vpop.f32.mrf.mxu0
        %v11160 = vadd.f32 %v11119, %v11159
        %v11161 = vpop.f32.mrf.mxu0
        %v11162 = vadd.f32 %v11121, %v11161
        %v11163 = vpop.f32.mrf.mxu0
        %v11164 = vpop.f32.mrf.mxu0
        %11165 = vdwg.mxu0
        %v11166 = vmax.f32 %v11160, 0.0
        %v11167 = vmax.f32 %v11162, 0.0
        %v11168 = vld [vmem:[%s12] sm:$0xff]
        %v11169 = vld [vmem:[%s12 + $0x8] sm:$0xff]
        %v11170 = vld [vmem:[%s12 + $0x10] sm:$0xff]
        %v11171 = vld [vmem:[%s12 + $0x18] sm:$0xff]
        %v11172 = vld [vmem:[%s12 + $0x20] sm:$0xff]
        %v11173 = vld [vmem:[%s12 + $0x28] sm:$0xff]
        %v11174 = vld [vmem:[%s12 + $0x30] sm:$0xff]
        %v11175 = vld [vmem:[%s12 + $0x38] sm:$0xff]
        %v11176 = vld [vmem:[%s12 + $0x40] sm:$0xff]
        %v11177 = vld [vmem:[%s12 + $0x48] sm:$0xff]
        %v11178 = vld [vmem:[%s12 + $0x50] sm:$0xff]
        %v11179 = vld [vmem:[%s12 + $0x58] sm:$0xff]
        %v11180 = vld [vmem:[%s12 + $0x60] sm:$0xff]
        %v11181 = vld [vmem:[%s12 + $0x68] sm:$0xff]
        %v11182 = vld [vmem:[%s12 + $0x70] sm:$0xff]
        %v11183 = vld [vmem:[%s12 + $0x78] sm:$0xff]
        %v11184 = vld [vmem:[%s12 + $0x80] sm:$0xff]
        %v11185 = vld [vmem:[%s12 + $0x88] sm:$0xff]
        %v11186 = vld [vmem:[%s12 + $0x90] sm:$0xff]
        %v11187 = vld [vmem:[%s12 + $0x98] sm:$0xff]
        %v11188 = vld [vmem:[%s12 + $0xa0] sm:$0xff]
        %v11189 = vld [vmem:[%s12 + $0xa8] sm:$0xff]
        %v11190 = vld [vmem:[%s12 + $0xb0] sm:$0xff]
        %v11191 = vld [vmem:[%s12 + $0xb8] sm:$0xff]
        %v11192 = vld [vmem:[%s12 + $0xc0] sm:$0xff]
        %v11193 = vld [vmem:[%s12 + $0xc8] sm:$0xff]
        %v11194 = vld [vmem:[%s12 + $0xd0] sm:$0xff]
        %v11195 = vld [vmem:[%s12 + $0xd8] sm:$0xff]
        %v11196 = vld [vmem:[%s12 + $0xe0] sm:$0xff]
        %v11197 = vld [vmem:[%s12 + $0xe8] sm:$0xff]
        %v11198 = vld [vmem:[%s12 + $0xf0] sm:$0xff]
        %v11199 = vld [vmem:[%s12 + $0xf8] sm:$0xff]
        %v11200 = vld [vmem:[#allocation22] sm:$0x1]
        %11201 = vmatprep.subr.mxu0 0.0
        %11202 = vmatpush1.msra.mxu0 %v11183
        %11203 = vmatprep.subr.mxu0 0.0
        %11204 = vmatpush1.msra.mxu0 %v11182
        %11205 = vmatprep.subr.mxu0 0.0
        %11206 = vmatpush1.msra.mxu0 %v11181
        %11207 = vmatprep.subr.mxu0 0.0
        %11208 = vmatpush1.msra.mxu0 %v11180
        %11209 = vmatprep.subr.mxu0 0.0
        %11210 = vmatpush1.msra.mxu0 %v11179
        %11211 = vmatprep.subr.mxu0 0.0
        %11212 = vmatpush1.msra.mxu0 %v11178
        %11213 = vmatprep.subr.mxu0 0.0
        %11214 = vmatpush1.msra.mxu0 %v11177
        %11215 = vmatprep.subr.mxu0 0.0
        %11216 = vmatpush1.msra.mxu0 %v11176
        %11217 = vmatprep.subr.mxu0 0.0
        %11218 = vmatpush1.msra.mxu0 %v11175
        %11219 = vmatprep.subr.mxu0 0.0
        %11220 = vmatpush1.msra.mxu0 %v11174
        %11221 = vmatprep.subr.mxu0 0.0
        %11222 = vmatpush1.msra.mxu0 %v11173
        %11223 = vmatprep.subr.mxu0 0.0
        %11224 = vmatpush1.msra.mxu0 %v11172
        %11225 = vmatprep.subr.mxu0 0.0
        %11226 = vmatpush1.msra.mxu0 %v11171
        %11227 = vmatprep.subr.mxu0 0.0
        %11228 = vmatpush1.msra.mxu0 %v11170
        %11229 = vmatprep.subr.mxu0 0.0
        %11230 = vmatpush1.msra.mxu0 %v11169
        %11231 = vmatprep.subr.mxu0 0.0
        %11232 = vmatpush1.msra.mxu0 %v11168
        %11233 = vmatprep.subr.mxu0 0.0
        %11234 = vmatpush2.msra.mxu0 %v11199
        %11235 = vmatprep.subr.mxu0 0.0
        %11236 = vmatpush2.msra.mxu0 %v11198
        %11237 = vmatprep.subr.mxu0 0.0
        %11238 = vmatpush2.msra.mxu0 %v11197
        %11239 = vmatprep.subr.mxu0 0.0
        %11240 = vmatpush2.msra.mxu0 %v11196
        %11241 = vmatprep.subr.mxu0 0.0
        %11242 = vmatpush2.msra.mxu0 %v11195
        %11243 = vmatprep.subr.mxu0 0.0
        %11244 = vmatpush2.msra.mxu0 %v11194
        %11245 = vmatprep.subr.mxu0 0.0
        %11246 = vmatpush2.msra.mxu0 %v11193
        %11247 = vmatprep.subr.mxu0 0.0
        %11248 = vmatpush2.msra.mxu0 %v11192
        %11249 = vmatprep.subr.mxu0 0.0
        %11250 = vmatpush2.msra.mxu0 %v11191
        %11251 = vmatprep.subr.mxu0 0.0
        %11252 = vmatpush2.msra.mxu0 %v11190
        %11253 = vmatprep.subr.mxu0 0.0
        %11254 = vmatpush2.msra.mxu0 %v11189
        %11255 = vmatprep.subr.mxu0 0.0
        %11256 = vmatpush2.msra.mxu0 %v11188
        %11257 = vmatprep.subr.mxu0 0.0
        %11258 = vmatpush2.msra.mxu0 %v11187
        %11259 = vmatprep.subr.mxu0 0.0
        %11260 = vmatpush2.msra.mxu0 %v11186
        %11261 = vmatprep.subr.mxu0 0.0
        %11262 = vmatpush2.msra.mxu0 %v11185
        %11263 = vmatprep.subr.mxu0 0.0
        %11264 = vmatpush2.msra.mxu0 %v11184
        %11265 = vmatprep.mubr.f32.mxu0 %v11167
        %11266 = vmatmul.mubr.f32.gmra.mxu0 %v11166
        %v11267 = vpop.f32.mrf.mxu0
        %v11268 = vadd.f32 %v11200, %v11267
        %v11269 = vpop.f32.mrf.mxu0
        %11270 = vdwg.mxu0
        %v11271 = vld [vmem:[#allocation23] sm:$0xff]
        %v11273 = vsel %vm2131, %v11268, 0
        %11275 = vmatprep.subr.mxu0 0.0
        %11276 = vmatpush1.msra.mxu0 0.0
        %11277 = vmatprep.subr.mxu0 0.0
        %11278 = vmatpush1.msra.mxu0 0.0
        %11279 = vmatprep.subr.mxu0 0.0
        %11280 = vmatpush1.msra.mxu0 0.0
        %11281 = vmatprep.subr.mxu0 0.0
        %11282 = vmatpush1.msra.mxu0 0.0
        %11283 = vmatprep.subr.mxu0 0.0
        %11284 = vmatpush1.msra.mxu0 0.0
        %11285 = vmatprep.subr.mxu0 0.0
        %11286 = vmatpush1.msra.mxu0 0.0
        %11287 = vmatprep.subr.mxu0 0.0
        %11288 = vmatpush1.msra.mxu0 0.0
        %11289 = vmatprep.subr.mxu0 0.0
        %11290 = vmatpush1.msra.mxu0 0.0
        %11291 = vmatprep.subr.mxu0 0.0
        %11292 = vmatpush1.msra.mxu0 0.0
        %11293 = vmatprep.subr.mxu0 0.0
        %11294 = vmatpush1.msra.mxu0 0.0
        %11295 = vmatprep.subr.mxu0 0.0
        %11296 = vmatpush1.msra.mxu0 0.0
        %11297 = vmatprep.subr.mxu0 0.0
        %11298 = vmatpush1.msra.mxu0 0.0
        %11299 = vmatprep.subr.mxu0 0.0
        %11300 = vmatpush1.msra.mxu0 0.0
        %11301 = vmatprep.subr.mxu0 0.0
        %11302 = vmatpush1.msra.mxu0 0.0
        %11303 = vmatprep.subr.mxu0 0.0
        %11304 = vmatpush1.msra.mxu0 0.0
        %11305 = vmatprep.subr.mxu0 0.0
        %11306 = vmatpush1.msra.mxu0 %v11271
        %11307 = vmatprep.subr.mxu0 0.0
        %11308 = vmatpush2.msra.mxu0 0.0
        %11309 = vmatprep.subr.mxu0 0.0
        %11310 = vmatpush2.msra.mxu0 0.0
        %11311 = vmatprep.subr.mxu0 0.0
        %11312 = vmatpush2.msra.mxu0 0.0
        %11313 = vmatprep.subr.mxu0 0.0
        %11314 = vmatpush2.msra.mxu0 0.0
        %11315 = vmatprep.subr.mxu0 0.0
        %11316 = vmatpush2.msra.mxu0 0.0
        %11317 = vmatprep.subr.mxu0 0.0
        %11318 = vmatpush2.msra.mxu0 0.0
        %11319 = vmatprep.subr.mxu0 0.0
        %11320 = vmatpush2.msra.mxu0 0.0
        %11321 = vmatprep.subr.mxu0 0.0
        %11322 = vmatpush2.msra.mxu0 0.0
        %11323 = vmatprep.subr.mxu0 0.0
        %11324 = vmatpush2.msra.mxu0 0.0
        %11325 = vmatprep.subr.mxu0 0.0
        %11326 = vmatpush2.msra.mxu0 0.0
        %11327 = vmatprep.subr.mxu0 0.0
        %11328 = vmatpush2.msra.mxu0 0.0
        %11329 = vmatprep.subr.mxu0 0.0
        %11330 = vmatpush2.msra.mxu0 0.0
        %11331 = vmatprep.subr.mxu0 0.0
        %11332 = vmatpush2.msra.mxu0 0.0
        %11333 = vmatprep.subr.mxu0 0.0
        %11334 = vmatpush2.msra.mxu0 0.0
        %11335 = vmatprep.subr.mxu0 0.0
        %11336 = vmatpush2.msra.mxu0 0.0
        %11337 = vmatprep.subr.mxu0 0.0
        %11338 = vmatpush2.msra.mxu0 0.0
        %11339 = vmatprep.mubr.f32.mxu0 0.0
        %11340 = vmatmul.mubr.f32.gmra.mxu0 %v11273
        %v11341 = vpop.f32.mrf.mxu0
        %v11342 = vadd.f32 1.0, %v11341
        %v11343 = vpop.f32.mrf.mxu0
        %11344 = vdwg.mxu0
        %v11345 = vmul.f32 %v11342, 0.5
        %v11346 = vmul.f32 %v11345, 15.0
        %v11347 = vmax.f32 %v11346, 0.0
        %v11348 = vmin.f32 %v11347, 15.0
        %11349 = vrot.lane.b32.xlu0 %v11268, 120
        %v11350 = vpop.permute.xlu0 %11349
        %v11351 = vsel %vm2131, %v11350, 0
        %11353 = vmatprep.subr.mxu0 0.0
        %11354 = vmatpush1.msra.mxu0 0.0
        %11355 = vmatprep.subr.mxu0 0.0
        %11356 = vmatpush1.msra.mxu0 0.0
        %11357 = vmatprep.subr.mxu0 0.0
        %11358 = vmatpush1.msra.mxu0 0.0
        %11359 = vmatprep.subr.mxu0 0.0
        %11360 = vmatpush1.msra.mxu0 0.0
        %11361 = vmatprep.subr.mxu0 0.0
        %11362 = vmatpush1.msra.mxu0 0.0
        %11363 = vmatprep.subr.mxu0 0.0
        %11364 = vmatpush1.msra.mxu0 0.0
        %11365 = vmatprep.subr.mxu0 0.0
        %11366 = vmatpush1.msra.mxu0 0.0
        %11367 = vmatprep.subr.mxu0 0.0
        %11368 = vmatpush1.msra.mxu0 0.0
        %11369 = vmatprep.subr.mxu0 0.0
        %11370 = vmatpush1.msra.mxu0 0.0
        %11371 = vmatprep.subr.mxu0 0.0
        %11372 = vmatpush1.msra.mxu0 0.0
        %11373 = vmatprep.subr.mxu0 0.0
        %11374 = vmatpush1.msra.mxu0 0.0
        %11375 = vmatprep.subr.mxu0 0.0
        %11376 = vmatpush1.msra.mxu0 0.0
        %11377 = vmatprep.subr.mxu0 0.0
        %11378 = vmatpush1.msra.mxu0 0.0
        %11379 = vmatprep.subr.mxu0 0.0
        %11380 = vmatpush1.msra.mxu0 0.0
        %11381 = vmatprep.subr.mxu0 0.0
        %11382 = vmatpush1.msra.mxu0 0.0
        %11383 = vmatprep.subr.mxu0 0.0
        %11384 = vmatpush1.msra.mxu0 %v11271
        %11385 = vmatprep.subr.mxu0 0.0
        %11386 = vmatpush2.msra.mxu0 0.0
        %11387 = vmatprep.subr.mxu0 0.0
        %11388 = vmatpush2.msra.mxu0 0.0
        %11389 = vmatprep.subr.mxu0 0.0
        %11390 = vmatpush2.msra.mxu0 0.0
        %11391 = vmatprep.subr.mxu0 0.0
        %11392 = vmatpush2.msra.mxu0 0.0
        %11393 = vmatprep.subr.mxu0 0.0
        %11394 = vmatpush2.msra.mxu0 0.0
        %11395 = vmatprep.subr.mxu0 0.0
        %11396 = vmatpush2.msra.mxu0 0.0
        %11397 = vmatprep.subr.mxu0 0.0
        %11398 = vmatpush2.msra.mxu0 0.0
        %11399 = vmatprep.subr.mxu0 0.0
        %11400 = vmatpush2.msra.mxu0 0.0
        %11401 = vmatprep.subr.mxu0 0.0
        %11402 = vmatpush2.msra.mxu0 0.0
        %11403 = vmatprep.subr.mxu0 0.0
        %11404 = vmatpush2.msra.mxu0 0.0
        %11405 = vmatprep.subr.mxu0 0.0
        %11406 = vmatpush2.msra.mxu0 0.0
        %11407 = vmatprep.subr.mxu0 0.0
        %11408 = vmatpush2.msra.mxu0 0.0
        %11409 = vmatprep.subr.mxu0 0.0
        %11410 = vmatpush2.msra.mxu0 0.0
        %11411 = vmatprep.subr.mxu0 0.0
        %11412 = vmatpush2.msra.mxu0 0.0
        %11413 = vmatprep.subr.mxu0 0.0
        %11414 = vmatpush2.msra.mxu0 0.0
        %11415 = vmatprep.subr.mxu0 0.0
        %11416 = vmatpush2.msra.mxu0 0.0
        %11417 = vmatprep.mubr.f32.mxu0 0.0
        %11418 = vmatmul.mubr.f32.gmra.mxu0 %v11351
        %v11419 = vpop.f32.mrf.mxu0
        %v11420 = vadd.f32 1.0, %v11419
        %v11421 = vpop.f32.mrf.mxu0
        %11422 = vdwg.mxu0
        %v11423 = vmul.f32 %v11420, 0.5
        %v11424 = vmul.f32 %v11423, 15.0
        %v11425 = vmax.f32 %v11424, 0.0
        %v11426 = vmin.f32 %v11425, 15.0
        %v11427 = vfloor.f32 %v11348
        %v11428 = vfloor.f32 %v11426
        %v11429 = vsub.f32 %v11348, %v11427
        %v11430 = vsub.f32 1.0, %v11429
        %v11431 = vsub.f32 %v11426, %v11428
        %v11432 = vsub.f32 1.0, %v11431
        %v11433 = vcvt.f32.s32.to.zero.pseudo %v11427
        %v11434 = vcvt.f32.s32.to.zero.pseudo %v11428
        %v11435 = vadd.s32 %v11433, 1
        %vm11436 = vcmp.lt.s32.totalorder %v11435, 15
        %v11437 = vsel %vm11436, %v11435, 15
        %v11438 = vadd.s32 %v11434, 1
        %vm11439 = vcmp.lt.s32.totalorder %v11438, 15
        %v11440 = vsel %vm11439, %v11438, 15
        %v11441 = vlaneseq
        %v11442 = vshrl.u32 %v11441, 7
        %v11443 = vadd.s32 %v11442, 8
        %v11444 = vlaneseq
        %v11445 = vshrl.u32 %v11444, 7
        %v11446 = vsub.s32 0, %v11445
        %v11447 = vrot.slane %v11434, %v11446
        %vm11448 = vcmp.eq.s32.totalorder %v11442, %v11447
        %vm11449 = vcmp.eq.s32.totalorder %v11443, %v11447
        %v11450 = vlaneseq
        %v11451 = vshrl.u32 %v11450, 7
        %v11452 = vsub.s32 0, %v11451
        %v11453 = vrot.slane %v11432, %v11452
        %v11454 = vsel %vm11448, %v11453, 0.0
        %v11455 = vsel %vm11449, %v11453, 0.0
        %v11456 = vlaneseq
        %v11457 = vshrl.u32 %v11456, 7
        %v11458 = vsub.s32 0, %v11457
        %v11459 = vrot.slane %v11440, %v11458
        %vm11460 = vcmp.eq.s32.totalorder %v11442, %v11459
        %vm11461 = vcmp.eq.s32.totalorder %v11443, %v11459
        %v11462 = vlaneseq
        %v11463 = vshrl.u32 %v11462, 7
        %v11464 = vsub.s32 0, %v11463
        %v11465 = vrot.slane %v11431, %v11464
        %v11466 = vsel %vm11460, %v11465, 0.0
        %v11467 = vsel %vm11461, %v11465, 0.0
        %v11468 = vadd.f32 %v11454, %v11466
        %v11469 = vadd.f32 %v11455, %v11467
        %vm11470 = vcmp.eq.s32.totalorder %v11433, 0
        %vm11471 = vcmp.eq.s32.totalorder %v11433, 1
        %vm11472 = vcmp.eq.s32.totalorder %v11433, 2
        %vm11473 = vcmp.eq.s32.totalorder %v11433, 3
        %vm11474 = vcmp.eq.s32.totalorder %v11433, 4
        %vm11475 = vcmp.eq.s32.totalorder %v11433, 5
        %vm11476 = vcmp.eq.s32.totalorder %v11433, 6
        %vm11477 = vcmp.eq.s32.totalorder %v11433, 7
        %vm11478 = vcmp.eq.s32.totalorder %v11433, 8
        %vm11479 = vcmp.eq.s32.totalorder %v11433, 9
        %vm11480 = vcmp.eq.s32.totalorder %v11433, 10
        %vm11481 = vcmp.eq.s32.totalorder %v11433, 11
        %vm11482 = vcmp.eq.s32.totalorder %v11433, 12
        %vm11483 = vcmp.eq.s32.totalorder %v11433, 13
        %vm11484 = vcmp.eq.s32.totalorder %v11433, 14
        %vm11485 = vcmp.eq.s32.totalorder %v11433, 15
        %v11486 = vsel %vm11470, %v11430, 0.0
        %v11487 = vsel %vm11471, %v11430, 0.0
        %v11488 = vsel %vm11472, %v11430, 0.0
        %v11489 = vsel %vm11473, %v11430, 0.0
        %v11490 = vsel %vm11474, %v11430, 0.0
        %v11491 = vsel %vm11475, %v11430, 0.0
        %v11492 = vsel %vm11476, %v11430, 0.0
        %v11493 = vsel %vm11477, %v11430, 0.0
        %v11494 = vsel %vm11478, %v11430, 0.0
        %v11495 = vsel %vm11479, %v11430, 0.0
        %v11496 = vsel %vm11480, %v11430, 0.0
        %v11497 = vsel %vm11481, %v11430, 0.0
        %v11498 = vsel %vm11482, %v11430, 0.0
        %v11499 = vsel %vm11483, %v11430, 0.0
        %v11500 = vsel %vm11484, %v11430, 0.0
        %v11501 = vsel %vm11485, %v11430, 0.0
        %vm11502 = vcmp.eq.s32.totalorder %v11437, 0
        %vm11503 = vcmp.eq.s32.totalorder %v11437, 1
        %vm11504 = vcmp.eq.s32.totalorder %v11437, 2
        %vm11505 = vcmp.eq.s32.totalorder %v11437, 3
        %vm11506 = vcmp.eq.s32.totalorder %v11437, 4
        %vm11507 = vcmp.eq.s32.totalorder %v11437, 5
        %vm11508 = vcmp.eq.s32.totalorder %v11437, 6
        %vm11509 = vcmp.eq.s32.totalorder %v11437, 7
        %vm11510 = vcmp.eq.s32.totalorder %v11437, 8
        %vm11511 = vcmp.eq.s32.totalorder %v11437, 9
        %vm11512 = vcmp.eq.s32.totalorder %v11437, 10
        %vm11513 = vcmp.eq.s32.totalorder %v11437, 11
        %vm11514 = vcmp.eq.s32.totalorder %v11437, 12
        %vm11515 = vcmp.eq.s32.totalorder %v11437, 13
        %vm11516 = vcmp.eq.s32.totalorder %v11437, 14
        %vm11517 = vcmp.eq.s32.totalorder %v11437, 15
        %v11518 = vsel %vm11502, %v11429, 0.0
        %v11519 = vsel %vm11503, %v11429, 0.0
        %v11520 = vsel %vm11504, %v11429, 0.0
        %v11521 = vsel %vm11505, %v11429, 0.0
        %v11522 = vsel %vm11506, %v11429, 0.0
        %v11523 = vsel %vm11507, %v11429, 0.0
        %v11524 = vsel %vm11508, %v11429, 0.0
        %v11525 = vsel %vm11509, %v11429, 0.0
        %v11526 = vsel %vm11510, %v11429, 0.0
        %v11527 = vsel %vm11511, %v11429, 0.0
        %v11528 = vsel %vm11512, %v11429, 0.0
        %v11529 = vsel %vm11513, %v11429, 0.0
        %v11530 = vsel %vm11514, %v11429, 0.0
        %v11531 = vsel %vm11515, %v11429, 0.0
        %v11532 = vsel %vm11516, %v11429, 0.0
        %v11533 = vsel %vm11517, %v11429, 0.0
        %v11534 = vadd.f32 %v11486, %v11518
        %v11535 = vadd.f32 %v11487, %v11519
        %v11536 = vadd.f32 %v11488, %v11520
        %v11537 = vadd.f32 %v11489, %v11521
        %v11538 = vadd.f32 %v11490, %v11522
        %v11539 = vadd.f32 %v11491, %v11523
        %v11540 = vadd.f32 %v11492, %v11524
        %v11541 = vadd.f32 %v11493, %v11525
        %v11542 = vadd.f32 %v11494, %v11526
        %v11543 = vadd.f32 %v11495, %v11527
        %v11544 = vadd.f32 %v11496, %v11528
        %v11545 = vadd.f32 %v11497, %v11529
        %v11546 = vadd.f32 %v11498, %v11530
        %v11547 = vadd.f32 %v11499, %v11531
        %v11548 = vadd.f32 %v11500, %v11532
        %v11549 = vadd.f32 %v11501, %v11533
        %v11550 = vld [vmem:[%s669] sm:$0xff]
        %v11551 = vld [vmem:[%s669 + $0x8] sm:$0xff]
        %v11552 = vld [vmem:[%s669 + $0x10] sm:$0xff]
        %v11553 = vld [vmem:[%s669 + $0x18] sm:$0xff]
        %v11554 = vld [vmem:[%s669 + $0x20] sm:$0xff]
        %v11555 = vld [vmem:[%s669 + $0x28] sm:$0xff]
        %v11556 = vld [vmem:[%s669 + $0x30] sm:$0xff]
        %v11557 = vld [vmem:[%s669 + $0x38] sm:$0xff]
        %v11559 = vsel %vm2197, %v11550, 0
        %v11562 = vsel %vm2197, %v11551, 0
        %v11565 = vsel %vm2197, %v11552, 0
        %v11568 = vsel %vm2197, %v11553, 0
        %v11571 = vsel %vm2197, %v11554, 0
        %v11574 = vsel %vm2197, %v11555, 0
        %v11577 = vsel %vm2197, %v11556, 0
        %v11580 = vsel %vm2197, %v11557, 0
        %11582 = vmatprep.subr.mxu0 0.0
        %11583 = vmatpush1.msra.mxu0 0.0
        %11584 = vmatprep.subr.mxu0 0.0
        %11585 = vmatpush1.msra.mxu0 0.0
        %11586 = vmatprep.subr.mxu0 0.0
        %11587 = vmatpush1.msra.mxu0 0.0
        %11588 = vmatprep.subr.mxu0 0.0
        %11589 = vmatpush1.msra.mxu0 0.0
        %11590 = vmatprep.subr.mxu0 0.0
        %11591 = vmatpush1.msra.mxu0 0.0
        %11592 = vmatprep.subr.mxu0 0.0
        %11593 = vmatpush1.msra.mxu0 0.0
        %11594 = vmatprep.subr.mxu0 0.0
        %11595 = vmatpush1.msra.mxu0 0.0
        %11596 = vmatprep.subr.mxu0 0.0
        %11597 = vmatpush1.msra.mxu0 0.0
        %11598 = vmatprep.subr.mxu0 0.0
        %11599 = vmatpush1.msra.mxu0 0.0
        %11600 = vmatprep.subr.mxu0 0.0
        %11601 = vmatpush1.msra.mxu0 0.0
        %11602 = vmatprep.subr.mxu0 0.0
        %11603 = vmatpush1.msra.mxu0 0.0
        %11604 = vmatprep.subr.mxu0 0.0
        %11605 = vmatpush1.msra.mxu0 0.0
        %11606 = vmatprep.subr.mxu0 0.0
        %11607 = vmatpush1.msra.mxu0 0.0
        %11608 = vmatprep.subr.mxu0 0.0
        %11609 = vmatpush1.msra.mxu0 0.0
        %11610 = vmatprep.subr.mxu0 0.0
        %11611 = vmatpush1.msra.mxu0 %v11469
        %11612 = vmatprep.subr.mxu0 0.0
        %11613 = vmatpush1.msra.mxu0 %v11468
        %11614 = vmatprep.subr.mxu0 0.0
        %11615 = vmatpush2.msra.mxu0 0.0
        %11616 = vmatprep.subr.mxu0 0.0
        %11617 = vmatpush2.msra.mxu0 0.0
        %11618 = vmatprep.subr.mxu0 0.0
        %11619 = vmatpush2.msra.mxu0 0.0
        %11620 = vmatprep.subr.mxu0 0.0
        %11621 = vmatpush2.msra.mxu0 0.0
        %11622 = vmatprep.subr.mxu0 0.0
        %11623 = vmatpush2.msra.mxu0 0.0
        %11624 = vmatprep.subr.mxu0 0.0
        %11625 = vmatpush2.msra.mxu0 0.0
        %11626 = vmatprep.subr.mxu0 0.0
        %11627 = vmatpush2.msra.mxu0 0.0
        %11628 = vmatprep.subr.mxu0 0.0
        %11629 = vmatpush2.msra.mxu0 0.0
        %11630 = vmatprep.subr.mxu0 0.0
        %11631 = vmatpush2.msra.mxu0 0.0
        %11632 = vmatprep.subr.mxu0 0.0
        %11633 = vmatpush2.msra.mxu0 0.0
        %11634 = vmatprep.subr.mxu0 0.0
        %11635 = vmatpush2.msra.mxu0 0.0
        %11636 = vmatprep.subr.mxu0 0.0
        %11637 = vmatpush2.msra.mxu0 0.0
        %11638 = vmatprep.subr.mxu0 0.0
        %11639 = vmatpush2.msra.mxu0 0.0
        %11640 = vmatprep.subr.mxu0 0.0
        %11641 = vmatpush2.msra.mxu0 0.0
        %11642 = vmatprep.subr.mxu0 0.0
        %11643 = vmatpush2.msra.mxu0 0.0
        %11644 = vmatprep.subr.mxu0 0.0
        %11645 = vmatpush2.msra.mxu0 0.0
        %11646 = vmatprep.mubr.f32.mxu0 0.0
        %11647 = vmatmul.mubr.f32.gmra.mxu0 %v11559
        %v11648 = vpop.f32.mrf.mxu0
        %v11649 = vadd.f32 0.0, %v11648
        %v11650 = vpop.f32.mrf.mxu0
        %11651 = vmatprep.mubr.f32.mxu0 0.0
        %11652 = vmatmul.mubr.f32.gmra.mxu0 %v11562
        %v11653 = vpop.f32.mrf.mxu0
        %v11654 = vadd.f32 0.0, %v11653
        %v11655 = vpop.f32.mrf.mxu0
        %11656 = vmatprep.mubr.f32.mxu0 0.0
        %11657 = vmatmul.mubr.f32.gmra.mxu0 %v11565
        %v11658 = vpop.f32.mrf.mxu0
        %v11659 = vadd.f32 0.0, %v11658
        %v11660 = vpop.f32.mrf.mxu0
        %11661 = vmatprep.mubr.f32.mxu0 0.0
        %11662 = vmatmul.mubr.f32.gmra.mxu0 %v11568
        %v11663 = vpop.f32.mrf.mxu0
        %v11664 = vadd.f32 0.0, %v11663
        %v11665 = vpop.f32.mrf.mxu0
        %11666 = vmatprep.mubr.f32.mxu0 0.0
        %11667 = vmatmul.mubr.f32.gmra.mxu0 %v11571
        %v11668 = vpop.f32.mrf.mxu0
        %v11669 = vadd.f32 0.0, %v11668
        %v11670 = vpop.f32.mrf.mxu0
        %11671 = vmatprep.mubr.f32.mxu0 0.0
        %11672 = vmatmul.mubr.f32.gmra.mxu0 %v11574
        %v11673 = vpop.f32.mrf.mxu0
        %v11674 = vadd.f32 0.0, %v11673
        %v11675 = vpop.f32.mrf.mxu0
        %11676 = vmatprep.mubr.f32.mxu0 0.0
        %11677 = vmatmul.mubr.f32.gmra.mxu0 %v11577
        %v11678 = vpop.f32.mrf.mxu0
        %v11679 = vadd.f32 0.0, %v11678
        %v11680 = vpop.f32.mrf.mxu0
        %11681 = vmatprep.mubr.f32.mxu0 0.0
        %11682 = vmatmul.mubr.f32.gmra.mxu0 %v11580
        %v11683 = vpop.f32.mrf.mxu0
        %v11684 = vadd.f32 0.0, %v11683
        %v11685 = vpop.f32.mrf.mxu0
        %11686 = vdwg.mxu0
        %v11695 = vcombine.high %v11649, %v11649
        %v11696 = vcombine.high %v11654, %v11654
        %v11697 = vcombine.high %v11659, %v11659
        %v11698 = vcombine.high %v11664, %v11664
        %v11699 = vcombine.high %v11669, %v11669
        %v11700 = vcombine.high %v11674, %v11674
        %v11701 = vcombine.high %v11679, %v11679
        %v11702 = vcombine.high %v11684, %v11684
        %v11711 = vlaneseq
        %v11712 = vshrl.u32 %v11711, 7
        %v11713 = vsub.s32 0, %v11712
        %v11714 = vrot.slane %v11534, %v11713
        %v11715 = vlaneseq
        %v11716 = vshrl.u32 %v11715, 7
        %v11717 = vsub.s32 0, %v11716
        %v11718 = vrot.slane %v11535, %v11717
        %v11719 = vlaneseq
        %v11720 = vshrl.u32 %v11719, 7
        %v11721 = vsub.s32 0, %v11720
        %v11722 = vrot.slane %v11536, %v11721
        %v11723 = vlaneseq
        %v11724 = vshrl.u32 %v11723, 7
        %v11725 = vsub.s32 0, %v11724
        %v11726 = vrot.slane %v11537, %v11725
        %v11727 = vlaneseq
        %v11728 = vshrl.u32 %v11727, 7
        %v11729 = vsub.s32 0, %v11728
        %v11730 = vrot.slane %v11538, %v11729
        %v11731 = vlaneseq
        %v11732 = vshrl.u32 %v11731, 7
        %v11733 = vsub.s32 0, %v11732
        %v11734 = vrot.slane %v11539, %v11733
        %v11735 = vlaneseq
        %v11736 = vshrl.u32 %v11735, 7
        %v11737 = vsub.s32 0, %v11736
        %v11738 = vrot.slane %v11540, %v11737
        %v11739 = vlaneseq
        %v11740 = vshrl.u32 %v11739, 7
        %v11741 = vsub.s32 0, %v11740
        %v11742 = vrot.slane %v11541, %v11741
        %v11743 = vlaneseq
        %v11744 = vshrl.u32 %v11743, 7
        %v11745 = vsub.s32 0, %v11744
        %v11746 = vrot.slane %v11542, %v11745
        %v11747 = vlaneseq
        %v11748 = vshrl.u32 %v11747, 7
        %v11749 = vsub.s32 0, %v11748
        %v11750 = vrot.slane %v11543, %v11749
        %v11751 = vlaneseq
        %v11752 = vshrl.u32 %v11751, 7
        %v11753 = vsub.s32 0, %v11752
        %v11754 = vrot.slane %v11544, %v11753
        %v11755 = vlaneseq
        %v11756 = vshrl.u32 %v11755, 7
        %v11757 = vsub.s32 0, %v11756
        %v11758 = vrot.slane %v11545, %v11757
        %v11759 = vlaneseq
        %v11760 = vshrl.u32 %v11759, 7
        %v11761 = vsub.s32 0, %v11760
        %v11762 = vrot.slane %v11546, %v11761
        %v11763 = vlaneseq
        %v11764 = vshrl.u32 %v11763, 7
        %v11765 = vsub.s32 0, %v11764
        %v11766 = vrot.slane %v11547, %v11765
        %v11767 = vlaneseq
        %v11768 = vshrl.u32 %v11767, 7
        %v11769 = vsub.s32 0, %v11768
        %v11770 = vrot.slane %v11548, %v11769
        %v11771 = vlaneseq
        %v11772 = vshrl.u32 %v11771, 7
        %v11773 = vsub.s32 0, %v11772
        %v11774 = vrot.slane %v11549, %v11773
        %v11775 = vmul.f32 %v11649, %v11714
        %v11776 = vmul.f32 %v11695, %v11718
        %v11777 = vmul.f32 %v11654, %v11722
        %v11778 = vmul.f32 %v11696, %v11726
        %v11779 = vmul.f32 %v11659, %v11730
        %v11780 = vmul.f32 %v11697, %v11734
        %v11781 = vmul.f32 %v11664, %v11738
        %v11782 = vmul.f32 %v11698, %v11742
        %v11783 = vmul.f32 %v11669, %v11746
        %v11784 = vmul.f32 %v11699, %v11750
        %v11785 = vmul.f32 %v11674, %v11754
        %v11786 = vmul.f32 %v11700, %v11758
        %v11787 = vmul.f32 %v11679, %v11762
        %v11788 = vmul.f32 %v11701, %v11766
        %v11789 = vmul.f32 %v11684, %v11770
        %v11790 = vmul.f32 %v11702, %v11774
        %v11791 = vsel %vm10650, %v11775, 0.0
        %v11792 = vsel %vm10650, %v11776, 0.0
        %v11793 = vadd.f32 %v11791, %v11792
        %v11794 = vsel %vm10650, %v11777, 0.0
        %v11795 = vadd.f32 %v11793, %v11794
        %v11796 = vsel %vm10650, %v11778, 0.0
        %v11797 = vadd.f32 %v11795, %v11796
        %v11798 = vsel %vm10650, %v11779, 0.0
        %v11799 = vadd.f32 %v11797, %v11798
        %v11800 = vsel %vm10650, %v11780, 0.0
        %v11801 = vadd.f32 %v11799, %v11800
        %v11802 = vsel %vm10650, %v11781, 0.0
        %v11803 = vadd.f32 %v11801, %v11802
        %v11804 = vsel %vm10650, %v11782, 0.0
        %v11805 = vadd.f32 %v11803, %v11804
        %v11806 = vsel %vm10650, %v11783, 0.0
        %v11807 = vadd.f32 %v11805, %v11806
        %v11808 = vsel %vm10650, %v11784, 0.0
        %v11809 = vadd.f32 %v11807, %v11808
        %v11810 = vsel %vm10650, %v11785, 0.0
        %v11811 = vadd.f32 %v11809, %v11810
        %v11812 = vsel %vm10650, %v11786, 0.0
        %v11813 = vadd.f32 %v11811, %v11812
        %v11814 = vsel %vm10650, %v11787, 0.0
        %v11815 = vadd.f32 %v11813, %v11814
        %v11816 = vsel %vm10650, %v11788, 0.0
        %v11817 = vadd.f32 %v11815, %v11816
        %v11818 = vsel %vm10650, %v11789, 0.0
        %v11819 = vadd.f32 %v11817, %v11818
        %v11820 = vsel %vm10650, %v11790, 0.0
        %v11821 = vadd.f32 %v11819, %v11820
        %11822 = vst [vmem:[%s673] sm:$0xf] %v11821
        %p11823 = scmp.lt.s32.totalorder %s33, 1
        %s11824 = scalar_select %p11823, %s33, 1
        %s11825 = smul.addr %s11824, 4
        %s11826 = scalar_lea.vmem %s15, %s11825
        // Predicated region
        $region129: #{spatial_transformer_forward.1} parent=79 // pred_check
          %p11827 = pneg %p376
        $region130: #{spatial_transformer_forward.1} parent=79 // pred_check_branch
          %11829 = sbr.rel (%p11827) target = $region132
        $region131: #{spatial_transformer_forward.1} parent=79 // pred_region
          _
        $region132: #{spatial_transformer_forward.1} parent=79 // pred_fallthru
          _
      $region80: #{spatial_transformer_forward.1} parent=5 // pred_fallthru
        _
      %p11830 = scmp.le.s32.totalorder 2, %s28
      // Predicated region
      $region133: #{spatial_transformer_forward.1} parent=5 // pred_check
        %p11831 = pneg %p11830
      $region134: #{spatial_transformer_forward.1} parent=5 // pred_check_branch
        %11833 = sbr.rel (%p11831) target = $region136
      $region135: #{spatial_transformer_forward.1} parent=5 // pred_region
        %s11834 = ssub.s32 %s28, 2
        // Predicated region
        $region137: #{spatial_transformer_forward.1} parent=135 // pred_check
          %p11835 = pneg %p382
        $region138: #{spatial_transformer_forward.1} parent=135 // pred_check_branch
          %11837 = sbr.rel (%p11835) target = $region140
        $region139: #{spatial_transformer_forward.1} parent=135 // pred_region
          %p11838 = scmp.lt.s32.totalorder %s34, 1
          %s11839 = scalar_select %p11838, %s34, 1
          %s11840 = smul.addr %s11839, 4
          %s11841 = scalar_lea.vmem %s15, %s11840
        $region140: #{spatial_transformer_forward.1} parent=135 // pred_fallthru
          _
      $region136: #{spatial_transformer_forward.1} parent=5 // pred_fallthru
        _
    $region6: #{spatial_transformer_forward.1} parent=1 // loop_footer
      %s32 = sadd.s32 1, %s28
    $region7: #{spatial_transformer_forward.1} parent=1 // loop_footer_branch
      %27 = sbr.rel target = $region3
    $region8: #{spatial_transformer_forward.1} parent=1 // loop_exit
      _
    %11842 = vsyncpa [#allocation7], 1
    %s11843 = scalar_lea.sflag [#allocation7], 1
    %11844 = vsyncpa %s11843, 1
    %11845 = vsyncpa [#allocation9], 1
    %11846 = vsyncpa [#allocation12], 1
    %11847 = vsyncpa [#allocation15], 1
    %11848 = vsyncpa [#allocation18], 1
    %11849 = vsyncpa [#allocation21], 1
    %11850 = vsyncpa [#allocation24], 1

</llo_original>
